<compile_context>
chip_gen: v7x
topology: tpu7x:2x2x1
jax: 0.10.0
libtpu: 0.0.40
codegen_flags: <defaults>
</compile_context>

<pallas_src>
import functools
import math

import jax
import jax.numpy as jnp
from jax.experimental import pallas as pl
from jax.experimental.pallas import tpu as pltpu


def _round_up(n, m):
    return ((n + m - 1) // m) * m


# --------------------------------------------------------------------------
# Kernel: one grid step == one batch element, full (S_pad, D_pad) slab in VMEM.
# --------------------------------------------------------------------------
def encoder_layer_kernel(x_ref,
                         wqkv_ref, bqkv_ref, woh_ref, bo_ref,
                         g1_ref, be1_ref,
                         w1_ref, b1_ref, w2_ref, b2_ref,
                         g2_ref, be2_ref,
                         o_ref, *,
                         n_heads, d_model, seq_len, n_layers, block_k):
    S_pad, D_pad = x_ref.shape[1], x_ref.shape[2]
    hd = d_model // n_heads
    hd_pad = woh_ref.shape[1]
    mm_dtype = wqkv_ref.dtype                    # bf16 (perf) or f32 (exact)
    exact = mm_dtype == jnp.float32
    scale = 1.0 / math.sqrt(hd)
    inv_d = 1.0 / d_model
    TK = block_k
    n_kb = S_pad // TK

    # Additive key-padding bias row: 0 for valid keys, -1e30 for padded keys.
    if S_pad != seq_len:
        key_bias = jnp.where(
            jax.lax.broadcasted_iota(jnp.int32, (1, S_pad), 1) < seq_len,
            0.0, -1e30).astype(jnp.float32)
    else:
        key_bias = None

    # Feature-column mask so LayerNorm stats cover only the real d_model cols.
    if D_pad != d_model:
        f_mask = (jax.lax.broadcasted_iota(jnp.int32, (1, D_pad), 1)
                  < d_model).astype(jnp.float32)
    else:
        f_mask = None

    def layer_norm(y, gamma, beta):
        mu = jnp.sum(y, axis=-1, keepdims=True) * inv_d
        diff = y - mu
        if f_mask is not None:
            diff = diff * f_mask          # padded cols -> 0 (keeps invariant)
        var = jnp.sum(diff * diff, axis=-1, keepdims=True) * inv_d
        return diff * jax.lax.rsqrt(var + 1e-5) * gamma + beta

    def one_layer(x):                     # x: (S_pad, D_pad) f32, padded cols == 0
        x_mm = x.astype(mm_dtype)

        # ---- multi-head self-attention, output projection folded per head ---
        attn = jnp.zeros((S_pad, D_pad), jnp.float32) + bo_ref[...]
        for h in range(n_heads):          # static unroll, n_heads is small
            # Fused Q|K|V projection: one wide (3*hd_pad-lane) MXU matmul.
            qkv = jnp.dot(x_mm, wqkv_ref[h],
                          preferred_element_type=jnp.float32) + bqkv_ref[h]
            q = (qkv[:, 0 * hd_pad:1 * hd_pad] * scale).astype(mm_dtype)
            k = qkv[:, 1 * hd_pad:2 * hd_pad].astype(mm_dtype)
            v = qkv[:, 2 * hd_pad:3 * hd_pad].astype(mm_dtype)

            # Flash-style online softmax over key blocks (O(S*TK) working set).
            m_i = jnp.full((S_pad, 1), -1e30, jnp.float32)
            l_i = jnp.zeros((S_pad, 1), jnp.float32)
            acc = jnp.zeros((S_pad, hd_pad), jnp.float32)
            for kb in range(n_kb):        # static unroll (n_kb small)
                k0 = kb * TK
                s = jax.lax.dot_general(
                    q, k[k0:k0 + TK, :], (((1,), (1,)), ((), ())),
                    preferred_element_type=jnp.float32)       # (S_pad, TK)
                if key_bias is not None:
                    s = s + key_bias[:, k0:k0 + TK]
                m_new = jnp.maximum(m_i, jnp.max(s, axis=-1, keepdims=True))
                alpha = jnp.exp(m_i - m_new)
                p = jnp.exp(s - m_new)
                l_i = alpha * l_i + jnp.sum(p, axis=-1, keepdims=True)
                acc = alpha * acc + jnp.dot(
                    p.astype(mm_dtype), v[k0:k0 + TK, :],
                    preferred_element_type=jnp.float32)
                m_i = m_new
            hv = acc * pl.reciprocal(l_i, approx=not exact)    # (S_pad, hd_pad)
            attn = attn + jnp.dot(hv.astype(mm_dtype), woh_ref[h],
                                  preferred_element_type=jnp.float32)

        # ---- residual + LayerNorm 1 (f32) -----------------------------------
        x1 = layer_norm(x + attn, g1_ref[...], be1_ref[...])

        # ---- FFN: Linear -> ReLU -> Linear ----------------------------------
        h1 = jnp.dot(x1.astype(mm_dtype), w1_ref[...],
                     preferred_element_type=jnp.float32) + b1_ref[...]
        h1 = jnp.maximum(h1, 0.0)
        h2 = jnp.dot(h1.astype(mm_dtype), w2_ref[...],
                     preferred_element_type=jnp.float32) + b2_ref[...]

        # ---- residual + LayerNorm 2 (f32) -----------------------------------
        return layer_norm(x1 + h2, g2_ref[...], be2_ref[...])

    x = x_ref[0]
    for _ in range(n_layers):             # static unroll: cross-layer visibility
        x = one_layer(x)
    o_ref[0] = x


# --------------------------------------------------------------------------
# Wrapper: pad to lane-dense layout, fuse per-head QKV, cast weights to bf16.
# --------------------------------------------------------------------------
def _prepare_params(params, n_heads, d_model, mm_dtype):
    (wq, bq, wk, bk, wv, bv, wo, bo,
     g1, be1, w1, b1, w2, b2, g2, be2) = params
    D = d_model
    hd = D // n_heads
    D_pad = _round_up(D, 128)
    hd_pad = _round_up(hd, 128)
    H = n_heads

    def split_heads_in(w, b):
        # w: (D, D) [in, out]; head h uses output columns h*hd:(h+1)*hd.
        wh = w.reshape(D, H, hd).transpose(1, 0, 2)          # (H, D, hd)
        wh = jnp.pad(wh, ((0, 0), (0, D_pad - D), (0, hd_pad - hd)))
        bh = jnp.pad(b.reshape(H, 1, hd), ((0, 0), (0, 0), (0, hd_pad - hd)))
        return wh, bh

    wqh, bqh = split_heads_in(wq, bq)
    wkh, bkh = split_heads_in(wk, bk)
    wvh, bvh = split_heads_in(wv, bv)
    # Fused per-head Q|K|V weight -> one wide projection matmul per head.
    wqkv = jnp.concatenate([wqh, wkh, wvh], axis=2).astype(mm_dtype)
    bqkv = jnp.concatenate([bqh, bkh, bvh], axis=2)          # f32 (post-matmul)

    # Output projection split per head: head h contributes rows h*hd:(h+1)*hd.
    woh = wo.reshape(H, hd, D)
    woh = jnp.pad(woh, ((0, 0), (0, hd_pad - hd), (0, D_pad - D))).astype(mm_dtype)

    pad_mat = lambda w: jnp.pad(w, ((0, D_pad - D), (0, D_pad - D)))
    pad_vec = lambda v: jnp.pad(v, ((0, 0), (0, D_pad - D)))

    prepared = (wqkv, bqkv, woh, pad_vec(bo),
                pad_vec(g1), pad_vec(be1),
                pad_mat(w1).astype(mm_dtype), pad_vec(b1),
                pad_mat(w2).astype(mm_dtype), pad_vec(b2),
                pad_vec(g2), pad_vec(be2))
    return prepared, D_pad, hd_pad


def _vmem_limit_bytes():
    cap = 64 * 1024 * 1024
    try:
        info = pltpu.get_tpu_info()
        cap = int(getattr(info, "vmem_capacity_bytes", cap)) or cap
    except Exception:
        pass
    # Leave headroom below physical; ~100 MiB on 128 MiB chips, ~56 MiB on v7x.
    return max(32 * 1024 * 1024, min(cap - 8 * 1024 * 1024, 100 * 1024 * 1024))


def encoder_layer_pallas(x, params, n_heads, n_layers=1,
                         matmul_dtype=jnp.bfloat16, block_k=512):
    B, S, D = x.shape
    assert D % n_heads == 0, "d_model must be divisible by n_heads"
    prepared, D_pad, hd_pad = _prepare_params(params, n_heads, D, matmul_dtype)

    # Sequence padding / key-block size: one block for short S, otherwise S is
    # padded to a multiple of block_k so flash key-tiles divide evenly.
    if S <= block_k:
        S_pad = _round_up(S, 8)
        tk = S_pad
    else:
        S_pad = _round_up(S, block_k)
        tk = block_k

    needs_pad = (S_pad != S) or (D_pad != D)
    x_p = jnp.pad(x, ((0, 0), (0, S_pad - S), (0, D_pad - D))) if needs_pad else x

    H = n_heads
    x_spec = pl.BlockSpec((1, S_pad, D_pad), lambda b: (b, 0, 0))

    def build(single_buffer_weights):
        wkw = dict(pipeline_mode=pl.Buffered(1)) if single_buffer_weights else {}
        c3 = lambda shape: pl.BlockSpec(shape, lambda b: (0, 0, 0), **wkw)
        c2 = lambda shape: pl.BlockSpec(shape, lambda b: (0, 0), **wkw)
        in_specs = [
            x_spec,
            c3((H, D_pad, 3 * hd_pad)), c3((H, 1, 3 * hd_pad)),   # Wqkv, bqkv
            c3((H, hd_pad, D_pad)), c2((1, D_pad)),               # Wo (per head), bo
            c2((1, D_pad)), c2((1, D_pad)),                       # gamma1, beta1
            c2((D_pad, D_pad)), c2((1, D_pad)),                   # W1, b1
            c2((D_pad, D_pad)), c2((1, D_pad)),                   # W2, b2
            c2((1, D_pad)), c2((1, D_pad)),                       # gamma2, beta2
        ]
        return pl.pallas_call(
            functools.partial(encoder_layer_kernel, n_heads=n_heads, d_model=D,
                              seq_len=S, n_layers=n_layers, block_k=tk),
            out_shape=jax.ShapeDtypeStruct((B, S_pad, D_pad), jnp.float32),
            grid_spec=pltpu.PrefetchScalarGridSpec(
                num_scalar_prefetch=0,
                grid=(B,),
                in_specs=in_specs,
                out_specs=x_spec),
            compiler_params=pltpu.CompilerParams(
                dimension_semantics=("parallel",),
                vmem_limit_bytes=_vmem_limit_bytes()),
        )

    try:
        out = build(True)(x_p, *prepared)
    except Exception:
        # TODO(synk): pl.Buffered(1) single-buffering of constant weight blocks
        # unsupported on this JAX build; fall back to default double-buffering.
        out = build(False)(x_p, *prepared)

    return out[:, :S, :D] if needs_pad else out


# ------------------------- pure-JAX reference ------------------------------
def encoder_layer_ref(x, params, n_heads):
    (wq, bq, wk, bk, wv, bv, wo, bo,
     g1, be1, w1, b1, w2, b2, g2, be2) = params
    B, S, D = x.shape
    hd = D // n_heads
    q = (x @ wq + bq).reshape(B, S, n_heads, hd).transpose(0, 2, 1, 3)
    k = (x @ wk + bk).reshape(B, S, n_heads, hd).transpose(0, 2, 1, 3)
    v = (x @ wv + bv).reshape(B, S, n_heads, hd).transpose(0, 2, 1, 3)
    s = jnp.einsum("bhqd,bhkd->bhqk", q, k) / math.sqrt(hd)
    p = jax.nn.softmax(s, axis=-1)
    a = jnp.einsum("bhqk,bhkd->bhqd", p, v).transpose(0, 2, 1, 3).reshape(B, S, D)
    a = a @ wo + bo

    def ln(y, g, b):
        mu = jnp.mean(y, axis=-1, keepdims=True)
        var = jnp.mean((y - mu) ** 2, axis=-1, keepdims=True)
        return (y - mu) * jax.lax.rsqrt(var + 1e-5) * g + b

    x = ln(x + a, g1, be1)
    h = jnp.maximum(x @ w1 + b1, 0.0)
    h = h @ w2 + b2
    return ln(x + h, g2, be2)


# ------------------------- parameter init ----------------------------------
def init_params(key, d_model):
    def linear(k, fan_in, fan_out):
        bound = 1.0 / math.sqrt(fan_in)
        kw, kb = jax.random.split(k)
        w = jax.random.uniform(kw, (fan_in, fan_out), jnp.float32, -bound, bound)
        b = jax.random.uniform(kb, (1, fan_out), jnp.float32, -bound, bound)
        return w, b

    keys = jax.random.split(key, 6)
    wq, bq = linear(keys[0], d_model, d_model)
    wk, bk = linear(keys[1], d_model, d_model)
    wv, bv = linear(keys[2], d_model, d_model)
    wo, bo = linear(keys[3], d_model, d_model)
    w1, b1 = linear(keys[4], d_model, d_model)
    w2, b2 = linear(keys[5], d_model, d_model)
    g1 = jnp.ones((1, d_model), jnp.float32)
    be1 = jnp.zeros((1, d_model), jnp.float32)
    g2 = jnp.ones((1, d_model), jnp.float32)
    be2 = jnp.zeros((1, d_model), jnp.float32)
    return (wq, bq, wk, bk, wv, bv, wo, bo,
            g1, be1, w1, b1, w2, b2, g2, be2)


if __name__ == "__main__":
    # Small config consistent with the module (d_model divisible by n_heads;
    # the PyTorch default 512/6 is not, so we use a clean small config).
    B, S, D = 2, 8, 32
    n_heads = 4

    key = jax.random.PRNGKey(0)
    kx, kp = jax.random.split(key)
    x = jax.random.normal(kx, (B, S, D), jnp.float32)
    params = init_params(kp, D)

    ref = encoder_layer_ref(x, params, n_heads)

    # Exact-precision path (f32 matmuls) — tight semantic check of the kernel.
    out_f32 = jax.block_until_ready(
        encoder_layer_pallas(x, params, n_heads, matmul_dtype=jnp.float32))
    assert out_f32.shape == (B, S, D)
    assert jnp.allclose(out_f32, ref, atol=1e-4, rtol=1e-4), "f32 path mismatch"

    # Performance path: bf16 MXU operands, f32 accumulation / softmax / LN.
    out_bf16 = jax.block_until_ready(encoder_layer_pallas(x, params, n_heads))
    assert out_bf16.shape == (B, S, D)
    assert jnp.allclose(out_bf16, ref, atol=2e-2, rtol=2e-2), "bf16 path mismatch"

    # Fused multi-layer variant (same shared layer applied 3x inside one
    # pallas_call: activation and weights stay resident in VMEM).
    n_layers = 3
    out_stack = jax.block_until_ready(
        encoder_layer_pallas(x, params, n_heads, n_layers=n_layers))
    ref_stack = x
    for _ in range(n_layers):
        ref_stack = encoder_layer_ref(ref_stack, params, n_heads)
    assert jnp.allclose(out_stack, ref_stack, atol=5e-2, rtol=5e-2), \
        "fused-stack mismatch"

    print("KERNEL_OK")
</pallas_src>

<mosaic_0001>
module attributes {stable_mosaic.version = 11 : i64} {
  func.func @encoder_layer_kernel(%arg0: i32, %arg1: memref<1x8x128xf32, #tpu.memory_space<vmem>>, %arg2: memref<4x128x384xf32, #tpu.memory_space<vmem>>, %arg3: memref<4x1x384xf32, #tpu.memory_space<vmem>>, %arg4: memref<4x128x128xf32, #tpu.memory_space<vmem>>, %arg5: memref<1x128xf32, #tpu.memory_space<vmem>>, %arg6: memref<1x128xf32, #tpu.memory_space<vmem>>, %arg7: memref<1x128xf32, #tpu.memory_space<vmem>>, %arg8: memref<128x128xf32, #tpu.memory_space<vmem>>, %arg9: memref<1x128xf32, #tpu.memory_space<vmem>>, %arg10: memref<128x128xf32, #tpu.memory_space<vmem>>, %arg11: memref<1x128xf32, #tpu.memory_space<vmem>>, %arg12: memref<1x128xf32, #tpu.memory_space<vmem>>, %arg13: memref<1x128xf32, #tpu.memory_space<vmem>>, %arg14: memref<1x8x128xf32, #tpu.memory_space<vmem>>) attributes {dimension_semantics = [#tpu.dimension_semantics<parallel>], iteration_bounds = array<i64: 2>, scalar_prefetch = 0 : i64, scratch_operands = 0 : i64, tpu.core_type = #tpu.core_type<tc>, window_params = [{transform_indices = @transform_0, window_bounds = array<i64: 1, 8, 128>}, {pipeline_mode = #tpu.pipeline_mode<synchronous>, transform_indices = @transform_1, window_bounds = array<i64: 4, 128, 384>}, {pipeline_mode = #tpu.pipeline_mode<synchronous>, transform_indices = @transform_2, window_bounds = array<i64: 4, 1, 384>}, {pipeline_mode = #tpu.pipeline_mode<synchronous>, transform_indices = @transform_3, window_bounds = array<i64: 4, 128, 128>}, {pipeline_mode = #tpu.pipeline_mode<synchronous>, transform_indices = @transform_4, window_bounds = array<i64: 1, 128>}, {pipeline_mode = #tpu.pipeline_mode<synchronous>, transform_indices = @transform_5, window_bounds = array<i64: 1, 128>}, {pipeline_mode = #tpu.pipeline_mode<synchronous>, transform_indices = @transform_6, window_bounds = array<i64: 1, 128>}, {pipeline_mode = #tpu.pipeline_mode<synchronous>, transform_indices = @transform_7, window_bounds = array<i64: 128, 128>}, {pipeline_mode = #tpu.pipeline_mode<synchronous>, transform_indices = @transform_8, window_bounds = array<i64: 1, 128>}, {pipeline_mode = #tpu.pipeline_mode<synchronous>, transform_indices = @transform_9, window_bounds = array<i64: 128, 128>}, {pipeline_mode = #tpu.pipeline_mode<synchronous>, transform_indices = @transform_10, window_bounds = array<i64: 1, 128>}, {pipeline_mode = #tpu.pipeline_mode<synchronous>, transform_indices = @transform_11, window_bounds = array<i64: 1, 128>}, {pipeline_mode = #tpu.pipeline_mode<synchronous>, transform_indices = @transform_12, window_bounds = array<i64: 1, 128>}, {transform_indices = @transform_13, window_bounds = array<i64: 1, 8, 128>}]} {
    %0 = tpu.iota {dimensions = array<i32: 1>} : vector<1x128xi32>
    %c32_i32 = arith.constant 32 : i32
    %1 = vector.broadcast %c32_i32 : i32 to vector<1x128xi32>
    %2 = arith.cmpi slt, %0, %1 : vector<1x128xi32>
    %3 = arith.extui %2 : vector<1x128xi1> to vector<1x128xi32>
    %4 = arith.sitofp %3 : vector<1x128xi32> to vector<1x128xf32>
    %c0 = arith.constant 0 : index
    %c0_0 = arith.constant 0 : index
    %c0_1 = arith.constant 0 : index
    %5 = vector.load %arg1[%c0, %c0_0, %c0_1] : memref<1x8x128xf32, #tpu.memory_space<vmem>>, vector<1x8x128xf32>
    %6 = vector.shape_cast %5 : vector<1x8x128xf32> to vector<8x128xf32>
    %cst = arith.constant 0.000000e+00 : f32
    %7 = vector.broadcast %cst : f32 to vector<8x128xf32>
    %c0_2 = arith.constant 0 : index
    %c0_3 = arith.constant 0 : index
    %8 = vector.load %arg5[%c0_2, %c0_3] : memref<1x128xf32, #tpu.memory_space<vmem>>, vector<1x128xf32>
    %9 = vector.broadcast %8 : vector<1x128xf32> to vector<8x128xf32>
    %10 = arith.addf %7, %9 : vector<8x128xf32>
    %c0_4 = arith.constant 0 : index
    %c0_5 = arith.constant 0 : index
    %c0_6 = arith.constant 0 : index
    %11 = vector.load %arg2[%c0_4, %c0_5, %c0_6] : memref<4x128x384xf32, #tpu.memory_space<vmem>>, vector<1x128x384xf32>
    %12 = vector.shape_cast %11 : vector<1x128x384xf32> to vector<128x384xf32>
    %cst_7 = arith.constant dense<0.000000e+00> : vector<8x384xf32>
    %13 = tpu.matmul %6, %12, %cst_7 {dimension_numbers = #tpu.dot_dimension_numbers<[1], [0], [0], [1], [0, 0, 1, 1], [], []>} : vector<8x128xf32>, vector<128x384xf32>, vector<8x384xf32> -> vector<8x384xf32>
    %c0_8 = arith.constant 0 : index
    %c0_9 = arith.constant 0 : index
    %c0_10 = arith.constant 0 : index
    %14 = vector.load %arg3[%c0_8, %c0_9, %c0_10] : memref<4x1x384xf32, #tpu.memory_space<vmem>>, vector<1x1x384xf32>
    %15 = vector.shape_cast %14 : vector<1x1x384xf32> to vector<1x384xf32>
    %16 = vector.broadcast %15 : vector<1x384xf32> to vector<8x384xf32>
    %17 = arith.addf %13, %16 : vector<8x384xf32>
    %18 = vector.extract_strided_slice %17 {offsets = [0, 0], sizes = [8, 128], strides = [1, 1]} : vector<8x384xf32> to vector<8x128xf32>
    %cst_11 = arith.constant 0.353553385 : f32
    %19 = vector.broadcast %cst_11 : f32 to vector<8x128xf32>
    %20 = arith.mulf %18, %19 : vector<8x128xf32>
    %21 = vector.extract_strided_slice %17 {offsets = [0, 128], sizes = [8, 128], strides = [1, 1]} : vector<8x384xf32> to vector<8x128xf32>
    %22 = vector.extract_strided_slice %17 {offsets = [0, 256], sizes = [8, 128], strides = [1, 1]} : vector<8x384xf32> to vector<8x128xf32>
    %cst_12 = arith.constant -1.000000e+30 : f32
    %23 = vector.broadcast %cst_12 : f32 to vector<8x1xf32>
    %cst_13 = arith.constant 0.000000e+00 : f32
    %24 = vector.broadcast %cst_13 : f32 to vector<8x1xf32>
    %cst_14 = arith.constant 0.000000e+00 : f32
    %25 = vector.broadcast %cst_14 : f32 to vector<8x128xf32>
    %cst_15 = arith.constant dense<0.000000e+00> : vector<8x8xf32>
    %26 = tpu.matmul %20, %21, %cst_15 {dimension_numbers = #tpu.dot_dimension_numbers<[1], [1], [0], [0], [0, 0, 1, 0], [], []>} : vector<8x128xf32>, vector<8x128xf32>, vector<8x8xf32> -> vector<8x8xf32>
    %cst_16 = arith.constant dense<0xFF800000> : vector<8xf32>
    %27 = vector.multi_reduction <maximumf>, %26, %cst_16 [1] : vector<8x8xf32> to vector<8xf32>
    %28 = vector.shape_cast %27 : vector<8xf32> to vector<8x1xf32>
    %29 = arith.maximumf %23, %28 : vector<8x1xf32>
    %30 = arith.subf %23, %29 : vector<8x1xf32>
    %31 = math.exp %30 : vector<8x1xf32>
    %32 = vector.broadcast %29 : vector<8x1xf32> to vector<8x8xf32>
    %33 = arith.subf %26, %32 : vector<8x8xf32>
    %34 = math.exp %33 : vector<8x8xf32>
    %35 = arith.mulf %31, %24 : vector<8x1xf32>
    %cst_17 = arith.constant dense<0.000000e+00> : vector<8xf32>
    %36 = vector.multi_reduction <add>, %34, %cst_17 [1] : vector<8x8xf32> to vector<8xf32>
    %37 = vector.shape_cast %36 : vector<8xf32> to vector<8x1xf32>
    %38 = arith.addf %35, %37 : vector<8x1xf32>
    %39 = vector.broadcast %31 : vector<8x1xf32> to vector<8x128xf32>
    %40 = arith.mulf %39, %25 : vector<8x128xf32>
    %cst_18 = arith.constant dense<0.000000e+00> : vector<8x128xf32>
    %41 = tpu.matmul %34, %22, %cst_18 {dimension_numbers = #tpu.dot_dimension_numbers<[1], [0], [0], [1], [0, 0, 1, 1], [], []>} : vector<8x8xf32>, vector<8x128xf32>, vector<8x128xf32> -> vector<8x128xf32>
    %42 = arith.addf %40, %41 : vector<8x128xf32>
    %43 = tpu.reciprocal %38 : vector<8x1xf32> -> vector<8x1xf32>
    %44 = vector.broadcast %43 : vector<8x1xf32> to vector<8x128xf32>
    %45 = arith.mulf %42, %44 : vector<8x128xf32>
    %c0_19 = arith.constant 0 : index
    %c0_20 = arith.constant 0 : index
    %c0_21 = arith.constant 0 : index
    %46 = vector.load %arg4[%c0_19, %c0_20, %c0_21] : memref<4x128x128xf32, #tpu.memory_space<vmem>>, vector<1x128x128xf32>
    %47 = vector.shape_cast %46 : vector<1x128x128xf32> to vector<128x128xf32>
    %cst_22 = arith.constant dense<0.000000e+00> : vector<8x128xf32>
    %48 = tpu.matmul %45, %47, %cst_22 {dimension_numbers = #tpu.dot_dimension_numbers<[1], [0], [0], [1], [0, 0, 1, 1], [], []>} : vector<8x128xf32>, vector<128x128xf32>, vector<8x128xf32> -> vector<8x128xf32>
    %49 = arith.addf %10, %48 : vector<8x128xf32>
    %c1 = arith.constant 1 : index
    %c0_23 = arith.constant 0 : index
    %c0_24 = arith.constant 0 : index
    %50 = vector.load %arg2[%c1, %c0_23, %c0_24] : memref<4x128x384xf32, #tpu.memory_space<vmem>>, vector<1x128x384xf32>
    %51 = vector.shape_cast %50 : vector<1x128x384xf32> to vector<128x384xf32>
    %cst_25 = arith.constant dense<0.000000e+00> : vector<8x384xf32>
    %52 = tpu.matmul %6, %51, %cst_25 {dimension_numbers = #tpu.dot_dimension_numbers<[1], [0], [0], [1], [0, 0, 1, 1], [], []>} : vector<8x128xf32>, vector<128x384xf32>, vector<8x384xf32> -> vector<8x384xf32>
    %c1_26 = arith.constant 1 : index
    %c0_27 = arith.constant 0 : index
    %c0_28 = arith.constant 0 : index
    %53 = vector.load %arg3[%c1_26, %c0_27, %c0_28] : memref<4x1x384xf32, #tpu.memory_space<vmem>>, vector<1x1x384xf32>
    %54 = vector.shape_cast %53 : vector<1x1x384xf32> to vector<1x384xf32>
    %55 = vector.broadcast %54 : vector<1x384xf32> to vector<8x384xf32>
    %56 = arith.addf %52, %55 : vector<8x384xf32>
    %57 = vector.extract_strided_slice %56 {offsets = [0, 0], sizes = [8, 128], strides = [1, 1]} : vector<8x384xf32> to vector<8x128xf32>
    %cst_29 = arith.constant 0.353553385 : f32
    %58 = vector.broadcast %cst_29 : f32 to vector<8x128xf32>
    %59 = arith.mulf %57, %58 : vector<8x128xf32>
    %60 = vector.extract_strided_slice %56 {offsets = [0, 128], sizes = [8, 128], strides = [1, 1]} : vector<8x384xf32> to vector<8x128xf32>
    %61 = vector.extract_strided_slice %56 {offsets = [0, 256], sizes = [8, 128], strides = [1, 1]} : vector<8x384xf32> to vector<8x128xf32>
    %cst_30 = arith.constant -1.000000e+30 : f32
    %62 = vector.broadcast %cst_30 : f32 to vector<8x1xf32>
    %cst_31 = arith.constant 0.000000e+00 : f32
    %63 = vector.broadcast %cst_31 : f32 to vector<8x1xf32>
    %cst_32 = arith.constant 0.000000e+00 : f32
    %64 = vector.broadcast %cst_32 : f32 to vector<8x128xf32>
    %cst_33 = arith.constant dense<0.000000e+00> : vector<8x8xf32>
    %65 = tpu.matmul %59, %60, %cst_33 {dimension_numbers = #tpu.dot_dimension_numbers<[1], [1], [0], [0], [0, 0, 1, 0], [], []>} : vector<8x128xf32>, vector<8x128xf32>, vector<8x8xf32> -> vector<8x8xf32>
    %cst_34 = arith.constant dense<0xFF800000> : vector<8xf32>
    %66 = vector.multi_reduction <maximumf>, %65, %cst_34 [1] : vector<8x8xf32> to vector<8xf32>
    %67 = vector.shape_cast %66 : vector<8xf32> to vector<8x1xf32>
    %68 = arith.maximumf %62, %67 : vector<8x1xf32>
    %69 = arith.subf %62, %68 : vector<8x1xf32>
    %70 = math.exp %69 : vector<8x1xf32>
    %71 = vector.broadcast %68 : vector<8x1xf32> to vector<8x8xf32>
    %72 = arith.subf %65, %71 : vector<8x8xf32>
    %73 = math.exp %72 : vector<8x8xf32>
    %74 = arith.mulf %70, %63 : vector<8x1xf32>
    %cst_35 = arith.constant dense<0.000000e+00> : vector<8xf32>
    %75 = vector.multi_reduction <add>, %73, %cst_35 [1] : vector<8x8xf32> to vector<8xf32>
    %76 = vector.shape_cast %75 : vector<8xf32> to vector<8x1xf32>
    %77 = arith.addf %74, %76 : vector<8x1xf32>
    %78 = vector.broadcast %70 : vector<8x1xf32> to vector<8x128xf32>
    %79 = arith.mulf %78, %64 : vector<8x128xf32>
    %cst_36 = arith.constant dense<0.000000e+00> : vector<8x128xf32>
    %80 = tpu.matmul %73, %61, %cst_36 {dimension_numbers = #tpu.dot_dimension_numbers<[1], [0], [0], [1], [0, 0, 1, 1], [], []>} : vector<8x8xf32>, vector<8x128xf32>, vector<8x128xf32> -> vector<8x128xf32>
    %81 = arith.addf %79, %80 : vector<8x128xf32>
    %82 = tpu.reciprocal %77 : vector<8x1xf32> -> vector<8x1xf32>
    %83 = vector.broadcast %82 : vector<8x1xf32> to vector<8x128xf32>
    %84 = arith.mulf %81, %83 : vector<8x128xf32>
    %c1_37 = arith.constant 1 : index
    %c0_38 = arith.constant 0 : index
    %c0_39 = arith.constant 0 : index
    %85 = vector.load %arg4[%c1_37, %c0_38, %c0_39] : memref<4x128x128xf32, #tpu.memory_space<vmem>>, vector<1x128x128xf32>
    %86 = vector.shape_cast %85 : vector<1x128x128xf32> to vector<128x128xf32>
    %cst_40 = arith.constant dense<0.000000e+00> : vector<8x128xf32>
    %87 = tpu.matmul %84, %86, %cst_40 {dimension_numbers = #tpu.dot_dimension_numbers<[1], [0], [0], [1], [0, 0, 1, 1], [], []>} : vector<8x128xf32>, vector<128x128xf32>, vector<8x128xf32> -> vector<8x128xf32>
    %88 = arith.addf %49, %87 : vector<8x128xf32>
    %c2 = arith.constant 2 : index
    %c0_41 = arith.constant 0 : index
    %c0_42 = arith.constant 0 : index
    %89 = vector.load %arg2[%c2, %c0_41, %c0_42] : memref<4x128x384xf32, #tpu.memory_space<vmem>>, vector<1x128x384xf32>
    %90 = vector.shape_cast %89 : vector<1x128x384xf32> to vector<128x384xf32>
    %cst_43 = arith.constant dense<0.000000e+00> : vector<8x384xf32>
    %91 = tpu.matmul %6, %90, %cst_43 {dimension_numbers = #tpu.dot_dimension_numbers<[1], [0], [0], [1], [0, 0, 1, 1], [], []>} : vector<8x128xf32>, vector<128x384xf32>, vector<8x384xf32> -> vector<8x384xf32>
    %c2_44 = arith.constant 2 : index
    %c0_45 = arith.constant 0 : index
    %c0_46 = arith.constant 0 : index
    %92 = vector.load %arg3[%c2_44, %c0_45, %c0_46] : memref<4x1x384xf32, #tpu.memory_space<vmem>>, vector<1x1x384xf32>
    %93 = vector.shape_cast %92 : vector<1x1x384xf32> to vector<1x384xf32>
    %94 = vector.broadcast %93 : vector<1x384xf32> to vector<8x384xf32>
    %95 = arith.addf %91, %94 : vector<8x384xf32>
    %96 = vector.extract_strided_slice %95 {offsets = [0, 0], sizes = [8, 128], strides = [1, 1]} : vector<8x384xf32> to vector<8x128xf32>
    %cst_47 = arith.constant 0.353553385 : f32
    %97 = vector.broadcast %cst_47 : f32 to vector<8x128xf32>
    %98 = arith.mulf %96, %97 : vector<8x128xf32>
    %99 = vector.extract_strided_slice %95 {offsets = [0, 128], sizes = [8, 128], strides = [1, 1]} : vector<8x384xf32> to vector<8x128xf32>
    %100 = vector.extract_strided_slice %95 {offsets = [0, 256], sizes = [8, 128], strides = [1, 1]} : vector<8x384xf32> to vector<8x128xf32>
    %cst_48 = arith.constant -1.000000e+30 : f32
    %101 = vector.broadcast %cst_48 : f32 to vector<8x1xf32>
    %cst_49 = arith.constant 0.000000e+00 : f32
    %102 = vector.broadcast %cst_49 : f32 to vector<8x1xf32>
    %cst_50 = arith.constant 0.000000e+00 : f32
    %103 = vector.broadcast %cst_50 : f32 to vector<8x128xf32>
    %cst_51 = arith.constant dense<0.000000e+00> : vector<8x8xf32>
    %104 = tpu.matmul %98, %99, %cst_51 {dimension_numbers = #tpu.dot_dimension_numbers<[1], [1], [0], [0], [0, 0, 1, 0], [], []>} : vector<8x128xf32>, vector<8x128xf32>, vector<8x8xf32> -> vector<8x8xf32>
    %cst_52 = arith.constant dense<0xFF800000> : vector<8xf32>
    %105 = vector.multi_reduction <maximumf>, %104, %cst_52 [1] : vector<8x8xf32> to vector<8xf32>
    %106 = vector.shape_cast %105 : vector<8xf32> to vector<8x1xf32>
    %107 = arith.maximumf %101, %106 : vector<8x1xf32>
    %108 = arith.subf %101, %107 : vector<8x1xf32>
    %109 = math.exp %108 : vector<8x1xf32>
    %110 = vector.broadcast %107 : vector<8x1xf32> to vector<8x8xf32>
    %111 = arith.subf %104, %110 : vector<8x8xf32>
    %112 = math.exp %111 : vector<8x8xf32>
    %113 = arith.mulf %109, %102 : vector<8x1xf32>
    %cst_53 = arith.constant dense<0.000000e+00> : vector<8xf32>
    %114 = vector.multi_reduction <add>, %112, %cst_53 [1] : vector<8x8xf32> to vector<8xf32>
    %115 = vector.shape_cast %114 : vector<8xf32> to vector<8x1xf32>
    %116 = arith.addf %113, %115 : vector<8x1xf32>
    %117 = vector.broadcast %109 : vector<8x1xf32> to vector<8x128xf32>
    %118 = arith.mulf %117, %103 : vector<8x128xf32>
    %cst_54 = arith.constant dense<0.000000e+00> : vector<8x128xf32>
    %119 = tpu.matmul %112, %100, %cst_54 {dimension_numbers = #tpu.dot_dimension_numbers<[1], [0], [0], [1], [0, 0, 1, 1], [], []>} : vector<8x8xf32>, vector<8x128xf32>, vector<8x128xf32> -> vector<8x128xf32>
    %120 = arith.addf %118, %119 : vector<8x128xf32>
    %121 = tpu.reciprocal %116 : vector<8x1xf32> -> vector<8x1xf32>
    %122 = vector.broadcast %121 : vector<8x1xf32> to vector<8x128xf32>
    %123 = arith.mulf %120, %122 : vector<8x128xf32>
    %c2_55 = arith.constant 2 : index
    %c0_56 = arith.constant 0 : index
    %c0_57 = arith.constant 0 : index
    %124 = vector.load %arg4[%c2_55, %c0_56, %c0_57] : memref<4x128x128xf32, #tpu.memory_space<vmem>>, vector<1x128x128xf32>
    %125 = vector.shape_cast %124 : vector<1x128x128xf32> to vector<128x128xf32>
    %cst_58 = arith.constant dense<0.000000e+00> : vector<8x128xf32>
    %126 = tpu.matmul %123, %125, %cst_58 {dimension_numbers = #tpu.dot_dimension_numbers<[1], [0], [0], [1], [0, 0, 1, 1], [], []>} : vector<8x128xf32>, vector<128x128xf32>, vector<8x128xf32> -> vector<8x128xf32>
    %127 = arith.addf %88, %126 : vector<8x128xf32>
    %c3 = arith.constant 3 : index
    %c0_59 = arith.constant 0 : index
    %c0_60 = arith.constant 0 : index
    %128 = vector.load %arg2[%c3, %c0_59, %c0_60] : memref<4x128x384xf32, #tpu.memory_space<vmem>>, vector<1x128x384xf32>
    %129 = vector.shape_cast %128 : vector<1x128x384xf32> to vector<128x384xf32>
    %cst_61 = arith.constant dense<0.000000e+00> : vector<8x384xf32>
    %130 = tpu.matmul %6, %129, %cst_61 {dimension_numbers = #tpu.dot_dimension_numbers<[1], [0], [0], [1], [0, 0, 1, 1], [], []>} : vector<8x128xf32>, vector<128x384xf32>, vector<8x384xf32> -> vector<8x384xf32>
    %c3_62 = arith.constant 3 : index
    %c0_63 = arith.constant 0 : index
    %c0_64 = arith.constant 0 : index
    %131 = vector.load %arg3[%c3_62, %c0_63, %c0_64] : memref<4x1x384xf32, #tpu.memory_space<vmem>>, vector<1x1x384xf32>
    %132 = vector.shape_cast %131 : vector<1x1x384xf32> to vector<1x384xf32>
    %133 = vector.broadcast %132 : vector<1x384xf32> to vector<8x384xf32>
    %134 = arith.addf %130, %133 : vector<8x384xf32>
    %135 = vector.extract_strided_slice %134 {offsets = [0, 0], sizes = [8, 128], strides = [1, 1]} : vector<8x384xf32> to vector<8x128xf32>
    %cst_65 = arith.constant 0.353553385 : f32
    %136 = vector.broadcast %cst_65 : f32 to vector<8x128xf32>
    %137 = arith.mulf %135, %136 : vector<8x128xf32>
    %138 = vector.extract_strided_slice %134 {offsets = [0, 128], sizes = [8, 128], strides = [1, 1]} : vector<8x384xf32> to vector<8x128xf32>
    %139 = vector.extract_strided_slice %134 {offsets = [0, 256], sizes = [8, 128], strides = [1, 1]} : vector<8x384xf32> to vector<8x128xf32>
    %cst_66 = arith.constant -1.000000e+30 : f32
    %140 = vector.broadcast %cst_66 : f32 to vector<8x1xf32>
    %cst_67 = arith.constant 0.000000e+00 : f32
    %141 = vector.broadcast %cst_67 : f32 to vector<8x1xf32>
    %cst_68 = arith.constant 0.000000e+00 : f32
    %142 = vector.broadcast %cst_68 : f32 to vector<8x128xf32>
    %cst_69 = arith.constant dense<0.000000e+00> : vector<8x8xf32>
    %143 = tpu.matmul %137, %138, %cst_69 {dimension_numbers = #tpu.dot_dimension_numbers<[1], [1], [0], [0], [0, 0, 1, 0], [], []>} : vector<8x128xf32>, vector<8x128xf32>, vector<8x8xf32> -> vector<8x8xf32>
    %cst_70 = arith.constant dense<0xFF800000> : vector<8xf32>
    %144 = vector.multi_reduction <maximumf>, %143, %cst_70 [1] : vector<8x8xf32> to vector<8xf32>
    %145 = vector.shape_cast %144 : vector<8xf32> to vector<8x1xf32>
    %146 = arith.maximumf %140, %145 : vector<8x1xf32>
    %147 = arith.subf %140, %146 : vector<8x1xf32>
    %148 = math.exp %147 : vector<8x1xf32>
    %149 = vector.broadcast %146 : vector<8x1xf32> to vector<8x8xf32>
    %150 = arith.subf %143, %149 : vector<8x8xf32>
    %151 = math.exp %150 : vector<8x8xf32>
    %152 = arith.mulf %148, %141 : vector<8x1xf32>
    %cst_71 = arith.constant dense<0.000000e+00> : vector<8xf32>
    %153 = vector.multi_reduction <add>, %151, %cst_71 [1] : vector<8x8xf32> to vector<8xf32>
    %154 = vector.shape_cast %153 : vector<8xf32> to vector<8x1xf32>
    %155 = arith.addf %152, %154 : vector<8x1xf32>
    %156 = vector.broadcast %148 : vector<8x1xf32> to vector<8x128xf32>
    %157 = arith.mulf %156, %142 : vector<8x128xf32>
    %cst_72 = arith.constant dense<0.000000e+00> : vector<8x128xf32>
    %158 = tpu.matmul %151, %139, %cst_72 {dimension_numbers = #tpu.dot_dimension_numbers<[1], [0], [0], [1], [0, 0, 1, 1], [], []>} : vector<8x8xf32>, vector<8x128xf32>, vector<8x128xf32> -> vector<8x128xf32>
    %159 = arith.addf %157, %158 : vector<8x128xf32>
    %160 = tpu.reciprocal %155 : vector<8x1xf32> -> vector<8x1xf32>
    %161 = vector.broadcast %160 : vector<8x1xf32> to vector<8x128xf32>
    %162 = arith.mulf %159, %161 : vector<8x128xf32>
    %c3_73 = arith.constant 3 : index
    %c0_74 = arith.constant 0 : index
    %c0_75 = arith.constant 0 : index
    %163 = vector.load %arg4[%c3_73, %c0_74, %c0_75] : memref<4x128x128xf32, #tpu.memory_space<vmem>>, vector<1x128x128xf32>
    %164 = vector.shape_cast %163 : vector<1x128x128xf32> to vector<128x128xf32>
    %cst_76 = arith.constant dense<0.000000e+00> : vector<8x128xf32>
    %165 = tpu.matmul %162, %164, %cst_76 {dimension_numbers = #tpu.dot_dimension_numbers<[1], [0], [0], [1], [0, 0, 1, 1], [], []>} : vector<8x128xf32>, vector<128x128xf32>, vector<8x128xf32> -> vector<8x128xf32>
    %166 = arith.addf %127, %165 : vector<8x128xf32>
    %167 = arith.addf %6, %166 : vector<8x128xf32>
    %c0_77 = arith.constant 0 : index
    %c0_78 = arith.constant 0 : index
    %168 = vector.load %arg6[%c0_77, %c0_78] : memref<1x128xf32, #tpu.memory_space<vmem>>, vector<1x128xf32>
    %c0_79 = arith.constant 0 : index
    %c0_80 = arith.constant 0 : index
    %169 = vector.load %arg7[%c0_79, %c0_80] : memref<1x128xf32, #tpu.memory_space<vmem>>, vector<1x128xf32>
    %cst_81 = arith.constant dense<0.000000e+00> : vector<8xf32>
    %170 = vector.multi_reduction <add>, %167, %cst_81 [1] : vector<8x128xf32> to vector<8xf32>
    %171 = vector.shape_cast %170 : vector<8xf32> to vector<8x1xf32>
    %cst_82 = arith.constant 3.125000e-02 : f32
    %172 = vector.broadcast %cst_82 : f32 to vector<8x1xf32>
    %173 = arith.mulf %171, %172 : vector<8x1xf32>
    %174 = vector.broadcast %173 : vector<8x1xf32> to vector<8x128xf32>
    %175 = arith.subf %167, %174 : vector<8x128xf32>
    %176 = vector.broadcast %4 : vector<1x128xf32> to vector<8x128xf32>
    %177 = arith.mulf %175, %176 : vector<8x128xf32>
    %178 = arith.mulf %177, %177 : vector<8x128xf32>
    %cst_83 = arith.constant dense<0.000000e+00> : vector<8xf32>
    %179 = vector.multi_reduction <add>, %178, %cst_83 [1] : vector<8x128xf32> to vector<8xf32>
    %180 = vector.shape_cast %179 : vector<8xf32> to vector<8x1xf32>
    %cst_84 = arith.constant 3.125000e-02 : f32
    %181 = vector.broadcast %cst_84 : f32 to vector<8x1xf32>
    %182 = arith.mulf %180, %181 : vector<8x1xf32>
    %cst_85 = arith.constant 9.99999974E-6 : f32
    %183 = vector.broadcast %cst_85 : f32 to vector<8x1xf32>
    %184 = arith.addf %182, %183 : vector<8x1xf32>
    %185 = math.rsqrt %184 : vector<8x1xf32>
    %186 = vector.broadcast %185 : vector<8x1xf32> to vector<8x128xf32>
    %187 = arith.mulf %177, %186 : vector<8x128xf32>
    %188 = vector.broadcast %168 : vector<1x128xf32> to vector<8x128xf32>
    %189 = arith.mulf %187, %188 : vector<8x128xf32>
    %190 = vector.broadcast %169 : vector<1x128xf32> to vector<8x128xf32>
    %191 = arith.addf %189, %190 : vector<8x128xf32>
    %c0_86 = arith.constant 0 : index
    %c0_87 = arith.constant 0 : index
    %192 = vector.load %arg8[%c0_86, %c0_87] : memref<128x128xf32, #tpu.memory_space<vmem>>, vector<128x128xf32>
    %cst_88 = arith.constant dense<0.000000e+00> : vector<8x128xf32>
    %193 = tpu.matmul %191, %192, %cst_88 {dimension_numbers = #tpu.dot_dimension_numbers<[1], [0], [0], [1], [0, 0, 1, 1], [], []>} : vector<8x128xf32>, vector<128x128xf32>, vector<8x128xf32> -> vector<8x128xf32>
    %c0_89 = arith.constant 0 : index
    %c0_90 = arith.constant 0 : index
    %194 = vector.load %arg9[%c0_89, %c0_90] : memref<1x128xf32, #tpu.memory_space<vmem>>, vector<1x128xf32>
    %195 = vector.broadcast %194 : vector<1x128xf32> to vector<8x128xf32>
    %196 = arith.addf %193, %195 : vector<8x128xf32>
    %cst_91 = arith.constant 0.000000e+00 : f32
    %197 = vector.broadcast %cst_91 : f32 to vector<8x128xf32>
    %198 = arith.maximumf %196, %197 : vector<8x128xf32>
    %c0_92 = arith.constant 0 : index
    %c0_93 = arith.constant 0 : index
    %199 = vector.load %arg10[%c0_92, %c0_93] : memref<128x128xf32, #tpu.memory_space<vmem>>, vector<128x128xf32>
    %cst_94 = arith.constant dense<0.000000e+00> : vector<8x128xf32>
    %200 = tpu.matmul %198, %199, %cst_94 {dimension_numbers = #tpu.dot_dimension_numbers<[1], [0], [0], [1], [0, 0, 1, 1], [], []>} : vector<8x128xf32>, vector<128x128xf32>, vector<8x128xf32> -> vector<8x128xf32>
    %c0_95 = arith.constant 0 : index
    %c0_96 = arith.constant 0 : index
    %201 = vector.load %arg11[%c0_95, %c0_96] : memref<1x128xf32, #tpu.memory_space<vmem>>, vector<1x128xf32>
    %202 = vector.broadcast %201 : vector<1x128xf32> to vector<8x128xf32>
    %203 = arith.addf %200, %202 : vector<8x128xf32>
    %204 = arith.addf %191, %203 : vector<8x128xf32>
    %c0_97 = arith.constant 0 : index
    %c0_98 = arith.constant 0 : index
    %205 = vector.load %arg12[%c0_97, %c0_98] : memref<1x128xf32, #tpu.memory_space<vmem>>, vector<1x128xf32>
    %c0_99 = arith.constant 0 : index
    %c0_100 = arith.constant 0 : index
    %206 = vector.load %arg13[%c0_99, %c0_100] : memref<1x128xf32, #tpu.memory_space<vmem>>, vector<1x128xf32>
    %cst_101 = arith.constant dense<0.000000e+00> : vector<8xf32>
    %207 = vector.multi_reduction <add>, %204, %cst_101 [1] : vector<8x128xf32> to vector<8xf32>
    %208 = vector.shape_cast %207 : vector<8xf32> to vector<8x1xf32>
    %cst_102 = arith.constant 3.125000e-02 : f32
    %209 = vector.broadcast %cst_102 : f32 to vector<8x1xf32>
    %210 = arith.mulf %208, %209 : vector<8x1xf32>
    %211 = vector.broadcast %210 : vector<8x1xf32> to vector<8x128xf32>
    %212 = arith.subf %204, %211 : vector<8x128xf32>
    %213 = vector.broadcast %4 : vector<1x128xf32> to vector<8x128xf32>
    %214 = arith.mulf %212, %213 : vector<8x128xf32>
    %215 = arith.mulf %214, %214 : vector<8x128xf32>
    %cst_103 = arith.constant dense<0.000000e+00> : vector<8xf32>
    %216 = vector.multi_reduction <add>, %215, %cst_103 [1] : vector<8x128xf32> to vector<8xf32>
    %217 = vector.shape_cast %216 : vector<8xf32> to vector<8x1xf32>
    %cst_104 = arith.constant 3.125000e-02 : f32
    %218 = vector.broadcast %cst_104 : f32 to vector<8x1xf32>
    %219 = arith.mulf %217, %218 : vector<8x1xf32>
    %cst_105 = arith.constant 9.99999974E-6 : f32
    %220 = vector.broadcast %cst_105 : f32 to vector<8x1xf32>
    %221 = arith.addf %219, %220 : vector<8x1xf32>
    %222 = math.rsqrt %221 : vector<8x1xf32>
    %223 = vector.broadcast %222 : vector<8x1xf32> to vector<8x128xf32>
    %224 = arith.mulf %214, %223 : vector<8x128xf32>
    %225 = vector.broadcast %205 : vector<1x128xf32> to vector<8x128xf32>
    %226 = arith.mulf %224, %225 : vector<8x128xf32>
    %227 = vector.broadcast %206 : vector<1x128xf32> to vector<8x128xf32>
    %228 = arith.addf %226, %227 : vector<8x128xf32>
    %c0_106 = arith.constant 0 : index
    %c0_107 = arith.constant 0 : index
    %c0_108 = arith.constant 0 : index
    %229 = vector.load %arg14[%c0_106, %c0_107, %c0_108] : memref<1x8x128xf32, #tpu.memory_space<vmem>>, vector<1x8x128xf32>
    %230 = vector.shape_cast %229 : vector<1x8x128xf32> to vector<8x128xf32>
    %231 = vector.shape_cast %228 : vector<8x128xf32> to vector<1x8x128xf32>
    tpu.vector_store %arg14[%c0_106, %c0_107, %c0_108], %231 {strides = array<i32>} : memref<1x8x128xf32, #tpu.memory_space<vmem>>, vector<1x8x128xf32>,
    return
  }
  func.func @transform_0(%arg0: i32) -> (i32, i32, i32) {
    %c0_i32 = arith.constant 0 : i32
    %c0_i32_0 = arith.constant 0 : i32
    %c0_i32_1 = arith.constant 0 : i32
    return %arg0, %c0_i32, %c0_i32_0 : i32, i32, i32
  }
  func.func @transform_1(%arg0: i32) -> (i32, i32, i32) {
    %c0_i32 = arith.constant 0 : i32
    %c0_i32_0 = arith.constant 0 : i32
    %c0_i32_1 = arith.constant 0 : i32
    %c0_i32_2 = arith.constant 0 : i32
    return %c0_i32, %c0_i32_0, %c0_i32_1 : i32, i32, i32
  }
  func.func @transform_2(%arg0: i32) -> (i32, i32, i32) {
    %c0_i32 = arith.constant 0 : i32
    %c0_i32_0 = arith.constant 0 : i32
    %c0_i32_1 = arith.constant 0 : i32
    %c0_i32_2 = arith.constant 0 : i32
    return %c0_i32, %c0_i32_0, %c0_i32_1 : i32, i32, i32
  }
  func.func @transform_3(%arg0: i32) -> (i32, i32, i32) {
    %c0_i32 = arith.constant 0 : i32
    %c0_i32_0 = arith.constant 0 : i32
    %c0_i32_1 = arith.constant 0 : i32
    %c0_i32_2 = arith.constant 0 : i32
    return %c0_i32, %c0_i32_0, %c0_i32_1 : i32, i32, i32
  }
  func.func @transform_4(%arg0: i32) -> (i32, i32) {
    %c0_i32 = arith.constant 0 : i32
    %c0_i32_0 = arith.constant 0 : i32
    %c0_i32_1 = arith.constant 0 : i32
    return %c0_i32, %c0_i32_0 : i32, i32
  }
  func.func @transform_5(%arg0: i32) -> (i32, i32) {
    %c0_i32 = arith.constant 0 : i32
    %c0_i32_0 = arith.constant 0 : i32
    %c0_i32_1 = arith.constant 0 : i32
    return %c0_i32, %c0_i32_0 : i32, i32
  }
  func.func @transform_6(%arg0: i32) -> (i32, i32) {
    %c0_i32 = arith.constant 0 : i32
    %c0_i32_0 = arith.constant 0 : i32
    %c0_i32_1 = arith.constant 0 : i32
    return %c0_i32, %c0_i32_0 : i32, i32
  }
  func.func @transform_7(%arg0: i32) -> (i32, i32) {
    %c0_i32 = arith.constant 0 : i32
    %c0_i32_0 = arith.constant 0 : i32
    %c0_i32_1 = arith.constant 0 : i32
    return %c0_i32, %c0_i32_0 : i32, i32
  }
  func.func @transform_8(%arg0: i32) -> (i32, i32) {
    %c0_i32 = arith.constant 0 : i32
    %c0_i32_0 = arith.constant 0 : i32
    %c0_i32_1 = arith.constant 0 : i32
    return %c0_i32, %c0_i32_0 : i32, i32
  }
  func.func @transform_9(%arg0: i32) -> (i32, i32) {
    %c0_i32 = arith.constant 0 : i32
    %c0_i32_0 = arith.constant 0 : i32
    %c0_i32_1 = arith.constant 0 : i32
    return %c0_i32, %c0_i32_0 : i32, i32
  }
  func.func @transform_10(%arg0: i32) -> (i32, i32) {
    %c0_i32 = arith.constant 0 : i32
    %c0_i32_0 = arith.constant 0 : i32
    %c0_i32_1 = arith.constant 0 : i32
    return %c0_i32, %c0_i32_0 : i32, i32
  }
  func.func @transform_11(%arg0: i32) -> (i32, i32) {
    %c0_i32 = arith.constant 0 : i32
    %c0_i32_0 = arith.constant 0 : i32
    %c0_i32_1 = arith.constant 0 : i32
    return %c0_i32, %c0_i32_0 : i32, i32
  }
  func.func @transform_12(%arg0: i32) -> (i32, i32) {
    %c0_i32 = arith.constant 0 : i32
    %c0_i32_0 = arith.constant 0 : i32
    %c0_i32_1 = arith.constant 0 : i32
    return %c0_i32, %c0_i32_0 : i32, i32
  }
  func.func @transform_13(%arg0: i32) -> (i32, i32, i32) {
    %c0_i32 = arith.constant 0 : i32
    %c0_i32_0 = arith.constant 0 : i32
    %c0_i32_1 = arith.constant 0 : i32
    return %arg0, %c0_i32, %c0_i32_0 : i32, i32, i32
  }
}

module attributes {stable_mosaic.version = 11 : i64} {
  func.func @encoder_layer_kernel(%arg0: i32, %arg1: memref<1x8x128xf32, #tpu.memory_space<vmem>>, %arg2: memref<4x128x384xf32, #tpu.memory_space<vmem>>, %arg3: memref<4x1x384xf32, #tpu.memory_space<vmem>>, %arg4: memref<4x128x128xf32, #tpu.memory_space<vmem>>, %arg5: memref<1x128xf32, #tpu.memory_space<vmem>>, %arg6: memref<1x128xf32, #tpu.memory_space<vmem>>, %arg7: memref<1x128xf32, #tpu.memory_space<vmem>>, %arg8: memref<128x128xf32, #tpu.memory_space<vmem>>, %arg9: memref<1x128xf32, #tpu.memory_space<vmem>>, %arg10: memref<128x128xf32, #tpu.memory_space<vmem>>, %arg11: memref<1x128xf32, #tpu.memory_space<vmem>>, %arg12: memref<1x128xf32, #tpu.memory_space<vmem>>, %arg13: memref<1x128xf32, #tpu.memory_space<vmem>>, %arg14: memref<1x8x128xf32, #tpu.memory_space<vmem>>) attributes {dimension_semantics = [#tpu.dimension_semantics<parallel>], iteration_bounds = array<i64: 2>, scalar_prefetch = 0 : i64, scratch_operands = 0 : i64, tpu.core_type = #tpu.core_type<tc>, window_params = [{transform_indices = @transform_0, window_bounds = array<i64: 1, 8, 128>}, {pipeline_mode = #tpu.pipeline_mode<synchronous>, transform_indices = @transform_1, window_bounds = array<i64: 4, 128, 384>}, {pipeline_mode = #tpu.pipeline_mode<synchronous>, transform_indices = @transform_2, window_bounds = array<i64: 4, 1, 384>}, {pipeline_mode = #tpu.pipeline_mode<synchronous>, transform_indices = @transform_3, window_bounds = array<i64: 4, 128, 128>}, {pipeline_mode = #tpu.pipeline_mode<synchronous>, transform_indices = @transform_4, window_bounds = array<i64: 1, 128>}, {pipeline_mode = #tpu.pipeline_mode<synchronous>, transform_indices = @transform_5, window_bounds = array<i64: 1, 128>}, {pipeline_mode = #tpu.pipeline_mode<synchronous>, transform_indices = @transform_6, window_bounds = array<i64: 1, 128>}, {pipeline_mode = #tpu.pipeline_mode<synchronous>, transform_indices = @transform_7, window_bounds = array<i64: 128, 128>}, {pipeline_mode = #tpu.pipeline_mode<synchronous>, transform_indices = @transform_8, window_bounds = array<i64: 1, 128>}, {pipeline_mode = #tpu.pipeline_mode<synchronous>, transform_indices = @transform_9, window_bounds = array<i64: 128, 128>}, {pipeline_mode = #tpu.pipeline_mode<synchronous>, transform_indices = @transform_10, window_bounds = array<i64: 1, 128>}, {pipeline_mode = #tpu.pipeline_mode<synchronous>, transform_indices = @transform_11, window_bounds = array<i64: 1, 128>}, {pipeline_mode = #tpu.pipeline_mode<synchronous>, transform_indices = @transform_12, window_bounds = array<i64: 1, 128>}, {transform_indices = @transform_13, window_bounds = array<i64: 1, 8, 128>}]} {
    %0 = tpu.iota {dimensions = array<i32: 1>} : vector<1x128xi32>
    %c32_i32 = arith.constant 32 : i32
    %1 = vector.broadcast %c32_i32 : i32 to vector<1x128xi32>
    %2 = arith.cmpi slt, %0, %1 : vector<1x128xi32>
    %3 = arith.extui %2 : vector<1x128xi1> to vector<1x128xi32>
    %4 = arith.sitofp %3 : vector<1x128xi32> to vector<1x128xf32>
    %c0 = arith.constant 0 : index
    %c0_0 = arith.constant 0 : index
    %c0_1 = arith.constant 0 : index
    %5 = vector.load %arg1[%c0, %c0_0, %c0_1] : memref<1x8x128xf32, #tpu.memory_space<vmem>>, vector<1x8x128xf32>
    %6 = vector.shape_cast %5 : vector<1x8x128xf32> to vector<8x128xf32>
    %cst = arith.constant 0.000000e+00 : f32
    %7 = vector.broadcast %cst : f32 to vector<8x128xf32>
    %c0_2 = arith.constant 0 : index
    %c0_3 = arith.constant 0 : index
    %8 = vector.load %arg5[%c0_2, %c0_3] : memref<1x128xf32, #tpu.memory_space<vmem>>, vector<1x128xf32>
    %9 = vector.broadcast %8 : vector<1x128xf32> to vector<8x128xf32>
    %10 = arith.addf %7, %9 : vector<8x128xf32>
    %c0_4 = arith.constant 0 : index
    %c0_5 = arith.constant 0 : index
    %c0_6 = arith.constant 0 : index
    %11 = vector.load %arg2[%c0_4, %c0_5, %c0_6] : memref<4x128x384xf32, #tpu.memory_space<vmem>>, vector<1x128x384xf32>
    %12 = vector.shape_cast %11 : vector<1x128x384xf32> to vector<128x384xf32>
    %cst_7 = arith.constant dense<0.000000e+00> : vector<8x384xf32>
    %13 = tpu.matmul %6, %12, %cst_7 {dimension_numbers = #tpu.dot_dimension_numbers<[1], [0], [0], [1], [0, 0, 1, 1], [], []>} : vector<8x128xf32>, vector<128x384xf32>, vector<8x384xf32> -> vector<8x384xf32>
    %c0_8 = arith.constant 0 : index
    %c0_9 = arith.constant 0 : index
    %c0_10 = arith.constant 0 : index
    %14 = vector.load %arg3[%c0_8, %c0_9, %c0_10] : memref<4x1x384xf32, #tpu.memory_space<vmem>>, vector<1x1x384xf32>
    %15 = vector.shape_cast %14 : vector<1x1x384xf32> to vector<1x384xf32>
    %16 = vector.broadcast %15 : vector<1x384xf32> to vector<8x384xf32>
    %17 = arith.addf %13, %16 : vector<8x384xf32>
    %18 = vector.extract_strided_slice %17 {offsets = [0, 0], sizes = [8, 128], strides = [1, 1]} : vector<8x384xf32> to vector<8x128xf32>
    %cst_11 = arith.constant 0.353553385 : f32
    %19 = vector.broadcast %cst_11 : f32 to vector<8x128xf32>
    %20 = arith.mulf %18, %19 : vector<8x128xf32>
    %21 = vector.extract_strided_slice %17 {offsets = [0, 128], sizes = [8, 128], strides = [1, 1]} : vector<8x384xf32> to vector<8x128xf32>
    %22 = vector.extract_strided_slice %17 {offsets = [0, 256], sizes = [8, 128], strides = [1, 1]} : vector<8x384xf32> to vector<8x128xf32>
    %cst_12 = arith.constant -1.000000e+30 : f32
    %23 = vector.broadcast %cst_12 : f32 to vector<8x1xf32>
    %cst_13 = arith.constant 0.000000e+00 : f32
    %24 = vector.broadcast %cst_13 : f32 to vector<8x1xf32>
    %cst_14 = arith.constant 0.000000e+00 : f32
    %25 = vector.broadcast %cst_14 : f32 to vector<8x128xf32>
    %cst_15 = arith.constant dense<0.000000e+00> : vector<8x8xf32>
    %26 = tpu.matmul %20, %21, %cst_15 {dimension_numbers = #tpu.dot_dimension_numbers<[1], [1], [0], [0], [0, 0, 1, 0], [], []>} : vector<8x128xf32>, vector<8x128xf32>, vector<8x8xf32> -> vector<8x8xf32>
    %cst_16 = arith.constant dense<0xFF800000> : vector<8xf32>
    %27 = vector.multi_reduction <maximumf>, %26, %cst_16 [1] : vector<8x8xf32> to vector<8xf32>
    %28 = vector.shape_cast %27 : vector<8xf32> to vector<8x1xf32>
    %29 = arith.maximumf %23, %28 : vector<8x1xf32>
    %30 = arith.subf %23, %29 : vector<8x1xf32>
    %31 = math.exp %30 : vector<8x1xf32>
    %32 = vector.broadcast %29 : vector<8x1xf32> to vector<8x8xf32>
    %33 = arith.subf %26, %32 : vector<8x8xf32>
    %34 = math.exp %33 : vector<8x8xf32>
    %35 = arith.mulf %31, %24 : vector<8x1xf32>
    %cst_17 = arith.constant dense<0.000000e+00> : vector<8xf32>
    %36 = vector.multi_reduction <add>, %34, %cst_17 [1] : vector<8x8xf32> to vector<8xf32>
    %37 = vector.shape_cast %36 : vector<8xf32> to vector<8x1xf32>
    %38 = arith.addf %35, %37 : vector<8x1xf32>
    %39 = vector.broadcast %31 : vector<8x1xf32> to vector<8x128xf32>
    %40 = arith.mulf %39, %25 : vector<8x128xf32>
    %cst_18 = arith.constant dense<0.000000e+00> : vector<8x128xf32>
    %41 = tpu.matmul %34, %22, %cst_18 {dimension_numbers = #tpu.dot_dimension_numbers<[1], [0], [0], [1], [0, 0, 1, 1], [], []>} : vector<8x8xf32>, vector<8x128xf32>, vector<8x128xf32> -> vector<8x128xf32>
    %42 = arith.addf %40, %41 : vector<8x128xf32>
    %43 = tpu.reciprocal %38 : vector<8x1xf32> -> vector<8x1xf32>
    %44 = vector.broadcast %43 : vector<8x1xf32> to vector<8x128xf32>
    %45 = arith.mulf %42, %44 : vector<8x128xf32>
    %c0_19 = arith.constant 0 : index
    %c0_20 = arith.constant 0 : index
    %c0_21 = arith.constant 0 : index
    %46 = vector.load %arg4[%c0_19, %c0_20, %c0_21] : memref<4x128x128xf32, #tpu.memory_space<vmem>>, vector<1x128x128xf32>
    %47 = vector.shape_cast %46 : vector<1x128x128xf32> to vector<128x128xf32>
    %cst_22 = arith.constant dense<0.000000e+00> : vector<8x128xf32>
    %48 = tpu.matmul %45, %47, %cst_22 {dimension_numbers = #tpu.dot_dimension_numbers<[1], [0], [0], [1], [0, 0, 1, 1], [], []>} : vector<8x128xf32>, vector<128x128xf32>, vector<8x128xf32> -> vector<8x128xf32>
    %49 = arith.addf %10, %48 : vector<8x128xf32>
    %c1 = arith.constant 1 : index
    %c0_23 = arith.constant 0 : index
    %c0_24 = arith.constant 0 : index
    %50 = vector.load %arg2[%c1, %c0_23, %c0_24] : memref<4x128x384xf32, #tpu.memory_space<vmem>>, vector<1x128x384xf32>
    %51 = vector.shape_cast %50 : vector<1x128x384xf32> to vector<128x384xf32>
    %cst_25 = arith.constant dense<0.000000e+00> : vector<8x384xf32>
    %52 = tpu.matmul %6, %51, %cst_25 {dimension_numbers = #tpu.dot_dimension_numbers<[1], [0], [0], [1], [0, 0, 1, 1], [], []>} : vector<8x128xf32>, vector<128x384xf32>, vector<8x384xf32> -> vector<8x384xf32>
    %c1_26 = arith.constant 1 : index
    %c0_27 = arith.constant 0 : index
    %c0_28 = arith.constant 0 : index
    %53 = vector.load %arg3[%c1_26, %c0_27, %c0_28] : memref<4x1x384xf32, #tpu.memory_space<vmem>>, vector<1x1x384xf32>
    %54 = vector.shape_cast %53 : vector<1x1x384xf32> to vector<1x384xf32>
    %55 = vector.broadcast %54 : vector<1x384xf32> to vector<8x384xf32>
    %56 = arith.addf %52, %55 : vector<8x384xf32>
    %57 = vector.extract_strided_slice %56 {offsets = [0, 0], sizes = [8, 128], strides = [1, 1]} : vector<8x384xf32> to vector<8x128xf32>
    %cst_29 = arith.constant 0.353553385 : f32
    %58 = vector.broadcast %cst_29 : f32 to vector<8x128xf32>
    %59 = arith.mulf %57, %58 : vector<8x128xf32>
    %60 = vector.extract_strided_slice %56 {offsets = [0, 128], sizes = [8, 128], strides = [1, 1]} : vector<8x384xf32> to vector<8x128xf32>
    %61 = vector.extract_strided_slice %56 {offsets = [0, 256], sizes = [8, 128], strides = [1, 1]} : vector<8x384xf32> to vector<8x128xf32>
    %cst_30 = arith.constant -1.000000e+30 : f32
    %62 = vector.broadcast %cst_30 : f32 to vector<8x1xf32>
    %cst_31 = arith.constant 0.000000e+00 : f32
    %63 = vector.broadcast %cst_31 : f32 to vector<8x1xf32>
    %cst_32 = arith.constant 0.000000e+00 : f32
    %64 = vector.broadcast %cst_32 : f32 to vector<8x128xf32>
    %cst_33 = arith.constant dense<0.000000e+00> : vector<8x8xf32>
    %65 = tpu.matmul %59, %60, %cst_33 {dimension_numbers = #tpu.dot_dimension_numbers<[1], [1], [0], [0], [0, 0, 1, 0], [], []>} : vector<8x128xf32>, vector<8x128xf32>, vector<8x8xf32> -> vector<8x8xf32>
    %cst_34 = arith.constant dense<0xFF800000> : vector<8xf32>
    %66 = vector.multi_reduction <maximumf>, %65, %cst_34 [1] : vector<8x8xf32> to vector<8xf32>
    %67 = vector.shape_cast %66 : vector<8xf32> to vector<8x1xf32>
    %68 = arith.maximumf %62, %67 : vector<8x1xf32>
    %69 = arith.subf %62, %68 : vector<8x1xf32>
    %70 = math.exp %69 : vector<8x1xf32>
    %71 = vector.broadcast %68 : vector<8x1xf32> to vector<8x8xf32>
    %72 = arith.subf %65, %71 : vector<8x8xf32>
    %73 = math.exp %72 : vector<8x8xf32>
    %74 = arith.mulf %70, %63 : vector<8x1xf32>
    %cst_35 = arith.constant dense<0.000000e+00> : vector<8xf32>
    %75 = vector.multi_reduction <add>, %73, %cst_35 [1] : vector<8x8xf32> to vector<8xf32>
    %76 = vector.shape_cast %75 : vector<8xf32> to vector<8x1xf32>
    %77 = arith.addf %74, %76 : vector<8x1xf32>
    %78 = vector.broadcast %70 : vector<8x1xf32> to vector<8x128xf32>
    %79 = arith.mulf %78, %64 : vector<8x128xf32>
    %cst_36 = arith.constant dense<0.000000e+00> : vector<8x128xf32>
    %80 = tpu.matmul %73, %61, %cst_36 {dimension_numbers = #tpu.dot_dimension_numbers<[1], [0], [0], [1], [0, 0, 1, 1], [], []>} : vector<8x8xf32>, vector<8x128xf32>, vector<8x128xf32> -> vector<8x128xf32>
    %81 = arith.addf %79, %80 : vector<8x128xf32>
    %82 = tpu.reciprocal %77 : vector<8x1xf32> -> vector<8x1xf32>
    %83 = vector.broadcast %82 : vector<8x1xf32> to vector<8x128xf32>
    %84 = arith.mulf %81, %83 : vector<8x128xf32>
    %c1_37 = arith.constant 1 : index
    %c0_38 = arith.constant 0 : index
    %c0_39 = arith.constant 0 : index
    %85 = vector.load %arg4[%c1_37, %c0_38, %c0_39] : memref<4x128x128xf32, #tpu.memory_space<vmem>>, vector<1x128x128xf32>
    %86 = vector.shape_cast %85 : vector<1x128x128xf32> to vector<128x128xf32>
    %cst_40 = arith.constant dense<0.000000e+00> : vector<8x128xf32>
    %87 = tpu.matmul %84, %86, %cst_40 {dimension_numbers = #tpu.dot_dimension_numbers<[1], [0], [0], [1], [0, 0, 1, 1], [], []>} : vector<8x128xf32>, vector<128x128xf32>, vector<8x128xf32> -> vector<8x128xf32>
    %88 = arith.addf %49, %87 : vector<8x128xf32>
    %c2 = arith.constant 2 : index
    %c0_41 = arith.constant 0 : index
    %c0_42 = arith.constant 0 : index
    %89 = vector.load %arg2[%c2, %c0_41, %c0_42] : memref<4x128x384xf32, #tpu.memory_space<vmem>>, vector<1x128x384xf32>
    %90 = vector.shape_cast %89 : vector<1x128x384xf32> to vector<128x384xf32>
    %cst_43 = arith.constant dense<0.000000e+00> : vector<8x384xf32>
    %91 = tpu.matmul %6, %90, %cst_43 {dimension_numbers = #tpu.dot_dimension_numbers<[1], [0], [0], [1], [0, 0, 1, 1], [], []>} : vector<8x128xf32>, vector<128x384xf32>, vector<8x384xf32> -> vector<8x384xf32>
    %c2_44 = arith.constant 2 : index
    %c0_45 = arith.constant 0 : index
    %c0_46 = arith.constant 0 : index
    %92 = vector.load %arg3[%c2_44, %c0_45, %c0_46] : memref<4x1x384xf32, #tpu.memory_space<vmem>>, vector<1x1x384xf32>
    %93 = vector.shape_cast %92 : vector<1x1x384xf32> to vector<1x384xf32>
    %94 = vector.broadcast %93 : vector<1x384xf32> to vector<8x384xf32>
    %95 = arith.addf %91, %94 : vector<8x384xf32>
    %96 = vector.extract_strided_slice %95 {offsets = [0, 0], sizes = [8, 128], strides = [1, 1]} : vector<8x384xf32> to vector<8x128xf32>
    %cst_47 = arith.constant 0.353553385 : f32
    %97 = vector.broadcast %cst_47 : f32 to vector<8x128xf32>
    %98 = arith.mulf %96, %97 : vector<8x128xf32>
    %99 = vector.extract_strided_slice %95 {offsets = [0, 128], sizes = [8, 128], strides = [1, 1]} : vector<8x384xf32> to vector<8x128xf32>
    %100 = vector.extract_strided_slice %95 {offsets = [0, 256], sizes = [8, 128], strides = [1, 1]} : vector<8x384xf32> to vector<8x128xf32>
    %cst_48 = arith.constant -1.000000e+30 : f32
    %101 = vector.broadcast %cst_48 : f32 to vector<8x1xf32>
    %cst_49 = arith.constant 0.000000e+00 : f32
    %102 = vector.broadcast %cst_49 : f32 to vector<8x1xf32>
    %cst_50 = arith.constant 0.000000e+00 : f32
    %103 = vector.broadcast %cst_50 : f32 to vector<8x128xf32>
    %cst_51 = arith.constant dense<0.000000e+00> : vector<8x8xf32>
    %104 = tpu.matmul %98, %99, %cst_51 {dimension_numbers = #tpu.dot_dimension_numbers<[1], [1], [0], [0], [0, 0, 1, 0], [], []>} : vector<8x128xf32>, vector<8x128xf32>, vector<8x8xf32> -> vector<8x8xf32>
    %cst_52 = arith.constant dense<0xFF800000> : vector<8xf32>
    %105 = vector.multi_reduction <maximumf>, %104, %cst_52 [1] : vector<8x8xf32> to vector<8xf32>
    %106 = vector.shape_cast %105 : vector<8xf32> to vector<8x1xf32>
    %107 = arith.maximumf %101, %106 : vector<8x1xf32>
    %108 = arith.subf %101, %107 : vector<8x1xf32>
    %109 = math.exp %108 : vector<8x1xf32>
    %110 = vector.broadcast %107 : vector<8x1xf32> to vector<8x8xf32>
    %111 = arith.subf %104, %110 : vector<8x8xf32>
    %112 = math.exp %111 : vector<8x8xf32>
    %113 = arith.mulf %109, %102 : vector<8x1xf32>
    %cst_53 = arith.constant dense<0.000000e+00> : vector<8xf32>
    %114 = vector.multi_reduction <add>, %112, %cst_53 [1] : vector<8x8xf32> to vector<8xf32>
    %115 = vector.shape_cast %114 : vector<8xf32> to vector<8x1xf32>
    %116 = arith.addf %113, %115 : vector<8x1xf32>
    %117 = vector.broadcast %109 : vector<8x1xf32> to vector<8x128xf32>
    %118 = arith.mulf %117, %103 : vector<8x128xf32>
    %cst_54 = arith.constant dense<0.000000e+00> : vector<8x128xf32>
    %119 = tpu.matmul %112, %100, %cst_54 {dimension_numbers = #tpu.dot_dimension_numbers<[1], [0], [0], [1], [0, 0, 1, 1], [], []>} : vector<8x8xf32>, vector<8x128xf32>, vector<8x128xf32> -> vector<8x128xf32>
    %120 = arith.addf %118, %119 : vector<8x128xf32>
    %121 = tpu.reciprocal %116 : vector<8x1xf32> -> vector<8x1xf32>
    %122 = vector.broadcast %121 : vector<8x1xf32> to vector<8x128xf32>
    %123 = arith.mulf %120, %122 : vector<8x128xf32>
    %c2_55 = arith.constant 2 : index
    %c0_56 = arith.constant 0 : index
    %c0_57 = arith.constant 0 : index
    %124 = vector.load %arg4[%c2_55, %c0_56, %c0_57] : memref<4x128x128xf32, #tpu.memory_space<vmem>>, vector<1x128x128xf32>
    %125 = vector.shape_cast %124 : vector<1x128x128xf32> to vector<128x128xf32>
    %cst_58 = arith.constant dense<0.000000e+00> : vector<8x128xf32>
    %126 = tpu.matmul %123, %125, %cst_58 {dimension_numbers = #tpu.dot_dimension_numbers<[1], [0], [0], [1], [0, 0, 1, 1], [], []>} : vector<8x128xf32>, vector<128x128xf32>, vector<8x128xf32> -> vector<8x128xf32>
    %127 = arith.addf %88, %126 : vector<8x128xf32>
    %c3 = arith.constant 3 : index
    %c0_59 = arith.constant 0 : index
    %c0_60 = arith.constant 0 : index
    %128 = vector.load %arg2[%c3, %c0_59, %c0_60] : memref<4x128x384xf32, #tpu.memory_space<vmem>>, vector<1x128x384xf32>
    %129 = vector.shape_cast %128 : vector<1x128x384xf32> to vector<128x384xf32>
    %cst_61 = arith.constant dense<0.000000e+00> : vector<8x384xf32>
    %130 = tpu.matmul %6, %129, %cst_61 {dimension_numbers = #tpu.dot_dimension_numbers<[1], [0], [0], [1], [0, 0, 1, 1], [], []>} : vector<8x128xf32>, vector<128x384xf32>, vector<8x384xf32> -> vector<8x384xf32>
    %c3_62 = arith.constant 3 : index
    %c0_63 = arith.constant 0 : index
    %c0_64 = arith.constant 0 : index
    %131 = vector.load %arg3[%c3_62, %c0_63, %c0_64] : memref<4x1x384xf32, #tpu.memory_space<vmem>>, vector<1x1x384xf32>
    %132 = vector.shape_cast %131 : vector<1x1x384xf32> to vector<1x384xf32>
    %133 = vector.broadcast %132 : vector<1x384xf32> to vector<8x384xf32>
    %134 = arith.addf %130, %133 : vector<8x384xf32>
    %135 = vector.extract_strided_slice %134 {offsets = [0, 0], sizes = [8, 128], strides = [1, 1]} : vector<8x384xf32> to vector<8x128xf32>
    %cst_65 = arith.constant 0.353553385 : f32
    %136 = vector.broadcast %cst_65 : f32 to vector<8x128xf32>
    %137 = arith.mulf %135, %136 : vector<8x128xf32>
    %138 = vector.extract_strided_slice %134 {offsets = [0, 128], sizes = [8, 128], strides = [1, 1]} : vector<8x384xf32> to vector<8x128xf32>
    %139 = vector.extract_strided_slice %134 {offsets = [0, 256], sizes = [8, 128], strides = [1, 1]} : vector<8x384xf32> to vector<8x128xf32>
    %cst_66 = arith.constant -1.000000e+30 : f32
    %140 = vector.broadcast %cst_66 : f32 to vector<8x1xf32>
    %cst_67 = arith.constant 0.000000e+00 : f32
    %141 = vector.broadcast %cst_67 : f32 to vector<8x1xf32>
    %cst_68 = arith.constant 0.000000e+00 : f32
    %142 = vector.broadcast %cst_68 : f32 to vector<8x128xf32>
    %cst_69 = arith.constant dense<0.000000e+00> : vector<8x8xf32>
    %143 = tpu.matmul %137, %138, %cst_69 {dimension_numbers = #tpu.dot_dimension_numbers<[1], [1], [0], [0], [0, 0, 1, 0], [], []>} : vector<8x128xf32>, vector<8x128xf32>, vector<8x8xf32> -> vector<8x8xf32>
    %cst_70 = arith.constant dense<0xFF800000> : vector<8xf32>
    %144 = vector.multi_reduction <maximumf>, %143, %cst_70 [1] : vector<8x8xf32> to vector<8xf32>
    %145 = vector.shape_cast %144 : vector<8xf32> to vector<8x1xf32>
    %146 = arith.maximumf %140, %145 : vector<8x1xf32>
    %147 = arith.subf %140, %146 : vector<8x1xf32>
    %148 = math.exp %147 : vector<8x1xf32>
    %149 = vector.broadcast %146 : vector<8x1xf32> to vector<8x8xf32>
    %150 = arith.subf %143, %149 : vector<8x8xf32>
    %151 = math.exp %150 : vector<8x8xf32>
    %152 = arith.mulf %148, %141 : vector<8x1xf32>
    %cst_71 = arith.constant dense<0.000000e+00> : vector<8xf32>
    %153 = vector.multi_reduction <add>, %151, %cst_71 [1] : vector<8x8xf32> to vector<8xf32>
    %154 = vector.shape_cast %153 : vector<8xf32> to vector<8x1xf32>
    %155 = arith.addf %152, %154 : vector<8x1xf32>
    %156 = vector.broadcast %148 : vector<8x1xf32> to vector<8x128xf32>
    %157 = arith.mulf %156, %142 : vector<8x128xf32>
    %cst_72 = arith.constant dense<0.000000e+00> : vector<8x128xf32>
    %158 = tpu.matmul %151, %139, %cst_72 {dimension_numbers = #tpu.dot_dimension_numbers<[1], [0], [0], [1], [0, 0, 1, 1], [], []>} : vector<8x8xf32>, vector<8x128xf32>, vector<8x128xf32> -> vector<8x128xf32>
    %159 = arith.addf %157, %158 : vector<8x128xf32>
    %160 = tpu.reciprocal %155 : vector<8x1xf32> -> vector<8x1xf32>
    %161 = vector.broadcast %160 : vector<8x1xf32> to vector<8x128xf32>
    %162 = arith.mulf %159, %161 : vector<8x128xf32>
    %c3_73 = arith.constant 3 : index
    %c0_74 = arith.constant 0 : index
    %c0_75 = arith.constant 0 : index
    %163 = vector.load %arg4[%c3_73, %c0_74, %c0_75] : memref<4x128x128xf32, #tpu.memory_space<vmem>>, vector<1x128x128xf32>
    %164 = vector.shape_cast %163 : vector<1x128x128xf32> to vector<128x128xf32>
    %cst_76 = arith.constant dense<0.000000e+00> : vector<8x128xf32>
    %165 = tpu.matmul %162, %164, %cst_76 {dimension_numbers = #tpu.dot_dimension_numbers<[1], [0], [0], [1], [0, 0, 1, 1], [], []>} : vector<8x128xf32>, vector<128x128xf32>, vector<8x128xf32> -> vector<8x128xf32>
    %166 = arith.addf %127, %165 : vector<8x128xf32>
    %167 = arith.addf %6, %166 : vector<8x128xf32>
    %c0_77 = arith.constant 0 : index
    %c0_78 = arith.constant 0 : index
    %168 = vector.load %arg6[%c0_77, %c0_78] : memref<1x128xf32, #tpu.memory_space<vmem>>, vector<1x128xf32>
    %c0_79 = arith.constant 0 : index
    %c0_80 = arith.constant 0 : index
    %169 = vector.load %arg7[%c0_79, %c0_80] : memref<1x128xf32, #tpu.memory_space<vmem>>, vector<1x128xf32>
    %cst_81 = arith.constant dense<0.000000e+00> : vector<8xf32>
    %170 = vector.multi_reduction <add>, %167, %cst_81 [1] : vector<8x128xf32> to vector<8xf32>
    %171 = vector.shape_cast %170 : vector<8xf32> to vector<8x1xf32>
    %cst_82 = arith.constant 3.125000e-02 : f32
    %172 = vector.broadcast %cst_82 : f32 to vector<8x1xf32>
    %173 = arith.mulf %171, %172 : vector<8x1xf32>
    %174 = vector.broadcast %173 : vector<8x1xf32> to vector<8x128xf32>
    %175 = arith.subf %167, %174 : vector<8x128xf32>
    %176 = vector.broadcast %4 : vector<1x128xf32> to vector<8x128xf32>
    %177 = arith.mulf %175, %176 : vector<8x128xf32>
    %178 = arith.mulf %177, %177 : vector<8x128xf32>
    %cst_83 = arith.constant dense<0.000000e+00> : vector<8xf32>
    %179 = vector.multi_reduction <add>, %178, %cst_83 [1] : vector<8x128xf32> to vector<8xf32>
    %180 = vector.shape_cast %179 : vector<8xf32> to vector<8x1xf32>
    %cst_84 = arith.constant 3.125000e-02 : f32
    %181 = vector.broadcast %cst_84 : f32 to vector<8x1xf32>
    %182 = arith.mulf %180, %181 : vector<8x1xf32>
    %cst_85 = arith.constant 9.99999974E-6 : f32
    %183 = vector.broadcast %cst_85 : f32 to vector<8x1xf32>
    %184 = arith.addf %182, %183 : vector<8x1xf32>
    %185 = math.rsqrt %184 : vector<8x1xf32>
    %186 = vector.broadcast %185 : vector<8x1xf32> to vector<8x128xf32>
    %187 = arith.mulf %177, %186 : vector<8x128xf32>
    %188 = vector.broadcast %168 : vector<1x128xf32> to vector<8x128xf32>
    %189 = arith.mulf %187, %188 : vector<8x128xf32>
    %190 = vector.broadcast %169 : vector<1x128xf32> to vector<8x128xf32>
    %191 = arith.addf %189, %190 : vector<8x128xf32>
    %c0_86 = arith.constant 0 : index
    %c0_87 = arith.constant 0 : index
    %192 = vector.load %arg8[%c0_86, %c0_87] : memref<128x128xf32, #tpu.memory_space<vmem>>, vector<128x128xf32>
    %cst_88 = arith.constant dense<0.000000e+00> : vector<8x128xf32>
    %193 = tpu.matmul %191, %192, %cst_88 {dimension_numbers = #tpu.dot_dimension_numbers<[1], [0], [0], [1], [0, 0, 1, 1], [], []>} : vector<8x128xf32>, vector<128x128xf32>, vector<8x128xf32> -> vector<8x128xf32>
    %c0_89 = arith.constant 0 : index
    %c0_90 = arith.constant 0 : index
    %194 = vector.load %arg9[%c0_89, %c0_90] : memref<1x128xf32, #tpu.memory_space<vmem>>, vector<1x128xf32>
    %195 = vector.broadcast %194 : vector<1x128xf32> to vector<8x128xf32>
    %196 = arith.addf %193, %195 : vector<8x128xf32>
    %cst_91 = arith.constant 0.000000e+00 : f32
    %197 = vector.broadcast %cst_91 : f32 to vector<8x128xf32>
    %198 = arith.maximumf %196, %197 : vector<8x128xf32>
    %c0_92 = arith.constant 0 : index
    %c0_93 = arith.constant 0 : index
    %199 = vector.load %arg10[%c0_92, %c0_93] : memref<128x128xf32, #tpu.memory_space<vmem>>, vector<128x128xf32>
    %cst_94 = arith.constant dense<0.000000e+00> : vector<8x128xf32>
    %200 = tpu.matmul %198, %199, %cst_94 {dimension_numbers = #tpu.dot_dimension_numbers<[1], [0], [0], [1], [0, 0, 1, 1], [], []>} : vector<8x128xf32>, vector<128x128xf32>, vector<8x128xf32> -> vector<8x128xf32>
    %c0_95 = arith.constant 0 : index
    %c0_96 = arith.constant 0 : index
    %201 = vector.load %arg11[%c0_95, %c0_96] : memref<1x128xf32, #tpu.memory_space<vmem>>, vector<1x128xf32>
    %202 = vector.broadcast %201 : vector<1x128xf32> to vector<8x128xf32>
    %203 = arith.addf %200, %202 : vector<8x128xf32>
    %204 = arith.addf %191, %203 : vector<8x128xf32>
    %c0_97 = arith.constant 0 : index
    %c0_98 = arith.constant 0 : index
    %205 = vector.load %arg12[%c0_97, %c0_98] : memref<1x128xf32, #tpu.memory_space<vmem>>, vector<1x128xf32>
    %c0_99 = arith.constant 0 : index
    %c0_100 = arith.constant 0 : index
    %206 = vector.load %arg13[%c0_99, %c0_100] : memref<1x128xf32, #tpu.memory_space<vmem>>, vector<1x128xf32>
    %cst_101 = arith.constant dense<0.000000e+00> : vector<8xf32>
    %207 = vector.multi_reduction <add>, %204, %cst_101 [1] : vector<8x128xf32> to vector<8xf32>
    %208 = vector.shape_cast %207 : vector<8xf32> to vector<8x1xf32>
    %cst_102 = arith.constant 3.125000e-02 : f32
    %209 = vector.broadcast %cst_102 : f32 to vector<8x1xf32>
    %210 = arith.mulf %208, %209 : vector<8x1xf32>
    %211 = vector.broadcast %210 : vector<8x1xf32> to vector<8x128xf32>
    %212 = arith.subf %204, %211 : vector<8x128xf32>
    %213 = vector.broadcast %4 : vector<1x128xf32> to vector<8x128xf32>
    %214 = arith.mulf %212, %213 : vector<8x128xf32>
    %215 = arith.mulf %214, %214 : vector<8x128xf32>
    %cst_103 = arith.constant dense<0.000000e+00> : vector<8xf32>
    %216 = vector.multi_reduction <add>, %215, %cst_103 [1] : vector<8x128xf32> to vector<8xf32>
    %217 = vector.shape_cast %216 : vector<8xf32> to vector<8x1xf32>
    %cst_104 = arith.constant 3.125000e-02 : f32
    %218 = vector.broadcast %cst_104 : f32 to vector<8x1xf32>
    %219 = arith.mulf %217, %218 : vector<8x1xf32>
    %cst_105 = arith.constant 9.99999974E-6 : f32
    %220 = vector.broadcast %cst_105 : f32 to vector<8x1xf32>
    %221 = arith.addf %219, %220 : vector<8x1xf32>
    %222 = math.rsqrt %221 : vector<8x1xf32>
    %223 = vector.broadcast %222 : vector<8x1xf32> to vector<8x128xf32>
    %224 = arith.mulf %214, %223 : vector<8x128xf32>
    %225 = vector.broadcast %205 : vector<1x128xf32> to vector<8x128xf32>
    %226 = arith.mulf %224, %225 : vector<8x128xf32>
    %227 = vector.broadcast %206 : vector<1x128xf32> to vector<8x128xf32>
    %228 = arith.addf %226, %227 : vector<8x128xf32>
    %c0_106 = arith.constant 0 : index
    %c0_107 = arith.constant 0 : index
    %c0_108 = arith.constant 0 : index
    %229 = vector.load %arg14[%c0_106, %c0_107, %c0_108] : memref<1x8x128xf32, #tpu.memory_space<vmem>>, vector<1x8x128xf32>
    %230 = vector.shape_cast %229 : vector<1x8x128xf32> to vector<8x128xf32>
    %231 = vector.shape_cast %228 : vector<8x128xf32> to vector<1x8x128xf32>
    tpu.vector_store %arg14[%c0_106, %c0_107, %c0_108], %231 {strides = array<i32>} : memref<1x8x128xf32, #tpu.memory_space<vmem>>, vector<1x8x128xf32>,
    return
  }
  func.func @transform_0(%arg0: i32) -> (i32, i32, i32) {
    %c0_i32 = arith.constant 0 : i32
    %c0_i32_0 = arith.constant 0 : i32
    %c0_i32_1 = arith.constant 0 : i32
    return %arg0, %c0_i32, %c0_i32_0 : i32, i32, i32
  }
  func.func @transform_1(%arg0: i32) -> (i32, i32, i32) {
    %c0_i32 = arith.constant 0 : i32
    %c0_i32_0 = arith.constant 0 : i32
    %c0_i32_1 = arith.constant 0 : i32
    %c0_i32_2 = arith.constant 0 : i32
    return %c0_i32, %c0_i32_0, %c0_i32_1 : i32, i32, i32
  }
  func.func @transform_2(%arg0: i32) -> (i32, i32, i32) {
    %c0_i32 = arith.constant 0 : i32
    %c0_i32_0 = arith.constant 0 : i32
    %c0_i32_1 = arith.constant 0 : i32
    %c0_i32_2 = arith.constant 0 : i32
    return %c0_i32, %c0_i32_0, %c0_i32_1 : i32, i32, i32
  }
  func.func @transform_3(%arg0: i32) -> (i32, i32, i32) {
    %c0_i32 = arith.constant 0 : i32
    %c0_i32_0 = arith.constant 0 : i32
    %c0_i32_1 = arith.constant 0 : i32
    %c0_i32_2 = arith.constant 0 : i32
    return %c0_i32, %c0_i32_0, %c0_i32_1 : i32, i32, i32
  }
  func.func @transform_4(%arg0: i32) -> (i32, i32) {
    %c0_i32 = arith.constant 0 : i32
    %c0_i32_0 = arith.constant 0 : i32
    %c0_i32_1 = arith.constant 0 : i32
    return %c0_i32, %c0_i32_0 : i32, i32
  }
  func.func @transform_5(%arg0: i32) -> (i32, i32) {
    %c0_i32 = arith.constant 0 : i32
    %c0_i32_0 = arith.constant 0 : i32
    %c0_i32_1 = arith.constant 0 : i32
    return %c0_i32, %c0_i32_0 : i32, i32
  }
  func.func @transform_6(%arg0: i32) -> (i32, i32) {
    %c0_i32 = arith.constant 0 : i32
    %c0_i32_0 = arith.constant 0 : i32
    %c0_i32_1 = arith.constant 0 : i32
    return %c0_i32, %c0_i32_0 : i32, i32
  }
  func.func @transform_7(%arg0: i32) -> (i32, i32) {
    %c0_i32 = arith.constant 0 : i32
    %c0_i32_0 = arith.constant 0 : i32
    %c0_i32_1 = arith.constant 0 : i32
    return %c0_i32, %c0_i32_0 : i32, i32
  }
  func.func @transform_8(%arg0: i32) -> (i32, i32) {
    %c0_i32 = arith.constant 0 : i32
    %c0_i32_0 = arith.constant 0 : i32
    %c0_i32_1 = arith.constant 0 : i32
    return %c0_i32, %c0_i32_0 : i32, i32
  }
  func.func @transform_9(%arg0: i32) -> (i32, i32) {
    %c0_i32 = arith.constant 0 : i32
    %c0_i32_0 = arith.constant 0 : i32
    %c0_i32_1 = arith.constant 0 : i32
    return %c0_i32, %c0_i32_0 : i32, i32
  }
  func.func @transform_10(%arg0: i32) -> (i32, i32) {
    %c0_i32 = arith.constant 0 : i32
    %c0_i32_0 = arith.constant 0 : i32
    %c0_i32_1 = arith.constant 0 : i32
    return %c0_i32, %c0_i32_0 : i32, i32
  }
  func.func @transform_11(%arg0: i32) -> (i32, i32) {
    %c0_i32 = arith.constant 0 : i32
    %c0_i32_0 = arith.constant 0 : i32
    %c0_i32_1 = arith.constant 0 : i32
    return %c0_i32, %c0_i32_0 : i32, i32
  }
  func.func @transform_12(%arg0: i32) -> (i32, i32) {
    %c0_i32 = arith.constant 0 : i32
    %c0_i32_0 = arith.constant 0 : i32
    %c0_i32_1 = arith.constant 0 : i32
    return %c0_i32, %c0_i32_0 : i32, i32
  }
  func.func @transform_13(%arg0: i32) -> (i32, i32, i32) {
    %c0_i32 = arith.constant 0 : i32
    %c0_i32_0 = arith.constant 0 : i32
    %c0_i32_1 = arith.constant 0 : i32
    return %arg0, %c0_i32, %c0_i32_0 : i32, i32, i32
  }
}

</mosaic_0001>

<llo_original>
// kernel: tpu_custom_call.1
$region0: #{tpu_custom_call.1}
  #allocation0 [shape = 'u32[]', space=smem, size = 0x4, offset = 0x4, fixed_abs, tag = 'smem constant byte address 0x4 - core index']
  #allocation1 [shape = 'u32[144,128]{1,0:T(1,128)}', space=vmem, size = 0x12000, scoped, tag = 'internal scratch']
  %s0 = inlined_call_operand.hbm [shape: f32[2,8,128], index: 0, kind: input, shape index: {}]
  %s1 = inlined_call_operand.hbm [shape: f32[4,128,384], index: 1, kind: input, shape index: {}]
  %s2 = inlined_call_operand.hbm [shape: f32[4,1,384], index: 2, kind: input, shape index: {}]
  %s3 = inlined_call_operand.hbm [shape: f32[4,128,128], index: 3, kind: input, shape index: {}]
  %s4 = inlined_call_operand.vmem [shape: f32[1,128], index: 4, kind: input, shape index: {}]
  %s5 = inlined_call_operand.vmem [shape: f32[1,128], index: 5, kind: input, shape index: {}]
  %s6 = inlined_call_operand.vmem [shape: f32[1,128], index: 6, kind: input, shape index: {}]
  %s7 = inlined_call_operand.hbm [shape: f32[128,128], index: 7, kind: input, shape index: {}]
  %s8 = inlined_call_operand.vmem [shape: f32[1,128], index: 8, kind: input, shape index: {}]
  %s9 = inlined_call_operand.hbm [shape: f32[128,128], index: 9, kind: input, shape index: {}]
  %s10 = inlined_call_operand.vmem [shape: f32[1,128], index: 10, kind: input, shape index: {}]
  %s11 = inlined_call_operand.vmem [shape: f32[1,128], index: 11, kind: input, shape index: {}]
  %s12 = inlined_call_operand.vmem [shape: f32[1,128], index: 12, kind: input, shape index: {}]
  %s13 = inlined_call_operand.hbm [shape: f32[2,8,128], index: 13, kind: output, shape index: {}]
  %s14 = sld [smem:[#allocation0]]
  $region109: #{tpu_custom_call.1} parent=0
    _
  %s16 = ssub.s32 1, %s14
  %s17 = scalar_select 0, %s16, %s14
  $region1: #{tpu_custom_call.1} parent=0
    #allocation2 [shape = 'u8[8192]{0}', space=vmem, size = 0x2000, scoped, tag = 'input window, operand 0']
    #allocation3 [shape = 's32[2]{0}', space=sflag, size = 0x8, scoped, tag = 'scoped memory for tpu_custom_call.1']
    #allocation4 [shape = 's32[2]{0}', space=sflag, size = 0x8, scoped, tag = 'scoped memory for tpu_custom_call.1']
    #allocation5 [shape = 'u8[786432]{0}', space=vmem, size = 0xc0000, scoped, tag = 'input window, operand 1, single buffered']
    #allocation6 [shape = 's32[1]{0}', space=sflag, size = 0x4, scoped, tag = 'scoped memory for tpu_custom_call.1']
    #allocation7 [shape = 'u8[6144]{0}', space=vmem, size = 0x1800, scoped, tag = 'input window, operand 2, single buffered']
    #allocation8 [shape = 'u8[262144]{0}', space=vmem, size = 0x40000, scoped, tag = 'input window, operand 3, single buffered']
    #allocation9 [shape = 's32[1]{0}', space=sflag, size = 0x4, scoped, tag = 'scoped memory for tpu_custom_call.1']
    #allocation10 [shape = 'u8[65536]{0}', space=vmem, size = 0x10000, scoped, tag = 'input window, operand 7, single buffered']
    #allocation11 [shape = 'u8[65536]{0}', space=vmem, size = 0x10000, scoped, tag = 'input window, operand 9, single buffered']
    #allocation12 [shape = 's32[1]{0}', space=sflag, size = 0x4, scoped, tag = 'scoped memory for tpu_custom_call.1']
    #allocation13 [shape = 'u8[8192]{0}', space=vmem, size = 0x2000, scoped, tag = 'output window, operand 0']
    %18 = vsyncpa [#allocation3], 0
    %s19 = scalar_lea.sflag [#allocation3], 1
    %20 = vsyncpa %s19, 0
    %21 = vsyncpa [#allocation6], 0
    %22 = vsyncpa [#allocation9], 0
    %23 = vsyncpa [#allocation12], 0
    %24 = vsyncpa [#allocation4], 0
    %s25 = scalar_lea.sflag [#allocation4], 1
    %26 = vsyncpa %s25, 0
    loop: start=0, step=1, limit=4
    $region2: #{tpu_custom_call.1} parent=1 // loop_pre_header
      _
    $region3: #{tpu_custom_call.1} parent=1 // loop_header
      %s28 = sphi 0, %s32
      %p29 = scmp.ge.s32.totalorder %s28, 4
      %s38 = sphi 0, %s40
      %s41 = sphi 0, %s38
      %s42 = sphi 0, %s41
      %s58 = sphi 0, %s42
      %s62 = sphi 0, %s62
      %s64 = sphi 0, %s62
      %s65 = sphi 0, %s64
      %s79 = sphi 0, %s65
      %s83 = sphi 0, %s83
      %s85 = sphi 0, %s83
      %s86 = sphi 0, %s85
      %s100 = sphi 0, %s86
      %s104 = sphi 0, %s104
      %s106 = sphi 0, %s104
      %s107 = sphi 0, %s106
      %s121 = sphi 0, %s107
      %s125 = sphi 0, %s125
      %s127 = sphi 0, %s125
      %s128 = sphi 0, %s127
      %s142 = sphi 0, %s128
      %s146 = sphi 0, %s146
      %s148 = sphi 0, %s146
      %s149 = sphi 0, %s148
      %s163 = sphi 0, %s149
      %s167 = sphi 0, %s167
      %s169 = sphi 0, %s167
      %s170 = sphi 0, %s169
      %s184 = sphi 0, %s170
      %s188 = sphi 0, %s188
      %s190 = sphi 0, %s188
      %s191 = sphi 0, %s190
      %s205 = sphi 0, %s191
      %s209 = sphi 0, %s209
      %s211 = sphi 0, %s209
      %s212 = sphi 0, %s211
      %s226 = sphi 0, %s212
      %s230 = sphi 0, %s230
      %s232 = sphi 0, %s230
      %s233 = sphi 0, %s232
      %s247 = sphi 0, %s233
      %s251 = sphi 0, %s251
      %s253 = sphi 0, %s251
      %s254 = sphi 0, %s253
      %s268 = sphi 0, %s254
      %s272 = sphi 0, %s272
      %s274 = sphi 0, %s272
      %s275 = sphi 0, %s274
      %s289 = sphi 0, %s275
      %s293 = sphi 0, %s293
      %s295 = sphi 0, %s293
      %s296 = sphi 0, %s295
      %s310 = sphi 0, %s296
      %s316 = sphi 0, %s318
      %s319 = sphi 0, %s316
      %s320 = sphi 0, %s319
      %s336 = sphi 0, %s320
    $region4: #{tpu_custom_call.1} parent=1 // loop_header_branch
      %31 = sbr.rel (%p29) target = $region8
    $region5: #{tpu_custom_call.1} parent=1 // loop_body
      %s33 = ssub.s32 %s28, 1
      %s34 = ssub.s32 %s28, 2
      %s35 = sadd.s32 %s28, 1
      %s36 = ssub.s32 %s28, %s35
      %p37 = scmp.eq.s32.totalorder %s36, 0
      %s39 = sadd.s32 %s38, 1
      %s40 = scalar_select %p37, %s38, %s39
      %p43 = pneg %p37
      %p44 = scmp.eq.s32.totalorder %s28, 1
      %p45 = por %p43, %p44
      %p46 = scmp.ne.s32.totalorder %s38, %s41
      %p47 = scmp.eq.s32.totalorder %s28, 0
      %p48 = por %p46, %p47
      %p49 = scmp.ne.s32.totalorder %s38, %s41
      %p50 = scmp.eq.s32.totalorder %s33, 1
      %p51 = por %p49, %p50
      %p52 = scmp.ne.s32.totalorder %s41, %s42
      %p53 = scmp.eq.s32.totalorder %s33, 0
      %p54 = por %p52, %p53
      %p55 = scmp.ne.s32.totalorder %s41, %s42
      %p56 = scmp.eq.s32.totalorder %s34, 1
      %p57 = por %p55, %p56
      %p59 = scmp.ne.s32.totalorder %s42, %s58
      %p60 = scmp.eq.s32.totalorder %s34, 0
      %p61 = por %p59, %p60
      %s63 = sadd.s32 %s62, 1
      %p66 = scmp.eq.s32.totalorder %s28, 1
      %p67 = scmp.ne.s32.totalorder %s62, %s64
      %p68 = scmp.eq.s32.totalorder %s28, 0
      %p69 = por %p67, %p68
      %p70 = scmp.ne.s32.totalorder %s62, %s64
      %p71 = scmp.eq.s32.totalorder %s33, 1
      %p72 = por %p70, %p71
      %p73 = scmp.ne.s32.totalorder %s64, %s65
      %p74 = scmp.eq.s32.totalorder %s33, 0
      %p75 = por %p73, %p74
      %p76 = scmp.ne.s32.totalorder %s64, %s65
      %p77 = scmp.eq.s32.totalorder %s34, 1
      %p78 = por %p76, %p77
      %p80 = scmp.ne.s32.totalorder %s65, %s79
      %p81 = scmp.eq.s32.totalorder %s34, 0
      %p82 = por %p80, %p81
      %s84 = sadd.s32 %s83, 1
      %p87 = scmp.eq.s32.totalorder %s28, 1
      %p88 = scmp.ne.s32.totalorder %s83, %s85
      %p89 = scmp.eq.s32.totalorder %s28, 0
      %p90 = por %p88, %p89
      %p91 = scmp.ne.s32.totalorder %s83, %s85
      %p92 = scmp.eq.s32.totalorder %s33, 1
      %p93 = por %p91, %p92
      %p94 = scmp.ne.s32.totalorder %s85, %s86
      %p95 = scmp.eq.s32.totalorder %s33, 0
      %p96 = por %p94, %p95
      %p97 = scmp.ne.s32.totalorder %s85, %s86
      %p98 = scmp.eq.s32.totalorder %s34, 1
      %p99 = por %p97, %p98
      %p101 = scmp.ne.s32.totalorder %s86, %s100
      %p102 = scmp.eq.s32.totalorder %s34, 0
      %p103 = por %p101, %p102
      %s105 = sadd.s32 %s104, 1
      %p108 = scmp.eq.s32.totalorder %s28, 1
      %p109 = scmp.ne.s32.totalorder %s104, %s106
      %p110 = scmp.eq.s32.totalorder %s28, 0
      %p111 = por %p109, %p110
      %p112 = scmp.ne.s32.totalorder %s104, %s106
      %p113 = scmp.eq.s32.totalorder %s33, 1
      %p114 = por %p112, %p113
      %p115 = scmp.ne.s32.totalorder %s106, %s107
      %p116 = scmp.eq.s32.totalorder %s33, 0
      %p117 = por %p115, %p116
      %p118 = scmp.ne.s32.totalorder %s106, %s107
      %p119 = scmp.eq.s32.totalorder %s34, 1
      %p120 = por %p118, %p119
      %p122 = scmp.ne.s32.totalorder %s107, %s121
      %p123 = scmp.eq.s32.totalorder %s34, 0
      %p124 = por %p122, %p123
      %s126 = sadd.s32 %s125, 1
      %p129 = scmp.eq.s32.totalorder %s28, 1
      %p130 = scmp.ne.s32.totalorder %s125, %s127
      %p131 = scmp.eq.s32.totalorder %s28, 0
      %p132 = por %p130, %p131
      %p133 = scmp.ne.s32.totalorder %s125, %s127
      %p134 = scmp.eq.s32.totalorder %s33, 1
      %p135 = por %p133, %p134
      %p136 = scmp.ne.s32.totalorder %s127, %s128
      %p137 = scmp.eq.s32.totalorder %s33, 0
      %p138 = por %p136, %p137
      %p139 = scmp.ne.s32.totalorder %s127, %s128
      %p140 = scmp.eq.s32.totalorder %s34, 1
      %p141 = por %p139, %p140
      %p143 = scmp.ne.s32.totalorder %s128, %s142
      %p144 = scmp.eq.s32.totalorder %s34, 0
      %p145 = por %p143, %p144
      %s147 = sadd.s32 %s146, 1
      %p150 = scmp.eq.s32.totalorder %s28, 1
      %p151 = scmp.ne.s32.totalorder %s146, %s148
      %p152 = scmp.eq.s32.totalorder %s28, 0
      %p153 = por %p151, %p152
      %p154 = scmp.ne.s32.totalorder %s146, %s148
      %p155 = scmp.eq.s32.totalorder %s33, 1
      %p156 = por %p154, %p155
      %p157 = scmp.ne.s32.totalorder %s148, %s149
      %p158 = scmp.eq.s32.totalorder %s33, 0
      %p159 = por %p157, %p158
      %p160 = scmp.ne.s32.totalorder %s148, %s149
      %p161 = scmp.eq.s32.totalorder %s34, 1
      %p162 = por %p160, %p161
      %p164 = scmp.ne.s32.totalorder %s149, %s163
      %p165 = scmp.eq.s32.totalorder %s34, 0
      %p166 = por %p164, %p165
      %s168 = sadd.s32 %s167, 1
      %p171 = scmp.eq.s32.totalorder %s28, 1
      %p172 = scmp.ne.s32.totalorder %s167, %s169
      %p173 = scmp.eq.s32.totalorder %s28, 0
      %p174 = por %p172, %p173
      %p175 = scmp.ne.s32.totalorder %s167, %s169
      %p176 = scmp.eq.s32.totalorder %s33, 1
      %p177 = por %p175, %p176
      %p178 = scmp.ne.s32.totalorder %s169, %s170
      %p179 = scmp.eq.s32.totalorder %s33, 0
      %p180 = por %p178, %p179
      %p181 = scmp.ne.s32.totalorder %s169, %s170
      %p182 = scmp.eq.s32.totalorder %s34, 1
      %p183 = por %p181, %p182
      %p185 = scmp.ne.s32.totalorder %s170, %s184
      %p186 = scmp.eq.s32.totalorder %s34, 0
      %p187 = por %p185, %p186
      %s189 = sadd.s32 %s188, 1
      %p192 = scmp.eq.s32.totalorder %s28, 1
      %p193 = scmp.ne.s32.totalorder %s188, %s190
      %p194 = scmp.eq.s32.totalorder %s28, 0
      %p195 = por %p193, %p194
      %p196 = scmp.ne.s32.totalorder %s188, %s190
      %p197 = scmp.eq.s32.totalorder %s33, 1
      %p198 = por %p196, %p197
      %p199 = scmp.ne.s32.totalorder %s190, %s191
      %p200 = scmp.eq.s32.totalorder %s33, 0
      %p201 = por %p199, %p200
      %p202 = scmp.ne.s32.totalorder %s190, %s191
      %p203 = scmp.eq.s32.totalorder %s34, 1
      %p204 = por %p202, %p203
      %p206 = scmp.ne.s32.totalorder %s191, %s205
      %p207 = scmp.eq.s32.totalorder %s34, 0
      %p208 = por %p206, %p207
      %s210 = sadd.s32 %s209, 1
      %p213 = scmp.eq.s32.totalorder %s28, 1
      %p214 = scmp.ne.s32.totalorder %s209, %s211
      %p215 = scmp.eq.s32.totalorder %s28, 0
      %p216 = por %p214, %p215
      %p217 = scmp.ne.s32.totalorder %s209, %s211
      %p218 = scmp.eq.s32.totalorder %s33, 1
      %p219 = por %p217, %p218
      %p220 = scmp.ne.s32.totalorder %s211, %s212
      %p221 = scmp.eq.s32.totalorder %s33, 0
      %p222 = por %p220, %p221
      %p223 = scmp.ne.s32.totalorder %s211, %s212
      %p224 = scmp.eq.s32.totalorder %s34, 1
      %p225 = por %p223, %p224
      %p227 = scmp.ne.s32.totalorder %s212, %s226
      %p228 = scmp.eq.s32.totalorder %s34, 0
      %p229 = por %p227, %p228
      %s231 = sadd.s32 %s230, 1
      %p234 = scmp.eq.s32.totalorder %s28, 1
      %p235 = scmp.ne.s32.totalorder %s230, %s232
      %p236 = scmp.eq.s32.totalorder %s28, 0
      %p237 = por %p235, %p236
      %p238 = scmp.ne.s32.totalorder %s230, %s232
      %p239 = scmp.eq.s32.totalorder %s33, 1
      %p240 = por %p238, %p239
      %p241 = scmp.ne.s32.totalorder %s232, %s233
      %p242 = scmp.eq.s32.totalorder %s33, 0
      %p243 = por %p241, %p242
      %p244 = scmp.ne.s32.totalorder %s232, %s233
      %p245 = scmp.eq.s32.totalorder %s34, 1
      %p246 = por %p244, %p245
      %p248 = scmp.ne.s32.totalorder %s233, %s247
      %p249 = scmp.eq.s32.totalorder %s34, 0
      %p250 = por %p248, %p249
      %s252 = sadd.s32 %s251, 1
      %p255 = scmp.eq.s32.totalorder %s28, 1
      %p256 = scmp.ne.s32.totalorder %s251, %s253
      %p257 = scmp.eq.s32.totalorder %s28, 0
      %p258 = por %p256, %p257
      %p259 = scmp.ne.s32.totalorder %s251, %s253
      %p260 = scmp.eq.s32.totalorder %s33, 1
      %p261 = por %p259, %p260
      %p262 = scmp.ne.s32.totalorder %s253, %s254
      %p263 = scmp.eq.s32.totalorder %s33, 0
      %p264 = por %p262, %p263
      %p265 = scmp.ne.s32.totalorder %s253, %s254
      %p266 = scmp.eq.s32.totalorder %s34, 1
      %p267 = por %p265, %p266
      %p269 = scmp.ne.s32.totalorder %s254, %s268
      %p270 = scmp.eq.s32.totalorder %s34, 0
      %p271 = por %p269, %p270
      %s273 = sadd.s32 %s272, 1
      %p276 = scmp.eq.s32.totalorder %s28, 1
      %p277 = scmp.ne.s32.totalorder %s272, %s274
      %p278 = scmp.eq.s32.totalorder %s28, 0
      %p279 = por %p277, %p278
      %p280 = scmp.ne.s32.totalorder %s272, %s274
      %p281 = scmp.eq.s32.totalorder %s33, 1
      %p282 = por %p280, %p281
      %p283 = scmp.ne.s32.totalorder %s274, %s275
      %p284 = scmp.eq.s32.totalorder %s33, 0
      %p285 = por %p283, %p284
      %p286 = scmp.ne.s32.totalorder %s274, %s275
      %p287 = scmp.eq.s32.totalorder %s34, 1
      %p288 = por %p286, %p287
      %p290 = scmp.ne.s32.totalorder %s275, %s289
      %p291 = scmp.eq.s32.totalorder %s34, 0
      %p292 = por %p290, %p291
      %s294 = sadd.s32 %s293, 1
      %p297 = scmp.eq.s32.totalorder %s28, 1
      %p298 = scmp.ne.s32.totalorder %s293, %s295
      %p299 = scmp.eq.s32.totalorder %s28, 0
      %p300 = por %p298, %p299
      %p301 = scmp.ne.s32.totalorder %s293, %s295
      %p302 = scmp.eq.s32.totalorder %s33, 1
      %p303 = por %p301, %p302
      %p304 = scmp.ne.s32.totalorder %s295, %s296
      %p305 = scmp.eq.s32.totalorder %s33, 0
      %p306 = por %p304, %p305
      %p307 = scmp.ne.s32.totalorder %s295, %s296
      %p308 = scmp.eq.s32.totalorder %s34, 1
      %p309 = por %p307, %p308
      %p311 = scmp.ne.s32.totalorder %s296, %s310
      %p312 = scmp.eq.s32.totalorder %s34, 0
      %p313 = por %p311, %p312
      %s314 = ssub.s32 %s28, %s35
      %p315 = scmp.eq.s32.totalorder %s314, 0
      %s317 = sadd.s32 %s316, 1
      %s318 = scalar_select %p315, %s316, %s317
      %p321 = pneg %p315
      %p322 = scmp.eq.s32.totalorder %s28, 1
      %p323 = por %p321, %p322
      %p324 = scmp.ne.s32.totalorder %s316, %s319
      %p325 = scmp.eq.s32.totalorder %s28, 0
      %p326 = por %p324, %p325
      %p327 = scmp.ne.s32.totalorder %s316, %s319
      %p328 = scmp.eq.s32.totalorder %s33, 1
      %p329 = por %p327, %p328
      %p330 = scmp.ne.s32.totalorder %s319, %s320
      %p331 = scmp.eq.s32.totalorder %s33, 0
      %p332 = por %p330, %p331
      %p333 = scmp.ne.s32.totalorder %s319, %s320
      %p334 = scmp.eq.s32.totalorder %s34, 1
      %p335 = por %p333, %p334
      %p337 = scmp.ne.s32.totalorder %s320, %s336
      %p338 = scmp.eq.s32.totalorder %s34, 0
      %p339 = por %p337, %p338
      %p340 = scmp.le.s32.totalorder 1, %s28
      %p341 = scmp.lt.s32.totalorder %s28, 3
      %p342 = pnand %p340, %p341
      %p343 = pneg %p342
      // Predicated region
      $region9: #{tpu_custom_call.1} parent=5 // pred_check
        _
      $region10: #{tpu_custom_call.1} parent=5 // pred_check_branch
        %345 = sbr.rel (%p342) target = $region12
      $region11: #{tpu_custom_call.1} parent=5 // pred_region
        %s346 = ssub.s32 %s28, 1
        // Predicated region
        $region13: #{tpu_custom_call.1} parent=11 // pred_check
          %p347 = pneg %p75
        $region14: #{tpu_custom_call.1} parent=11 // pred_check_branch
          %349 = sbr.rel (%p347) target = $region16
        $region15: #{tpu_custom_call.1} parent=11 // pred_region
          %s351 = ssub.s32 24576, 24576
          %352 = vsyncadd [#allocation6], %s351
          %s353 = sshll.u32 [#allocation5], 4
          %s354 = int_to_ptr.vmem [resolvable:$true] %s353
          %359 = dma.hbm_to_vmem [thread:$0]  %s1, 24576, %s354, [#allocation6], 384, 384, 24
        $region16: #{tpu_custom_call.1} parent=11 // pred_fallthru
          _
        // Predicated region
        $region17: #{tpu_custom_call.1} parent=11 // pred_check
          %p360 = pneg %p96
        $region18: #{tpu_custom_call.1} parent=11 // pred_check_branch
          %362 = sbr.rel (%p360) target = $region20
        $region19: #{tpu_custom_call.1} parent=11 // pred_region
          %s364 = ssub.s32 192, 192
          %365 = vsyncadd [#allocation6], %s364
          %s366 = sshll.u32 [#allocation7], 4
          %s367 = int_to_ptr.vmem [resolvable:$true] %s366
          %372 = dma.hbm_to_vmem [thread:$0]  %s2, 192, %s367, [#allocation6], 48, 48, 3
        $region20: #{tpu_custom_call.1} parent=11 // pred_fallthru
          _
        // Predicated region
        $region21: #{tpu_custom_call.1} parent=11 // pred_check
          %p373 = pneg %p117
        $region22: #{tpu_custom_call.1} parent=11 // pred_check_branch
          %375 = sbr.rel (%p373) target = $region24
        $region23: #{tpu_custom_call.1} parent=11 // pred_region
          %s377 = ssub.s32 8192, 8192
          %378 = vsyncadd [#allocation9], %s377
          %s379 = sshll.u32 [#allocation8], 4
          %s380 = int_to_ptr.vmem [resolvable:$true] %s379
          %385 = dma.hbm_to_vmem [thread:$0]  %s3, 8192, %s380, [#allocation9], 128, 128, 8
        $region24: #{tpu_custom_call.1} parent=11 // pred_fallthru
          _
        // Predicated region
        $region25: #{tpu_custom_call.1} parent=11 // pred_check
          %p386 = pneg %p138
        $region26: #{tpu_custom_call.1} parent=11 // pred_check_branch
          %388 = sbr.rel (%p386) target = $region28
        $region27: #{tpu_custom_call.1} parent=11 // pred_region
          _
        $region28: #{tpu_custom_call.1} parent=11 // pred_fallthru
          _
        // Predicated region
        $region29: #{tpu_custom_call.1} parent=11 // pred_check
          %p389 = pneg %p159
        $region30: #{tpu_custom_call.1} parent=11 // pred_check_branch
          %391 = sbr.rel (%p389) target = $region32
        $region31: #{tpu_custom_call.1} parent=11 // pred_region
          _
        $region32: #{tpu_custom_call.1} parent=11 // pred_fallthru
          _
        // Predicated region
        $region33: #{tpu_custom_call.1} parent=11 // pred_check
          %p392 = pneg %p180
        $region34: #{tpu_custom_call.1} parent=11 // pred_check_branch
          %394 = sbr.rel (%p392) target = $region36
        $region35: #{tpu_custom_call.1} parent=11 // pred_region
          _
        $region36: #{tpu_custom_call.1} parent=11 // pred_fallthru
          _
        // Predicated region
        $region37: #{tpu_custom_call.1} parent=11 // pred_check
          %p395 = pneg %p201
        $region38: #{tpu_custom_call.1} parent=11 // pred_check_branch
          %397 = sbr.rel (%p395) target = $region40
        $region39: #{tpu_custom_call.1} parent=11 // pred_region
          %s399 = ssub.s32 2048, 2048
          %400 = vsyncadd [#allocation9], %s399
          %s401 = sshll.u32 [#allocation10], 4
          %s402 = int_to_ptr.vmem [resolvable:$true] %s401
          %407 = dma.hbm_to_vmem [thread:$0]  %s7, 2048, %s402, [#allocation9], 128, 128, 8
        $region40: #{tpu_custom_call.1} parent=11 // pred_fallthru
          _
        // Predicated region
        $region41: #{tpu_custom_call.1} parent=11 // pred_check
          %p408 = pneg %p222
        $region42: #{tpu_custom_call.1} parent=11 // pred_check_branch
          %410 = sbr.rel (%p408) target = $region44
        $region43: #{tpu_custom_call.1} parent=11 // pred_region
          _
        $region44: #{tpu_custom_call.1} parent=11 // pred_fallthru
          _
        // Predicated region
        $region45: #{tpu_custom_call.1} parent=11 // pred_check
          %p411 = pneg %p243
        $region46: #{tpu_custom_call.1} parent=11 // pred_check_branch
          %413 = sbr.rel (%p411) target = $region48
        $region47: #{tpu_custom_call.1} parent=11 // pred_region
          %s415 = ssub.s32 2048, 2048
          %416 = vsyncadd [#allocation12], %s415
          %s417 = sshll.u32 [#allocation11], 4
          %s418 = int_to_ptr.vmem [resolvable:$true] %s417
          %423 = dma.hbm_to_vmem [thread:$0]  %s9, 2048, %s418, [#allocation12], 128, 128, 8
        $region48: #{tpu_custom_call.1} parent=11 // pred_fallthru
          _
        // Predicated region
        $region49: #{tpu_custom_call.1} parent=11 // pred_check
          %p424 = pneg %p264
        $region50: #{tpu_custom_call.1} parent=11 // pred_check_branch
          %426 = sbr.rel (%p424) target = $region52
        $region51: #{tpu_custom_call.1} parent=11 // pred_region
          _
        $region52: #{tpu_custom_call.1} parent=11 // pred_fallthru
          _
        // Predicated region
        $region53: #{tpu_custom_call.1} parent=11 // pred_check
          %p427 = pneg %p285
        $region54: #{tpu_custom_call.1} parent=11 // pred_check_branch
          %429 = sbr.rel (%p427) target = $region56
        $region55: #{tpu_custom_call.1} parent=11 // pred_region
          _
        $region56: #{tpu_custom_call.1} parent=11 // pred_fallthru
          _
        // Predicated region
        $region57: #{tpu_custom_call.1} parent=11 // pred_check
          %p430 = pneg %p306
        $region58: #{tpu_custom_call.1} parent=11 // pred_check_branch
          %432 = sbr.rel (%p430) target = $region60
        $region59: #{tpu_custom_call.1} parent=11 // pred_region
          _
        $region60: #{tpu_custom_call.1} parent=11 // pred_fallthru
          _
      $region12: #{tpu_custom_call.1} parent=5 // pred_fallthru
        _
      %p433 = scmp.lt.s32.totalorder %s28, 2
      // Predicated region
      $region61: #{tpu_custom_call.1} parent=5 // pred_check
        %p434 = pneg %p433
      $region62: #{tpu_custom_call.1} parent=5 // pred_check_branch
        %436 = sbr.rel (%p434) target = $region64
      $region63: #{tpu_custom_call.1} parent=5 // pred_region
        // Predicated region
        $region65: #{tpu_custom_call.1} parent=63 // pred_check
          %p437 = pneg %p48
        $region66: #{tpu_custom_call.1} parent=63 // pred_check_branch
          %439 = sbr.rel (%p437) target = $region68
        $region67: #{tpu_custom_call.1} parent=63 // pred_region
          %s440 = sand.u32 %s38, 1
          %s441 = scalar_lea.sflag [#allocation3], %s440
          %s442 = sand.u32 %s38, 1
          %s443 = smul.addr %s442, 8
          %s444 = scalar_lea.vmem [#allocation2], %s443
          %s446 = ssub.s32 128, 128
          %447 = vsyncadd %s441, %s446
          %s448 = smul.addr %s28, 128
          %s449 = scalar_lea.hbm %s0, %s448
          %s451 = sshll.u32 %s444, 4
          %s452 = int_to_ptr.vmem [resolvable:$true] %s451
          %454 = dma.hbm_to_vmem [thread:$0]  %s449, 128, %s452, %s441
        $region68: #{tpu_custom_call.1} parent=63 // pred_fallthru
          _
      $region64: #{tpu_custom_call.1} parent=5 // pred_fallthru
        _
      %p455 = scmp.le.s32.totalorder 1, %s28
      %p456 = scmp.lt.s32.totalorder %s28, 3
      %p457 = pnand %p455, %p456
      %p458 = pneg %p457
      // Predicated region
      $region69: #{tpu_custom_call.1} parent=5 // pred_check
        _
      $region70: #{tpu_custom_call.1} parent=5 // pred_check_branch
        %460 = sbr.rel (%p457) target = $region72
      $region71: #{tpu_custom_call.1} parent=5 // pred_region
        %s461 = ssub.s32 %s28, 1
        %s462 = sand.u32 %s41, 1
        %s463 = scalar_lea.sflag [#allocation3], %s462
        %s464 = sand.u32 %s41, 1
        %s465 = smul.addr %s464, 8
        %s466 = scalar_lea.vmem [#allocation2], %s465
        // Predicated region
        $region73: #{tpu_custom_call.1} parent=71 // pred_check
          %p467 = pneg %p54
        $region74: #{tpu_custom_call.1} parent=71 // pred_check_branch
          %469 = sbr.rel (%p467) target = $region76
        $region75: #{tpu_custom_call.1} parent=71 // pred_region
          %470 = dma.done %s463, 128
        $region76: #{tpu_custom_call.1} parent=71 // pred_fallthru
          _
        // Predicated region
        $region77: #{tpu_custom_call.1} parent=71 // pred_check
          %p471 = pneg %p75
        $region78: #{tpu_custom_call.1} parent=71 // pred_check_branch
          %473 = sbr.rel (%p471) target = $region80
        $region79: #{tpu_custom_call.1} parent=71 // pred_region
          %474 = dma.done [#allocation6], 24576
        $region80: #{tpu_custom_call.1} parent=71 // pred_fallthru
          _
        // Predicated region
        $region81: #{tpu_custom_call.1} parent=71 // pred_check
          %p475 = pneg %p96
        $region82: #{tpu_custom_call.1} parent=71 // pred_check_branch
          %477 = sbr.rel (%p475) target = $region84
        $region83: #{tpu_custom_call.1} parent=71 // pred_region
          %478 = dma.done [#allocation6], 192
        $region84: #{tpu_custom_call.1} parent=71 // pred_fallthru
          _
        // Predicated region
        $region85: #{tpu_custom_call.1} parent=71 // pred_check
          %p479 = pneg %p117
        $region86: #{tpu_custom_call.1} parent=71 // pred_check_branch
          %481 = sbr.rel (%p479) target = $region88
        $region87: #{tpu_custom_call.1} parent=71 // pred_region
          %482 = dma.done [#allocation9], 8192
        $region88: #{tpu_custom_call.1} parent=71 // pred_fallthru
          _
        // Predicated region
        $region89: #{tpu_custom_call.1} parent=71 // pred_check
          %p483 = pneg %p201
        $region90: #{tpu_custom_call.1} parent=71 // pred_check_branch
          %485 = sbr.rel (%p483) target = $region92
        $region91: #{tpu_custom_call.1} parent=71 // pred_region
          %486 = dma.done [#allocation9], 2048
        $region92: #{tpu_custom_call.1} parent=71 // pred_fallthru
          _
        // Predicated region
        $region93: #{tpu_custom_call.1} parent=71 // pred_check
          %p487 = pneg %p243
        $region94: #{tpu_custom_call.1} parent=71 // pred_check_branch
          %489 = sbr.rel (%p487) target = $region96
        $region95: #{tpu_custom_call.1} parent=71 // pred_region
          %490 = dma.done [#allocation12], 2048
        $region96: #{tpu_custom_call.1} parent=71 // pred_fallthru
          _
        %s491 = sand.u32 %s41, 1
        %s492 = scalar_lea.sflag [#allocation3], %s491
        %s493 = sand.u32 %s41, 1
        %s494 = smul.addr %s493, 8
        %s495 = scalar_lea.vmem [#allocation2], %s494
        %p496 = pneg %p54
        %p497 = pneg %p51
        %p498 = pneg %p75
        %p499 = pneg %p72
        %p500 = pneg %p96
        %p501 = pneg %p93
        %p502 = pneg %p117
        %p503 = pneg %p114
        %p504 = pneg %p138
        %p505 = pneg %p135
        %p506 = pneg %p159
        %p507 = pneg %p156
        %p508 = pneg %p180
        %p509 = pneg %p177
        %p510 = pneg %p201
        %p511 = pneg %p198
        %p512 = pneg %p222
        %p513 = pneg %p219
        %p514 = pneg %p243
        %p515 = pneg %p240
        %p516 = pneg %p264
        %p517 = pneg %p261
        %p518 = pneg %p285
        %p519 = pneg %p282
        %p520 = pneg %p306
        %p521 = pneg %p303
        %p522 = pneg %p332
        %p523 = pneg %p329
        %s524 = sand.u32 %s319, 1
        %s525 = scalar_lea.sflag [#allocation4], %s524
        %s526 = sand.u32 %s319, 1
        %s527 = smul.addr %s526, 8
        %s528 = scalar_lea.vmem [#allocation13], %s527
        %v529 = vlaneseq
        %v530 = vand.u32 %v529, 127
        %vm531 = vcmp.lt.s32.totalorder %v530, 32
        %v532 = vsel %vm531, 1, 0
        %v533 = vcvt.s32.f32 %v532
        %v534 = vld [vmem:[%s466] sm:$0xff]
        %v535 = vld [vmem:[%s4] sm:$0x1]
        %v537 = vlaneseq
        %v538 = vshrl.u32 %v537, 7
        %v539 = vsub.s32 0, %v538
        %v540 = vrot.slane %v535, %v539
        %v542 = vadd.f32 %v540, 0.0
        %v543 = vld [vmem:[#allocation5] sm:$0xff]
        %v544 = vld [vmem:[#allocation5 + $0x8] sm:$0xff]
        %v545 = vld [vmem:[#allocation5 + $0x10] sm:$0xff]
        %v546 = vld [vmem:[#allocation5 + $0x18] sm:$0xff]
        %v547 = vld [vmem:[#allocation5 + $0x20] sm:$0xff]
        %v548 = vld [vmem:[#allocation5 + $0x28] sm:$0xff]
        %v549 = vld [vmem:[#allocation5 + $0x30] sm:$0xff]
        %v550 = vld [vmem:[#allocation5 + $0x38] sm:$0xff]
        %v551 = vld [vmem:[#allocation5 + $0x40] sm:$0xff]
        %v552 = vld [vmem:[#allocation5 + $0x48] sm:$0xff]
        %v553 = vld [vmem:[#allocation5 + $0x50] sm:$0xff]
        %v554 = vld [vmem:[#allocation5 + $0x58] sm:$0xff]
        %v555 = vld [vmem:[#allocation5 + $0x60] sm:$0xff]
        %v556 = vld [vmem:[#allocation5 + $0x68] sm:$0xff]
        %v557 = vld [vmem:[#allocation5 + $0x70] sm:$0xff]
        %v558 = vld [vmem:[#allocation5 + $0x78] sm:$0xff]
        %v559 = vld [vmem:[#allocation5 + $0x80] sm:$0xff]
        %v560 = vld [vmem:[#allocation5 + $0x88] sm:$0xff]
        %v561 = vld [vmem:[#allocation5 + $0x90] sm:$0xff]
        %v562 = vld [vmem:[#allocation5 + $0x98] sm:$0xff]
        %v563 = vld [vmem:[#allocation5 + $0xa0] sm:$0xff]
        %v564 = vld [vmem:[#allocation5 + $0xa8] sm:$0xff]
        %v565 = vld [vmem:[#allocation5 + $0xb0] sm:$0xff]
        %v566 = vld [vmem:[#allocation5 + $0xb8] sm:$0xff]
        %v567 = vld [vmem:[#allocation5 + $0xc0] sm:$0xff]
        %v568 = vld [vmem:[#allocation5 + $0xc8] sm:$0xff]
        %v569 = vld [vmem:[#allocation5 + $0xd0] sm:$0xff]
        %v570 = vld [vmem:[#allocation5 + $0xd8] sm:$0xff]
        %v571 = vld [vmem:[#allocation5 + $0xe0] sm:$0xff]
        %v572 = vld [vmem:[#allocation5 + $0xe8] sm:$0xff]
        %v573 = vld [vmem:[#allocation5 + $0xf0] sm:$0xff]
        %v574 = vld [vmem:[#allocation5 + $0xf8] sm:$0xff]
        %v575 = vld [vmem:[#allocation5 + $0x100] sm:$0xff]
        %v576 = vld [vmem:[#allocation5 + $0x108] sm:$0xff]
        %v577 = vld [vmem:[#allocation5 + $0x110] sm:$0xff]
        %v578 = vld [vmem:[#allocation5 + $0x118] sm:$0xff]
        %v579 = vld [vmem:[#allocation5 + $0x120] sm:$0xff]
        %v580 = vld [vmem:[#allocation5 + $0x128] sm:$0xff]
        %v581 = vld [vmem:[#allocation5 + $0x130] sm:$0xff]
        %v582 = vld [vmem:[#allocation5 + $0x138] sm:$0xff]
        %v583 = vld [vmem:[#allocation5 + $0x140] sm:$0xff]
        %v584 = vld [vmem:[#allocation5 + $0x148] sm:$0xff]
        %v585 = vld [vmem:[#allocation5 + $0x150] sm:$0xff]
        %v586 = vld [vmem:[#allocation5 + $0x158] sm:$0xff]
        %v587 = vld [vmem:[#allocation5 + $0x160] sm:$0xff]
        %v588 = vld [vmem:[#allocation5 + $0x168] sm:$0xff]
        %v589 = vld [vmem:[#allocation5 + $0x170] sm:$0xff]
        %v590 = vld [vmem:[#allocation5 + $0x178] sm:$0xff]
        %v591 = vld [vmem:[#allocation7] sm:$0x7]
        %v593 = vlaneseq
        %v594 = vshrl.u32 %v593, 7
        %v595 = vsub.s32 0, %v594
        %v596 = vrot.slane %v591, %v595
        %v597 = vlaneseq
        %v598 = vshrl.u32 %v597, 7
        %v599 = vsub.s32 1, %v598
        %v600 = vrot.slane %v591, %v599
        %v601 = vlaneseq
        %v602 = vshrl.u32 %v601, 7
        %v603 = vsub.s32 2, %v602
        %v604 = vrot.slane %v591, %v603
        %608 = vmatprep.subr.mxu0 %v544
        %609 = vmatpush1.msra.mxu0 %v543
        %610 = vmatprep.subr.mxu0 %v547
        %611 = vmatpush1.msra.mxu0 %v546
        %612 = vmatprep.subr.mxu0 %v550
        %613 = vmatpush1.msra.mxu0 %v549
        %614 = vmatprep.subr.mxu0 %v553
        %615 = vmatpush1.msra.mxu0 %v552
        %616 = vmatprep.subr.mxu0 %v556
        %617 = vmatpush1.msra.mxu0 %v555
        %618 = vmatprep.subr.mxu0 %v559
        %619 = vmatpush1.msra.mxu0 %v558
        %620 = vmatprep.subr.mxu0 %v562
        %621 = vmatpush1.msra.mxu0 %v561
        %622 = vmatprep.subr.mxu0 %v565
        %623 = vmatpush1.msra.mxu0 %v564
        %624 = vmatprep.subr.mxu0 %v568
        %625 = vmatpush1.msra.mxu0 %v567
        %626 = vmatprep.subr.mxu0 %v571
        %627 = vmatpush1.msra.mxu0 %v570
        %628 = vmatprep.subr.mxu0 %v574
        %629 = vmatpush1.msra.mxu0 %v573
        %630 = vmatprep.subr.mxu0 %v577
        %631 = vmatpush1.msra.mxu0 %v576
        %632 = vmatprep.subr.mxu0 %v580
        %633 = vmatpush1.msra.mxu0 %v579
        %634 = vmatprep.subr.mxu0 %v583
        %635 = vmatpush1.msra.mxu0 %v582
        %636 = vmatprep.subr.mxu0 %v586
        %637 = vmatpush1.msra.mxu0 %v585
        %638 = vmatprep.subr.mxu0 %v589
        %639 = vmatpush1.msra.mxu0 %v588
        %640 = vmatprep.subr.mxu0 0.0
        %641 = vmatpush1.msra.mxu0 0.0
        %642 = vmatprep.subr.mxu0 0.0
        %643 = vmatpush1.msra.mxu0 0.0
        %644 = vmatprep.subr.mxu0 0.0
        %645 = vmatpush1.msra.mxu0 0.0
        %646 = vmatprep.subr.mxu0 0.0
        %647 = vmatpush1.msra.mxu0 0.0
        %648 = vmatprep.subr.mxu0 0.0
        %649 = vmatpush1.msra.mxu0 0.0
        %650 = vmatprep.subr.mxu0 0.0
        %651 = vmatpush1.msra.mxu0 0.0
        %652 = vmatprep.subr.mxu0 0.0
        %653 = vmatpush1.msra.mxu0 0.0
        %654 = vmatprep.subr.mxu0 0.0
        %655 = vmatpush1.msra.mxu0 0.0
        %656 = vmatprep.subr.mxu0 0.0
        %657 = vmatpush1.msra.mxu0 0.0
        %658 = vmatprep.subr.mxu0 0.0
        %659 = vmatpush1.msra.mxu0 0.0
        %660 = vmatprep.subr.mxu0 0.0
        %661 = vmatpush1.msra.mxu0 0.0
        %662 = vmatprep.subr.mxu0 0.0
        %663 = vmatpush1.msra.mxu0 0.0
        %664 = vmatprep.subr.mxu0 0.0
        %665 = vmatpush1.msra.mxu0 0.0
        %666 = vmatprep.subr.mxu0 0.0
        %667 = vmatpush1.msra.mxu0 0.0
        %668 = vmatprep.subr.mxu0 0.0
        %669 = vmatpush1.msra.mxu0 0.0
        %670 = vmatprep.subr.mxu0 0.0
        %671 = vmatpush1.msra.mxu0 0.0
        %672 = vmatprep.mubr.f32.mxu0 0.0
        %673 = vmatmul.mubr.f32.gmra.mrb[0].mxu0 %v534
        %v674 = vpop.f32.mrb[0].mxu0
        %v675 = vadd.f32 %v596, %v674
        %v676 = vpop.f32.mrb[0].mxu0
        %v677 = vadd.f32 %v600, %v676
        %678 = vdwg.mxu0
        %679 = vmatprep.subr.mxu0 0.0
        %680 = vmatpush1.msra.mxu0 %v545
        %681 = vmatprep.subr.mxu0 0.0
        %682 = vmatpush1.msra.mxu0 %v548
        %683 = vmatprep.subr.mxu0 0.0
        %684 = vmatpush1.msra.mxu0 %v551
        %685 = vmatprep.subr.mxu0 0.0
        %686 = vmatpush1.msra.mxu0 %v554
        %687 = vmatprep.subr.mxu0 0.0
        %688 = vmatpush1.msra.mxu0 %v557
        %689 = vmatprep.subr.mxu0 0.0
        %690 = vmatpush1.msra.mxu0 %v560
        %691 = vmatprep.subr.mxu0 0.0
        %692 = vmatpush1.msra.mxu0 %v563
        %693 = vmatprep.subr.mxu0 0.0
        %694 = vmatpush1.msra.mxu0 %v566
        %695 = vmatprep.subr.mxu0 0.0
        %696 = vmatpush1.msra.mxu0 %v569
        %697 = vmatprep.subr.mxu0 0.0
        %698 = vmatpush1.msra.mxu0 %v572
        %699 = vmatprep.subr.mxu0 0.0
        %700 = vmatpush1.msra.mxu0 %v575
        %701 = vmatprep.subr.mxu0 0.0
        %702 = vmatpush1.msra.mxu0 %v578
        %703 = vmatprep.subr.mxu0 0.0
        %704 = vmatpush1.msra.mxu0 %v581
        %705 = vmatprep.subr.mxu0 0.0
        %706 = vmatpush1.msra.mxu0 %v584
        %707 = vmatprep.subr.mxu0 0.0
        %708 = vmatpush1.msra.mxu0 %v587
        %709 = vmatprep.subr.mxu0 0.0
        %710 = vmatpush1.msra.mxu0 %v590
        %711 = vmatprep.subr.mxu0 0.0
        %712 = vmatpush1.msra.mxu0 0.0
        %713 = vmatprep.subr.mxu0 0.0
        %714 = vmatpush1.msra.mxu0 0.0
        %715 = vmatprep.subr.mxu0 0.0
        %716 = vmatpush1.msra.mxu0 0.0
        %717 = vmatprep.subr.mxu0 0.0
        %718 = vmatpush1.msra.mxu0 0.0
        %719 = vmatprep.subr.mxu0 0.0
        %720 = vmatpush1.msra.mxu0 0.0
        %721 = vmatprep.subr.mxu0 0.0
        %722 = vmatpush1.msra.mxu0 0.0
        %723 = vmatprep.subr.mxu0 0.0
        %724 = vmatpush1.msra.mxu0 0.0
        %725 = vmatprep.subr.mxu0 0.0
        %726 = vmatpush1.msra.mxu0 0.0
        %727 = vmatprep.subr.mxu0 0.0
        %728 = vmatpush1.msra.mxu0 0.0
        %729 = vmatprep.subr.mxu0 0.0
        %730 = vmatpush1.msra.mxu0 0.0
        %731 = vmatprep.subr.mxu0 0.0
        %732 = vmatpush1.msra.mxu0 0.0
        %733 = vmatprep.subr.mxu0 0.0
        %734 = vmatpush1.msra.mxu0 0.0
        %735 = vmatprep.subr.mxu0 0.0
        %736 = vmatpush1.msra.mxu0 0.0
        %737 = vmatprep.subr.mxu0 0.0
        %738 = vmatpush1.msra.mxu0 0.0
        %739 = vmatprep.subr.mxu0 0.0
        %740 = vmatpush1.msra.mxu0 0.0
        %741 = vmatprep.subr.mxu0 0.0
        %742 = vmatpush1.msra.mxu0 0.0
        %743 = vmatprep.mubr.f32.mxu0 0.0
        %744 = vmatmul.mubr.f32.gmra.mrb[0].mxu0 %v534
        %v745 = vpop.f32.mrb[0].mxu0
        %v746 = vadd.f32 %v604, %v745
        %v747 = vpop.f32.mrb[0].mxu0
        %748 = vdwg.mxu0
        %v749 = vmul.f32 %v675, 0.35355338
        %750 = vmatprep.subr.mxu0 0.0
        %751 = vmatpush1.xpose.msra.mxu0 %v677
        %752 = vmatprep.subr.mxu0 0.0
        %753 = vmatpush1.xpose.msra.mxu0 0.0
        %754 = vmatprep.subr.mxu0 0.0
        %755 = vmatpush1.xpose.msra.mxu0 0.0
        %756 = vmatprep.subr.mxu0 0.0
        %757 = vmatpush1.xpose.msra.mxu0 0.0
        %758 = vmatprep.subr.mxu0 0.0
        %759 = vmatpush1.xpose.msra.mxu0 0.0
        %760 = vmatprep.subr.mxu0 0.0
        %761 = vmatpush1.xpose.msra.mxu0 0.0
        %762 = vmatprep.subr.mxu0 0.0
        %763 = vmatpush1.xpose.msra.mxu0 0.0
        %764 = vmatprep.subr.mxu0 0.0
        %765 = vmatpush1.xpose.msra.mxu0 0.0
        %766 = vmatprep.subr.mxu0 0.0
        %767 = vmatpush1.xpose.msra.mxu0 0.0
        %768 = vmatprep.subr.mxu0 0.0
        %769 = vmatpush1.xpose.msra.mxu0 0.0
        %770 = vmatprep.subr.mxu0 0.0
        %771 = vmatpush1.xpose.msra.mxu0 0.0
        %772 = vmatprep.subr.mxu0 0.0
        %773 = vmatpush1.xpose.msra.mxu0 0.0
        %774 = vmatprep.subr.mxu0 0.0
        %775 = vmatpush1.xpose.msra.mxu0 0.0
        %776 = vmatprep.subr.mxu0 0.0
        %777 = vmatpush1.xpose.msra.mxu0 0.0
        %778 = vmatprep.subr.mxu0 0.0
        %779 = vmatpush1.xpose.msra.mxu0 0.0
        %780 = vmatprep.subr.mxu0 0.0
        %781 = vmatpush1.xpose.msra.mxu0 0.0
        %782 = vmatprep.subr.mxu0 0.0
        %783 = vmatpush1.xpose.msra.mxu0 0.0
        %784 = vmatprep.subr.mxu0 0.0
        %785 = vmatpush1.xpose.msra.mxu0 0.0
        %786 = vmatprep.subr.mxu0 0.0
        %787 = vmatpush1.xpose.msra.mxu0 0.0
        %788 = vmatprep.subr.mxu0 0.0
        %789 = vmatpush1.xpose.msra.mxu0 0.0
        %790 = vmatprep.subr.mxu0 0.0
        %791 = vmatpush1.xpose.msra.mxu0 0.0
        %792 = vmatprep.subr.mxu0 0.0
        %793 = vmatpush1.xpose.msra.mxu0 0.0
        %794 = vmatprep.subr.mxu0 0.0
        %795 = vmatpush1.xpose.msra.mxu0 0.0
        %796 = vmatprep.subr.mxu0 0.0
        %797 = vmatpush1.xpose.msra.mxu0 0.0
        %798 = vmatprep.subr.mxu0 0.0
        %799 = vmatpush1.xpose.msra.mxu0 0.0
        %800 = vmatprep.subr.mxu0 0.0
        %801 = vmatpush1.xpose.msra.mxu0 0.0
        %802 = vmatprep.subr.mxu0 0.0
        %803 = vmatpush1.xpose.msra.mxu0 0.0
        %804 = vmatprep.subr.mxu0 0.0
        %805 = vmatpush1.xpose.msra.mxu0 0.0
        %806 = vmatprep.subr.mxu0 0.0
        %807 = vmatpush1.xpose.msra.mxu0 0.0
        %808 = vmatprep.subr.mxu0 0.0
        %809 = vmatpush1.xpose.msra.mxu0 0.0
        %810 = vmatprep.subr.mxu0 0.0
        %811 = vmatpush1.xpose.msra.mxu0 0.0
        %812 = vmatprep.subr.mxu0 0.0
        %813 = vmatpush1.xpose.msra.mxu0 0.0
        %814 = vmatprep.mubr.f32.mxu0 0.0
        %815 = vmatmul.mubr.f32.gmra.mrb[0].mxu0 %v749
        %v816 = vpop.f32.mrb[0].mxu0
        %v817 = vadd.f32 0.0, %v816
        %v818 = vpop.f32.mrb[0].mxu0
        %819 = vdwg.mxu0
        %vm820 = vcmask 64512
        %v821 = vsel %vm820, %v817, -inf
        %822 = vmax.xlane.f32.xlu0 %v821
        %v823 = vpop.xlane.xlu0 %822
        %v824 = vmax.f32 %v823, -1e+30
        %v825 = vsub.f32 -1e+30, %v824
        %v826 = vmul.f32 %v825, 1.442695
        %v827 = vpow.pop %v826
        %v828 = vsub.f32 %v817, %v824
        %v829 = vmul.f32 %v828, 1.442695
        %v830 = vpow.pop %v829
        %v831 = vmul.f32 %v827, 0.0
        %v832 = vsel %vm820, %v830, 0.0
        %833 = vadd.xlane.f32.xlu0 %v832
        %v834 = vpop.xlane.xlu0 %833
        %v835 = vadd.f32 %v831, %v834
        %v837 = vsel %vm820, %v830, 0
        %839 = vmatprep.subr.mxu0 0.0
        %840 = vmatpush1.msra.mxu0 %v746
        %841 = vmatprep.subr.mxu0 0.0
        %842 = vmatpush1.msra.mxu0 0.0
        %843 = vmatprep.subr.mxu0 0.0
        %844 = vmatpush1.msra.mxu0 0.0
        %845 = vmatprep.subr.mxu0 0.0
        %846 = vmatpush1.msra.mxu0 0.0
        %847 = vmatprep.subr.mxu0 0.0
        %848 = vmatpush1.msra.mxu0 0.0
        %849 = vmatprep.subr.mxu0 0.0
        %850 = vmatpush1.msra.mxu0 0.0
        %851 = vmatprep.subr.mxu0 0.0
        %852 = vmatpush1.msra.mxu0 0.0
        %853 = vmatprep.subr.mxu0 0.0
        %854 = vmatpush1.msra.mxu0 0.0
        %855 = vmatprep.subr.mxu0 0.0
        %856 = vmatpush1.msra.mxu0 0.0
        %857 = vmatprep.subr.mxu0 0.0
        %858 = vmatpush1.msra.mxu0 0.0
        %859 = vmatprep.subr.mxu0 0.0
        %860 = vmatpush1.msra.mxu0 0.0
        %861 = vmatprep.subr.mxu0 0.0
        %862 = vmatpush1.msra.mxu0 0.0
        %863 = vmatprep.subr.mxu0 0.0
        %864 = vmatpush1.msra.mxu0 0.0
        %865 = vmatprep.subr.mxu0 0.0
        %866 = vmatpush1.msra.mxu0 0.0
        %867 = vmatprep.subr.mxu0 0.0
        %868 = vmatpush1.msra.mxu0 0.0
        %869 = vmatprep.subr.mxu0 0.0
        %870 = vmatpush1.msra.mxu0 0.0
        %871 = vmatprep.subr.mxu0 0.0
        %872 = vmatpush1.msra.mxu0 0.0
        %873 = vmatprep.subr.mxu0 0.0
        %874 = vmatpush1.msra.mxu0 0.0
        %875 = vmatprep.subr.mxu0 0.0
        %876 = vmatpush1.msra.mxu0 0.0
        %877 = vmatprep.subr.mxu0 0.0
        %878 = vmatpush1.msra.mxu0 0.0
        %879 = vmatprep.subr.mxu0 0.0
        %880 = vmatpush1.msra.mxu0 0.0
        %881 = vmatprep.subr.mxu0 0.0
        %882 = vmatpush1.msra.mxu0 0.0
        %883 = vmatprep.subr.mxu0 0.0
        %884 = vmatpush1.msra.mxu0 0.0
        %885 = vmatprep.subr.mxu0 0.0
        %886 = vmatpush1.msra.mxu0 0.0
        %887 = vmatprep.subr.mxu0 0.0
        %888 = vmatpush1.msra.mxu0 0.0
        %889 = vmatprep.subr.mxu0 0.0
        %890 = vmatpush1.msra.mxu0 0.0
        %891 = vmatprep.subr.mxu0 0.0
        %892 = vmatpush1.msra.mxu0 0.0
        %893 = vmatprep.subr.mxu0 0.0
        %894 = vmatpush1.msra.mxu0 0.0
        %895 = vmatprep.subr.mxu0 0.0
        %896 = vmatpush1.msra.mxu0 0.0
        %897 = vmatprep.subr.mxu0 0.0
        %898 = vmatpush1.msra.mxu0 0.0
        %899 = vmatprep.subr.mxu0 0.0
        %900 = vmatpush1.msra.mxu0 0.0
        %901 = vmatprep.subr.mxu0 0.0
        %902 = vmatpush1.msra.mxu0 0.0
        %903 = vmatprep.mubr.f32.mxu0 0.0
        %904 = vmatmul.mubr.f32.gmra.mrb[0].mxu0 %v837
        %v905 = vpop.f32.mrb[0].mxu0
        %v906 = vadd.f32 0.0, %v905
        %v907 = vpop.f32.mrb[0].mxu0
        %908 = vdwg.mxu0
        %v909 = vadd.f32 %v831, %v906
        %v910 = vrcp.pop %v835
        %v911 = vmul.f32 %v909, %v910
        %v912 = vld [vmem:[#allocation8] sm:$0xff]
        %v913 = vld [vmem:[#allocation8 + $0x8] sm:$0xff]
        %v914 = vld [vmem:[#allocation8 + $0x10] sm:$0xff]
        %v915 = vld [vmem:[#allocation8 + $0x18] sm:$0xff]
        %v916 = vld [vmem:[#allocation8 + $0x20] sm:$0xff]
        %v917 = vld [vmem:[#allocation8 + $0x28] sm:$0xff]
        %v918 = vld [vmem:[#allocation8 + $0x30] sm:$0xff]
        %v919 = vld [vmem:[#allocation8 + $0x38] sm:$0xff]
        %v920 = vld [vmem:[#allocation8 + $0x40] sm:$0xff]
        %v921 = vld [vmem:[#allocation8 + $0x48] sm:$0xff]
        %v922 = vld [vmem:[#allocation8 + $0x50] sm:$0xff]
        %v923 = vld [vmem:[#allocation8 + $0x58] sm:$0xff]
        %v924 = vld [vmem:[#allocation8 + $0x60] sm:$0xff]
        %v925 = vld [vmem:[#allocation8 + $0x68] sm:$0xff]
        %v926 = vld [vmem:[#allocation8 + $0x70] sm:$0xff]
        %v927 = vld [vmem:[#allocation8 + $0x78] sm:$0xff]
        %928 = vmatprep.subr.mxu0 0.0
        %929 = vmatpush1.msra.mxu0 %v912
        %930 = vmatprep.subr.mxu0 0.0
        %931 = vmatpush1.msra.mxu0 %v913
        %932 = vmatprep.subr.mxu0 0.0
        %933 = vmatpush1.msra.mxu0 %v914
        %934 = vmatprep.subr.mxu0 0.0
        %935 = vmatpush1.msra.mxu0 %v915
        %936 = vmatprep.subr.mxu0 0.0
        %937 = vmatpush1.msra.mxu0 %v916
        %938 = vmatprep.subr.mxu0 0.0
        %939 = vmatpush1.msra.mxu0 %v917
        %940 = vmatprep.subr.mxu0 0.0
        %941 = vmatpush1.msra.mxu0 %v918
        %942 = vmatprep.subr.mxu0 0.0
        %943 = vmatpush1.msra.mxu0 %v919
        %944 = vmatprep.subr.mxu0 0.0
        %945 = vmatpush1.msra.mxu0 %v920
        %946 = vmatprep.subr.mxu0 0.0
        %947 = vmatpush1.msra.mxu0 %v921
        %948 = vmatprep.subr.mxu0 0.0
        %949 = vmatpush1.msra.mxu0 %v922
        %950 = vmatprep.subr.mxu0 0.0
        %951 = vmatpush1.msra.mxu0 %v923
        %952 = vmatprep.subr.mxu0 0.0
        %953 = vmatpush1.msra.mxu0 %v924
        %954 = vmatprep.subr.mxu0 0.0
        %955 = vmatpush1.msra.mxu0 %v925
        %956 = vmatprep.subr.mxu0 0.0
        %957 = vmatpush1.msra.mxu0 %v926
        %958 = vmatprep.subr.mxu0 0.0
        %959 = vmatpush1.msra.mxu0 %v927
        %960 = vmatprep.subr.mxu0 0.0
        %961 = vmatpush1.msra.mxu0 0.0
        %962 = vmatprep.subr.mxu0 0.0
        %963 = vmatpush1.msra.mxu0 0.0
        %964 = vmatprep.subr.mxu0 0.0
        %965 = vmatpush1.msra.mxu0 0.0
        %966 = vmatprep.subr.mxu0 0.0
        %967 = vmatpush1.msra.mxu0 0.0
        %968 = vmatprep.subr.mxu0 0.0
        %969 = vmatpush1.msra.mxu0 0.0
        %970 = vmatprep.subr.mxu0 0.0
        %971 = vmatpush1.msra.mxu0 0.0
        %972 = vmatprep.subr.mxu0 0.0
        %973 = vmatpush1.msra.mxu0 0.0
        %974 = vmatprep.subr.mxu0 0.0
        %975 = vmatpush1.msra.mxu0 0.0
        %976 = vmatprep.subr.mxu0 0.0
        %977 = vmatpush1.msra.mxu0 0.0
        %978 = vmatprep.subr.mxu0 0.0
        %979 = vmatpush1.msra.mxu0 0.0
        %980 = vmatprep.subr.mxu0 0.0
        %981 = vmatpush1.msra.mxu0 0.0
        %982 = vmatprep.subr.mxu0 0.0
        %983 = vmatpush1.msra.mxu0 0.0
        %984 = vmatprep.subr.mxu0 0.0
        %985 = vmatpush1.msra.mxu0 0.0
        %986 = vmatprep.subr.mxu0 0.0
        %987 = vmatpush1.msra.mxu0 0.0
        %988 = vmatprep.subr.mxu0 0.0
        %989 = vmatpush1.msra.mxu0 0.0
        %990 = vmatprep.subr.mxu0 0.0
        %991 = vmatpush1.msra.mxu0 0.0
        %992 = vmatprep.mubr.f32.mxu0 0.0
        %993 = vmatmul.mubr.f32.gmra.mrb[0].mxu0 %v911
        %v994 = vpop.f32.mrb[0].mxu0
        %v995 = vadd.f32 0.0, %v994
        %v996 = vpop.f32.mrb[0].mxu0
        %997 = vdwg.mxu0
        %v998 = vadd.f32 %v542, %v995
        %s999 = scalar_lea.vmem [#allocation5], 384
        %v1000 = vld [vmem:[%s999] sm:$0xff]
        %v1001 = vld [vmem:[%s999 + $0x8] sm:$0xff]
        %v1002 = vld [vmem:[%s999 + $0x10] sm:$0xff]
        %v1003 = vld [vmem:[%s999 + $0x18] sm:$0xff]
        %v1004 = vld [vmem:[%s999 + $0x20] sm:$0xff]
        %v1005 = vld [vmem:[%s999 + $0x28] sm:$0xff]
        %v1006 = vld [vmem:[%s999 + $0x30] sm:$0xff]
        %v1007 = vld [vmem:[%s999 + $0x38] sm:$0xff]
        %v1008 = vld [vmem:[%s999 + $0x40] sm:$0xff]
        %v1009 = vld [vmem:[%s999 + $0x48] sm:$0xff]
        %v1010 = vld [vmem:[%s999 + $0x50] sm:$0xff]
        %v1011 = vld [vmem:[%s999 + $0x58] sm:$0xff]
        %v1012 = vld [vmem:[%s999 + $0x60] sm:$0xff]
        %v1013 = vld [vmem:[%s999 + $0x68] sm:$0xff]
        %v1014 = vld [vmem:[%s999 + $0x70] sm:$0xff]
        %v1015 = vld [vmem:[%s999 + $0x78] sm:$0xff]
        %v1016 = vld [vmem:[%s999 + $0x80] sm:$0xff]
        %v1017 = vld [vmem:[%s999 + $0x88] sm:$0xff]
        %v1018 = vld [vmem:[%s999 + $0x90] sm:$0xff]
        %v1019 = vld [vmem:[%s999 + $0x98] sm:$0xff]
        %v1020 = vld [vmem:[%s999 + $0xa0] sm:$0xff]
        %v1021 = vld [vmem:[%s999 + $0xa8] sm:$0xff]
        %v1022 = vld [vmem:[%s999 + $0xb0] sm:$0xff]
        %v1023 = vld [vmem:[%s999 + $0xb8] sm:$0xff]
        %v1024 = vld [vmem:[%s999 + $0xc0] sm:$0xff]
        %v1025 = vld [vmem:[%s999 + $0xc8] sm:$0xff]
        %v1026 = vld [vmem:[%s999 + $0xd0] sm:$0xff]
        %v1027 = vld [vmem:[%s999 + $0xd8] sm:$0xff]
        %v1028 = vld [vmem:[%s999 + $0xe0] sm:$0xff]
        %v1029 = vld [vmem:[%s999 + $0xe8] sm:$0xff]
        %v1030 = vld [vmem:[%s999 + $0xf0] sm:$0xff]
        %v1031 = vld [vmem:[%s999 + $0xf8] sm:$0xff]
        %v1032 = vld [vmem:[%s999 + $0x100] sm:$0xff]
        %v1033 = vld [vmem:[%s999 + $0x108] sm:$0xff]
        %v1034 = vld [vmem:[%s999 + $0x110] sm:$0xff]
        %v1035 = vld [vmem:[%s999 + $0x118] sm:$0xff]
        %v1036 = vld [vmem:[%s999 + $0x120] sm:$0xff]
        %v1037 = vld [vmem:[%s999 + $0x128] sm:$0xff]
        %v1038 = vld [vmem:[%s999 + $0x130] sm:$0xff]
        %v1039 = vld [vmem:[%s999 + $0x138] sm:$0xff]
        %v1040 = vld [vmem:[%s999 + $0x140] sm:$0xff]
        %v1041 = vld [vmem:[%s999 + $0x148] sm:$0xff]
        %v1042 = vld [vmem:[%s999 + $0x150] sm:$0xff]
        %v1043 = vld [vmem:[%s999 + $0x158] sm:$0xff]
        %v1044 = vld [vmem:[%s999 + $0x160] sm:$0xff]
        %v1045 = vld [vmem:[%s999 + $0x168] sm:$0xff]
        %v1046 = vld [vmem:[%s999 + $0x170] sm:$0xff]
        %v1047 = vld [vmem:[%s999 + $0x178] sm:$0xff]
        %s1048 = scalar_lea.vmem [#allocation7], 3
        %v1049 = vld [vmem:[%s1048] sm:$0x7]
        %v1051 = vlaneseq
        %v1052 = vshrl.u32 %v1051, 7
        %v1053 = vsub.s32 0, %v1052
        %v1054 = vrot.slane %v1049, %v1053
        %v1055 = vlaneseq
        %v1056 = vshrl.u32 %v1055, 7
        %v1057 = vsub.s32 1, %v1056
        %v1058 = vrot.slane %v1049, %v1057
        %v1059 = vlaneseq
        %v1060 = vshrl.u32 %v1059, 7
        %v1061 = vsub.s32 2, %v1060
        %v1062 = vrot.slane %v1049, %v1061
        %1066 = vmatprep.subr.mxu0 %v1001
        %1067 = vmatpush1.msra.mxu0 %v1000
        %1068 = vmatprep.subr.mxu0 %v1004
        %1069 = vmatpush1.msra.mxu0 %v1003
        %1070 = vmatprep.subr.mxu0 %v1007
        %1071 = vmatpush1.msra.mxu0 %v1006
        %1072 = vmatprep.subr.mxu0 %v1010
        %1073 = vmatpush1.msra.mxu0 %v1009
        %1074 = vmatprep.subr.mxu0 %v1013
        %1075 = vmatpush1.msra.mxu0 %v1012
        %1076 = vmatprep.subr.mxu0 %v1016
        %1077 = vmatpush1.msra.mxu0 %v1015
        %1078 = vmatprep.subr.mxu0 %v1019
        %1079 = vmatpush1.msra.mxu0 %v1018
        %1080 = vmatprep.subr.mxu0 %v1022
        %1081 = vmatpush1.msra.mxu0 %v1021
        %1082 = vmatprep.subr.mxu0 %v1025
        %1083 = vmatpush1.msra.mxu0 %v1024
        %1084 = vmatprep.subr.mxu0 %v1028
        %1085 = vmatpush1.msra.mxu0 %v1027
        %1086 = vmatprep.subr.mxu0 %v1031
        %1087 = vmatpush1.msra.mxu0 %v1030
        %1088 = vmatprep.subr.mxu0 %v1034
        %1089 = vmatpush1.msra.mxu0 %v1033
        %1090 = vmatprep.subr.mxu0 %v1037
        %1091 = vmatpush1.msra.mxu0 %v1036
        %1092 = vmatprep.subr.mxu0 %v1040
        %1093 = vmatpush1.msra.mxu0 %v1039
        %1094 = vmatprep.subr.mxu0 %v1043
        %1095 = vmatpush1.msra.mxu0 %v1042
        %1096 = vmatprep.subr.mxu0 %v1046
        %1097 = vmatpush1.msra.mxu0 %v1045
        %1098 = vmatprep.subr.mxu0 0.0
        %1099 = vmatpush1.msra.mxu0 0.0
        %1100 = vmatprep.subr.mxu0 0.0
        %1101 = vmatpush1.msra.mxu0 0.0
        %1102 = vmatprep.subr.mxu0 0.0
        %1103 = vmatpush1.msra.mxu0 0.0
        %1104 = vmatprep.subr.mxu0 0.0
        %1105 = vmatpush1.msra.mxu0 0.0
        %1106 = vmatprep.subr.mxu0 0.0
        %1107 = vmatpush1.msra.mxu0 0.0
        %1108 = vmatprep.subr.mxu0 0.0
        %1109 = vmatpush1.msra.mxu0 0.0
        %1110 = vmatprep.subr.mxu0 0.0
        %1111 = vmatpush1.msra.mxu0 0.0
        %1112 = vmatprep.subr.mxu0 0.0
        %1113 = vmatpush1.msra.mxu0 0.0
        %1114 = vmatprep.subr.mxu0 0.0
        %1115 = vmatpush1.msra.mxu0 0.0
        %1116 = vmatprep.subr.mxu0 0.0
        %1117 = vmatpush1.msra.mxu0 0.0
        %1118 = vmatprep.subr.mxu0 0.0
        %1119 = vmatpush1.msra.mxu0 0.0
        %1120 = vmatprep.subr.mxu0 0.0
        %1121 = vmatpush1.msra.mxu0 0.0
        %1122 = vmatprep.subr.mxu0 0.0
        %1123 = vmatpush1.msra.mxu0 0.0
        %1124 = vmatprep.subr.mxu0 0.0
        %1125 = vmatpush1.msra.mxu0 0.0
        %1126 = vmatprep.subr.mxu0 0.0
        %1127 = vmatpush1.msra.mxu0 0.0
        %1128 = vmatprep.subr.mxu0 0.0
        %1129 = vmatpush1.msra.mxu0 0.0
        %1130 = vmatprep.mubr.f32.mxu0 0.0
        %1131 = vmatmul.mubr.f32.gmra.mrb[0].mxu0 %v534
        %v1132 = vpop.f32.mrb[0].mxu0
        %v1133 = vadd.f32 %v1054, %v1132
        %v1134 = vpop.f32.mrb[0].mxu0
        %v1135 = vadd.f32 %v1058, %v1134
        %1136 = vdwg.mxu0
        %1137 = vmatprep.subr.mxu0 0.0
        %1138 = vmatpush1.msra.mxu0 %v1002
        %1139 = vmatprep.subr.mxu0 0.0
        %1140 = vmatpush1.msra.mxu0 %v1005
        %1141 = vmatprep.subr.mxu0 0.0
        %1142 = vmatpush1.msra.mxu0 %v1008
        %1143 = vmatprep.subr.mxu0 0.0
        %1144 = vmatpush1.msra.mxu0 %v1011
        %1145 = vmatprep.subr.mxu0 0.0
        %1146 = vmatpush1.msra.mxu0 %v1014
        %1147 = vmatprep.subr.mxu0 0.0
        %1148 = vmatpush1.msra.mxu0 %v1017
        %1149 = vmatprep.subr.mxu0 0.0
        %1150 = vmatpush1.msra.mxu0 %v1020
        %1151 = vmatprep.subr.mxu0 0.0
        %1152 = vmatpush1.msra.mxu0 %v1023
        %1153 = vmatprep.subr.mxu0 0.0
        %1154 = vmatpush1.msra.mxu0 %v1026
        %1155 = vmatprep.subr.mxu0 0.0
        %1156 = vmatpush1.msra.mxu0 %v1029
        %1157 = vmatprep.subr.mxu0 0.0
        %1158 = vmatpush1.msra.mxu0 %v1032
        %1159 = vmatprep.subr.mxu0 0.0
        %1160 = vmatpush1.msra.mxu0 %v1035
        %1161 = vmatprep.subr.mxu0 0.0
        %1162 = vmatpush1.msra.mxu0 %v1038
        %1163 = vmatprep.subr.mxu0 0.0
        %1164 = vmatpush1.msra.mxu0 %v1041
        %1165 = vmatprep.subr.mxu0 0.0
        %1166 = vmatpush1.msra.mxu0 %v1044
        %1167 = vmatprep.subr.mxu0 0.0
        %1168 = vmatpush1.msra.mxu0 %v1047
        %1169 = vmatprep.subr.mxu0 0.0
        %1170 = vmatpush1.msra.mxu0 0.0
        %1171 = vmatprep.subr.mxu0 0.0
        %1172 = vmatpush1.msra.mxu0 0.0
        %1173 = vmatprep.subr.mxu0 0.0
        %1174 = vmatpush1.msra.mxu0 0.0
        %1175 = vmatprep.subr.mxu0 0.0
        %1176 = vmatpush1.msra.mxu0 0.0
        %1177 = vmatprep.subr.mxu0 0.0
        %1178 = vmatpush1.msra.mxu0 0.0
        %1179 = vmatprep.subr.mxu0 0.0
        %1180 = vmatpush1.msra.mxu0 0.0
        %1181 = vmatprep.subr.mxu0 0.0
        %1182 = vmatpush1.msra.mxu0 0.0
        %1183 = vmatprep.subr.mxu0 0.0
        %1184 = vmatpush1.msra.mxu0 0.0
        %1185 = vmatprep.subr.mxu0 0.0
        %1186 = vmatpush1.msra.mxu0 0.0
        %1187 = vmatprep.subr.mxu0 0.0
        %1188 = vmatpush1.msra.mxu0 0.0
        %1189 = vmatprep.subr.mxu0 0.0
        %1190 = vmatpush1.msra.mxu0 0.0
        %1191 = vmatprep.subr.mxu0 0.0
        %1192 = vmatpush1.msra.mxu0 0.0
        %1193 = vmatprep.subr.mxu0 0.0
        %1194 = vmatpush1.msra.mxu0 0.0
        %1195 = vmatprep.subr.mxu0 0.0
        %1196 = vmatpush1.msra.mxu0 0.0
        %1197 = vmatprep.subr.mxu0 0.0
        %1198 = vmatpush1.msra.mxu0 0.0
        %1199 = vmatprep.subr.mxu0 0.0
        %1200 = vmatpush1.msra.mxu0 0.0
        %1201 = vmatprep.mubr.f32.mxu0 0.0
        %1202 = vmatmul.mubr.f32.gmra.mrb[0].mxu0 %v534
        %v1203 = vpop.f32.mrb[0].mxu0
        %v1204 = vadd.f32 %v1062, %v1203
        %v1205 = vpop.f32.mrb[0].mxu0
        %1206 = vdwg.mxu0
        %v1207 = vmul.f32 %v1133, 0.35355338
        %1208 = vmatprep.subr.mxu0 0.0
        %1209 = vmatpush1.xpose.msra.mxu0 %v1135
        %1210 = vmatprep.subr.mxu0 0.0
        %1211 = vmatpush1.xpose.msra.mxu0 0.0
        %1212 = vmatprep.subr.mxu0 0.0
        %1213 = vmatpush1.xpose.msra.mxu0 0.0
        %1214 = vmatprep.subr.mxu0 0.0
        %1215 = vmatpush1.xpose.msra.mxu0 0.0
        %1216 = vmatprep.subr.mxu0 0.0
        %1217 = vmatpush1.xpose.msra.mxu0 0.0
        %1218 = vmatprep.subr.mxu0 0.0
        %1219 = vmatpush1.xpose.msra.mxu0 0.0
        %1220 = vmatprep.subr.mxu0 0.0
        %1221 = vmatpush1.xpose.msra.mxu0 0.0
        %1222 = vmatprep.subr.mxu0 0.0
        %1223 = vmatpush1.xpose.msra.mxu0 0.0
        %1224 = vmatprep.subr.mxu0 0.0
        %1225 = vmatpush1.xpose.msra.mxu0 0.0
        %1226 = vmatprep.subr.mxu0 0.0
        %1227 = vmatpush1.xpose.msra.mxu0 0.0
        %1228 = vmatprep.subr.mxu0 0.0
        %1229 = vmatpush1.xpose.msra.mxu0 0.0
        %1230 = vmatprep.subr.mxu0 0.0
        %1231 = vmatpush1.xpose.msra.mxu0 0.0
        %1232 = vmatprep.subr.mxu0 0.0
        %1233 = vmatpush1.xpose.msra.mxu0 0.0
        %1234 = vmatprep.subr.mxu0 0.0
        %1235 = vmatpush1.xpose.msra.mxu0 0.0
        %1236 = vmatprep.subr.mxu0 0.0
        %1237 = vmatpush1.xpose.msra.mxu0 0.0
        %1238 = vmatprep.subr.mxu0 0.0
        %1239 = vmatpush1.xpose.msra.mxu0 0.0
        %1240 = vmatprep.subr.mxu0 0.0
        %1241 = vmatpush1.xpose.msra.mxu0 0.0
        %1242 = vmatprep.subr.mxu0 0.0
        %1243 = vmatpush1.xpose.msra.mxu0 0.0
        %1244 = vmatprep.subr.mxu0 0.0
        %1245 = vmatpush1.xpose.msra.mxu0 0.0
        %1246 = vmatprep.subr.mxu0 0.0
        %1247 = vmatpush1.xpose.msra.mxu0 0.0
        %1248 = vmatprep.subr.mxu0 0.0
        %1249 = vmatpush1.xpose.msra.mxu0 0.0
        %1250 = vmatprep.subr.mxu0 0.0
        %1251 = vmatpush1.xpose.msra.mxu0 0.0
        %1252 = vmatprep.subr.mxu0 0.0
        %1253 = vmatpush1.xpose.msra.mxu0 0.0
        %1254 = vmatprep.subr.mxu0 0.0
        %1255 = vmatpush1.xpose.msra.mxu0 0.0
        %1256 = vmatprep.subr.mxu0 0.0
        %1257 = vmatpush1.xpose.msra.mxu0 0.0
        %1258 = vmatprep.subr.mxu0 0.0
        %1259 = vmatpush1.xpose.msra.mxu0 0.0
        %1260 = vmatprep.subr.mxu0 0.0
        %1261 = vmatpush1.xpose.msra.mxu0 0.0
        %1262 = vmatprep.subr.mxu0 0.0
        %1263 = vmatpush1.xpose.msra.mxu0 0.0
        %1264 = vmatprep.subr.mxu0 0.0
        %1265 = vmatpush1.xpose.msra.mxu0 0.0
        %1266 = vmatprep.subr.mxu0 0.0
        %1267 = vmatpush1.xpose.msra.mxu0 0.0
        %1268 = vmatprep.subr.mxu0 0.0
        %1269 = vmatpush1.xpose.msra.mxu0 0.0
        %1270 = vmatprep.subr.mxu0 0.0
        %1271 = vmatpush1.xpose.msra.mxu0 0.0
        %1272 = vmatprep.mubr.f32.mxu0 0.0
        %1273 = vmatmul.mubr.f32.gmra.mrb[0].mxu0 %v1207
        %v1274 = vpop.f32.mrb[0].mxu0
        %v1275 = vadd.f32 0.0, %v1274
        %v1276 = vpop.f32.mrb[0].mxu0
        %1277 = vdwg.mxu0
        %v1278 = vsel %vm820, %v1275, -inf
        %1279 = vmax.xlane.f32.xlu0 %v1278
        %v1280 = vpop.xlane.xlu0 %1279
        %v1281 = vmax.f32 %v1280, -1e+30
        %v1282 = vsub.f32 -1e+30, %v1281
        %v1283 = vmul.f32 %v1282, 1.442695
        %v1284 = vpow.pop %v1283
        %v1285 = vsub.f32 %v1275, %v1281
        %v1286 = vmul.f32 %v1285, 1.442695
        %v1287 = vpow.pop %v1286
        %v1288 = vmul.f32 %v1284, 0.0
        %v1289 = vsel %vm820, %v1287, 0.0
        %1290 = vadd.xlane.f32.xlu0 %v1289
        %v1291 = vpop.xlane.xlu0 %1290
        %v1292 = vadd.f32 %v1288, %v1291
        %v1294 = vsel %vm820, %v1287, 0
        %1296 = vmatprep.subr.mxu0 0.0
        %1297 = vmatpush1.msra.mxu0 %v1204
        %1298 = vmatprep.subr.mxu0 0.0
        %1299 = vmatpush1.msra.mxu0 0.0
        %1300 = vmatprep.subr.mxu0 0.0
        %1301 = vmatpush1.msra.mxu0 0.0
        %1302 = vmatprep.subr.mxu0 0.0
        %1303 = vmatpush1.msra.mxu0 0.0
        %1304 = vmatprep.subr.mxu0 0.0
        %1305 = vmatpush1.msra.mxu0 0.0
        %1306 = vmatprep.subr.mxu0 0.0
        %1307 = vmatpush1.msra.mxu0 0.0
        %1308 = vmatprep.subr.mxu0 0.0
        %1309 = vmatpush1.msra.mxu0 0.0
        %1310 = vmatprep.subr.mxu0 0.0
        %1311 = vmatpush1.msra.mxu0 0.0
        %1312 = vmatprep.subr.mxu0 0.0
        %1313 = vmatpush1.msra.mxu0 0.0
        %1314 = vmatprep.subr.mxu0 0.0
        %1315 = vmatpush1.msra.mxu0 0.0
        %1316 = vmatprep.subr.mxu0 0.0
        %1317 = vmatpush1.msra.mxu0 0.0
        %1318 = vmatprep.subr.mxu0 0.0
        %1319 = vmatpush1.msra.mxu0 0.0
        %1320 = vmatprep.subr.mxu0 0.0
        %1321 = vmatpush1.msra.mxu0 0.0
        %1322 = vmatprep.subr.mxu0 0.0
        %1323 = vmatpush1.msra.mxu0 0.0
        %1324 = vmatprep.subr.mxu0 0.0
        %1325 = vmatpush1.msra.mxu0 0.0
        %1326 = vmatprep.subr.mxu0 0.0
        %1327 = vmatpush1.msra.mxu0 0.0
        %1328 = vmatprep.subr.mxu0 0.0
        %1329 = vmatpush1.msra.mxu0 0.0
        %1330 = vmatprep.subr.mxu0 0.0
        %1331 = vmatpush1.msra.mxu0 0.0
        %1332 = vmatprep.subr.mxu0 0.0
        %1333 = vmatpush1.msra.mxu0 0.0
        %1334 = vmatprep.subr.mxu0 0.0
        %1335 = vmatpush1.msra.mxu0 0.0
        %1336 = vmatprep.subr.mxu0 0.0
        %1337 = vmatpush1.msra.mxu0 0.0
        %1338 = vmatprep.subr.mxu0 0.0
        %1339 = vmatpush1.msra.mxu0 0.0
        %1340 = vmatprep.subr.mxu0 0.0
        %1341 = vmatpush1.msra.mxu0 0.0
        %1342 = vmatprep.subr.mxu0 0.0
        %1343 = vmatpush1.msra.mxu0 0.0
        %1344 = vmatprep.subr.mxu0 0.0
        %1345 = vmatpush1.msra.mxu0 0.0
        %1346 = vmatprep.subr.mxu0 0.0
        %1347 = vmatpush1.msra.mxu0 0.0
        %1348 = vmatprep.subr.mxu0 0.0
        %1349 = vmatpush1.msra.mxu0 0.0
        %1350 = vmatprep.subr.mxu0 0.0
        %1351 = vmatpush1.msra.mxu0 0.0
        %1352 = vmatprep.subr.mxu0 0.0
        %1353 = vmatpush1.msra.mxu0 0.0
        %1354 = vmatprep.subr.mxu0 0.0
        %1355 = vmatpush1.msra.mxu0 0.0
        %1356 = vmatprep.subr.mxu0 0.0
        %1357 = vmatpush1.msra.mxu0 0.0
        %1358 = vmatprep.subr.mxu0 0.0
        %1359 = vmatpush1.msra.mxu0 0.0
        %1360 = vmatprep.mubr.f32.mxu0 0.0
        %1361 = vmatmul.mubr.f32.gmra.mrb[0].mxu0 %v1294
        %v1362 = vpop.f32.mrb[0].mxu0
        %v1363 = vadd.f32 0.0, %v1362
        %v1364 = vpop.f32.mrb[0].mxu0
        %1365 = vdwg.mxu0
        %v1366 = vadd.f32 %v1288, %v1363
        %v1367 = vrcp.pop %v1292
        %v1368 = vmul.f32 %v1366, %v1367
        %s1369 = scalar_lea.vmem [#allocation8], 128
        %v1370 = vld [vmem:[%s1369] sm:$0xff]
        %v1371 = vld [vmem:[%s1369 + $0x8] sm:$0xff]
        %v1372 = vld [vmem:[%s1369 + $0x10] sm:$0xff]
        %v1373 = vld [vmem:[%s1369 + $0x18] sm:$0xff]
        %v1374 = vld [vmem:[%s1369 + $0x20] sm:$0xff]
        %v1375 = vld [vmem:[%s1369 + $0x28] sm:$0xff]
        %v1376 = vld [vmem:[%s1369 + $0x30] sm:$0xff]
        %v1377 = vld [vmem:[%s1369 + $0x38] sm:$0xff]
        %v1378 = vld [vmem:[%s1369 + $0x40] sm:$0xff]
        %v1379 = vld [vmem:[%s1369 + $0x48] sm:$0xff]
        %v1380 = vld [vmem:[%s1369 + $0x50] sm:$0xff]
        %v1381 = vld [vmem:[%s1369 + $0x58] sm:$0xff]
        %v1382 = vld [vmem:[%s1369 + $0x60] sm:$0xff]
        %v1383 = vld [vmem:[%s1369 + $0x68] sm:$0xff]
        %v1384 = vld [vmem:[%s1369 + $0x70] sm:$0xff]
        %v1385 = vld [vmem:[%s1369 + $0x78] sm:$0xff]
        %1386 = vmatprep.subr.mxu0 0.0
        %1387 = vmatpush1.msra.mxu0 %v1370
        %1388 = vmatprep.subr.mxu0 0.0
        %1389 = vmatpush1.msra.mxu0 %v1371
        %1390 = vmatprep.subr.mxu0 0.0
        %1391 = vmatpush1.msra.mxu0 %v1372
        %1392 = vmatprep.subr.mxu0 0.0
        %1393 = vmatpush1.msra.mxu0 %v1373
        %1394 = vmatprep.subr.mxu0 0.0
        %1395 = vmatpush1.msra.mxu0 %v1374
        %1396 = vmatprep.subr.mxu0 0.0
        %1397 = vmatpush1.msra.mxu0 %v1375
        %1398 = vmatprep.subr.mxu0 0.0
        %1399 = vmatpush1.msra.mxu0 %v1376
        %1400 = vmatprep.subr.mxu0 0.0
        %1401 = vmatpush1.msra.mxu0 %v1377
        %1402 = vmatprep.subr.mxu0 0.0
        %1403 = vmatpush1.msra.mxu0 %v1378
        %1404 = vmatprep.subr.mxu0 0.0
        %1405 = vmatpush1.msra.mxu0 %v1379
        %1406 = vmatprep.subr.mxu0 0.0
        %1407 = vmatpush1.msra.mxu0 %v1380
        %1408 = vmatprep.subr.mxu0 0.0
        %1409 = vmatpush1.msra.mxu0 %v1381
        %1410 = vmatprep.subr.mxu0 0.0
        %1411 = vmatpush1.msra.mxu0 %v1382
        %1412 = vmatprep.subr.mxu0 0.0
        %1413 = vmatpush1.msra.mxu0 %v1383
        %1414 = vmatprep.subr.mxu0 0.0
        %1415 = vmatpush1.msra.mxu0 %v1384
        %1416 = vmatprep.subr.mxu0 0.0
        %1417 = vmatpush1.msra.mxu0 %v1385
        %1418 = vmatprep.subr.mxu0 0.0
        %1419 = vmatpush1.msra.mxu0 0.0
        %1420 = vmatprep.subr.mxu0 0.0
        %1421 = vmatpush1.msra.mxu0 0.0
        %1422 = vmatprep.subr.mxu0 0.0
        %1423 = vmatpush1.msra.mxu0 0.0
        %1424 = vmatprep.subr.mxu0 0.0
        %1425 = vmatpush1.msra.mxu0 0.0
        %1426 = vmatprep.subr.mxu0 0.0
        %1427 = vmatpush1.msra.mxu0 0.0
        %1428 = vmatprep.subr.mxu0 0.0
        %1429 = vmatpush1.msra.mxu0 0.0
        %1430 = vmatprep.subr.mxu0 0.0
        %1431 = vmatpush1.msra.mxu0 0.0
        %1432 = vmatprep.subr.mxu0 0.0
        %1433 = vmatpush1.msra.mxu0 0.0
        %1434 = vmatprep.subr.mxu0 0.0
        %1435 = vmatpush1.msra.mxu0 0.0
        %1436 = vmatprep.subr.mxu0 0.0
        %1437 = vmatpush1.msra.mxu0 0.0
        %1438 = vmatprep.subr.mxu0 0.0
        %1439 = vmatpush1.msra.mxu0 0.0
        %1440 = vmatprep.subr.mxu0 0.0
        %1441 = vmatpush1.msra.mxu0 0.0
        %1442 = vmatprep.subr.mxu0 0.0
        %1443 = vmatpush1.msra.mxu0 0.0
        %1444 = vmatprep.subr.mxu0 0.0
        %1445 = vmatpush1.msra.mxu0 0.0
        %1446 = vmatprep.subr.mxu0 0.0
        %1447 = vmatpush1.msra.mxu0 0.0
        %1448 = vmatprep.subr.mxu0 0.0
        %1449 = vmatpush1.msra.mxu0 0.0
        %1450 = vmatprep.mubr.f32.mxu0 0.0
        %1451 = vmatmul.mubr.f32.gmra.mrb[0].mxu0 %v1368
        %v1452 = vpop.f32.mrb[0].mxu0
        %v1453 = vadd.f32 0.0, %v1452
        %v1454 = vpop.f32.mrb[0].mxu0
        %1455 = vdwg.mxu0
        %v1456 = vadd.f32 %v998, %v1453
        %s1457 = scalar_lea.vmem [#allocation5], 768
        %v1458 = vld [vmem:[%s1457] sm:$0xff]
        %v1459 = vld [vmem:[%s1457 + $0x8] sm:$0xff]
        %v1460 = vld [vmem:[%s1457 + $0x10] sm:$0xff]
        %v1461 = vld [vmem:[%s1457 + $0x18] sm:$0xff]
        %v1462 = vld [vmem:[%s1457 + $0x20] sm:$0xff]
        %v1463 = vld [vmem:[%s1457 + $0x28] sm:$0xff]
        %v1464 = vld [vmem:[%s1457 + $0x30] sm:$0xff]
        %v1465 = vld [vmem:[%s1457 + $0x38] sm:$0xff]
        %v1466 = vld [vmem:[%s1457 + $0x40] sm:$0xff]
        %v1467 = vld [vmem:[%s1457 + $0x48] sm:$0xff]
        %v1468 = vld [vmem:[%s1457 + $0x50] sm:$0xff]
        %v1469 = vld [vmem:[%s1457 + $0x58] sm:$0xff]
        %v1470 = vld [vmem:[%s1457 + $0x60] sm:$0xff]
        %v1471 = vld [vmem:[%s1457 + $0x68] sm:$0xff]
        %v1472 = vld [vmem:[%s1457 + $0x70] sm:$0xff]
        %v1473 = vld [vmem:[%s1457 + $0x78] sm:$0xff]
        %v1474 = vld [vmem:[%s1457 + $0x80] sm:$0xff]
        %v1475 = vld [vmem:[%s1457 + $0x88] sm:$0xff]
        %v1476 = vld [vmem:[%s1457 + $0x90] sm:$0xff]
        %v1477 = vld [vmem:[%s1457 + $0x98] sm:$0xff]
        %v1478 = vld [vmem:[%s1457 + $0xa0] sm:$0xff]
        %v1479 = vld [vmem:[%s1457 + $0xa8] sm:$0xff]
        %v1480 = vld [vmem:[%s1457 + $0xb0] sm:$0xff]
        %v1481 = vld [vmem:[%s1457 + $0xb8] sm:$0xff]
        %v1482 = vld [vmem:[%s1457 + $0xc0] sm:$0xff]
        %v1483 = vld [vmem:[%s1457 + $0xc8] sm:$0xff]
        %v1484 = vld [vmem:[%s1457 + $0xd0] sm:$0xff]
        %v1485 = vld [vmem:[%s1457 + $0xd8] sm:$0xff]
        %v1486 = vld [vmem:[%s1457 + $0xe0] sm:$0xff]
        %v1487 = vld [vmem:[%s1457 + $0xe8] sm:$0xff]
        %v1488 = vld [vmem:[%s1457 + $0xf0] sm:$0xff]
        %v1489 = vld [vmem:[%s1457 + $0xf8] sm:$0xff]
        %v1490 = vld [vmem:[%s1457 + $0x100] sm:$0xff]
        %v1491 = vld [vmem:[%s1457 + $0x108] sm:$0xff]
        %v1492 = vld [vmem:[%s1457 + $0x110] sm:$0xff]
        %v1493 = vld [vmem:[%s1457 + $0x118] sm:$0xff]
        %v1494 = vld [vmem:[%s1457 + $0x120] sm:$0xff]
        %v1495 = vld [vmem:[%s1457 + $0x128] sm:$0xff]
        %v1496 = vld [vmem:[%s1457 + $0x130] sm:$0xff]
        %v1497 = vld [vmem:[%s1457 + $0x138] sm:$0xff]
        %v1498 = vld [vmem:[%s1457 + $0x140] sm:$0xff]
        %v1499 = vld [vmem:[%s1457 + $0x148] sm:$0xff]
        %v1500 = vld [vmem:[%s1457 + $0x150] sm:$0xff]
        %v1501 = vld [vmem:[%s1457 + $0x158] sm:$0xff]
        %v1502 = vld [vmem:[%s1457 + $0x160] sm:$0xff]
        %v1503 = vld [vmem:[%s1457 + $0x168] sm:$0xff]
        %v1504 = vld [vmem:[%s1457 + $0x170] sm:$0xff]
        %v1505 = vld [vmem:[%s1457 + $0x178] sm:$0xff]
        %s1506 = scalar_lea.vmem [#allocation7], 6
        %v1507 = vld [vmem:[%s1506] sm:$0x7]
        %v1509 = vlaneseq
        %v1510 = vshrl.u32 %v1509, 7
        %v1511 = vsub.s32 0, %v1510
        %v1512 = vrot.slane %v1507, %v1511
        %v1513 = vlaneseq
        %v1514 = vshrl.u32 %v1513, 7
        %v1515 = vsub.s32 1, %v1514
        %v1516 = vrot.slane %v1507, %v1515
        %v1517 = vlaneseq
        %v1518 = vshrl.u32 %v1517, 7
        %v1519 = vsub.s32 2, %v1518
        %v1520 = vrot.slane %v1507, %v1519
        %1524 = vmatprep.subr.mxu0 %v1459
        %1525 = vmatpush1.msra.mxu0 %v1458
        %1526 = vmatprep.subr.mxu0 %v1462
        %1527 = vmatpush1.msra.mxu0 %v1461
        %1528 = vmatprep.subr.mxu0 %v1465
        %1529 = vmatpush1.msra.mxu0 %v1464
        %1530 = vmatprep.subr.mxu0 %v1468
        %1531 = vmatpush1.msra.mxu0 %v1467
        %1532 = vmatprep.subr.mxu0 %v1471
        %1533 = vmatpush1.msra.mxu0 %v1470
        %1534 = vmatprep.subr.mxu0 %v1474
        %1535 = vmatpush1.msra.mxu0 %v1473
        %1536 = vmatprep.subr.mxu0 %v1477
        %1537 = vmatpush1.msra.mxu0 %v1476
        %1538 = vmatprep.subr.mxu0 %v1480
        %1539 = vmatpush1.msra.mxu0 %v1479
        %1540 = vmatprep.subr.mxu0 %v1483
        %1541 = vmatpush1.msra.mxu0 %v1482
        %1542 = vmatprep.subr.mxu0 %v1486
        %1543 = vmatpush1.msra.mxu0 %v1485
        %1544 = vmatprep.subr.mxu0 %v1489
        %1545 = vmatpush1.msra.mxu0 %v1488
        %1546 = vmatprep.subr.mxu0 %v1492
        %1547 = vmatpush1.msra.mxu0 %v1491
        %1548 = vmatprep.subr.mxu0 %v1495
        %1549 = vmatpush1.msra.mxu0 %v1494
        %1550 = vmatprep.subr.mxu0 %v1498
        %1551 = vmatpush1.msra.mxu0 %v1497
        %1552 = vmatprep.subr.mxu0 %v1501
        %1553 = vmatpush1.msra.mxu0 %v1500
        %1554 = vmatprep.subr.mxu0 %v1504
        %1555 = vmatpush1.msra.mxu0 %v1503
        %1556 = vmatprep.subr.mxu0 0.0
        %1557 = vmatpush1.msra.mxu0 0.0
        %1558 = vmatprep.subr.mxu0 0.0
        %1559 = vmatpush1.msra.mxu0 0.0
        %1560 = vmatprep.subr.mxu0 0.0
        %1561 = vmatpush1.msra.mxu0 0.0
        %1562 = vmatprep.subr.mxu0 0.0
        %1563 = vmatpush1.msra.mxu0 0.0
        %1564 = vmatprep.subr.mxu0 0.0
        %1565 = vmatpush1.msra.mxu0 0.0
        %1566 = vmatprep.subr.mxu0 0.0
        %1567 = vmatpush1.msra.mxu0 0.0
        %1568 = vmatprep.subr.mxu0 0.0
        %1569 = vmatpush1.msra.mxu0 0.0
        %1570 = vmatprep.subr.mxu0 0.0
        %1571 = vmatpush1.msra.mxu0 0.0
        %1572 = vmatprep.subr.mxu0 0.0
        %1573 = vmatpush1.msra.mxu0 0.0
        %1574 = vmatprep.subr.mxu0 0.0
        %1575 = vmatpush1.msra.mxu0 0.0
        %1576 = vmatprep.subr.mxu0 0.0
        %1577 = vmatpush1.msra.mxu0 0.0
        %1578 = vmatprep.subr.mxu0 0.0
        %1579 = vmatpush1.msra.mxu0 0.0
        %1580 = vmatprep.subr.mxu0 0.0
        %1581 = vmatpush1.msra.mxu0 0.0
        %1582 = vmatprep.subr.mxu0 0.0
        %1583 = vmatpush1.msra.mxu0 0.0
        %1584 = vmatprep.subr.mxu0 0.0
        %1585 = vmatpush1.msra.mxu0 0.0
        %1586 = vmatprep.subr.mxu0 0.0
        %1587 = vmatpush1.msra.mxu0 0.0
        %1588 = vmatprep.mubr.f32.mxu0 0.0
        %1589 = vmatmul.mubr.f32.gmra.mrb[0].mxu0 %v534
        %v1590 = vpop.f32.mrb[0].mxu0
        %v1591 = vadd.f32 %v1512, %v1590
        %v1592 = vpop.f32.mrb[0].mxu0
        %v1593 = vadd.f32 %v1516, %v1592
        %1594 = vdwg.mxu0
        %1595 = vmatprep.subr.mxu0 0.0
        %1596 = vmatpush1.msra.mxu0 %v1460
        %1597 = vmatprep.subr.mxu0 0.0
        %1598 = vmatpush1.msra.mxu0 %v1463
        %1599 = vmatprep.subr.mxu0 0.0
        %1600 = vmatpush1.msra.mxu0 %v1466
        %1601 = vmatprep.subr.mxu0 0.0
        %1602 = vmatpush1.msra.mxu0 %v1469
        %1603 = vmatprep.subr.mxu0 0.0
        %1604 = vmatpush1.msra.mxu0 %v1472
        %1605 = vmatprep.subr.mxu0 0.0
        %1606 = vmatpush1.msra.mxu0 %v1475
        %1607 = vmatprep.subr.mxu0 0.0
        %1608 = vmatpush1.msra.mxu0 %v1478
        %1609 = vmatprep.subr.mxu0 0.0
        %1610 = vmatpush1.msra.mxu0 %v1481
        %1611 = vmatprep.subr.mxu0 0.0
        %1612 = vmatpush1.msra.mxu0 %v1484
        %1613 = vmatprep.subr.mxu0 0.0
        %1614 = vmatpush1.msra.mxu0 %v1487
        %1615 = vmatprep.subr.mxu0 0.0
        %1616 = vmatpush1.msra.mxu0 %v1490
        %1617 = vmatprep.subr.mxu0 0.0
        %1618 = vmatpush1.msra.mxu0 %v1493
        %1619 = vmatprep.subr.mxu0 0.0
        %1620 = vmatpush1.msra.mxu0 %v1496
        %1621 = vmatprep.subr.mxu0 0.0
        %1622 = vmatpush1.msra.mxu0 %v1499
        %1623 = vmatprep.subr.mxu0 0.0
        %1624 = vmatpush1.msra.mxu0 %v1502
        %1625 = vmatprep.subr.mxu0 0.0
        %1626 = vmatpush1.msra.mxu0 %v1505
        %1627 = vmatprep.subr.mxu0 0.0
        %1628 = vmatpush1.msra.mxu0 0.0
        %1629 = vmatprep.subr.mxu0 0.0
        %1630 = vmatpush1.msra.mxu0 0.0
        %1631 = vmatprep.subr.mxu0 0.0
        %1632 = vmatpush1.msra.mxu0 0.0
        %1633 = vmatprep.subr.mxu0 0.0
        %1634 = vmatpush1.msra.mxu0 0.0
        %1635 = vmatprep.subr.mxu0 0.0
        %1636 = vmatpush1.msra.mxu0 0.0
        %1637 = vmatprep.subr.mxu0 0.0
        %1638 = vmatpush1.msra.mxu0 0.0
        %1639 = vmatprep.subr.mxu0 0.0
        %1640 = vmatpush1.msra.mxu0 0.0
        %1641 = vmatprep.subr.mxu0 0.0
        %1642 = vmatpush1.msra.mxu0 0.0
        %1643 = vmatprep.subr.mxu0 0.0
        %1644 = vmatpush1.msra.mxu0 0.0
        %1645 = vmatprep.subr.mxu0 0.0
        %1646 = vmatpush1.msra.mxu0 0.0
        %1647 = vmatprep.subr.mxu0 0.0
        %1648 = vmatpush1.msra.mxu0 0.0
        %1649 = vmatprep.subr.mxu0 0.0
        %1650 = vmatpush1.msra.mxu0 0.0
        %1651 = vmatprep.subr.mxu0 0.0
        %1652 = vmatpush1.msra.mxu0 0.0
        %1653 = vmatprep.subr.mxu0 0.0
        %1654 = vmatpush1.msra.mxu0 0.0
        %1655 = vmatprep.subr.mxu0 0.0
        %1656 = vmatpush1.msra.mxu0 0.0
        %1657 = vmatprep.subr.mxu0 0.0
        %1658 = vmatpush1.msra.mxu0 0.0
        %1659 = vmatprep.mubr.f32.mxu0 0.0
        %1660 = vmatmul.mubr.f32.gmra.mrb[0].mxu0 %v534
        %v1661 = vpop.f32.mrb[0].mxu0
        %v1662 = vadd.f32 %v1520, %v1661
        %v1663 = vpop.f32.mrb[0].mxu0
        %1664 = vdwg.mxu0
        %v1665 = vmul.f32 %v1591, 0.35355338
        %1666 = vmatprep.subr.mxu0 0.0
        %1667 = vmatpush1.xpose.msra.mxu0 %v1593
        %1668 = vmatprep.subr.mxu0 0.0
        %1669 = vmatpush1.xpose.msra.mxu0 0.0
        %1670 = vmatprep.subr.mxu0 0.0
        %1671 = vmatpush1.xpose.msra.mxu0 0.0
        %1672 = vmatprep.subr.mxu0 0.0
        %1673 = vmatpush1.xpose.msra.mxu0 0.0
        %1674 = vmatprep.subr.mxu0 0.0
        %1675 = vmatpush1.xpose.msra.mxu0 0.0
        %1676 = vmatprep.subr.mxu0 0.0
        %1677 = vmatpush1.xpose.msra.mxu0 0.0
        %1678 = vmatprep.subr.mxu0 0.0
        %1679 = vmatpush1.xpose.msra.mxu0 0.0
        %1680 = vmatprep.subr.mxu0 0.0
        %1681 = vmatpush1.xpose.msra.mxu0 0.0
        %1682 = vmatprep.subr.mxu0 0.0
        %1683 = vmatpush1.xpose.msra.mxu0 0.0
        %1684 = vmatprep.subr.mxu0 0.0
        %1685 = vmatpush1.xpose.msra.mxu0 0.0
        %1686 = vmatprep.subr.mxu0 0.0
        %1687 = vmatpush1.xpose.msra.mxu0 0.0
        %1688 = vmatprep.subr.mxu0 0.0
        %1689 = vmatpush1.xpose.msra.mxu0 0.0
        %1690 = vmatprep.subr.mxu0 0.0
        %1691 = vmatpush1.xpose.msra.mxu0 0.0
        %1692 = vmatprep.subr.mxu0 0.0
        %1693 = vmatpush1.xpose.msra.mxu0 0.0
        %1694 = vmatprep.subr.mxu0 0.0
        %1695 = vmatpush1.xpose.msra.mxu0 0.0
        %1696 = vmatprep.subr.mxu0 0.0
        %1697 = vmatpush1.xpose.msra.mxu0 0.0
        %1698 = vmatprep.subr.mxu0 0.0
        %1699 = vmatpush1.xpose.msra.mxu0 0.0
        %1700 = vmatprep.subr.mxu0 0.0
        %1701 = vmatpush1.xpose.msra.mxu0 0.0
        %1702 = vmatprep.subr.mxu0 0.0
        %1703 = vmatpush1.xpose.msra.mxu0 0.0
        %1704 = vmatprep.subr.mxu0 0.0
        %1705 = vmatpush1.xpose.msra.mxu0 0.0
        %1706 = vmatprep.subr.mxu0 0.0
        %1707 = vmatpush1.xpose.msra.mxu0 0.0
        %1708 = vmatprep.subr.mxu0 0.0
        %1709 = vmatpush1.xpose.msra.mxu0 0.0
        %1710 = vmatprep.subr.mxu0 0.0
        %1711 = vmatpush1.xpose.msra.mxu0 0.0
        %1712 = vmatprep.subr.mxu0 0.0
        %1713 = vmatpush1.xpose.msra.mxu0 0.0
        %1714 = vmatprep.subr.mxu0 0.0
        %1715 = vmatpush1.xpose.msra.mxu0 0.0
        %1716 = vmatprep.subr.mxu0 0.0
        %1717 = vmatpush1.xpose.msra.mxu0 0.0
        %1718 = vmatprep.subr.mxu0 0.0
        %1719 = vmatpush1.xpose.msra.mxu0 0.0
        %1720 = vmatprep.subr.mxu0 0.0
        %1721 = vmatpush1.xpose.msra.mxu0 0.0
        %1722 = vmatprep.subr.mxu0 0.0
        %1723 = vmatpush1.xpose.msra.mxu0 0.0
        %1724 = vmatprep.subr.mxu0 0.0
        %1725 = vmatpush1.xpose.msra.mxu0 0.0
        %1726 = vmatprep.subr.mxu0 0.0
        %1727 = vmatpush1.xpose.msra.mxu0 0.0
        %1728 = vmatprep.subr.mxu0 0.0
        %1729 = vmatpush1.xpose.msra.mxu0 0.0
        %1730 = vmatprep.mubr.f32.mxu0 0.0
        %1731 = vmatmul.mubr.f32.gmra.mrb[0].mxu0 %v1665
        %v1732 = vpop.f32.mrb[0].mxu0
        %v1733 = vadd.f32 0.0, %v1732
        %v1734 = vpop.f32.mrb[0].mxu0
        %1735 = vdwg.mxu0
        %v1736 = vsel %vm820, %v1733, -inf
        %1737 = vmax.xlane.f32.xlu0 %v1736
        %v1738 = vpop.xlane.xlu0 %1737
        %v1739 = vmax.f32 %v1738, -1e+30
        %v1740 = vsub.f32 -1e+30, %v1739
        %v1741 = vmul.f32 %v1740, 1.442695
        %v1742 = vpow.pop %v1741
        %v1743 = vsub.f32 %v1733, %v1739
        %v1744 = vmul.f32 %v1743, 1.442695
        %v1745 = vpow.pop %v1744
        %v1746 = vmul.f32 %v1742, 0.0
        %v1747 = vsel %vm820, %v1745, 0.0
        %1748 = vadd.xlane.f32.xlu0 %v1747
        %v1749 = vpop.xlane.xlu0 %1748
        %v1750 = vadd.f32 %v1746, %v1749
        %v1752 = vsel %vm820, %v1745, 0
        %1754 = vmatprep.subr.mxu0 0.0
        %1755 = vmatpush1.msra.mxu0 %v1662
        %1756 = vmatprep.subr.mxu0 0.0
        %1757 = vmatpush1.msra.mxu0 0.0
        %1758 = vmatprep.subr.mxu0 0.0
        %1759 = vmatpush1.msra.mxu0 0.0
        %1760 = vmatprep.subr.mxu0 0.0
        %1761 = vmatpush1.msra.mxu0 0.0
        %1762 = vmatprep.subr.mxu0 0.0
        %1763 = vmatpush1.msra.mxu0 0.0
        %1764 = vmatprep.subr.mxu0 0.0
        %1765 = vmatpush1.msra.mxu0 0.0
        %1766 = vmatprep.subr.mxu0 0.0
        %1767 = vmatpush1.msra.mxu0 0.0
        %1768 = vmatprep.subr.mxu0 0.0
        %1769 = vmatpush1.msra.mxu0 0.0
        %1770 = vmatprep.subr.mxu0 0.0
        %1771 = vmatpush1.msra.mxu0 0.0
        %1772 = vmatprep.subr.mxu0 0.0
        %1773 = vmatpush1.msra.mxu0 0.0
        %1774 = vmatprep.subr.mxu0 0.0
        %1775 = vmatpush1.msra.mxu0 0.0
        %1776 = vmatprep.subr.mxu0 0.0
        %1777 = vmatpush1.msra.mxu0 0.0
        %1778 = vmatprep.subr.mxu0 0.0
        %1779 = vmatpush1.msra.mxu0 0.0
        %1780 = vmatprep.subr.mxu0 0.0
        %1781 = vmatpush1.msra.mxu0 0.0
        %1782 = vmatprep.subr.mxu0 0.0
        %1783 = vmatpush1.msra.mxu0 0.0
        %1784 = vmatprep.subr.mxu0 0.0
        %1785 = vmatpush1.msra.mxu0 0.0
        %1786 = vmatprep.subr.mxu0 0.0
        %1787 = vmatpush1.msra.mxu0 0.0
        %1788 = vmatprep.subr.mxu0 0.0
        %1789 = vmatpush1.msra.mxu0 0.0
        %1790 = vmatprep.subr.mxu0 0.0
        %1791 = vmatpush1.msra.mxu0 0.0
        %1792 = vmatprep.subr.mxu0 0.0
        %1793 = vmatpush1.msra.mxu0 0.0
        %1794 = vmatprep.subr.mxu0 0.0
        %1795 = vmatpush1.msra.mxu0 0.0
        %1796 = vmatprep.subr.mxu0 0.0
        %1797 = vmatpush1.msra.mxu0 0.0
        %1798 = vmatprep.subr.mxu0 0.0
        %1799 = vmatpush1.msra.mxu0 0.0
        %1800 = vmatprep.subr.mxu0 0.0
        %1801 = vmatpush1.msra.mxu0 0.0
        %1802 = vmatprep.subr.mxu0 0.0
        %1803 = vmatpush1.msra.mxu0 0.0
        %1804 = vmatprep.subr.mxu0 0.0
        %1805 = vmatpush1.msra.mxu0 0.0
        %1806 = vmatprep.subr.mxu0 0.0
        %1807 = vmatpush1.msra.mxu0 0.0
        %1808 = vmatprep.subr.mxu0 0.0
        %1809 = vmatpush1.msra.mxu0 0.0
        %1810 = vmatprep.subr.mxu0 0.0
        %1811 = vmatpush1.msra.mxu0 0.0
        %1812 = vmatprep.subr.mxu0 0.0
        %1813 = vmatpush1.msra.mxu0 0.0
        %1814 = vmatprep.subr.mxu0 0.0
        %1815 = vmatpush1.msra.mxu0 0.0
        %1816 = vmatprep.subr.mxu0 0.0
        %1817 = vmatpush1.msra.mxu0 0.0
        %1818 = vmatprep.mubr.f32.mxu0 0.0
        %1819 = vmatmul.mubr.f32.gmra.mrb[0].mxu0 %v1752
        %v1820 = vpop.f32.mrb[0].mxu0
        %v1821 = vadd.f32 0.0, %v1820
        %v1822 = vpop.f32.mrb[0].mxu0
        %1823 = vdwg.mxu0
        %v1824 = vadd.f32 %v1746, %v1821
        %v1825 = vrcp.pop %v1750
        %v1826 = vmul.f32 %v1824, %v1825
        %s1827 = scalar_lea.vmem [#allocation8], 256
        %v1828 = vld [vmem:[%s1827] sm:$0xff]
        %v1829 = vld [vmem:[%s1827 + $0x8] sm:$0xff]
        %v1830 = vld [vmem:[%s1827 + $0x10] sm:$0xff]
        %v1831 = vld [vmem:[%s1827 + $0x18] sm:$0xff]
        %v1832 = vld [vmem:[%s1827 + $0x20] sm:$0xff]
        %v1833 = vld [vmem:[%s1827 + $0x28] sm:$0xff]
        %v1834 = vld [vmem:[%s1827 + $0x30] sm:$0xff]
        %v1835 = vld [vmem:[%s1827 + $0x38] sm:$0xff]
        %v1836 = vld [vmem:[%s1827 + $0x40] sm:$0xff]
        %v1837 = vld [vmem:[%s1827 + $0x48] sm:$0xff]
        %v1838 = vld [vmem:[%s1827 + $0x50] sm:$0xff]
        %v1839 = vld [vmem:[%s1827 + $0x58] sm:$0xff]
        %v1840 = vld [vmem:[%s1827 + $0x60] sm:$0xff]
        %v1841 = vld [vmem:[%s1827 + $0x68] sm:$0xff]
        %v1842 = vld [vmem:[%s1827 + $0x70] sm:$0xff]
        %v1843 = vld [vmem:[%s1827 + $0x78] sm:$0xff]
        %1844 = vmatprep.subr.mxu0 0.0
        %1845 = vmatpush1.msra.mxu0 %v1828
        %1846 = vmatprep.subr.mxu0 0.0
        %1847 = vmatpush1.msra.mxu0 %v1829
        %1848 = vmatprep.subr.mxu0 0.0
        %1849 = vmatpush1.msra.mxu0 %v1830
        %1850 = vmatprep.subr.mxu0 0.0
        %1851 = vmatpush1.msra.mxu0 %v1831
        %1852 = vmatprep.subr.mxu0 0.0
        %1853 = vmatpush1.msra.mxu0 %v1832
        %1854 = vmatprep.subr.mxu0 0.0
        %1855 = vmatpush1.msra.mxu0 %v1833
        %1856 = vmatprep.subr.mxu0 0.0
        %1857 = vmatpush1.msra.mxu0 %v1834
        %1858 = vmatprep.subr.mxu0 0.0
        %1859 = vmatpush1.msra.mxu0 %v1835
        %1860 = vmatprep.subr.mxu0 0.0
        %1861 = vmatpush1.msra.mxu0 %v1836
        %1862 = vmatprep.subr.mxu0 0.0
        %1863 = vmatpush1.msra.mxu0 %v1837
        %1864 = vmatprep.subr.mxu0 0.0
        %1865 = vmatpush1.msra.mxu0 %v1838
        %1866 = vmatprep.subr.mxu0 0.0
        %1867 = vmatpush1.msra.mxu0 %v1839
        %1868 = vmatprep.subr.mxu0 0.0
        %1869 = vmatpush1.msra.mxu0 %v1840
        %1870 = vmatprep.subr.mxu0 0.0
        %1871 = vmatpush1.msra.mxu0 %v1841
        %1872 = vmatprep.subr.mxu0 0.0
        %1873 = vmatpush1.msra.mxu0 %v1842
        %1874 = vmatprep.subr.mxu0 0.0
        %1875 = vmatpush1.msra.mxu0 %v1843
        %1876 = vmatprep.subr.mxu0 0.0
        %1877 = vmatpush1.msra.mxu0 0.0
        %1878 = vmatprep.subr.mxu0 0.0
        %1879 = vmatpush1.msra.mxu0 0.0
        %1880 = vmatprep.subr.mxu0 0.0
        %1881 = vmatpush1.msra.mxu0 0.0
        %1882 = vmatprep.subr.mxu0 0.0
        %1883 = vmatpush1.msra.mxu0 0.0
        %1884 = vmatprep.subr.mxu0 0.0
        %1885 = vmatpush1.msra.mxu0 0.0
        %1886 = vmatprep.subr.mxu0 0.0
        %1887 = vmatpush1.msra.mxu0 0.0
        %1888 = vmatprep.subr.mxu0 0.0
        %1889 = vmatpush1.msra.mxu0 0.0
        %1890 = vmatprep.subr.mxu0 0.0
        %1891 = vmatpush1.msra.mxu0 0.0
        %1892 = vmatprep.subr.mxu0 0.0
        %1893 = vmatpush1.msra.mxu0 0.0
        %1894 = vmatprep.subr.mxu0 0.0
        %1895 = vmatpush1.msra.mxu0 0.0
        %1896 = vmatprep.subr.mxu0 0.0
        %1897 = vmatpush1.msra.mxu0 0.0
        %1898 = vmatprep.subr.mxu0 0.0
        %1899 = vmatpush1.msra.mxu0 0.0
        %1900 = vmatprep.subr.mxu0 0.0
        %1901 = vmatpush1.msra.mxu0 0.0
        %1902 = vmatprep.subr.mxu0 0.0
        %1903 = vmatpush1.msra.mxu0 0.0
        %1904 = vmatprep.subr.mxu0 0.0
        %1905 = vmatpush1.msra.mxu0 0.0
        %1906 = vmatprep.subr.mxu0 0.0
        %1907 = vmatpush1.msra.mxu0 0.0
        %1908 = vmatprep.mubr.f32.mxu0 0.0
        %1909 = vmatmul.mubr.f32.gmra.mrb[0].mxu0 %v1826
        %v1910 = vpop.f32.mrb[0].mxu0
        %v1911 = vadd.f32 0.0, %v1910
        %v1912 = vpop.f32.mrb[0].mxu0
        %1913 = vdwg.mxu0
        %v1914 = vadd.f32 %v1456, %v1911
        %s1915 = scalar_lea.vmem [#allocation5], 1152
        %v1916 = vld [vmem:[%s1915] sm:$0xff]
        %v1917 = vld [vmem:[%s1915 + $0x8] sm:$0xff]
        %v1918 = vld [vmem:[%s1915 + $0x10] sm:$0xff]
        %v1919 = vld [vmem:[%s1915 + $0x18] sm:$0xff]
        %v1920 = vld [vmem:[%s1915 + $0x20] sm:$0xff]
        %v1921 = vld [vmem:[%s1915 + $0x28] sm:$0xff]
        %v1922 = vld [vmem:[%s1915 + $0x30] sm:$0xff]
        %v1923 = vld [vmem:[%s1915 + $0x38] sm:$0xff]
        %v1924 = vld [vmem:[%s1915 + $0x40] sm:$0xff]
        %v1925 = vld [vmem:[%s1915 + $0x48] sm:$0xff]
        %v1926 = vld [vmem:[%s1915 + $0x50] sm:$0xff]
        %v1927 = vld [vmem:[%s1915 + $0x58] sm:$0xff]
        %v1928 = vld [vmem:[%s1915 + $0x60] sm:$0xff]
        %v1929 = vld [vmem:[%s1915 + $0x68] sm:$0xff]
        %v1930 = vld [vmem:[%s1915 + $0x70] sm:$0xff]
        %v1931 = vld [vmem:[%s1915 + $0x78] sm:$0xff]
        %v1932 = vld [vmem:[%s1915 + $0x80] sm:$0xff]
        %v1933 = vld [vmem:[%s1915 + $0x88] sm:$0xff]
        %v1934 = vld [vmem:[%s1915 + $0x90] sm:$0xff]
        %v1935 = vld [vmem:[%s1915 + $0x98] sm:$0xff]
        %v1936 = vld [vmem:[%s1915 + $0xa0] sm:$0xff]
        %v1937 = vld [vmem:[%s1915 + $0xa8] sm:$0xff]
        %v1938 = vld [vmem:[%s1915 + $0xb0] sm:$0xff]
        %v1939 = vld [vmem:[%s1915 + $0xb8] sm:$0xff]
        %v1940 = vld [vmem:[%s1915 + $0xc0] sm:$0xff]
        %v1941 = vld [vmem:[%s1915 + $0xc8] sm:$0xff]
        %v1942 = vld [vmem:[%s1915 + $0xd0] sm:$0xff]
        %v1943 = vld [vmem:[%s1915 + $0xd8] sm:$0xff]
        %v1944 = vld [vmem:[%s1915 + $0xe0] sm:$0xff]
        %v1945 = vld [vmem:[%s1915 + $0xe8] sm:$0xff]
        %v1946 = vld [vmem:[%s1915 + $0xf0] sm:$0xff]
        %v1947 = vld [vmem:[%s1915 + $0xf8] sm:$0xff]
        %v1948 = vld [vmem:[%s1915 + $0x100] sm:$0xff]
        %v1949 = vld [vmem:[%s1915 + $0x108] sm:$0xff]
        %v1950 = vld [vmem:[%s1915 + $0x110] sm:$0xff]
        %v1951 = vld [vmem:[%s1915 + $0x118] sm:$0xff]
        %v1952 = vld [vmem:[%s1915 + $0x120] sm:$0xff]
        %v1953 = vld [vmem:[%s1915 + $0x128] sm:$0xff]
        %v1954 = vld [vmem:[%s1915 + $0x130] sm:$0xff]
        %v1955 = vld [vmem:[%s1915 + $0x138] sm:$0xff]
        %v1956 = vld [vmem:[%s1915 + $0x140] sm:$0xff]
        %v1957 = vld [vmem:[%s1915 + $0x148] sm:$0xff]
        %v1958 = vld [vmem:[%s1915 + $0x150] sm:$0xff]
        %v1959 = vld [vmem:[%s1915 + $0x158] sm:$0xff]
        %v1960 = vld [vmem:[%s1915 + $0x160] sm:$0xff]
        %v1961 = vld [vmem:[%s1915 + $0x168] sm:$0xff]
        %v1962 = vld [vmem:[%s1915 + $0x170] sm:$0xff]
        %v1963 = vld [vmem:[%s1915 + $0x178] sm:$0xff]
        %s1964 = scalar_lea.vmem [#allocation7], 9
        %v1965 = vld [vmem:[%s1964] sm:$0x7]
        %v1967 = vlaneseq
        %v1968 = vshrl.u32 %v1967, 7
        %v1969 = vsub.s32 0, %v1968
        %v1970 = vrot.slane %v1965, %v1969
        %v1971 = vlaneseq
        %v1972 = vshrl.u32 %v1971, 7
        %v1973 = vsub.s32 1, %v1972
        %v1974 = vrot.slane %v1965, %v1973
        %v1975 = vlaneseq
        %v1976 = vshrl.u32 %v1975, 7
        %v1977 = vsub.s32 2, %v1976
        %v1978 = vrot.slane %v1965, %v1977
        %1982 = vmatprep.subr.mxu0 %v1917
        %1983 = vmatpush1.msra.mxu0 %v1916
        %1984 = vmatprep.subr.mxu0 %v1920
        %1985 = vmatpush1.msra.mxu0 %v1919
        %1986 = vmatprep.subr.mxu0 %v1923
        %1987 = vmatpush1.msra.mxu0 %v1922
        %1988 = vmatprep.subr.mxu0 %v1926
        %1989 = vmatpush1.msra.mxu0 %v1925
        %1990 = vmatprep.subr.mxu0 %v1929
        %1991 = vmatpush1.msra.mxu0 %v1928
        %1992 = vmatprep.subr.mxu0 %v1932
        %1993 = vmatpush1.msra.mxu0 %v1931
        %1994 = vmatprep.subr.mxu0 %v1935
        %1995 = vmatpush1.msra.mxu0 %v1934
        %1996 = vmatprep.subr.mxu0 %v1938
        %1997 = vmatpush1.msra.mxu0 %v1937
        %1998 = vmatprep.subr.mxu0 %v1941
        %1999 = vmatpush1.msra.mxu0 %v1940
        %2000 = vmatprep.subr.mxu0 %v1944
        %2001 = vmatpush1.msra.mxu0 %v1943
        %2002 = vmatprep.subr.mxu0 %v1947
        %2003 = vmatpush1.msra.mxu0 %v1946
        %2004 = vmatprep.subr.mxu0 %v1950
        %2005 = vmatpush1.msra.mxu0 %v1949
        %2006 = vmatprep.subr.mxu0 %v1953
        %2007 = vmatpush1.msra.mxu0 %v1952
        %2008 = vmatprep.subr.mxu0 %v1956
        %2009 = vmatpush1.msra.mxu0 %v1955
        %2010 = vmatprep.subr.mxu0 %v1959
        %2011 = vmatpush1.msra.mxu0 %v1958
        %2012 = vmatprep.subr.mxu0 %v1962
        %2013 = vmatpush1.msra.mxu0 %v1961
        %2014 = vmatprep.subr.mxu0 0.0
        %2015 = vmatpush1.msra.mxu0 0.0
        %2016 = vmatprep.subr.mxu0 0.0
        %2017 = vmatpush1.msra.mxu0 0.0
        %2018 = vmatprep.subr.mxu0 0.0
        %2019 = vmatpush1.msra.mxu0 0.0
        %2020 = vmatprep.subr.mxu0 0.0
        %2021 = vmatpush1.msra.mxu0 0.0
        %2022 = vmatprep.subr.mxu0 0.0
        %2023 = vmatpush1.msra.mxu0 0.0
        %2024 = vmatprep.subr.mxu0 0.0
        %2025 = vmatpush1.msra.mxu0 0.0
        %2026 = vmatprep.subr.mxu0 0.0
        %2027 = vmatpush1.msra.mxu0 0.0
        %2028 = vmatprep.subr.mxu0 0.0
        %2029 = vmatpush1.msra.mxu0 0.0
        %2030 = vmatprep.subr.mxu0 0.0
        %2031 = vmatpush1.msra.mxu0 0.0
        %2032 = vmatprep.subr.mxu0 0.0
        %2033 = vmatpush1.msra.mxu0 0.0
        %2034 = vmatprep.subr.mxu0 0.0
        %2035 = vmatpush1.msra.mxu0 0.0
        %2036 = vmatprep.subr.mxu0 0.0
        %2037 = vmatpush1.msra.mxu0 0.0
        %2038 = vmatprep.subr.mxu0 0.0
        %2039 = vmatpush1.msra.mxu0 0.0
        %2040 = vmatprep.subr.mxu0 0.0
        %2041 = vmatpush1.msra.mxu0 0.0
        %2042 = vmatprep.subr.mxu0 0.0
        %2043 = vmatpush1.msra.mxu0 0.0
        %2044 = vmatprep.subr.mxu0 0.0
        %2045 = vmatpush1.msra.mxu0 0.0
        %2046 = vmatprep.mubr.f32.mxu0 0.0
        %2047 = vmatmul.mubr.f32.gmra.mrb[0].mxu0 %v534
        %v2048 = vpop.f32.mrb[0].mxu0
        %v2049 = vadd.f32 %v1970, %v2048
        %v2050 = vpop.f32.mrb[0].mxu0
        %v2051 = vadd.f32 %v1974, %v2050
        %2052 = vdwg.mxu0
        %2053 = vmatprep.subr.mxu0 0.0
        %2054 = vmatpush1.msra.mxu0 %v1918
        %2055 = vmatprep.subr.mxu0 0.0
        %2056 = vmatpush1.msra.mxu0 %v1921
        %2057 = vmatprep.subr.mxu0 0.0
        %2058 = vmatpush1.msra.mxu0 %v1924
        %2059 = vmatprep.subr.mxu0 0.0
        %2060 = vmatpush1.msra.mxu0 %v1927
        %2061 = vmatprep.subr.mxu0 0.0
        %2062 = vmatpush1.msra.mxu0 %v1930
        %2063 = vmatprep.subr.mxu0 0.0
        %2064 = vmatpush1.msra.mxu0 %v1933
        %2065 = vmatprep.subr.mxu0 0.0
        %2066 = vmatpush1.msra.mxu0 %v1936
        %2067 = vmatprep.subr.mxu0 0.0
        %2068 = vmatpush1.msra.mxu0 %v1939
        %2069 = vmatprep.subr.mxu0 0.0
        %2070 = vmatpush1.msra.mxu0 %v1942
        %2071 = vmatprep.subr.mxu0 0.0
        %2072 = vmatpush1.msra.mxu0 %v1945
        %2073 = vmatprep.subr.mxu0 0.0
        %2074 = vmatpush1.msra.mxu0 %v1948
        %2075 = vmatprep.subr.mxu0 0.0
        %2076 = vmatpush1.msra.mxu0 %v1951
        %2077 = vmatprep.subr.mxu0 0.0
        %2078 = vmatpush1.msra.mxu0 %v1954
        %2079 = vmatprep.subr.mxu0 0.0
        %2080 = vmatpush1.msra.mxu0 %v1957
        %2081 = vmatprep.subr.mxu0 0.0
        %2082 = vmatpush1.msra.mxu0 %v1960
        %2083 = vmatprep.subr.mxu0 0.0
        %2084 = vmatpush1.msra.mxu0 %v1963
        %2085 = vmatprep.subr.mxu0 0.0
        %2086 = vmatpush1.msra.mxu0 0.0
        %2087 = vmatprep.subr.mxu0 0.0
        %2088 = vmatpush1.msra.mxu0 0.0
        %2089 = vmatprep.subr.mxu0 0.0
        %2090 = vmatpush1.msra.mxu0 0.0
        %2091 = vmatprep.subr.mxu0 0.0
        %2092 = vmatpush1.msra.mxu0 0.0
        %2093 = vmatprep.subr.mxu0 0.0
        %2094 = vmatpush1.msra.mxu0 0.0
        %2095 = vmatprep.subr.mxu0 0.0
        %2096 = vmatpush1.msra.mxu0 0.0
        %2097 = vmatprep.subr.mxu0 0.0
        %2098 = vmatpush1.msra.mxu0 0.0
        %2099 = vmatprep.subr.mxu0 0.0
        %2100 = vmatpush1.msra.mxu0 0.0
        %2101 = vmatprep.subr.mxu0 0.0
        %2102 = vmatpush1.msra.mxu0 0.0
        %2103 = vmatprep.subr.mxu0 0.0
        %2104 = vmatpush1.msra.mxu0 0.0
        %2105 = vmatprep.subr.mxu0 0.0
        %2106 = vmatpush1.msra.mxu0 0.0
        %2107 = vmatprep.subr.mxu0 0.0
        %2108 = vmatpush1.msra.mxu0 0.0
        %2109 = vmatprep.subr.mxu0 0.0
        %2110 = vmatpush1.msra.mxu0 0.0
        %2111 = vmatprep.subr.mxu0 0.0
        %2112 = vmatpush1.msra.mxu0 0.0
        %2113 = vmatprep.subr.mxu0 0.0
        %2114 = vmatpush1.msra.mxu0 0.0
        %2115 = vmatprep.subr.mxu0 0.0
        %2116 = vmatpush1.msra.mxu0 0.0
        %2117 = vmatprep.mubr.f32.mxu0 0.0
        %2118 = vmatmul.mubr.f32.gmra.mrb[0].mxu0 %v534
        %v2119 = vpop.f32.mrb[0].mxu0
        %v2120 = vadd.f32 %v1978, %v2119
        %v2121 = vpop.f32.mrb[0].mxu0
        %2122 = vdwg.mxu0
        %v2123 = vmul.f32 %v2049, 0.35355338
        %2124 = vmatprep.subr.mxu0 0.0
        %2125 = vmatpush1.xpose.msra.mxu0 %v2051
        %2126 = vmatprep.subr.mxu0 0.0
        %2127 = vmatpush1.xpose.msra.mxu0 0.0
        %2128 = vmatprep.subr.mxu0 0.0
        %2129 = vmatpush1.xpose.msra.mxu0 0.0
        %2130 = vmatprep.subr.mxu0 0.0
        %2131 = vmatpush1.xpose.msra.mxu0 0.0
        %2132 = vmatprep.subr.mxu0 0.0
        %2133 = vmatpush1.xpose.msra.mxu0 0.0
        %2134 = vmatprep.subr.mxu0 0.0
        %2135 = vmatpush1.xpose.msra.mxu0 0.0
        %2136 = vmatprep.subr.mxu0 0.0
        %2137 = vmatpush1.xpose.msra.mxu0 0.0
        %2138 = vmatprep.subr.mxu0 0.0
        %2139 = vmatpush1.xpose.msra.mxu0 0.0
        %2140 = vmatprep.subr.mxu0 0.0
        %2141 = vmatpush1.xpose.msra.mxu0 0.0
        %2142 = vmatprep.subr.mxu0 0.0
        %2143 = vmatpush1.xpose.msra.mxu0 0.0
        %2144 = vmatprep.subr.mxu0 0.0
        %2145 = vmatpush1.xpose.msra.mxu0 0.0
        %2146 = vmatprep.subr.mxu0 0.0
        %2147 = vmatpush1.xpose.msra.mxu0 0.0
        %2148 = vmatprep.subr.mxu0 0.0
        %2149 = vmatpush1.xpose.msra.mxu0 0.0
        %2150 = vmatprep.subr.mxu0 0.0
        %2151 = vmatpush1.xpose.msra.mxu0 0.0
        %2152 = vmatprep.subr.mxu0 0.0
        %2153 = vmatpush1.xpose.msra.mxu0 0.0
        %2154 = vmatprep.subr.mxu0 0.0
        %2155 = vmatpush1.xpose.msra.mxu0 0.0
        %2156 = vmatprep.subr.mxu0 0.0
        %2157 = vmatpush1.xpose.msra.mxu0 0.0
        %2158 = vmatprep.subr.mxu0 0.0
        %2159 = vmatpush1.xpose.msra.mxu0 0.0
        %2160 = vmatprep.subr.mxu0 0.0
        %2161 = vmatpush1.xpose.msra.mxu0 0.0
        %2162 = vmatprep.subr.mxu0 0.0
        %2163 = vmatpush1.xpose.msra.mxu0 0.0
        %2164 = vmatprep.subr.mxu0 0.0
        %2165 = vmatpush1.xpose.msra.mxu0 0.0
        %2166 = vmatprep.subr.mxu0 0.0
        %2167 = vmatpush1.xpose.msra.mxu0 0.0
        %2168 = vmatprep.subr.mxu0 0.0
        %2169 = vmatpush1.xpose.msra.mxu0 0.0
        %2170 = vmatprep.subr.mxu0 0.0
        %2171 = vmatpush1.xpose.msra.mxu0 0.0
        %2172 = vmatprep.subr.mxu0 0.0
        %2173 = vmatpush1.xpose.msra.mxu0 0.0
        %2174 = vmatprep.subr.mxu0 0.0
        %2175 = vmatpush1.xpose.msra.mxu0 0.0
        %2176 = vmatprep.subr.mxu0 0.0
        %2177 = vmatpush1.xpose.msra.mxu0 0.0
        %2178 = vmatprep.subr.mxu0 0.0
        %2179 = vmatpush1.xpose.msra.mxu0 0.0
        %2180 = vmatprep.subr.mxu0 0.0
        %2181 = vmatpush1.xpose.msra.mxu0 0.0
        %2182 = vmatprep.subr.mxu0 0.0
        %2183 = vmatpush1.xpose.msra.mxu0 0.0
        %2184 = vmatprep.subr.mxu0 0.0
        %2185 = vmatpush1.xpose.msra.mxu0 0.0
        %2186 = vmatprep.subr.mxu0 0.0
        %2187 = vmatpush1.xpose.msra.mxu0 0.0
        %2188 = vmatprep.mubr.f32.mxu0 0.0
        %2189 = vmatmul.mubr.f32.gmra.mrb[0].mxu0 %v2123
        %v2190 = vpop.f32.mrb[0].mxu0
        %v2191 = vadd.f32 0.0, %v2190
        %v2192 = vpop.f32.mrb[0].mxu0
        %2193 = vdwg.mxu0
        %v2194 = vsel %vm820, %v2191, -inf
        %2195 = vmax.xlane.f32.xlu0 %v2194
        %v2196 = vpop.xlane.xlu0 %2195
        %v2197 = vmax.f32 %v2196, -1e+30
        %v2198 = vsub.f32 -1e+30, %v2197
        %v2199 = vmul.f32 %v2198, 1.442695
        %v2200 = vpow.pop %v2199
        %v2201 = vsub.f32 %v2191, %v2197
        %v2202 = vmul.f32 %v2201, 1.442695
        %v2203 = vpow.pop %v2202
        %v2204 = vmul.f32 %v2200, 0.0
        %v2205 = vsel %vm820, %v2203, 0.0
        %2206 = vadd.xlane.f32.xlu0 %v2205
        %v2207 = vpop.xlane.xlu0 %2206
        %v2208 = vadd.f32 %v2204, %v2207
        %v2210 = vsel %vm820, %v2203, 0
        %2212 = vmatprep.subr.mxu0 0.0
        %2213 = vmatpush1.msra.mxu0 %v2120
        %2214 = vmatprep.subr.mxu0 0.0
        %2215 = vmatpush1.msra.mxu0 0.0
        %2216 = vmatprep.subr.mxu0 0.0
        %2217 = vmatpush1.msra.mxu0 0.0
        %2218 = vmatprep.subr.mxu0 0.0
        %2219 = vmatpush1.msra.mxu0 0.0
        %2220 = vmatprep.subr.mxu0 0.0
        %2221 = vmatpush1.msra.mxu0 0.0
        %2222 = vmatprep.subr.mxu0 0.0
        %2223 = vmatpush1.msra.mxu0 0.0
        %2224 = vmatprep.subr.mxu0 0.0
        %2225 = vmatpush1.msra.mxu0 0.0
        %2226 = vmatprep.subr.mxu0 0.0
        %2227 = vmatpush1.msra.mxu0 0.0
        %2228 = vmatprep.subr.mxu0 0.0
        %2229 = vmatpush1.msra.mxu0 0.0
        %2230 = vmatprep.subr.mxu0 0.0
        %2231 = vmatpush1.msra.mxu0 0.0
        %2232 = vmatprep.subr.mxu0 0.0
        %2233 = vmatpush1.msra.mxu0 0.0
        %2234 = vmatprep.subr.mxu0 0.0
        %2235 = vmatpush1.msra.mxu0 0.0
        %2236 = vmatprep.subr.mxu0 0.0
        %2237 = vmatpush1.msra.mxu0 0.0
        %2238 = vmatprep.subr.mxu0 0.0
        %2239 = vmatpush1.msra.mxu0 0.0
        %2240 = vmatprep.subr.mxu0 0.0
        %2241 = vmatpush1.msra.mxu0 0.0
        %2242 = vmatprep.subr.mxu0 0.0
        %2243 = vmatpush1.msra.mxu0 0.0
        %2244 = vmatprep.subr.mxu0 0.0
        %2245 = vmatpush1.msra.mxu0 0.0
        %2246 = vmatprep.subr.mxu0 0.0
        %2247 = vmatpush1.msra.mxu0 0.0
        %2248 = vmatprep.subr.mxu0 0.0
        %2249 = vmatpush1.msra.mxu0 0.0
        %2250 = vmatprep.subr.mxu0 0.0
        %2251 = vmatpush1.msra.mxu0 0.0
        %2252 = vmatprep.subr.mxu0 0.0
        %2253 = vmatpush1.msra.mxu0 0.0
        %2254 = vmatprep.subr.mxu0 0.0
        %2255 = vmatpush1.msra.mxu0 0.0
        %2256 = vmatprep.subr.mxu0 0.0
        %2257 = vmatpush1.msra.mxu0 0.0
        %2258 = vmatprep.subr.mxu0 0.0
        %2259 = vmatpush1.msra.mxu0 0.0
        %2260 = vmatprep.subr.mxu0 0.0
        %2261 = vmatpush1.msra.mxu0 0.0
        %2262 = vmatprep.subr.mxu0 0.0
        %2263 = vmatpush1.msra.mxu0 0.0
        %2264 = vmatprep.subr.mxu0 0.0
        %2265 = vmatpush1.msra.mxu0 0.0
        %2266 = vmatprep.subr.mxu0 0.0
        %2267 = vmatpush1.msra.mxu0 0.0
        %2268 = vmatprep.subr.mxu0 0.0
        %2269 = vmatpush1.msra.mxu0 0.0
        %2270 = vmatprep.subr.mxu0 0.0
        %2271 = vmatpush1.msra.mxu0 0.0
        %2272 = vmatprep.subr.mxu0 0.0
        %2273 = vmatpush1.msra.mxu0 0.0
        %2274 = vmatprep.subr.mxu0 0.0
        %2275 = vmatpush1.msra.mxu0 0.0
        %2276 = vmatprep.mubr.f32.mxu0 0.0
        %2277 = vmatmul.mubr.f32.gmra.mrb[0].mxu0 %v2210
        %v2278 = vpop.f32.mrb[0].mxu0
        %v2279 = vadd.f32 0.0, %v2278
        %v2280 = vpop.f32.mrb[0].mxu0
        %2281 = vdwg.mxu0
        %v2282 = vadd.f32 %v2204, %v2279
        %v2283 = vrcp.pop %v2208
        %v2284 = vmul.f32 %v2282, %v2283
        %s2285 = scalar_lea.vmem [#allocation8], 384
        %v2286 = vld [vmem:[%s2285] sm:$0xff]
        %v2287 = vld [vmem:[%s2285 + $0x8] sm:$0xff]
        %v2288 = vld [vmem:[%s2285 + $0x10] sm:$0xff]
        %v2289 = vld [vmem:[%s2285 + $0x18] sm:$0xff]
        %v2290 = vld [vmem:[%s2285 + $0x20] sm:$0xff]
        %v2291 = vld [vmem:[%s2285 + $0x28] sm:$0xff]
        %v2292 = vld [vmem:[%s2285 + $0x30] sm:$0xff]
        %v2293 = vld [vmem:[%s2285 + $0x38] sm:$0xff]
        %v2294 = vld [vmem:[%s2285 + $0x40] sm:$0xff]
        %v2295 = vld [vmem:[%s2285 + $0x48] sm:$0xff]
        %v2296 = vld [vmem:[%s2285 + $0x50] sm:$0xff]
        %v2297 = vld [vmem:[%s2285 + $0x58] sm:$0xff]
        %v2298 = vld [vmem:[%s2285 + $0x60] sm:$0xff]
        %v2299 = vld [vmem:[%s2285 + $0x68] sm:$0xff]
        %v2300 = vld [vmem:[%s2285 + $0x70] sm:$0xff]
        %v2301 = vld [vmem:[%s2285 + $0x78] sm:$0xff]
        %2302 = vmatprep.subr.mxu0 0.0
        %2303 = vmatpush1.msra.mxu0 %v2286
        %2304 = vmatprep.subr.mxu0 0.0
        %2305 = vmatpush1.msra.mxu0 %v2287
        %2306 = vmatprep.subr.mxu0 0.0
        %2307 = vmatpush1.msra.mxu0 %v2288
        %2308 = vmatprep.subr.mxu0 0.0
        %2309 = vmatpush1.msra.mxu0 %v2289
        %2310 = vmatprep.subr.mxu0 0.0
        %2311 = vmatpush1.msra.mxu0 %v2290
        %2312 = vmatprep.subr.mxu0 0.0
        %2313 = vmatpush1.msra.mxu0 %v2291
        %2314 = vmatprep.subr.mxu0 0.0
        %2315 = vmatpush1.msra.mxu0 %v2292
        %2316 = vmatprep.subr.mxu0 0.0
        %2317 = vmatpush1.msra.mxu0 %v2293
        %2318 = vmatprep.subr.mxu0 0.0
        %2319 = vmatpush1.msra.mxu0 %v2294
        %2320 = vmatprep.subr.mxu0 0.0
        %2321 = vmatpush1.msra.mxu0 %v2295
        %2322 = vmatprep.subr.mxu0 0.0
        %2323 = vmatpush1.msra.mxu0 %v2296
        %2324 = vmatprep.subr.mxu0 0.0
        %2325 = vmatpush1.msra.mxu0 %v2297
        %2326 = vmatprep.subr.mxu0 0.0
        %2327 = vmatpush1.msra.mxu0 %v2298
        %2328 = vmatprep.subr.mxu0 0.0
        %2329 = vmatpush1.msra.mxu0 %v2299
        %2330 = vmatprep.subr.mxu0 0.0
        %2331 = vmatpush1.msra.mxu0 %v2300
        %2332 = vmatprep.subr.mxu0 0.0
        %2333 = vmatpush1.msra.mxu0 %v2301
        %2334 = vmatprep.subr.mxu0 0.0
        %2335 = vmatpush1.msra.mxu0 0.0
        %2336 = vmatprep.subr.mxu0 0.0
        %2337 = vmatpush1.msra.mxu0 0.0
        %2338 = vmatprep.subr.mxu0 0.0
        %2339 = vmatpush1.msra.mxu0 0.0
        %2340 = vmatprep.subr.mxu0 0.0
        %2341 = vmatpush1.msra.mxu0 0.0
        %2342 = vmatprep.subr.mxu0 0.0
        %2343 = vmatpush1.msra.mxu0 0.0
        %2344 = vmatprep.subr.mxu0 0.0
        %2345 = vmatpush1.msra.mxu0 0.0
        %2346 = vmatprep.subr.mxu0 0.0
        %2347 = vmatpush1.msra.mxu0 0.0
        %2348 = vmatprep.subr.mxu0 0.0
        %2349 = vmatpush1.msra.mxu0 0.0
        %2350 = vmatprep.subr.mxu0 0.0
        %2351 = vmatpush1.msra.mxu0 0.0
        %2352 = vmatprep.subr.mxu0 0.0
        %2353 = vmatpush1.msra.mxu0 0.0
        %2354 = vmatprep.subr.mxu0 0.0
        %2355 = vmatpush1.msra.mxu0 0.0
        %2356 = vmatprep.subr.mxu0 0.0
        %2357 = vmatpush1.msra.mxu0 0.0
        %2358 = vmatprep.subr.mxu0 0.0
        %2359 = vmatpush1.msra.mxu0 0.0
        %2360 = vmatprep.subr.mxu0 0.0
        %2361 = vmatpush1.msra.mxu0 0.0
        %2362 = vmatprep.subr.mxu0 0.0
        %2363 = vmatpush1.msra.mxu0 0.0
        %2364 = vmatprep.subr.mxu0 0.0
        %2365 = vmatpush1.msra.mxu0 0.0
        %2366 = vmatprep.mubr.f32.mxu0 0.0
        %2367 = vmatmul.mubr.f32.gmra.mrb[0].mxu0 %v2284
        %v2368 = vpop.f32.mrb[0].mxu0
        %v2369 = vadd.f32 0.0, %v2368
        %v2370 = vpop.f32.mrb[0].mxu0
        %2371 = vdwg.mxu0
        %v2372 = vadd.f32 %v1914, %v2369
        %v2373 = vadd.f32 %v534, %v2372
        %v2374 = vld [vmem:[%s5] sm:$0x1]
        %v2375 = vld [vmem:[%s6] sm:$0x1]
        %2376 = vadd.xlane.f32.xlu0 %v2373
        %v2377 = vpop.xlane.xlu0 %2376
        %v2378 = vmul.f32 %v2377, 0.03125
        %v2379 = vsub.f32 %v2373, %v2378
        %v2380 = vmul.f32 %v2379, %v533
        %v2381 = vmul.f32 %v2380, %v2380
        %2382 = vadd.xlane.f32.xlu0 %v2381
        %v2383 = vpop.xlane.xlu0 %2382
        %v2384 = vmul.f32 %v2383, 0.03125
        %v2385 = vadd.f32 %v2384, 1e-05
        %v2386 = vrsqrt.pop %v2385
        %v2387 = vmul.f32 %v2380, %v2386
        %v2389 = vlaneseq
        %v2390 = vshrl.u32 %v2389, 7
        %v2391 = vsub.s32 0, %v2390
        %v2392 = vrot.slane %v2374, %v2391
        %v2394 = vmul.f32 %v2387, %v2392
        %v2396 = vlaneseq
        %v2397 = vshrl.u32 %v2396, 7
        %v2398 = vsub.s32 0, %v2397
        %v2399 = vrot.slane %v2375, %v2398
        %v2401 = vadd.f32 %v2394, %v2399
        %v2402 = vld [vmem:[#allocation10] sm:$0xff]
        %v2403 = vld [vmem:[#allocation10 + $0x8] sm:$0xff]
        %v2404 = vld [vmem:[#allocation10 + $0x10] sm:$0xff]
        %v2405 = vld [vmem:[#allocation10 + $0x18] sm:$0xff]
        %v2406 = vld [vmem:[#allocation10 + $0x20] sm:$0xff]
        %v2407 = vld [vmem:[#allocation10 + $0x28] sm:$0xff]
        %v2408 = vld [vmem:[#allocation10 + $0x30] sm:$0xff]
        %v2409 = vld [vmem:[#allocation10 + $0x38] sm:$0xff]
        %v2410 = vld [vmem:[#allocation10 + $0x40] sm:$0xff]
        %v2411 = vld [vmem:[#allocation10 + $0x48] sm:$0xff]
        %v2412 = vld [vmem:[#allocation10 + $0x50] sm:$0xff]
        %v2413 = vld [vmem:[#allocation10 + $0x58] sm:$0xff]
        %v2414 = vld [vmem:[#allocation10 + $0x60] sm:$0xff]
        %v2415 = vld [vmem:[#allocation10 + $0x68] sm:$0xff]
        %v2416 = vld [vmem:[#allocation10 + $0x70] sm:$0xff]
        %v2417 = vld [vmem:[#allocation10 + $0x78] sm:$0xff]
        %v2418 = vld [vmem:[%s8] sm:$0x1]
        %v2420 = vlaneseq
        %v2421 = vshrl.u32 %v2420, 7
        %v2422 = vsub.s32 0, %v2421
        %v2423 = vrot.slane %v2418, %v2422
        %2425 = vmatprep.subr.mxu0 0.0
        %2426 = vmatpush1.msra.mxu0 %v2402
        %2427 = vmatprep.subr.mxu0 0.0
        %2428 = vmatpush1.msra.mxu0 %v2403
        %2429 = vmatprep.subr.mxu0 0.0
        %2430 = vmatpush1.msra.mxu0 %v2404
        %2431 = vmatprep.subr.mxu0 0.0
        %2432 = vmatpush1.msra.mxu0 %v2405
        %2433 = vmatprep.subr.mxu0 0.0
        %2434 = vmatpush1.msra.mxu0 %v2406
        %2435 = vmatprep.subr.mxu0 0.0
        %2436 = vmatpush1.msra.mxu0 %v2407
        %2437 = vmatprep.subr.mxu0 0.0
        %2438 = vmatpush1.msra.mxu0 %v2408
        %2439 = vmatprep.subr.mxu0 0.0
        %2440 = vmatpush1.msra.mxu0 %v2409
        %2441 = vmatprep.subr.mxu0 0.0
        %2442 = vmatpush1.msra.mxu0 %v2410
        %2443 = vmatprep.subr.mxu0 0.0
        %2444 = vmatpush1.msra.mxu0 %v2411
        %2445 = vmatprep.subr.mxu0 0.0
        %2446 = vmatpush1.msra.mxu0 %v2412
        %2447 = vmatprep.subr.mxu0 0.0
        %2448 = vmatpush1.msra.mxu0 %v2413
        %2449 = vmatprep.subr.mxu0 0.0
        %2450 = vmatpush1.msra.mxu0 %v2414
        %2451 = vmatprep.subr.mxu0 0.0
        %2452 = vmatpush1.msra.mxu0 %v2415
        %2453 = vmatprep.subr.mxu0 0.0
        %2454 = vmatpush1.msra.mxu0 %v2416
        %2455 = vmatprep.subr.mxu0 0.0
        %2456 = vmatpush1.msra.mxu0 %v2417
        %2457 = vmatprep.subr.mxu0 0.0
        %2458 = vmatpush1.msra.mxu0 0.0
        %2459 = vmatprep.subr.mxu0 0.0
        %2460 = vmatpush1.msra.mxu0 0.0
        %2461 = vmatprep.subr.mxu0 0.0
        %2462 = vmatpush1.msra.mxu0 0.0
        %2463 = vmatprep.subr.mxu0 0.0
        %2464 = vmatpush1.msra.mxu0 0.0
        %2465 = vmatprep.subr.mxu0 0.0
        %2466 = vmatpush1.msra.mxu0 0.0
        %2467 = vmatprep.subr.mxu0 0.0
        %2468 = vmatpush1.msra.mxu0 0.0
        %2469 = vmatprep.subr.mxu0 0.0
        %2470 = vmatpush1.msra.mxu0 0.0
        %2471 = vmatprep.subr.mxu0 0.0
        %2472 = vmatpush1.msra.mxu0 0.0
        %2473 = vmatprep.subr.mxu0 0.0
        %2474 = vmatpush1.msra.mxu0 0.0
        %2475 = vmatprep.subr.mxu0 0.0
        %2476 = vmatpush1.msra.mxu0 0.0
        %2477 = vmatprep.subr.mxu0 0.0
        %2478 = vmatpush1.msra.mxu0 0.0
        %2479 = vmatprep.subr.mxu0 0.0
        %2480 = vmatpush1.msra.mxu0 0.0
        %2481 = vmatprep.subr.mxu0 0.0
        %2482 = vmatpush1.msra.mxu0 0.0
        %2483 = vmatprep.subr.mxu0 0.0
        %2484 = vmatpush1.msra.mxu0 0.0
        %2485 = vmatprep.subr.mxu0 0.0
        %2486 = vmatpush1.msra.mxu0 0.0
        %2487 = vmatprep.subr.mxu0 0.0
        %2488 = vmatpush1.msra.mxu0 0.0
        %2489 = vmatprep.mubr.f32.mxu0 0.0
        %2490 = vmatmul.mubr.f32.gmra.mrb[0].mxu0 %v2401
        %v2491 = vpop.f32.mrb[0].mxu0
        %v2492 = vadd.f32 %v2423, %v2491
        %v2493 = vpop.f32.mrb[0].mxu0
        %2494 = vdwg.mxu0
        %v2495 = vmax.f32 %v2492, 0.0
        %v2496 = vld [vmem:[#allocation11] sm:$0xff]
        %v2497 = vld [vmem:[#allocation11 + $0x8] sm:$0xff]
        %v2498 = vld [vmem:[#allocation11 + $0x10] sm:$0xff]
        %v2499 = vld [vmem:[#allocation11 + $0x18] sm:$0xff]
        %v2500 = vld [vmem:[#allocation11 + $0x20] sm:$0xff]
        %v2501 = vld [vmem:[#allocation11 + $0x28] sm:$0xff]
        %v2502 = vld [vmem:[#allocation11 + $0x30] sm:$0xff]
        %v2503 = vld [vmem:[#allocation11 + $0x38] sm:$0xff]
        %v2504 = vld [vmem:[#allocation11 + $0x40] sm:$0xff]
        %v2505 = vld [vmem:[#allocation11 + $0x48] sm:$0xff]
        %v2506 = vld [vmem:[#allocation11 + $0x50] sm:$0xff]
        %v2507 = vld [vmem:[#allocation11 + $0x58] sm:$0xff]
        %v2508 = vld [vmem:[#allocation11 + $0x60] sm:$0xff]
        %v2509 = vld [vmem:[#allocation11 + $0x68] sm:$0xff]
        %v2510 = vld [vmem:[#allocation11 + $0x70] sm:$0xff]
        %v2511 = vld [vmem:[#allocation11 + $0x78] sm:$0xff]
        %v2512 = vld [vmem:[%s10] sm:$0x1]
        %v2514 = vlaneseq
        %v2515 = vshrl.u32 %v2514, 7
        %v2516 = vsub.s32 0, %v2515
        %v2517 = vrot.slane %v2512, %v2516
        %2519 = vmatprep.subr.mxu0 0.0
        %2520 = vmatpush1.msra.mxu0 %v2496
        %2521 = vmatprep.subr.mxu0 0.0
        %2522 = vmatpush1.msra.mxu0 %v2497
        %2523 = vmatprep.subr.mxu0 0.0
        %2524 = vmatpush1.msra.mxu0 %v2498
        %2525 = vmatprep.subr.mxu0 0.0
        %2526 = vmatpush1.msra.mxu0 %v2499
        %2527 = vmatprep.subr.mxu0 0.0
        %2528 = vmatpush1.msra.mxu0 %v2500
        %2529 = vmatprep.subr.mxu0 0.0
        %2530 = vmatpush1.msra.mxu0 %v2501
        %2531 = vmatprep.subr.mxu0 0.0
        %2532 = vmatpush1.msra.mxu0 %v2502
        %2533 = vmatprep.subr.mxu0 0.0
        %2534 = vmatpush1.msra.mxu0 %v2503
        %2535 = vmatprep.subr.mxu0 0.0
        %2536 = vmatpush1.msra.mxu0 %v2504
        %2537 = vmatprep.subr.mxu0 0.0
        %2538 = vmatpush1.msra.mxu0 %v2505
        %2539 = vmatprep.subr.mxu0 0.0
        %2540 = vmatpush1.msra.mxu0 %v2506
        %2541 = vmatprep.subr.mxu0 0.0
        %2542 = vmatpush1.msra.mxu0 %v2507
        %2543 = vmatprep.subr.mxu0 0.0
        %2544 = vmatpush1.msra.mxu0 %v2508
        %2545 = vmatprep.subr.mxu0 0.0
        %2546 = vmatpush1.msra.mxu0 %v2509
        %2547 = vmatprep.subr.mxu0 0.0
        %2548 = vmatpush1.msra.mxu0 %v2510
        %2549 = vmatprep.subr.mxu0 0.0
        %2550 = vmatpush1.msra.mxu0 %v2511
        %2551 = vmatprep.subr.mxu0 0.0
        %2552 = vmatpush1.msra.mxu0 0.0
        %2553 = vmatprep.subr.mxu0 0.0
        %2554 = vmatpush1.msra.mxu0 0.0
        %2555 = vmatprep.subr.mxu0 0.0
        %2556 = vmatpush1.msra.mxu0 0.0
        %2557 = vmatprep.subr.mxu0 0.0
        %2558 = vmatpush1.msra.mxu0 0.0
        %2559 = vmatprep.subr.mxu0 0.0
        %2560 = vmatpush1.msra.mxu0 0.0
        %2561 = vmatprep.subr.mxu0 0.0
        %2562 = vmatpush1.msra.mxu0 0.0
        %2563 = vmatprep.subr.mxu0 0.0
        %2564 = vmatpush1.msra.mxu0 0.0
        %2565 = vmatprep.subr.mxu0 0.0
        %2566 = vmatpush1.msra.mxu0 0.0
        %2567 = vmatprep.subr.mxu0 0.0
        %2568 = vmatpush1.msra.mxu0 0.0
        %2569 = vmatprep.subr.mxu0 0.0
        %2570 = vmatpush1.msra.mxu0 0.0
        %2571 = vmatprep.subr.mxu0 0.0
        %2572 = vmatpush1.msra.mxu0 0.0
        %2573 = vmatprep.subr.mxu0 0.0
        %2574 = vmatpush1.msra.mxu0 0.0
        %2575 = vmatprep.subr.mxu0 0.0
        %2576 = vmatpush1.msra.mxu0 0.0
        %2577 = vmatprep.subr.mxu0 0.0
        %2578 = vmatpush1.msra.mxu0 0.0
        %2579 = vmatprep.subr.mxu0 0.0
        %2580 = vmatpush1.msra.mxu0 0.0
        %2581 = vmatprep.subr.mxu0 0.0
        %2582 = vmatpush1.msra.mxu0 0.0
        %2583 = vmatprep.mubr.f32.mxu0 0.0
        %2584 = vmatmul.mubr.f32.gmra.mrb[0].mxu0 %v2495
        %v2585 = vpop.f32.mrb[0].mxu0
        %v2586 = vadd.f32 %v2517, %v2585
        %v2587 = vpop.f32.mrb[0].mxu0
        %2588 = vdwg.mxu0
        %v2589 = vadd.f32 %v2401, %v2586
        %v2590 = vld [vmem:[%s11] sm:$0x1]
        %v2591 = vld [vmem:[%s12] sm:$0x1]
        %2592 = vadd.xlane.f32.xlu0 %v2589
        %v2593 = vpop.xlane.xlu0 %2592
        %v2594 = vmul.f32 %v2593, 0.03125
        %v2595 = vsub.f32 %v2589, %v2594
        %v2596 = vmul.f32 %v2595, %v533
        %v2597 = vmul.f32 %v2596, %v2596
        %2598 = vadd.xlane.f32.xlu0 %v2597
        %v2599 = vpop.xlane.xlu0 %2598
        %v2600 = vmul.f32 %v2599, 0.03125
        %v2601 = vadd.f32 %v2600, 1e-05
        %v2602 = vrsqrt.pop %v2601
        %v2603 = vmul.f32 %v2596, %v2602
        %v2605 = vlaneseq
        %v2606 = vshrl.u32 %v2605, 7
        %v2607 = vsub.s32 0, %v2606
        %v2608 = vrot.slane %v2590, %v2607
        %v2610 = vmul.f32 %v2603, %v2608
        %v2612 = vlaneseq
        %v2613 = vshrl.u32 %v2612, 7
        %v2614 = vsub.s32 0, %v2613
        %v2615 = vrot.slane %v2591, %v2614
        %v2617 = vadd.f32 %v2610, %v2615
        %2618 = vst [vmem:[%s528] sm:$0xff] %v2617
        %s2619 = sand.u32 %s319, 1
        %s2620 = scalar_lea.sflag [#allocation4], %s2619
        %s2621 = sand.u32 %s319, 1
        %s2622 = smul.addr %s2621, 8
        %s2623 = scalar_lea.vmem [#allocation13], %s2622
        // Predicated region
        $region97: #{tpu_custom_call.1} parent=71 // pred_check
          %p2624 = pneg %p329
        $region98: #{tpu_custom_call.1} parent=71 // pred_check_branch
          %2626 = sbr.rel (%p2624) target = $region100
        $region99: #{tpu_custom_call.1} parent=71 // pred_region
          %s2628 = ssub.s32 128, 128
          %2629 = vsyncadd %s2620, %s2628
          %s2630 = smul.addr %s33, 128
          %s2631 = scalar_lea.hbm %s13, %s2630
          %s2633 = sshll.u32 %s2623, 4
          %s2634 = int_to_ptr.vmem [resolvable:$true] %s2633
          %2636 = dma.vmem_to_hbm [thread:$0]  %s2634, 128, %s2631, %s2620
        $region100: #{tpu_custom_call.1} parent=71 // pred_fallthru
          _
      $region72: #{tpu_custom_call.1} parent=5 // pred_fallthru
        _
      %p2637 = scmp.le.s32.totalorder 2, %s28
      // Predicated region
      $region101: #{tpu_custom_call.1} parent=5 // pred_check
        %p2638 = pneg %p2637
      $region102: #{tpu_custom_call.1} parent=5 // pred_check_branch
        %2640 = sbr.rel (%p2638) target = $region104
      $region103: #{tpu_custom_call.1} parent=5 // pred_region
        %s2641 = ssub.s32 %s28, 2
        // Predicated region
        $region105: #{tpu_custom_call.1} parent=103 // pred_check
          %p2642 = pneg %p335
        $region106: #{tpu_custom_call.1} parent=103 // pred_check_branch
          %2644 = sbr.rel (%p2642) target = $region108
        $region107: #{tpu_custom_call.1} parent=103 // pred_region
          %s2645 = sand.u32 %s320, 1
          %s2646 = scalar_lea.sflag [#allocation4], %s2645
          %s2647 = sand.u32 %s320, 1
          %s2648 = smul.addr %s2647, 8
          %s2649 = scalar_lea.vmem [#allocation13], %s2648
          %2650 = dma.done %s2646, 128
        $region108: #{tpu_custom_call.1} parent=103 // pred_fallthru
          _
      $region104: #{tpu_custom_call.1} parent=5 // pred_fallthru
        _
    $region6: #{tpu_custom_call.1} parent=1 // loop_footer
      %s32 = sadd.s32 1, %s28
    $region7: #{tpu_custom_call.1} parent=1 // loop_footer_branch
      %27 = sbr.rel target = $region3
    $region8: #{tpu_custom_call.1} parent=1 // loop_exit
      _
    %2651 = vsyncpa [#allocation3], 1
    %s2652 = scalar_lea.sflag [#allocation3], 1
    %2653 = vsyncpa %s2652, 1
    %2654 = vsyncpa [#allocation6], 1
    %2655 = vsyncpa [#allocation9], 1
    %2656 = vsyncpa [#allocation12], 1
    %2657 = vsyncpa [#allocation4], 1
    %s2658 = scalar_lea.sflag [#allocation4], 1
    %2659 = vsyncpa %s2658, 1

// kernel: tpu_custom_call.1
$region0: #{tpu_custom_call.1}
  #allocation0 [shape = 'u32[]', space=smem, size = 0x4, offset = 0x4, fixed_abs, tag = 'smem constant byte address 0x4 - core index']
  #allocation1 [shape = 'u32[144,128]{1,0:T(1,128)}', space=vmem, size = 0x12000, scoped, tag = 'internal scratch']
  %s0 = inlined_call_operand.hbm [shape: f32[2,8,128], index: 0, kind: input, shape index: {}]
  %s1 = inlined_call_operand.hbm [shape: f32[4,128,384], index: 1, kind: input, shape index: {}]
  %s2 = inlined_call_operand.hbm [shape: f32[4,1,384], index: 2, kind: input, shape index: {}]
  %s3 = inlined_call_operand.hbm [shape: f32[4,128,128], index: 3, kind: input, shape index: {}]
  %s4 = inlined_call_operand.vmem [shape: f32[1,128], index: 4, kind: input, shape index: {}]
  %s5 = inlined_call_operand.vmem [shape: f32[1,128], index: 5, kind: input, shape index: {}]
  %s6 = inlined_call_operand.vmem [shape: f32[1,128], index: 6, kind: input, shape index: {}]
  %s7 = inlined_call_operand.hbm [shape: f32[128,128], index: 7, kind: input, shape index: {}]
  %s8 = inlined_call_operand.vmem [shape: f32[1,128], index: 8, kind: input, shape index: {}]
  %s9 = inlined_call_operand.hbm [shape: f32[128,128], index: 9, kind: input, shape index: {}]
  %s10 = inlined_call_operand.vmem [shape: f32[1,128], index: 10, kind: input, shape index: {}]
  %s11 = inlined_call_operand.vmem [shape: f32[1,128], index: 11, kind: input, shape index: {}]
  %s12 = inlined_call_operand.vmem [shape: f32[1,128], index: 12, kind: input, shape index: {}]
  %s13 = inlined_call_operand.hbm [shape: f32[2,8,128], index: 13, kind: output, shape index: {}]
  %s14 = sld [smem:[#allocation0]]
  $region109: #{tpu_custom_call.1} parent=0
    _
  %s16 = ssub.s32 1, %s14
  %s17 = scalar_select 0, %s16, %s14
  $region1: #{tpu_custom_call.1} parent=0
    #allocation2 [shape = 'u8[8192]{0}', space=vmem, size = 0x2000, scoped, tag = 'input window, operand 0']
    #allocation3 [shape = 's32[2]{0}', space=sflag, size = 0x8, scoped, tag = 'scoped memory for tpu_custom_call.1']
    #allocation4 [shape = 's32[2]{0}', space=sflag, size = 0x8, scoped, tag = 'scoped memory for tpu_custom_call.1']
    #allocation5 [shape = 'u8[786432]{0}', space=vmem, size = 0xc0000, scoped, tag = 'input window, operand 1, single buffered']
    #allocation6 [shape = 's32[1]{0}', space=sflag, size = 0x4, scoped, tag = 'scoped memory for tpu_custom_call.1']
    #allocation7 [shape = 'u8[6144]{0}', space=vmem, size = 0x1800, scoped, tag = 'input window, operand 2, single buffered']
    #allocation8 [shape = 'u8[262144]{0}', space=vmem, size = 0x40000, scoped, tag = 'input window, operand 3, single buffered']
    #allocation9 [shape = 's32[1]{0}', space=sflag, size = 0x4, scoped, tag = 'scoped memory for tpu_custom_call.1']
    #allocation10 [shape = 'u8[65536]{0}', space=vmem, size = 0x10000, scoped, tag = 'input window, operand 7, single buffered']
    #allocation11 [shape = 'u8[65536]{0}', space=vmem, size = 0x10000, scoped, tag = 'input window, operand 9, single buffered']
    #allocation12 [shape = 's32[1]{0}', space=sflag, size = 0x4, scoped, tag = 'scoped memory for tpu_custom_call.1']
    #allocation13 [shape = 'u8[8192]{0}', space=vmem, size = 0x2000, scoped, tag = 'output window, operand 0']
    %18 = vsyncpa [#allocation3], 0
    %s19 = scalar_lea.sflag [#allocation3], 1
    %20 = vsyncpa %s19, 0
    %21 = vsyncpa [#allocation6], 0
    %22 = vsyncpa [#allocation9], 0
    %23 = vsyncpa [#allocation12], 0
    %24 = vsyncpa [#allocation4], 0
    %s25 = scalar_lea.sflag [#allocation4], 1
    %26 = vsyncpa %s25, 0
    loop: start=0, step=1, limit=4
    $region2: #{tpu_custom_call.1} parent=1 // loop_pre_header
      _
    $region3: #{tpu_custom_call.1} parent=1 // loop_header
      %s28 = sphi 0, %s32
      %p29 = scmp.ge.s32.totalorder %s28, 4
      %s38 = sphi 0, %s40
      %s41 = sphi 0, %s38
      %s42 = sphi 0, %s41
      %s58 = sphi 0, %s42
      %s62 = sphi 0, %s62
      %s64 = sphi 0, %s62
      %s65 = sphi 0, %s64
      %s79 = sphi 0, %s65
      %s83 = sphi 0, %s83
      %s85 = sphi 0, %s83
      %s86 = sphi 0, %s85
      %s100 = sphi 0, %s86
      %s104 = sphi 0, %s104
      %s106 = sphi 0, %s104
      %s107 = sphi 0, %s106
      %s121 = sphi 0, %s107
      %s125 = sphi 0, %s125
      %s127 = sphi 0, %s125
      %s128 = sphi 0, %s127
      %s142 = sphi 0, %s128
      %s146 = sphi 0, %s146
      %s148 = sphi 0, %s146
      %s149 = sphi 0, %s148
      %s163 = sphi 0, %s149
      %s167 = sphi 0, %s167
      %s169 = sphi 0, %s167
      %s170 = sphi 0, %s169
      %s184 = sphi 0, %s170
      %s188 = sphi 0, %s188
      %s190 = sphi 0, %s188
      %s191 = sphi 0, %s190
      %s205 = sphi 0, %s191
      %s209 = sphi 0, %s209
      %s211 = sphi 0, %s209
      %s212 = sphi 0, %s211
      %s226 = sphi 0, %s212
      %s230 = sphi 0, %s230
      %s232 = sphi 0, %s230
      %s233 = sphi 0, %s232
      %s247 = sphi 0, %s233
      %s251 = sphi 0, %s251
      %s253 = sphi 0, %s251
      %s254 = sphi 0, %s253
      %s268 = sphi 0, %s254
      %s272 = sphi 0, %s272
      %s274 = sphi 0, %s272
      %s275 = sphi 0, %s274
      %s289 = sphi 0, %s275
      %s293 = sphi 0, %s293
      %s295 = sphi 0, %s293
      %s296 = sphi 0, %s295
      %s310 = sphi 0, %s296
      %s316 = sphi 0, %s318
      %s319 = sphi 0, %s316
      %s320 = sphi 0, %s319
      %s336 = sphi 0, %s320
    $region4: #{tpu_custom_call.1} parent=1 // loop_header_branch
      %31 = sbr.rel (%p29) target = $region8
    $region5: #{tpu_custom_call.1} parent=1 // loop_body
      %s33 = ssub.s32 %s28, 1
      %s34 = ssub.s32 %s28, 2
      %s35 = sadd.s32 %s28, 1
      %s36 = ssub.s32 %s28, %s35
      %p37 = scmp.eq.s32.totalorder %s36, 0
      %s39 = sadd.s32 %s38, 1
      %s40 = scalar_select %p37, %s38, %s39
      %p43 = pneg %p37
      %p44 = scmp.eq.s32.totalorder %s28, 1
      %p45 = por %p43, %p44
      %p46 = scmp.ne.s32.totalorder %s38, %s41
      %p47 = scmp.eq.s32.totalorder %s28, 0
      %p48 = por %p46, %p47
      %p49 = scmp.ne.s32.totalorder %s38, %s41
      %p50 = scmp.eq.s32.totalorder %s33, 1
      %p51 = por %p49, %p50
      %p52 = scmp.ne.s32.totalorder %s41, %s42
      %p53 = scmp.eq.s32.totalorder %s33, 0
      %p54 = por %p52, %p53
      %p55 = scmp.ne.s32.totalorder %s41, %s42
      %p56 = scmp.eq.s32.totalorder %s34, 1
      %p57 = por %p55, %p56
      %p59 = scmp.ne.s32.totalorder %s42, %s58
      %p60 = scmp.eq.s32.totalorder %s34, 0
      %p61 = por %p59, %p60
      %s63 = sadd.s32 %s62, 1
      %p66 = scmp.eq.s32.totalorder %s28, 1
      %p67 = scmp.ne.s32.totalorder %s62, %s64
      %p68 = scmp.eq.s32.totalorder %s28, 0
      %p69 = por %p67, %p68
      %p70 = scmp.ne.s32.totalorder %s62, %s64
      %p71 = scmp.eq.s32.totalorder %s33, 1
      %p72 = por %p70, %p71
      %p73 = scmp.ne.s32.totalorder %s64, %s65
      %p74 = scmp.eq.s32.totalorder %s33, 0
      %p75 = por %p73, %p74
      %p76 = scmp.ne.s32.totalorder %s64, %s65
      %p77 = scmp.eq.s32.totalorder %s34, 1
      %p78 = por %p76, %p77
      %p80 = scmp.ne.s32.totalorder %s65, %s79
      %p81 = scmp.eq.s32.totalorder %s34, 0
      %p82 = por %p80, %p81
      %s84 = sadd.s32 %s83, 1
      %p87 = scmp.eq.s32.totalorder %s28, 1
      %p88 = scmp.ne.s32.totalorder %s83, %s85
      %p89 = scmp.eq.s32.totalorder %s28, 0
      %p90 = por %p88, %p89
      %p91 = scmp.ne.s32.totalorder %s83, %s85
      %p92 = scmp.eq.s32.totalorder %s33, 1
      %p93 = por %p91, %p92
      %p94 = scmp.ne.s32.totalorder %s85, %s86
      %p95 = scmp.eq.s32.totalorder %s33, 0
      %p96 = por %p94, %p95
      %p97 = scmp.ne.s32.totalorder %s85, %s86
      %p98 = scmp.eq.s32.totalorder %s34, 1
      %p99 = por %p97, %p98
      %p101 = scmp.ne.s32.totalorder %s86, %s100
      %p102 = scmp.eq.s32.totalorder %s34, 0
      %p103 = por %p101, %p102
      %s105 = sadd.s32 %s104, 1
      %p108 = scmp.eq.s32.totalorder %s28, 1
      %p109 = scmp.ne.s32.totalorder %s104, %s106
      %p110 = scmp.eq.s32.totalorder %s28, 0
      %p111 = por %p109, %p110
      %p112 = scmp.ne.s32.totalorder %s104, %s106
      %p113 = scmp.eq.s32.totalorder %s33, 1
      %p114 = por %p112, %p113
      %p115 = scmp.ne.s32.totalorder %s106, %s107
      %p116 = scmp.eq.s32.totalorder %s33, 0
      %p117 = por %p115, %p116
      %p118 = scmp.ne.s32.totalorder %s106, %s107
      %p119 = scmp.eq.s32.totalorder %s34, 1
      %p120 = por %p118, %p119
      %p122 = scmp.ne.s32.totalorder %s107, %s121
      %p123 = scmp.eq.s32.totalorder %s34, 0
      %p124 = por %p122, %p123
      %s126 = sadd.s32 %s125, 1
      %p129 = scmp.eq.s32.totalorder %s28, 1
      %p130 = scmp.ne.s32.totalorder %s125, %s127
      %p131 = scmp.eq.s32.totalorder %s28, 0
      %p132 = por %p130, %p131
      %p133 = scmp.ne.s32.totalorder %s125, %s127
      %p134 = scmp.eq.s32.totalorder %s33, 1
      %p135 = por %p133, %p134
      %p136 = scmp.ne.s32.totalorder %s127, %s128
      %p137 = scmp.eq.s32.totalorder %s33, 0
      %p138 = por %p136, %p137
      %p139 = scmp.ne.s32.totalorder %s127, %s128
      %p140 = scmp.eq.s32.totalorder %s34, 1
      %p141 = por %p139, %p140
      %p143 = scmp.ne.s32.totalorder %s128, %s142
      %p144 = scmp.eq.s32.totalorder %s34, 0
      %p145 = por %p143, %p144
      %s147 = sadd.s32 %s146, 1
      %p150 = scmp.eq.s32.totalorder %s28, 1
      %p151 = scmp.ne.s32.totalorder %s146, %s148
      %p152 = scmp.eq.s32.totalorder %s28, 0
      %p153 = por %p151, %p152
      %p154 = scmp.ne.s32.totalorder %s146, %s148
      %p155 = scmp.eq.s32.totalorder %s33, 1
      %p156 = por %p154, %p155
      %p157 = scmp.ne.s32.totalorder %s148, %s149
      %p158 = scmp.eq.s32.totalorder %s33, 0
      %p159 = por %p157, %p158
      %p160 = scmp.ne.s32.totalorder %s148, %s149
      %p161 = scmp.eq.s32.totalorder %s34, 1
      %p162 = por %p160, %p161
      %p164 = scmp.ne.s32.totalorder %s149, %s163
      %p165 = scmp.eq.s32.totalorder %s34, 0
      %p166 = por %p164, %p165
      %s168 = sadd.s32 %s167, 1
      %p171 = scmp.eq.s32.totalorder %s28, 1
      %p172 = scmp.ne.s32.totalorder %s167, %s169
      %p173 = scmp.eq.s32.totalorder %s28, 0
      %p174 = por %p172, %p173
      %p175 = scmp.ne.s32.totalorder %s167, %s169
      %p176 = scmp.eq.s32.totalorder %s33, 1
      %p177 = por %p175, %p176
      %p178 = scmp.ne.s32.totalorder %s169, %s170
      %p179 = scmp.eq.s32.totalorder %s33, 0
      %p180 = por %p178, %p179
      %p181 = scmp.ne.s32.totalorder %s169, %s170
      %p182 = scmp.eq.s32.totalorder %s34, 1
      %p183 = por %p181, %p182
      %p185 = scmp.ne.s32.totalorder %s170, %s184
      %p186 = scmp.eq.s32.totalorder %s34, 0
      %p187 = por %p185, %p186
      %s189 = sadd.s32 %s188, 1
      %p192 = scmp.eq.s32.totalorder %s28, 1
      %p193 = scmp.ne.s32.totalorder %s188, %s190
      %p194 = scmp.eq.s32.totalorder %s28, 0
      %p195 = por %p193, %p194
      %p196 = scmp.ne.s32.totalorder %s188, %s190
      %p197 = scmp.eq.s32.totalorder %s33, 1
      %p198 = por %p196, %p197
      %p199 = scmp.ne.s32.totalorder %s190, %s191
      %p200 = scmp.eq.s32.totalorder %s33, 0
      %p201 = por %p199, %p200
      %p202 = scmp.ne.s32.totalorder %s190, %s191
      %p203 = scmp.eq.s32.totalorder %s34, 1
      %p204 = por %p202, %p203
      %p206 = scmp.ne.s32.totalorder %s191, %s205
      %p207 = scmp.eq.s32.totalorder %s34, 0
      %p208 = por %p206, %p207
      %s210 = sadd.s32 %s209, 1
      %p213 = scmp.eq.s32.totalorder %s28, 1
      %p214 = scmp.ne.s32.totalorder %s209, %s211
      %p215 = scmp.eq.s32.totalorder %s28, 0
      %p216 = por %p214, %p215
      %p217 = scmp.ne.s32.totalorder %s209, %s211
      %p218 = scmp.eq.s32.totalorder %s33, 1
      %p219 = por %p217, %p218
      %p220 = scmp.ne.s32.totalorder %s211, %s212
      %p221 = scmp.eq.s32.totalorder %s33, 0
      %p222 = por %p220, %p221
      %p223 = scmp.ne.s32.totalorder %s211, %s212
      %p224 = scmp.eq.s32.totalorder %s34, 1
      %p225 = por %p223, %p224
      %p227 = scmp.ne.s32.totalorder %s212, %s226
      %p228 = scmp.eq.s32.totalorder %s34, 0
      %p229 = por %p227, %p228
      %s231 = sadd.s32 %s230, 1
      %p234 = scmp.eq.s32.totalorder %s28, 1
      %p235 = scmp.ne.s32.totalorder %s230, %s232
      %p236 = scmp.eq.s32.totalorder %s28, 0
      %p237 = por %p235, %p236
      %p238 = scmp.ne.s32.totalorder %s230, %s232
      %p239 = scmp.eq.s32.totalorder %s33, 1
      %p240 = por %p238, %p239
      %p241 = scmp.ne.s32.totalorder %s232, %s233
      %p242 = scmp.eq.s32.totalorder %s33, 0
      %p243 = por %p241, %p242
      %p244 = scmp.ne.s32.totalorder %s232, %s233
      %p245 = scmp.eq.s32.totalorder %s34, 1
      %p246 = por %p244, %p245
      %p248 = scmp.ne.s32.totalorder %s233, %s247
      %p249 = scmp.eq.s32.totalorder %s34, 0
      %p250 = por %p248, %p249
      %s252 = sadd.s32 %s251, 1
      %p255 = scmp.eq.s32.totalorder %s28, 1
      %p256 = scmp.ne.s32.totalorder %s251, %s253
      %p257 = scmp.eq.s32.totalorder %s28, 0
      %p258 = por %p256, %p257
      %p259 = scmp.ne.s32.totalorder %s251, %s253
      %p260 = scmp.eq.s32.totalorder %s33, 1
      %p261 = por %p259, %p260
      %p262 = scmp.ne.s32.totalorder %s253, %s254
      %p263 = scmp.eq.s32.totalorder %s33, 0
      %p264 = por %p262, %p263
      %p265 = scmp.ne.s32.totalorder %s253, %s254
      %p266 = scmp.eq.s32.totalorder %s34, 1
      %p267 = por %p265, %p266
      %p269 = scmp.ne.s32.totalorder %s254, %s268
      %p270 = scmp.eq.s32.totalorder %s34, 0
      %p271 = por %p269, %p270
      %s273 = sadd.s32 %s272, 1
      %p276 = scmp.eq.s32.totalorder %s28, 1
      %p277 = scmp.ne.s32.totalorder %s272, %s274
      %p278 = scmp.eq.s32.totalorder %s28, 0
      %p279 = por %p277, %p278
      %p280 = scmp.ne.s32.totalorder %s272, %s274
      %p281 = scmp.eq.s32.totalorder %s33, 1
      %p282 = por %p280, %p281
      %p283 = scmp.ne.s32.totalorder %s274, %s275
      %p284 = scmp.eq.s32.totalorder %s33, 0
      %p285 = por %p283, %p284
      %p286 = scmp.ne.s32.totalorder %s274, %s275
      %p287 = scmp.eq.s32.totalorder %s34, 1
      %p288 = por %p286, %p287
      %p290 = scmp.ne.s32.totalorder %s275, %s289
      %p291 = scmp.eq.s32.totalorder %s34, 0
      %p292 = por %p290, %p291
      %s294 = sadd.s32 %s293, 1
      %p297 = scmp.eq.s32.totalorder %s28, 1
      %p298 = scmp.ne.s32.totalorder %s293, %s295
      %p299 = scmp.eq.s32.totalorder %s28, 0
      %p300 = por %p298, %p299
      %p301 = scmp.ne.s32.totalorder %s293, %s295
      %p302 = scmp.eq.s32.totalorder %s33, 1
      %p303 = por %p301, %p302
      %p304 = scmp.ne.s32.totalorder %s295, %s296
      %p305 = scmp.eq.s32.totalorder %s33, 0
      %p306 = por %p304, %p305
      %p307 = scmp.ne.s32.totalorder %s295, %s296
      %p308 = scmp.eq.s32.totalorder %s34, 1
      %p309 = por %p307, %p308
      %p311 = scmp.ne.s32.totalorder %s296, %s310
      %p312 = scmp.eq.s32.totalorder %s34, 0
      %p313 = por %p311, %p312
      %s314 = ssub.s32 %s28, %s35
      %p315 = scmp.eq.s32.totalorder %s314, 0
      %s317 = sadd.s32 %s316, 1
      %s318 = scalar_select %p315, %s316, %s317
      %p321 = pneg %p315
      %p322 = scmp.eq.s32.totalorder %s28, 1
      %p323 = por %p321, %p322
      %p324 = scmp.ne.s32.totalorder %s316, %s319
      %p325 = scmp.eq.s32.totalorder %s28, 0
      %p326 = por %p324, %p325
      %p327 = scmp.ne.s32.totalorder %s316, %s319
      %p328 = scmp.eq.s32.totalorder %s33, 1
      %p329 = por %p327, %p328
      %p330 = scmp.ne.s32.totalorder %s319, %s320
      %p331 = scmp.eq.s32.totalorder %s33, 0
      %p332 = por %p330, %p331
      %p333 = scmp.ne.s32.totalorder %s319, %s320
      %p334 = scmp.eq.s32.totalorder %s34, 1
      %p335 = por %p333, %p334
      %p337 = scmp.ne.s32.totalorder %s320, %s336
      %p338 = scmp.eq.s32.totalorder %s34, 0
      %p339 = por %p337, %p338
      %p340 = scmp.le.s32.totalorder 1, %s28
      %p341 = scmp.lt.s32.totalorder %s28, 3
      %p342 = pnand %p340, %p341
      %p343 = pneg %p342
      // Predicated region
      $region9: #{tpu_custom_call.1} parent=5 // pred_check
        _
      $region10: #{tpu_custom_call.1} parent=5 // pred_check_branch
        %345 = sbr.rel (%p342) target = $region12
      $region11: #{tpu_custom_call.1} parent=5 // pred_region
        %s346 = ssub.s32 %s28, 1
        // Predicated region
        $region13: #{tpu_custom_call.1} parent=11 // pred_check
          %p347 = pneg %p75
        $region14: #{tpu_custom_call.1} parent=11 // pred_check_branch
          %349 = sbr.rel (%p347) target = $region16
        $region15: #{tpu_custom_call.1} parent=11 // pred_region
          %s351 = ssub.s32 24576, 24576
          %352 = vsyncadd [#allocation6], %s351
          %s353 = sshll.u32 [#allocation5], 4
          %s354 = int_to_ptr.vmem [resolvable:$true] %s353
          %359 = dma.hbm_to_vmem [thread:$0]  %s1, 24576, %s354, [#allocation6], 384, 384, 24
        $region16: #{tpu_custom_call.1} parent=11 // pred_fallthru
          _
        // Predicated region
        $region17: #{tpu_custom_call.1} parent=11 // pred_check
          %p360 = pneg %p96
        $region18: #{tpu_custom_call.1} parent=11 // pred_check_branch
          %362 = sbr.rel (%p360) target = $region20
        $region19: #{tpu_custom_call.1} parent=11 // pred_region
          %s364 = ssub.s32 192, 192
          %365 = vsyncadd [#allocation6], %s364
          %s366 = sshll.u32 [#allocation7], 4
          %s367 = int_to_ptr.vmem [resolvable:$true] %s366
          %372 = dma.hbm_to_vmem [thread:$0]  %s2, 192, %s367, [#allocation6], 48, 48, 3
        $region20: #{tpu_custom_call.1} parent=11 // pred_fallthru
          _
        // Predicated region
        $region21: #{tpu_custom_call.1} parent=11 // pred_check
          %p373 = pneg %p117
        $region22: #{tpu_custom_call.1} parent=11 // pred_check_branch
          %375 = sbr.rel (%p373) target = $region24
        $region23: #{tpu_custom_call.1} parent=11 // pred_region
          %s377 = ssub.s32 8192, 8192
          %378 = vsyncadd [#allocation9], %s377
          %s379 = sshll.u32 [#allocation8], 4
          %s380 = int_to_ptr.vmem [resolvable:$true] %s379
          %385 = dma.hbm_to_vmem [thread:$0]  %s3, 8192, %s380, [#allocation9], 128, 128, 8
        $region24: #{tpu_custom_call.1} parent=11 // pred_fallthru
          _
        // Predicated region
        $region25: #{tpu_custom_call.1} parent=11 // pred_check
          %p386 = pneg %p138
        $region26: #{tpu_custom_call.1} parent=11 // pred_check_branch
          %388 = sbr.rel (%p386) target = $region28
        $region27: #{tpu_custom_call.1} parent=11 // pred_region
          _
        $region28: #{tpu_custom_call.1} parent=11 // pred_fallthru
          _
        // Predicated region
        $region29: #{tpu_custom_call.1} parent=11 // pred_check
          %p389 = pneg %p159
        $region30: #{tpu_custom_call.1} parent=11 // pred_check_branch
          %391 = sbr.rel (%p389) target = $region32
        $region31: #{tpu_custom_call.1} parent=11 // pred_region
          _
        $region32: #{tpu_custom_call.1} parent=11 // pred_fallthru
          _
        // Predicated region
        $region33: #{tpu_custom_call.1} parent=11 // pred_check
          %p392 = pneg %p180
        $region34: #{tpu_custom_call.1} parent=11 // pred_check_branch
          %394 = sbr.rel (%p392) target = $region36
        $region35: #{tpu_custom_call.1} parent=11 // pred_region
          _
        $region36: #{tpu_custom_call.1} parent=11 // pred_fallthru
          _
        // Predicated region
        $region37: #{tpu_custom_call.1} parent=11 // pred_check
          %p395 = pneg %p201
        $region38: #{tpu_custom_call.1} parent=11 // pred_check_branch
          %397 = sbr.rel (%p395) target = $region40
        $region39: #{tpu_custom_call.1} parent=11 // pred_region
          %s399 = ssub.s32 2048, 2048
          %400 = vsyncadd [#allocation9], %s399
          %s401 = sshll.u32 [#allocation10], 4
          %s402 = int_to_ptr.vmem [resolvable:$true] %s401
          %407 = dma.hbm_to_vmem [thread:$0]  %s7, 2048, %s402, [#allocation9], 128, 128, 8
        $region40: #{tpu_custom_call.1} parent=11 // pred_fallthru
          _
        // Predicated region
        $region41: #{tpu_custom_call.1} parent=11 // pred_check
          %p408 = pneg %p222
        $region42: #{tpu_custom_call.1} parent=11 // pred_check_branch
          %410 = sbr.rel (%p408) target = $region44
        $region43: #{tpu_custom_call.1} parent=11 // pred_region
          _
        $region44: #{tpu_custom_call.1} parent=11 // pred_fallthru
          _
        // Predicated region
        $region45: #{tpu_custom_call.1} parent=11 // pred_check
          %p411 = pneg %p243
        $region46: #{tpu_custom_call.1} parent=11 // pred_check_branch
          %413 = sbr.rel (%p411) target = $region48
        $region47: #{tpu_custom_call.1} parent=11 // pred_region
          %s415 = ssub.s32 2048, 2048
          %416 = vsyncadd [#allocation12], %s415
          %s417 = sshll.u32 [#allocation11], 4
          %s418 = int_to_ptr.vmem [resolvable:$true] %s417
          %423 = dma.hbm_to_vmem [thread:$0]  %s9, 2048, %s418, [#allocation12], 128, 128, 8
        $region48: #{tpu_custom_call.1} parent=11 // pred_fallthru
          _
        // Predicated region
        $region49: #{tpu_custom_call.1} parent=11 // pred_check
          %p424 = pneg %p264
        $region50: #{tpu_custom_call.1} parent=11 // pred_check_branch
          %426 = sbr.rel (%p424) target = $region52
        $region51: #{tpu_custom_call.1} parent=11 // pred_region
          _
        $region52: #{tpu_custom_call.1} parent=11 // pred_fallthru
          _
        // Predicated region
        $region53: #{tpu_custom_call.1} parent=11 // pred_check
          %p427 = pneg %p285
        $region54: #{tpu_custom_call.1} parent=11 // pred_check_branch
          %429 = sbr.rel (%p427) target = $region56
        $region55: #{tpu_custom_call.1} parent=11 // pred_region
          _
        $region56: #{tpu_custom_call.1} parent=11 // pred_fallthru
          _
        // Predicated region
        $region57: #{tpu_custom_call.1} parent=11 // pred_check
          %p430 = pneg %p306
        $region58: #{tpu_custom_call.1} parent=11 // pred_check_branch
          %432 = sbr.rel (%p430) target = $region60
        $region59: #{tpu_custom_call.1} parent=11 // pred_region
          _
        $region60: #{tpu_custom_call.1} parent=11 // pred_fallthru
          _
      $region12: #{tpu_custom_call.1} parent=5 // pred_fallthru
        _
      %p433 = scmp.lt.s32.totalorder %s28, 2
      // Predicated region
      $region61: #{tpu_custom_call.1} parent=5 // pred_check
        %p434 = pneg %p433
      $region62: #{tpu_custom_call.1} parent=5 // pred_check_branch
        %436 = sbr.rel (%p434) target = $region64
      $region63: #{tpu_custom_call.1} parent=5 // pred_region
        // Predicated region
        $region65: #{tpu_custom_call.1} parent=63 // pred_check
          %p437 = pneg %p48
        $region66: #{tpu_custom_call.1} parent=63 // pred_check_branch
          %439 = sbr.rel (%p437) target = $region68
        $region67: #{tpu_custom_call.1} parent=63 // pred_region
          %s440 = sand.u32 %s38, 1
          %s441 = scalar_lea.sflag [#allocation3], %s440
          %s442 = sand.u32 %s38, 1
          %s443 = smul.addr %s442, 8
          %s444 = scalar_lea.vmem [#allocation2], %s443
          %s446 = ssub.s32 128, 128
          %447 = vsyncadd %s441, %s446
          %s448 = smul.addr %s28, 128
          %s449 = scalar_lea.hbm %s0, %s448
          %s451 = sshll.u32 %s444, 4
          %s452 = int_to_ptr.vmem [resolvable:$true] %s451
          %454 = dma.hbm_to_vmem [thread:$0]  %s449, 128, %s452, %s441
        $region68: #{tpu_custom_call.1} parent=63 // pred_fallthru
          _
      $region64: #{tpu_custom_call.1} parent=5 // pred_fallthru
        _
      %p455 = scmp.le.s32.totalorder 1, %s28
      %p456 = scmp.lt.s32.totalorder %s28, 3
      %p457 = pnand %p455, %p456
      %p458 = pneg %p457
      // Predicated region
      $region69: #{tpu_custom_call.1} parent=5 // pred_check
        _
      $region70: #{tpu_custom_call.1} parent=5 // pred_check_branch
        %460 = sbr.rel (%p457) target = $region72
      $region71: #{tpu_custom_call.1} parent=5 // pred_region
        %s461 = ssub.s32 %s28, 1
        %s462 = sand.u32 %s41, 1
        %s463 = scalar_lea.sflag [#allocation3], %s462
        %s464 = sand.u32 %s41, 1
        %s465 = smul.addr %s464, 8
        %s466 = scalar_lea.vmem [#allocation2], %s465
        // Predicated region
        $region73: #{tpu_custom_call.1} parent=71 // pred_check
          %p467 = pneg %p54
        $region74: #{tpu_custom_call.1} parent=71 // pred_check_branch
          %469 = sbr.rel (%p467) target = $region76
        $region75: #{tpu_custom_call.1} parent=71 // pred_region
          %470 = dma.done %s463, 128
        $region76: #{tpu_custom_call.1} parent=71 // pred_fallthru
          _
        // Predicated region
        $region77: #{tpu_custom_call.1} parent=71 // pred_check
          %p471 = pneg %p75
        $region78: #{tpu_custom_call.1} parent=71 // pred_check_branch
          %473 = sbr.rel (%p471) target = $region80
        $region79: #{tpu_custom_call.1} parent=71 // pred_region
          %474 = dma.done [#allocation6], 24576
        $region80: #{tpu_custom_call.1} parent=71 // pred_fallthru
          _
        // Predicated region
        $region81: #{tpu_custom_call.1} parent=71 // pred_check
          %p475 = pneg %p96
        $region82: #{tpu_custom_call.1} parent=71 // pred_check_branch
          %477 = sbr.rel (%p475) target = $region84
        $region83: #{tpu_custom_call.1} parent=71 // pred_region
          %478 = dma.done [#allocation6], 192
        $region84: #{tpu_custom_call.1} parent=71 // pred_fallthru
          _
        // Predicated region
        $region85: #{tpu_custom_call.1} parent=71 // pred_check
          %p479 = pneg %p117
        $region86: #{tpu_custom_call.1} parent=71 // pred_check_branch
          %481 = sbr.rel (%p479) target = $region88
        $region87: #{tpu_custom_call.1} parent=71 // pred_region
          %482 = dma.done [#allocation9], 8192
        $region88: #{tpu_custom_call.1} parent=71 // pred_fallthru
          _
        // Predicated region
        $region89: #{tpu_custom_call.1} parent=71 // pred_check
          %p483 = pneg %p201
        $region90: #{tpu_custom_call.1} parent=71 // pred_check_branch
          %485 = sbr.rel (%p483) target = $region92
        $region91: #{tpu_custom_call.1} parent=71 // pred_region
          %486 = dma.done [#allocation9], 2048
        $region92: #{tpu_custom_call.1} parent=71 // pred_fallthru
          _
        // Predicated region
        $region93: #{tpu_custom_call.1} parent=71 // pred_check
          %p487 = pneg %p243
        $region94: #{tpu_custom_call.1} parent=71 // pred_check_branch
          %489 = sbr.rel (%p487) target = $region96
        $region95: #{tpu_custom_call.1} parent=71 // pred_region
          %490 = dma.done [#allocation12], 2048
        $region96: #{tpu_custom_call.1} parent=71 // pred_fallthru
          _
        %s491 = sand.u32 %s41, 1
        %s492 = scalar_lea.sflag [#allocation3], %s491
        %s493 = sand.u32 %s41, 1
        %s494 = smul.addr %s493, 8
        %s495 = scalar_lea.vmem [#allocation2], %s494
        %p496 = pneg %p54
        %p497 = pneg %p51
        %p498 = pneg %p75
        %p499 = pneg %p72
        %p500 = pneg %p96
        %p501 = pneg %p93
        %p502 = pneg %p117
        %p503 = pneg %p114
        %p504 = pneg %p138
        %p505 = pneg %p135
        %p506 = pneg %p159
        %p507 = pneg %p156
        %p508 = pneg %p180
        %p509 = pneg %p177
        %p510 = pneg %p201
        %p511 = pneg %p198
        %p512 = pneg %p222
        %p513 = pneg %p219
        %p514 = pneg %p243
        %p515 = pneg %p240
        %p516 = pneg %p264
        %p517 = pneg %p261
        %p518 = pneg %p285
        %p519 = pneg %p282
        %p520 = pneg %p306
        %p521 = pneg %p303
        %p522 = pneg %p332
        %p523 = pneg %p329
        %s524 = sand.u32 %s319, 1
        %s525 = scalar_lea.sflag [#allocation4], %s524
        %s526 = sand.u32 %s319, 1
        %s527 = smul.addr %s526, 8
        %s528 = scalar_lea.vmem [#allocation13], %s527
        %v529 = vlaneseq
        %v530 = vand.u32 %v529, 127
        %vm531 = vcmp.lt.s32.totalorder %v530, 32
        %v532 = vsel %vm531, 1, 0
        %v533 = vcvt.s32.f32 %v532
        %v534 = vld [vmem:[%s466] sm:$0xff]
        %v535 = vld [vmem:[%s4] sm:$0x1]
        %v537 = vlaneseq
        %v538 = vshrl.u32 %v537, 7
        %v539 = vsub.s32 0, %v538
        %v540 = vrot.slane %v535, %v539
        %v542 = vadd.f32 %v540, 0.0
        %v543 = vld [vmem:[#allocation5] sm:$0xff]
        %v544 = vld [vmem:[#allocation5 + $0x8] sm:$0xff]
        %v545 = vld [vmem:[#allocation5 + $0x10] sm:$0xff]
        %v546 = vld [vmem:[#allocation5 + $0x18] sm:$0xff]
        %v547 = vld [vmem:[#allocation5 + $0x20] sm:$0xff]
        %v548 = vld [vmem:[#allocation5 + $0x28] sm:$0xff]
        %v549 = vld [vmem:[#allocation5 + $0x30] sm:$0xff]
        %v550 = vld [vmem:[#allocation5 + $0x38] sm:$0xff]
        %v551 = vld [vmem:[#allocation5 + $0x40] sm:$0xff]
        %v552 = vld [vmem:[#allocation5 + $0x48] sm:$0xff]
        %v553 = vld [vmem:[#allocation5 + $0x50] sm:$0xff]
        %v554 = vld [vmem:[#allocation5 + $0x58] sm:$0xff]
        %v555 = vld [vmem:[#allocation5 + $0x60] sm:$0xff]
        %v556 = vld [vmem:[#allocation5 + $0x68] sm:$0xff]
        %v557 = vld [vmem:[#allocation5 + $0x70] sm:$0xff]
        %v558 = vld [vmem:[#allocation5 + $0x78] sm:$0xff]
        %v559 = vld [vmem:[#allocation5 + $0x80] sm:$0xff]
        %v560 = vld [vmem:[#allocation5 + $0x88] sm:$0xff]
        %v561 = vld [vmem:[#allocation5 + $0x90] sm:$0xff]
        %v562 = vld [vmem:[#allocation5 + $0x98] sm:$0xff]
        %v563 = vld [vmem:[#allocation5 + $0xa0] sm:$0xff]
        %v564 = vld [vmem:[#allocation5 + $0xa8] sm:$0xff]
        %v565 = vld [vmem:[#allocation5 + $0xb0] sm:$0xff]
        %v566 = vld [vmem:[#allocation5 + $0xb8] sm:$0xff]
        %v567 = vld [vmem:[#allocation5 + $0xc0] sm:$0xff]
        %v568 = vld [vmem:[#allocation5 + $0xc8] sm:$0xff]
        %v569 = vld [vmem:[#allocation5 + $0xd0] sm:$0xff]
        %v570 = vld [vmem:[#allocation5 + $0xd8] sm:$0xff]
        %v571 = vld [vmem:[#allocation5 + $0xe0] sm:$0xff]
        %v572 = vld [vmem:[#allocation5 + $0xe8] sm:$0xff]
        %v573 = vld [vmem:[#allocation5 + $0xf0] sm:$0xff]
        %v574 = vld [vmem:[#allocation5 + $0xf8] sm:$0xff]
        %v575 = vld [vmem:[#allocation5 + $0x100] sm:$0xff]
        %v576 = vld [vmem:[#allocation5 + $0x108] sm:$0xff]
        %v577 = vld [vmem:[#allocation5 + $0x110] sm:$0xff]
        %v578 = vld [vmem:[#allocation5 + $0x118] sm:$0xff]
        %v579 = vld [vmem:[#allocation5 + $0x120] sm:$0xff]
        %v580 = vld [vmem:[#allocation5 + $0x128] sm:$0xff]
        %v581 = vld [vmem:[#allocation5 + $0x130] sm:$0xff]
        %v582 = vld [vmem:[#allocation5 + $0x138] sm:$0xff]
        %v583 = vld [vmem:[#allocation5 + $0x140] sm:$0xff]
        %v584 = vld [vmem:[#allocation5 + $0x148] sm:$0xff]
        %v585 = vld [vmem:[#allocation5 + $0x150] sm:$0xff]
        %v586 = vld [vmem:[#allocation5 + $0x158] sm:$0xff]
        %v587 = vld [vmem:[#allocation5 + $0x160] sm:$0xff]
        %v588 = vld [vmem:[#allocation5 + $0x168] sm:$0xff]
        %v589 = vld [vmem:[#allocation5 + $0x170] sm:$0xff]
        %v590 = vld [vmem:[#allocation5 + $0x178] sm:$0xff]
        %v591 = vld [vmem:[#allocation7] sm:$0x7]
        %v593 = vlaneseq
        %v594 = vshrl.u32 %v593, 7
        %v595 = vsub.s32 0, %v594
        %v596 = vrot.slane %v591, %v595
        %v597 = vlaneseq
        %v598 = vshrl.u32 %v597, 7
        %v599 = vsub.s32 1, %v598
        %v600 = vrot.slane %v591, %v599
        %v601 = vlaneseq
        %v602 = vshrl.u32 %v601, 7
        %v603 = vsub.s32 2, %v602
        %v604 = vrot.slane %v591, %v603
        %608 = vmatprep.subr.mxu0 %v544
        %609 = vmatpush1.msra.mxu0 %v543
        %610 = vmatprep.subr.mxu0 %v547
        %611 = vmatpush1.msra.mxu0 %v546
        %612 = vmatprep.subr.mxu0 %v550
        %613 = vmatpush1.msra.mxu0 %v549
        %614 = vmatprep.subr.mxu0 %v553
        %615 = vmatpush1.msra.mxu0 %v552
        %616 = vmatprep.subr.mxu0 %v556
        %617 = vmatpush1.msra.mxu0 %v555
        %618 = vmatprep.subr.mxu0 %v559
        %619 = vmatpush1.msra.mxu0 %v558
        %620 = vmatprep.subr.mxu0 %v562
        %621 = vmatpush1.msra.mxu0 %v561
        %622 = vmatprep.subr.mxu0 %v565
        %623 = vmatpush1.msra.mxu0 %v564
        %624 = vmatprep.subr.mxu0 %v568
        %625 = vmatpush1.msra.mxu0 %v567
        %626 = vmatprep.subr.mxu0 %v571
        %627 = vmatpush1.msra.mxu0 %v570
        %628 = vmatprep.subr.mxu0 %v574
        %629 = vmatpush1.msra.mxu0 %v573
        %630 = vmatprep.subr.mxu0 %v577
        %631 = vmatpush1.msra.mxu0 %v576
        %632 = vmatprep.subr.mxu0 %v580
        %633 = vmatpush1.msra.mxu0 %v579
        %634 = vmatprep.subr.mxu0 %v583
        %635 = vmatpush1.msra.mxu0 %v582
        %636 = vmatprep.subr.mxu0 %v586
        %637 = vmatpush1.msra.mxu0 %v585
        %638 = vmatprep.subr.mxu0 %v589
        %639 = vmatpush1.msra.mxu0 %v588
        %640 = vmatprep.subr.mxu0 0.0
        %641 = vmatpush1.msra.mxu0 0.0
        %642 = vmatprep.subr.mxu0 0.0
        %643 = vmatpush1.msra.mxu0 0.0
        %644 = vmatprep.subr.mxu0 0.0
        %645 = vmatpush1.msra.mxu0 0.0
        %646 = vmatprep.subr.mxu0 0.0
        %647 = vmatpush1.msra.mxu0 0.0
        %648 = vmatprep.subr.mxu0 0.0
        %649 = vmatpush1.msra.mxu0 0.0
        %650 = vmatprep.subr.mxu0 0.0
        %651 = vmatpush1.msra.mxu0 0.0
        %652 = vmatprep.subr.mxu0 0.0
        %653 = vmatpush1.msra.mxu0 0.0
        %654 = vmatprep.subr.mxu0 0.0
        %655 = vmatpush1.msra.mxu0 0.0
        %656 = vmatprep.subr.mxu0 0.0
        %657 = vmatpush1.msra.mxu0 0.0
        %658 = vmatprep.subr.mxu0 0.0
        %659 = vmatpush1.msra.mxu0 0.0
        %660 = vmatprep.subr.mxu0 0.0
        %661 = vmatpush1.msra.mxu0 0.0
        %662 = vmatprep.subr.mxu0 0.0
        %663 = vmatpush1.msra.mxu0 0.0
        %664 = vmatprep.subr.mxu0 0.0
        %665 = vmatpush1.msra.mxu0 0.0
        %666 = vmatprep.subr.mxu0 0.0
        %667 = vmatpush1.msra.mxu0 0.0
        %668 = vmatprep.subr.mxu0 0.0
        %669 = vmatpush1.msra.mxu0 0.0
        %670 = vmatprep.subr.mxu0 0.0
        %671 = vmatpush1.msra.mxu0 0.0
        %672 = vmatprep.mubr.f32.mxu0 0.0
        %673 = vmatmul.mubr.f32.gmra.mrb[0].mxu0 %v534
        %v674 = vpop.f32.mrb[0].mxu0
        %v675 = vadd.f32 %v596, %v674
        %v676 = vpop.f32.mrb[0].mxu0
        %v677 = vadd.f32 %v600, %v676
        %678 = vdwg.mxu0
        %679 = vmatprep.subr.mxu0 0.0
        %680 = vmatpush1.msra.mxu0 %v545
        %681 = vmatprep.subr.mxu0 0.0
        %682 = vmatpush1.msra.mxu0 %v548
        %683 = vmatprep.subr.mxu0 0.0
        %684 = vmatpush1.msra.mxu0 %v551
        %685 = vmatprep.subr.mxu0 0.0
        %686 = vmatpush1.msra.mxu0 %v554
        %687 = vmatprep.subr.mxu0 0.0
        %688 = vmatpush1.msra.mxu0 %v557
        %689 = vmatprep.subr.mxu0 0.0
        %690 = vmatpush1.msra.mxu0 %v560
        %691 = vmatprep.subr.mxu0 0.0
        %692 = vmatpush1.msra.mxu0 %v563
        %693 = vmatprep.subr.mxu0 0.0
        %694 = vmatpush1.msra.mxu0 %v566
        %695 = vmatprep.subr.mxu0 0.0
        %696 = vmatpush1.msra.mxu0 %v569
        %697 = vmatprep.subr.mxu0 0.0
        %698 = vmatpush1.msra.mxu0 %v572
        %699 = vmatprep.subr.mxu0 0.0
        %700 = vmatpush1.msra.mxu0 %v575
        %701 = vmatprep.subr.mxu0 0.0
        %702 = vmatpush1.msra.mxu0 %v578
        %703 = vmatprep.subr.mxu0 0.0
        %704 = vmatpush1.msra.mxu0 %v581
        %705 = vmatprep.subr.mxu0 0.0
        %706 = vmatpush1.msra.mxu0 %v584
        %707 = vmatprep.subr.mxu0 0.0
        %708 = vmatpush1.msra.mxu0 %v587
        %709 = vmatprep.subr.mxu0 0.0
        %710 = vmatpush1.msra.mxu0 %v590
        %711 = vmatprep.subr.mxu0 0.0
        %712 = vmatpush1.msra.mxu0 0.0
        %713 = vmatprep.subr.mxu0 0.0
        %714 = vmatpush1.msra.mxu0 0.0
        %715 = vmatprep.subr.mxu0 0.0
        %716 = vmatpush1.msra.mxu0 0.0
        %717 = vmatprep.subr.mxu0 0.0
        %718 = vmatpush1.msra.mxu0 0.0
        %719 = vmatprep.subr.mxu0 0.0
        %720 = vmatpush1.msra.mxu0 0.0
        %721 = vmatprep.subr.mxu0 0.0
        %722 = vmatpush1.msra.mxu0 0.0
        %723 = vmatprep.subr.mxu0 0.0
        %724 = vmatpush1.msra.mxu0 0.0
        %725 = vmatprep.subr.mxu0 0.0
        %726 = vmatpush1.msra.mxu0 0.0
        %727 = vmatprep.subr.mxu0 0.0
        %728 = vmatpush1.msra.mxu0 0.0
        %729 = vmatprep.subr.mxu0 0.0
        %730 = vmatpush1.msra.mxu0 0.0
        %731 = vmatprep.subr.mxu0 0.0
        %732 = vmatpush1.msra.mxu0 0.0
        %733 = vmatprep.subr.mxu0 0.0
        %734 = vmatpush1.msra.mxu0 0.0
        %735 = vmatprep.subr.mxu0 0.0
        %736 = vmatpush1.msra.mxu0 0.0
        %737 = vmatprep.subr.mxu0 0.0
        %738 = vmatpush1.msra.mxu0 0.0
        %739 = vmatprep.subr.mxu0 0.0
        %740 = vmatpush1.msra.mxu0 0.0
        %741 = vmatprep.subr.mxu0 0.0
        %742 = vmatpush1.msra.mxu0 0.0
        %743 = vmatprep.mubr.f32.mxu0 0.0
        %744 = vmatmul.mubr.f32.gmra.mrb[0].mxu0 %v534
        %v745 = vpop.f32.mrb[0].mxu0
        %v746 = vadd.f32 %v604, %v745
        %v747 = vpop.f32.mrb[0].mxu0
        %748 = vdwg.mxu0
        %v749 = vmul.f32 %v675, 0.35355338
        %750 = vmatprep.subr.mxu0 0.0
        %751 = vmatpush1.xpose.msra.mxu0 %v677
        %752 = vmatprep.subr.mxu0 0.0
        %753 = vmatpush1.xpose.msra.mxu0 0.0
        %754 = vmatprep.subr.mxu0 0.0
        %755 = vmatpush1.xpose.msra.mxu0 0.0
        %756 = vmatprep.subr.mxu0 0.0
        %757 = vmatpush1.xpose.msra.mxu0 0.0
        %758 = vmatprep.subr.mxu0 0.0
        %759 = vmatpush1.xpose.msra.mxu0 0.0
        %760 = vmatprep.subr.mxu0 0.0
        %761 = vmatpush1.xpose.msra.mxu0 0.0
        %762 = vmatprep.subr.mxu0 0.0
        %763 = vmatpush1.xpose.msra.mxu0 0.0
        %764 = vmatprep.subr.mxu0 0.0
        %765 = vmatpush1.xpose.msra.mxu0 0.0
        %766 = vmatprep.subr.mxu0 0.0
        %767 = vmatpush1.xpose.msra.mxu0 0.0
        %768 = vmatprep.subr.mxu0 0.0
        %769 = vmatpush1.xpose.msra.mxu0 0.0
        %770 = vmatprep.subr.mxu0 0.0
        %771 = vmatpush1.xpose.msra.mxu0 0.0
        %772 = vmatprep.subr.mxu0 0.0
        %773 = vmatpush1.xpose.msra.mxu0 0.0
        %774 = vmatprep.subr.mxu0 0.0
        %775 = vmatpush1.xpose.msra.mxu0 0.0
        %776 = vmatprep.subr.mxu0 0.0
        %777 = vmatpush1.xpose.msra.mxu0 0.0
        %778 = vmatprep.subr.mxu0 0.0
        %779 = vmatpush1.xpose.msra.mxu0 0.0
        %780 = vmatprep.subr.mxu0 0.0
        %781 = vmatpush1.xpose.msra.mxu0 0.0
        %782 = vmatprep.subr.mxu0 0.0
        %783 = vmatpush1.xpose.msra.mxu0 0.0
        %784 = vmatprep.subr.mxu0 0.0
        %785 = vmatpush1.xpose.msra.mxu0 0.0
        %786 = vmatprep.subr.mxu0 0.0
        %787 = vmatpush1.xpose.msra.mxu0 0.0
        %788 = vmatprep.subr.mxu0 0.0
        %789 = vmatpush1.xpose.msra.mxu0 0.0
        %790 = vmatprep.subr.mxu0 0.0
        %791 = vmatpush1.xpose.msra.mxu0 0.0
        %792 = vmatprep.subr.mxu0 0.0
        %793 = vmatpush1.xpose.msra.mxu0 0.0
        %794 = vmatprep.subr.mxu0 0.0
        %795 = vmatpush1.xpose.msra.mxu0 0.0
        %796 = vmatprep.subr.mxu0 0.0
        %797 = vmatpush1.xpose.msra.mxu0 0.0
        %798 = vmatprep.subr.mxu0 0.0
        %799 = vmatpush1.xpose.msra.mxu0 0.0
        %800 = vmatprep.subr.mxu0 0.0
        %801 = vmatpush1.xpose.msra.mxu0 0.0
        %802 = vmatprep.subr.mxu0 0.0
        %803 = vmatpush1.xpose.msra.mxu0 0.0
        %804 = vmatprep.subr.mxu0 0.0
        %805 = vmatpush1.xpose.msra.mxu0 0.0
        %806 = vmatprep.subr.mxu0 0.0
        %807 = vmatpush1.xpose.msra.mxu0 0.0
        %808 = vmatprep.subr.mxu0 0.0
        %809 = vmatpush1.xpose.msra.mxu0 0.0
        %810 = vmatprep.subr.mxu0 0.0
        %811 = vmatpush1.xpose.msra.mxu0 0.0
        %812 = vmatprep.subr.mxu0 0.0
        %813 = vmatpush1.xpose.msra.mxu0 0.0
        %814 = vmatprep.mubr.f32.mxu0 0.0
        %815 = vmatmul.mubr.f32.gmra.mrb[0].mxu0 %v749
        %v816 = vpop.f32.mrb[0].mxu0
        %v817 = vadd.f32 0.0, %v816
        %v818 = vpop.f32.mrb[0].mxu0
        %819 = vdwg.mxu0
        %vm820 = vcmask 64512
        %v821 = vsel %vm820, %v817, -inf
        %822 = vmax.xlane.f32.xlu0 %v821
        %v823 = vpop.xlane.xlu0 %822
        %v824 = vmax.f32 %v823, -1e+30
        %v825 = vsub.f32 -1e+30, %v824
        %v826 = vmul.f32 %v825, 1.442695
        %v827 = vpow.pop %v826
        %v828 = vsub.f32 %v817, %v824
        %v829 = vmul.f32 %v828, 1.442695
        %v830 = vpow.pop %v829
        %v831 = vmul.f32 %v827, 0.0
        %v832 = vsel %vm820, %v830, 0.0
        %833 = vadd.xlane.f32.xlu0 %v832
        %v834 = vpop.xlane.xlu0 %833
        %v835 = vadd.f32 %v831, %v834
        %v837 = vsel %vm820, %v830, 0
        %839 = vmatprep.subr.mxu0 0.0
        %840 = vmatpush1.msra.mxu0 %v746
        %841 = vmatprep.subr.mxu0 0.0
        %842 = vmatpush1.msra.mxu0 0.0
        %843 = vmatprep.subr.mxu0 0.0
        %844 = vmatpush1.msra.mxu0 0.0
        %845 = vmatprep.subr.mxu0 0.0
        %846 = vmatpush1.msra.mxu0 0.0
        %847 = vmatprep.subr.mxu0 0.0
        %848 = vmatpush1.msra.mxu0 0.0
        %849 = vmatprep.subr.mxu0 0.0
        %850 = vmatpush1.msra.mxu0 0.0
        %851 = vmatprep.subr.mxu0 0.0
        %852 = vmatpush1.msra.mxu0 0.0
        %853 = vmatprep.subr.mxu0 0.0
        %854 = vmatpush1.msra.mxu0 0.0
        %855 = vmatprep.subr.mxu0 0.0
        %856 = vmatpush1.msra.mxu0 0.0
        %857 = vmatprep.subr.mxu0 0.0
        %858 = vmatpush1.msra.mxu0 0.0
        %859 = vmatprep.subr.mxu0 0.0
        %860 = vmatpush1.msra.mxu0 0.0
        %861 = vmatprep.subr.mxu0 0.0
        %862 = vmatpush1.msra.mxu0 0.0
        %863 = vmatprep.subr.mxu0 0.0
        %864 = vmatpush1.msra.mxu0 0.0
        %865 = vmatprep.subr.mxu0 0.0
        %866 = vmatpush1.msra.mxu0 0.0
        %867 = vmatprep.subr.mxu0 0.0
        %868 = vmatpush1.msra.mxu0 0.0
        %869 = vmatprep.subr.mxu0 0.0
        %870 = vmatpush1.msra.mxu0 0.0
        %871 = vmatprep.subr.mxu0 0.0
        %872 = vmatpush1.msra.mxu0 0.0
        %873 = vmatprep.subr.mxu0 0.0
        %874 = vmatpush1.msra.mxu0 0.0
        %875 = vmatprep.subr.mxu0 0.0
        %876 = vmatpush1.msra.mxu0 0.0
        %877 = vmatprep.subr.mxu0 0.0
        %878 = vmatpush1.msra.mxu0 0.0
        %879 = vmatprep.subr.mxu0 0.0
        %880 = vmatpush1.msra.mxu0 0.0
        %881 = vmatprep.subr.mxu0 0.0
        %882 = vmatpush1.msra.mxu0 0.0
        %883 = vmatprep.subr.mxu0 0.0
        %884 = vmatpush1.msra.mxu0 0.0
        %885 = vmatprep.subr.mxu0 0.0
        %886 = vmatpush1.msra.mxu0 0.0
        %887 = vmatprep.subr.mxu0 0.0
        %888 = vmatpush1.msra.mxu0 0.0
        %889 = vmatprep.subr.mxu0 0.0
        %890 = vmatpush1.msra.mxu0 0.0
        %891 = vmatprep.subr.mxu0 0.0
        %892 = vmatpush1.msra.mxu0 0.0
        %893 = vmatprep.subr.mxu0 0.0
        %894 = vmatpush1.msra.mxu0 0.0
        %895 = vmatprep.subr.mxu0 0.0
        %896 = vmatpush1.msra.mxu0 0.0
        %897 = vmatprep.subr.mxu0 0.0
        %898 = vmatpush1.msra.mxu0 0.0
        %899 = vmatprep.subr.mxu0 0.0
        %900 = vmatpush1.msra.mxu0 0.0
        %901 = vmatprep.subr.mxu0 0.0
        %902 = vmatpush1.msra.mxu0 0.0
        %903 = vmatprep.mubr.f32.mxu0 0.0
        %904 = vmatmul.mubr.f32.gmra.mrb[0].mxu0 %v837
        %v905 = vpop.f32.mrb[0].mxu0
        %v906 = vadd.f32 0.0, %v905
        %v907 = vpop.f32.mrb[0].mxu0
        %908 = vdwg.mxu0
        %v909 = vadd.f32 %v831, %v906
        %v910 = vrcp.pop %v835
        %v911 = vmul.f32 %v909, %v910
        %v912 = vld [vmem:[#allocation8] sm:$0xff]
        %v913 = vld [vmem:[#allocation8 + $0x8] sm:$0xff]
        %v914 = vld [vmem:[#allocation8 + $0x10] sm:$0xff]
        %v915 = vld [vmem:[#allocation8 + $0x18] sm:$0xff]
        %v916 = vld [vmem:[#allocation8 + $0x20] sm:$0xff]
        %v917 = vld [vmem:[#allocation8 + $0x28] sm:$0xff]
        %v918 = vld [vmem:[#allocation8 + $0x30] sm:$0xff]
        %v919 = vld [vmem:[#allocation8 + $0x38] sm:$0xff]
        %v920 = vld [vmem:[#allocation8 + $0x40] sm:$0xff]
        %v921 = vld [vmem:[#allocation8 + $0x48] sm:$0xff]
        %v922 = vld [vmem:[#allocation8 + $0x50] sm:$0xff]
        %v923 = vld [vmem:[#allocation8 + $0x58] sm:$0xff]
        %v924 = vld [vmem:[#allocation8 + $0x60] sm:$0xff]
        %v925 = vld [vmem:[#allocation8 + $0x68] sm:$0xff]
        %v926 = vld [vmem:[#allocation8 + $0x70] sm:$0xff]
        %v927 = vld [vmem:[#allocation8 + $0x78] sm:$0xff]
        %928 = vmatprep.subr.mxu0 0.0
        %929 = vmatpush1.msra.mxu0 %v912
        %930 = vmatprep.subr.mxu0 0.0
        %931 = vmatpush1.msra.mxu0 %v913
        %932 = vmatprep.subr.mxu0 0.0
        %933 = vmatpush1.msra.mxu0 %v914
        %934 = vmatprep.subr.mxu0 0.0
        %935 = vmatpush1.msra.mxu0 %v915
        %936 = vmatprep.subr.mxu0 0.0
        %937 = vmatpush1.msra.mxu0 %v916
        %938 = vmatprep.subr.mxu0 0.0
        %939 = vmatpush1.msra.mxu0 %v917
        %940 = vmatprep.subr.mxu0 0.0
        %941 = vmatpush1.msra.mxu0 %v918
        %942 = vmatprep.subr.mxu0 0.0
        %943 = vmatpush1.msra.mxu0 %v919
        %944 = vmatprep.subr.mxu0 0.0
        %945 = vmatpush1.msra.mxu0 %v920
        %946 = vmatprep.subr.mxu0 0.0
        %947 = vmatpush1.msra.mxu0 %v921
        %948 = vmatprep.subr.mxu0 0.0
        %949 = vmatpush1.msra.mxu0 %v922
        %950 = vmatprep.subr.mxu0 0.0
        %951 = vmatpush1.msra.mxu0 %v923
        %952 = vmatprep.subr.mxu0 0.0
        %953 = vmatpush1.msra.mxu0 %v924
        %954 = vmatprep.subr.mxu0 0.0
        %955 = vmatpush1.msra.mxu0 %v925
        %956 = vmatprep.subr.mxu0 0.0
        %957 = vmatpush1.msra.mxu0 %v926
        %958 = vmatprep.subr.mxu0 0.0
        %959 = vmatpush1.msra.mxu0 %v927
        %960 = vmatprep.subr.mxu0 0.0
        %961 = vmatpush1.msra.mxu0 0.0
        %962 = vmatprep.subr.mxu0 0.0
        %963 = vmatpush1.msra.mxu0 0.0
        %964 = vmatprep.subr.mxu0 0.0
        %965 = vmatpush1.msra.mxu0 0.0
        %966 = vmatprep.subr.mxu0 0.0
        %967 = vmatpush1.msra.mxu0 0.0
        %968 = vmatprep.subr.mxu0 0.0
        %969 = vmatpush1.msra.mxu0 0.0
        %970 = vmatprep.subr.mxu0 0.0
        %971 = vmatpush1.msra.mxu0 0.0
        %972 = vmatprep.subr.mxu0 0.0
        %973 = vmatpush1.msra.mxu0 0.0
        %974 = vmatprep.subr.mxu0 0.0
        %975 = vmatpush1.msra.mxu0 0.0
        %976 = vmatprep.subr.mxu0 0.0
        %977 = vmatpush1.msra.mxu0 0.0
        %978 = vmatprep.subr.mxu0 0.0
        %979 = vmatpush1.msra.mxu0 0.0
        %980 = vmatprep.subr.mxu0 0.0
        %981 = vmatpush1.msra.mxu0 0.0
        %982 = vmatprep.subr.mxu0 0.0
        %983 = vmatpush1.msra.mxu0 0.0
        %984 = vmatprep.subr.mxu0 0.0
        %985 = vmatpush1.msra.mxu0 0.0
        %986 = vmatprep.subr.mxu0 0.0
        %987 = vmatpush1.msra.mxu0 0.0
        %988 = vmatprep.subr.mxu0 0.0
        %989 = vmatpush1.msra.mxu0 0.0
        %990 = vmatprep.subr.mxu0 0.0
        %991 = vmatpush1.msra.mxu0 0.0
        %992 = vmatprep.mubr.f32.mxu0 0.0
        %993 = vmatmul.mubr.f32.gmra.mrb[0].mxu0 %v911
        %v994 = vpop.f32.mrb[0].mxu0
        %v995 = vadd.f32 0.0, %v994
        %v996 = vpop.f32.mrb[0].mxu0
        %997 = vdwg.mxu0
        %v998 = vadd.f32 %v542, %v995
        %s999 = scalar_lea.vmem [#allocation5], 384
        %v1000 = vld [vmem:[%s999] sm:$0xff]
        %v1001 = vld [vmem:[%s999 + $0x8] sm:$0xff]
        %v1002 = vld [vmem:[%s999 + $0x10] sm:$0xff]
        %v1003 = vld [vmem:[%s999 + $0x18] sm:$0xff]
        %v1004 = vld [vmem:[%s999 + $0x20] sm:$0xff]
        %v1005 = vld [vmem:[%s999 + $0x28] sm:$0xff]
        %v1006 = vld [vmem:[%s999 + $0x30] sm:$0xff]
        %v1007 = vld [vmem:[%s999 + $0x38] sm:$0xff]
        %v1008 = vld [vmem:[%s999 + $0x40] sm:$0xff]
        %v1009 = vld [vmem:[%s999 + $0x48] sm:$0xff]
        %v1010 = vld [vmem:[%s999 + $0x50] sm:$0xff]
        %v1011 = vld [vmem:[%s999 + $0x58] sm:$0xff]
        %v1012 = vld [vmem:[%s999 + $0x60] sm:$0xff]
        %v1013 = vld [vmem:[%s999 + $0x68] sm:$0xff]
        %v1014 = vld [vmem:[%s999 + $0x70] sm:$0xff]
        %v1015 = vld [vmem:[%s999 + $0x78] sm:$0xff]
        %v1016 = vld [vmem:[%s999 + $0x80] sm:$0xff]
        %v1017 = vld [vmem:[%s999 + $0x88] sm:$0xff]
        %v1018 = vld [vmem:[%s999 + $0x90] sm:$0xff]
        %v1019 = vld [vmem:[%s999 + $0x98] sm:$0xff]
        %v1020 = vld [vmem:[%s999 + $0xa0] sm:$0xff]
        %v1021 = vld [vmem:[%s999 + $0xa8] sm:$0xff]
        %v1022 = vld [vmem:[%s999 + $0xb0] sm:$0xff]
        %v1023 = vld [vmem:[%s999 + $0xb8] sm:$0xff]
        %v1024 = vld [vmem:[%s999 + $0xc0] sm:$0xff]
        %v1025 = vld [vmem:[%s999 + $0xc8] sm:$0xff]
        %v1026 = vld [vmem:[%s999 + $0xd0] sm:$0xff]
        %v1027 = vld [vmem:[%s999 + $0xd8] sm:$0xff]
        %v1028 = vld [vmem:[%s999 + $0xe0] sm:$0xff]
        %v1029 = vld [vmem:[%s999 + $0xe8] sm:$0xff]
        %v1030 = vld [vmem:[%s999 + $0xf0] sm:$0xff]
        %v1031 = vld [vmem:[%s999 + $0xf8] sm:$0xff]
        %v1032 = vld [vmem:[%s999 + $0x100] sm:$0xff]
        %v1033 = vld [vmem:[%s999 + $0x108] sm:$0xff]
        %v1034 = vld [vmem:[%s999 + $0x110] sm:$0xff]
        %v1035 = vld [vmem:[%s999 + $0x118] sm:$0xff]
        %v1036 = vld [vmem:[%s999 + $0x120] sm:$0xff]
        %v1037 = vld [vmem:[%s999 + $0x128] sm:$0xff]
        %v1038 = vld [vmem:[%s999 + $0x130] sm:$0xff]
        %v1039 = vld [vmem:[%s999 + $0x138] sm:$0xff]
        %v1040 = vld [vmem:[%s999 + $0x140] sm:$0xff]
        %v1041 = vld [vmem:[%s999 + $0x148] sm:$0xff]
        %v1042 = vld [vmem:[%s999 + $0x150] sm:$0xff]
        %v1043 = vld [vmem:[%s999 + $0x158] sm:$0xff]
        %v1044 = vld [vmem:[%s999 + $0x160] sm:$0xff]
        %v1045 = vld [vmem:[%s999 + $0x168] sm:$0xff]
        %v1046 = vld [vmem:[%s999 + $0x170] sm:$0xff]
        %v1047 = vld [vmem:[%s999 + $0x178] sm:$0xff]
        %s1048 = scalar_lea.vmem [#allocation7], 3
        %v1049 = vld [vmem:[%s1048] sm:$0x7]
        %v1051 = vlaneseq
        %v1052 = vshrl.u32 %v1051, 7
        %v1053 = vsub.s32 0, %v1052
        %v1054 = vrot.slane %v1049, %v1053
        %v1055 = vlaneseq
        %v1056 = vshrl.u32 %v1055, 7
        %v1057 = vsub.s32 1, %v1056
        %v1058 = vrot.slane %v1049, %v1057
        %v1059 = vlaneseq
        %v1060 = vshrl.u32 %v1059, 7
        %v1061 = vsub.s32 2, %v1060
        %v1062 = vrot.slane %v1049, %v1061
        %1066 = vmatprep.subr.mxu0 %v1001
        %1067 = vmatpush1.msra.mxu0 %v1000
        %1068 = vmatprep.subr.mxu0 %v1004
        %1069 = vmatpush1.msra.mxu0 %v1003
        %1070 = vmatprep.subr.mxu0 %v1007
        %1071 = vmatpush1.msra.mxu0 %v1006
        %1072 = vmatprep.subr.mxu0 %v1010
        %1073 = vmatpush1.msra.mxu0 %v1009
        %1074 = vmatprep.subr.mxu0 %v1013
        %1075 = vmatpush1.msra.mxu0 %v1012
        %1076 = vmatprep.subr.mxu0 %v1016
        %1077 = vmatpush1.msra.mxu0 %v1015
        %1078 = vmatprep.subr.mxu0 %v1019
        %1079 = vmatpush1.msra.mxu0 %v1018
        %1080 = vmatprep.subr.mxu0 %v1022
        %1081 = vmatpush1.msra.mxu0 %v1021
        %1082 = vmatprep.subr.mxu0 %v1025
        %1083 = vmatpush1.msra.mxu0 %v1024
        %1084 = vmatprep.subr.mxu0 %v1028
        %1085 = vmatpush1.msra.mxu0 %v1027
        %1086 = vmatprep.subr.mxu0 %v1031
        %1087 = vmatpush1.msra.mxu0 %v1030
        %1088 = vmatprep.subr.mxu0 %v1034
        %1089 = vmatpush1.msra.mxu0 %v1033
        %1090 = vmatprep.subr.mxu0 %v1037
        %1091 = vmatpush1.msra.mxu0 %v1036
        %1092 = vmatprep.subr.mxu0 %v1040
        %1093 = vmatpush1.msra.mxu0 %v1039
        %1094 = vmatprep.subr.mxu0 %v1043
        %1095 = vmatpush1.msra.mxu0 %v1042
        %1096 = vmatprep.subr.mxu0 %v1046
        %1097 = vmatpush1.msra.mxu0 %v1045
        %1098 = vmatprep.subr.mxu0 0.0
        %1099 = vmatpush1.msra.mxu0 0.0
        %1100 = vmatprep.subr.mxu0 0.0
        %1101 = vmatpush1.msra.mxu0 0.0
        %1102 = vmatprep.subr.mxu0 0.0
        %1103 = vmatpush1.msra.mxu0 0.0
        %1104 = vmatprep.subr.mxu0 0.0
        %1105 = vmatpush1.msra.mxu0 0.0
        %1106 = vmatprep.subr.mxu0 0.0
        %1107 = vmatpush1.msra.mxu0 0.0
        %1108 = vmatprep.subr.mxu0 0.0
        %1109 = vmatpush1.msra.mxu0 0.0
        %1110 = vmatprep.subr.mxu0 0.0
        %1111 = vmatpush1.msra.mxu0 0.0
        %1112 = vmatprep.subr.mxu0 0.0
        %1113 = vmatpush1.msra.mxu0 0.0
        %1114 = vmatprep.subr.mxu0 0.0
        %1115 = vmatpush1.msra.mxu0 0.0
        %1116 = vmatprep.subr.mxu0 0.0
        %1117 = vmatpush1.msra.mxu0 0.0
        %1118 = vmatprep.subr.mxu0 0.0
        %1119 = vmatpush1.msra.mxu0 0.0
        %1120 = vmatprep.subr.mxu0 0.0
        %1121 = vmatpush1.msra.mxu0 0.0
        %1122 = vmatprep.subr.mxu0 0.0
        %1123 = vmatpush1.msra.mxu0 0.0
        %1124 = vmatprep.subr.mxu0 0.0
        %1125 = vmatpush1.msra.mxu0 0.0
        %1126 = vmatprep.subr.mxu0 0.0
        %1127 = vmatpush1.msra.mxu0 0.0
        %1128 = vmatprep.subr.mxu0 0.0
        %1129 = vmatpush1.msra.mxu0 0.0
        %1130 = vmatprep.mubr.f32.mxu0 0.0
        %1131 = vmatmul.mubr.f32.gmra.mrb[0].mxu0 %v534
        %v1132 = vpop.f32.mrb[0].mxu0
        %v1133 = vadd.f32 %v1054, %v1132
        %v1134 = vpop.f32.mrb[0].mxu0
        %v1135 = vadd.f32 %v1058, %v1134
        %1136 = vdwg.mxu0
        %1137 = vmatprep.subr.mxu0 0.0
        %1138 = vmatpush1.msra.mxu0 %v1002
        %1139 = vmatprep.subr.mxu0 0.0
        %1140 = vmatpush1.msra.mxu0 %v1005
        %1141 = vmatprep.subr.mxu0 0.0
        %1142 = vmatpush1.msra.mxu0 %v1008
        %1143 = vmatprep.subr.mxu0 0.0
        %1144 = vmatpush1.msra.mxu0 %v1011
        %1145 = vmatprep.subr.mxu0 0.0
        %1146 = vmatpush1.msra.mxu0 %v1014
        %1147 = vmatprep.subr.mxu0 0.0
        %1148 = vmatpush1.msra.mxu0 %v1017
        %1149 = vmatprep.subr.mxu0 0.0
        %1150 = vmatpush1.msra.mxu0 %v1020
        %1151 = vmatprep.subr.mxu0 0.0
        %1152 = vmatpush1.msra.mxu0 %v1023
        %1153 = vmatprep.subr.mxu0 0.0
        %1154 = vmatpush1.msra.mxu0 %v1026
        %1155 = vmatprep.subr.mxu0 0.0
        %1156 = vmatpush1.msra.mxu0 %v1029
        %1157 = vmatprep.subr.mxu0 0.0
        %1158 = vmatpush1.msra.mxu0 %v1032
        %1159 = vmatprep.subr.mxu0 0.0
        %1160 = vmatpush1.msra.mxu0 %v1035
        %1161 = vmatprep.subr.mxu0 0.0
        %1162 = vmatpush1.msra.mxu0 %v1038
        %1163 = vmatprep.subr.mxu0 0.0
        %1164 = vmatpush1.msra.mxu0 %v1041
        %1165 = vmatprep.subr.mxu0 0.0
        %1166 = vmatpush1.msra.mxu0 %v1044
        %1167 = vmatprep.subr.mxu0 0.0
        %1168 = vmatpush1.msra.mxu0 %v1047
        %1169 = vmatprep.subr.mxu0 0.0
        %1170 = vmatpush1.msra.mxu0 0.0
        %1171 = vmatprep.subr.mxu0 0.0
        %1172 = vmatpush1.msra.mxu0 0.0
        %1173 = vmatprep.subr.mxu0 0.0
        %1174 = vmatpush1.msra.mxu0 0.0
        %1175 = vmatprep.subr.mxu0 0.0
        %1176 = vmatpush1.msra.mxu0 0.0
        %1177 = vmatprep.subr.mxu0 0.0
        %1178 = vmatpush1.msra.mxu0 0.0
        %1179 = vmatprep.subr.mxu0 0.0
        %1180 = vmatpush1.msra.mxu0 0.0
        %1181 = vmatprep.subr.mxu0 0.0
        %1182 = vmatpush1.msra.mxu0 0.0
        %1183 = vmatprep.subr.mxu0 0.0
        %1184 = vmatpush1.msra.mxu0 0.0
        %1185 = vmatprep.subr.mxu0 0.0
        %1186 = vmatpush1.msra.mxu0 0.0
        %1187 = vmatprep.subr.mxu0 0.0
        %1188 = vmatpush1.msra.mxu0 0.0
        %1189 = vmatprep.subr.mxu0 0.0
        %1190 = vmatpush1.msra.mxu0 0.0
        %1191 = vmatprep.subr.mxu0 0.0
        %1192 = vmatpush1.msra.mxu0 0.0
        %1193 = vmatprep.subr.mxu0 0.0
        %1194 = vmatpush1.msra.mxu0 0.0
        %1195 = vmatprep.subr.mxu0 0.0
        %1196 = vmatpush1.msra.mxu0 0.0
        %1197 = vmatprep.subr.mxu0 0.0
        %1198 = vmatpush1.msra.mxu0 0.0
        %1199 = vmatprep.subr.mxu0 0.0
        %1200 = vmatpush1.msra.mxu0 0.0
        %1201 = vmatprep.mubr.f32.mxu0 0.0
        %1202 = vmatmul.mubr.f32.gmra.mrb[0].mxu0 %v534
        %v1203 = vpop.f32.mrb[0].mxu0
        %v1204 = vadd.f32 %v1062, %v1203
        %v1205 = vpop.f32.mrb[0].mxu0
        %1206 = vdwg.mxu0
        %v1207 = vmul.f32 %v1133, 0.35355338
        %1208 = vmatprep.subr.mxu0 0.0
        %1209 = vmatpush1.xpose.msra.mxu0 %v1135
        %1210 = vmatprep.subr.mxu0 0.0
        %1211 = vmatpush1.xpose.msra.mxu0 0.0
        %1212 = vmatprep.subr.mxu0 0.0
        %1213 = vmatpush1.xpose.msra.mxu0 0.0
        %1214 = vmatprep.subr.mxu0 0.0
        %1215 = vmatpush1.xpose.msra.mxu0 0.0
        %1216 = vmatprep.subr.mxu0 0.0
        %1217 = vmatpush1.xpose.msra.mxu0 0.0
        %1218 = vmatprep.subr.mxu0 0.0
        %1219 = vmatpush1.xpose.msra.mxu0 0.0
        %1220 = vmatprep.subr.mxu0 0.0
        %1221 = vmatpush1.xpose.msra.mxu0 0.0
        %1222 = vmatprep.subr.mxu0 0.0
        %1223 = vmatpush1.xpose.msra.mxu0 0.0
        %1224 = vmatprep.subr.mxu0 0.0
        %1225 = vmatpush1.xpose.msra.mxu0 0.0
        %1226 = vmatprep.subr.mxu0 0.0
        %1227 = vmatpush1.xpose.msra.mxu0 0.0
        %1228 = vmatprep.subr.mxu0 0.0
        %1229 = vmatpush1.xpose.msra.mxu0 0.0
        %1230 = vmatprep.subr.mxu0 0.0
        %1231 = vmatpush1.xpose.msra.mxu0 0.0
        %1232 = vmatprep.subr.mxu0 0.0
        %1233 = vmatpush1.xpose.msra.mxu0 0.0
        %1234 = vmatprep.subr.mxu0 0.0
        %1235 = vmatpush1.xpose.msra.mxu0 0.0
        %1236 = vmatprep.subr.mxu0 0.0
        %1237 = vmatpush1.xpose.msra.mxu0 0.0
        %1238 = vmatprep.subr.mxu0 0.0
        %1239 = vmatpush1.xpose.msra.mxu0 0.0
        %1240 = vmatprep.subr.mxu0 0.0
        %1241 = vmatpush1.xpose.msra.mxu0 0.0
        %1242 = vmatprep.subr.mxu0 0.0
        %1243 = vmatpush1.xpose.msra.mxu0 0.0
        %1244 = vmatprep.subr.mxu0 0.0
        %1245 = vmatpush1.xpose.msra.mxu0 0.0
        %1246 = vmatprep.subr.mxu0 0.0
        %1247 = vmatpush1.xpose.msra.mxu0 0.0
        %1248 = vmatprep.subr.mxu0 0.0
        %1249 = vmatpush1.xpose.msra.mxu0 0.0
        %1250 = vmatprep.subr.mxu0 0.0
        %1251 = vmatpush1.xpose.msra.mxu0 0.0
        %1252 = vmatprep.subr.mxu0 0.0
        %1253 = vmatpush1.xpose.msra.mxu0 0.0
        %1254 = vmatprep.subr.mxu0 0.0
        %1255 = vmatpush1.xpose.msra.mxu0 0.0
        %1256 = vmatprep.subr.mxu0 0.0
        %1257 = vmatpush1.xpose.msra.mxu0 0.0
        %1258 = vmatprep.subr.mxu0 0.0
        %1259 = vmatpush1.xpose.msra.mxu0 0.0
        %1260 = vmatprep.subr.mxu0 0.0
        %1261 = vmatpush1.xpose.msra.mxu0 0.0
        %1262 = vmatprep.subr.mxu0 0.0
        %1263 = vmatpush1.xpose.msra.mxu0 0.0
        %1264 = vmatprep.subr.mxu0 0.0
        %1265 = vmatpush1.xpose.msra.mxu0 0.0
        %1266 = vmatprep.subr.mxu0 0.0
        %1267 = vmatpush1.xpose.msra.mxu0 0.0
        %1268 = vmatprep.subr.mxu0 0.0
        %1269 = vmatpush1.xpose.msra.mxu0 0.0
        %1270 = vmatprep.subr.mxu0 0.0
        %1271 = vmatpush1.xpose.msra.mxu0 0.0
        %1272 = vmatprep.mubr.f32.mxu0 0.0
        %1273 = vmatmul.mubr.f32.gmra.mrb[0].mxu0 %v1207
        %v1274 = vpop.f32.mrb[0].mxu0
        %v1275 = vadd.f32 0.0, %v1274
        %v1276 = vpop.f32.mrb[0].mxu0
        %1277 = vdwg.mxu0
        %v1278 = vsel %vm820, %v1275, -inf
        %1279 = vmax.xlane.f32.xlu0 %v1278
        %v1280 = vpop.xlane.xlu0 %1279
        %v1281 = vmax.f32 %v1280, -1e+30
        %v1282 = vsub.f32 -1e+30, %v1281
        %v1283 = vmul.f32 %v1282, 1.442695
        %v1284 = vpow.pop %v1283
        %v1285 = vsub.f32 %v1275, %v1281
        %v1286 = vmul.f32 %v1285, 1.442695
        %v1287 = vpow.pop %v1286
        %v1288 = vmul.f32 %v1284, 0.0
        %v1289 = vsel %vm820, %v1287, 0.0
        %1290 = vadd.xlane.f32.xlu0 %v1289
        %v1291 = vpop.xlane.xlu0 %1290
        %v1292 = vadd.f32 %v1288, %v1291
        %v1294 = vsel %vm820, %v1287, 0
        %1296 = vmatprep.subr.mxu0 0.0
        %1297 = vmatpush1.msra.mxu0 %v1204
        %1298 = vmatprep.subr.mxu0 0.0
        %1299 = vmatpush1.msra.mxu0 0.0
        %1300 = vmatprep.subr.mxu0 0.0
        %1301 = vmatpush1.msra.mxu0 0.0
        %1302 = vmatprep.subr.mxu0 0.0
        %1303 = vmatpush1.msra.mxu0 0.0
        %1304 = vmatprep.subr.mxu0 0.0
        %1305 = vmatpush1.msra.mxu0 0.0
        %1306 = vmatprep.subr.mxu0 0.0
        %1307 = vmatpush1.msra.mxu0 0.0
        %1308 = vmatprep.subr.mxu0 0.0
        %1309 = vmatpush1.msra.mxu0 0.0
        %1310 = vmatprep.subr.mxu0 0.0
        %1311 = vmatpush1.msra.mxu0 0.0
        %1312 = vmatprep.subr.mxu0 0.0
        %1313 = vmatpush1.msra.mxu0 0.0
        %1314 = vmatprep.subr.mxu0 0.0
        %1315 = vmatpush1.msra.mxu0 0.0
        %1316 = vmatprep.subr.mxu0 0.0
        %1317 = vmatpush1.msra.mxu0 0.0
        %1318 = vmatprep.subr.mxu0 0.0
        %1319 = vmatpush1.msra.mxu0 0.0
        %1320 = vmatprep.subr.mxu0 0.0
        %1321 = vmatpush1.msra.mxu0 0.0
        %1322 = vmatprep.subr.mxu0 0.0
        %1323 = vmatpush1.msra.mxu0 0.0
        %1324 = vmatprep.subr.mxu0 0.0
        %1325 = vmatpush1.msra.mxu0 0.0
        %1326 = vmatprep.subr.mxu0 0.0
        %1327 = vmatpush1.msra.mxu0 0.0
        %1328 = vmatprep.subr.mxu0 0.0
        %1329 = vmatpush1.msra.mxu0 0.0
        %1330 = vmatprep.subr.mxu0 0.0
        %1331 = vmatpush1.msra.mxu0 0.0
        %1332 = vmatprep.subr.mxu0 0.0
        %1333 = vmatpush1.msra.mxu0 0.0
        %1334 = vmatprep.subr.mxu0 0.0
        %1335 = vmatpush1.msra.mxu0 0.0
        %1336 = vmatprep.subr.mxu0 0.0
        %1337 = vmatpush1.msra.mxu0 0.0
        %1338 = vmatprep.subr.mxu0 0.0
        %1339 = vmatpush1.msra.mxu0 0.0
        %1340 = vmatprep.subr.mxu0 0.0
        %1341 = vmatpush1.msra.mxu0 0.0
        %1342 = vmatprep.subr.mxu0 0.0
        %1343 = vmatpush1.msra.mxu0 0.0
        %1344 = vmatprep.subr.mxu0 0.0
        %1345 = vmatpush1.msra.mxu0 0.0
        %1346 = vmatprep.subr.mxu0 0.0
        %1347 = vmatpush1.msra.mxu0 0.0
        %1348 = vmatprep.subr.mxu0 0.0
        %1349 = vmatpush1.msra.mxu0 0.0
        %1350 = vmatprep.subr.mxu0 0.0
        %1351 = vmatpush1.msra.mxu0 0.0
        %1352 = vmatprep.subr.mxu0 0.0
        %1353 = vmatpush1.msra.mxu0 0.0
        %1354 = vmatprep.subr.mxu0 0.0
        %1355 = vmatpush1.msra.mxu0 0.0
        %1356 = vmatprep.subr.mxu0 0.0
        %1357 = vmatpush1.msra.mxu0 0.0
        %1358 = vmatprep.subr.mxu0 0.0
        %1359 = vmatpush1.msra.mxu0 0.0
        %1360 = vmatprep.mubr.f32.mxu0 0.0
        %1361 = vmatmul.mubr.f32.gmra.mrb[0].mxu0 %v1294
        %v1362 = vpop.f32.mrb[0].mxu0
        %v1363 = vadd.f32 0.0, %v1362
        %v1364 = vpop.f32.mrb[0].mxu0
        %1365 = vdwg.mxu0
        %v1366 = vadd.f32 %v1288, %v1363
        %v1367 = vrcp.pop %v1292
        %v1368 = vmul.f32 %v1366, %v1367
        %s1369 = scalar_lea.vmem [#allocation8], 128
        %v1370 = vld [vmem:[%s1369] sm:$0xff]
        %v1371 = vld [vmem:[%s1369 + $0x8] sm:$0xff]
        %v1372 = vld [vmem:[%s1369 + $0x10] sm:$0xff]
        %v1373 = vld [vmem:[%s1369 + $0x18] sm:$0xff]
        %v1374 = vld [vmem:[%s1369 + $0x20] sm:$0xff]
        %v1375 = vld [vmem:[%s1369 + $0x28] sm:$0xff]
        %v1376 = vld [vmem:[%s1369 + $0x30] sm:$0xff]
        %v1377 = vld [vmem:[%s1369 + $0x38] sm:$0xff]
        %v1378 = vld [vmem:[%s1369 + $0x40] sm:$0xff]
        %v1379 = vld [vmem:[%s1369 + $0x48] sm:$0xff]
        %v1380 = vld [vmem:[%s1369 + $0x50] sm:$0xff]
        %v1381 = vld [vmem:[%s1369 + $0x58] sm:$0xff]
        %v1382 = vld [vmem:[%s1369 + $0x60] sm:$0xff]
        %v1383 = vld [vmem:[%s1369 + $0x68] sm:$0xff]
        %v1384 = vld [vmem:[%s1369 + $0x70] sm:$0xff]
        %v1385 = vld [vmem:[%s1369 + $0x78] sm:$0xff]
        %1386 = vmatprep.subr.mxu0 0.0
        %1387 = vmatpush1.msra.mxu0 %v1370
        %1388 = vmatprep.subr.mxu0 0.0
        %1389 = vmatpush1.msra.mxu0 %v1371
        %1390 = vmatprep.subr.mxu0 0.0
        %1391 = vmatpush1.msra.mxu0 %v1372
        %1392 = vmatprep.subr.mxu0 0.0
        %1393 = vmatpush1.msra.mxu0 %v1373
        %1394 = vmatprep.subr.mxu0 0.0
        %1395 = vmatpush1.msra.mxu0 %v1374
        %1396 = vmatprep.subr.mxu0 0.0
        %1397 = vmatpush1.msra.mxu0 %v1375
        %1398 = vmatprep.subr.mxu0 0.0
        %1399 = vmatpush1.msra.mxu0 %v1376
        %1400 = vmatprep.subr.mxu0 0.0
        %1401 = vmatpush1.msra.mxu0 %v1377
        %1402 = vmatprep.subr.mxu0 0.0
        %1403 = vmatpush1.msra.mxu0 %v1378
        %1404 = vmatprep.subr.mxu0 0.0
        %1405 = vmatpush1.msra.mxu0 %v1379
        %1406 = vmatprep.subr.mxu0 0.0
        %1407 = vmatpush1.msra.mxu0 %v1380
        %1408 = vmatprep.subr.mxu0 0.0
        %1409 = vmatpush1.msra.mxu0 %v1381
        %1410 = vmatprep.subr.mxu0 0.0
        %1411 = vmatpush1.msra.mxu0 %v1382
        %1412 = vmatprep.subr.mxu0 0.0
        %1413 = vmatpush1.msra.mxu0 %v1383
        %1414 = vmatprep.subr.mxu0 0.0
        %1415 = vmatpush1.msra.mxu0 %v1384
        %1416 = vmatprep.subr.mxu0 0.0
        %1417 = vmatpush1.msra.mxu0 %v1385
        %1418 = vmatprep.subr.mxu0 0.0
        %1419 = vmatpush1.msra.mxu0 0.0
        %1420 = vmatprep.subr.mxu0 0.0
        %1421 = vmatpush1.msra.mxu0 0.0
        %1422 = vmatprep.subr.mxu0 0.0
        %1423 = vmatpush1.msra.mxu0 0.0
        %1424 = vmatprep.subr.mxu0 0.0
        %1425 = vmatpush1.msra.mxu0 0.0
        %1426 = vmatprep.subr.mxu0 0.0
        %1427 = vmatpush1.msra.mxu0 0.0
        %1428 = vmatprep.subr.mxu0 0.0
        %1429 = vmatpush1.msra.mxu0 0.0
        %1430 = vmatprep.subr.mxu0 0.0
        %1431 = vmatpush1.msra.mxu0 0.0
        %1432 = vmatprep.subr.mxu0 0.0
        %1433 = vmatpush1.msra.mxu0 0.0
        %1434 = vmatprep.subr.mxu0 0.0
        %1435 = vmatpush1.msra.mxu0 0.0
        %1436 = vmatprep.subr.mxu0 0.0
        %1437 = vmatpush1.msra.mxu0 0.0
        %1438 = vmatprep.subr.mxu0 0.0
        %1439 = vmatpush1.msra.mxu0 0.0
        %1440 = vmatprep.subr.mxu0 0.0
        %1441 = vmatpush1.msra.mxu0 0.0
        %1442 = vmatprep.subr.mxu0 0.0
        %1443 = vmatpush1.msra.mxu0 0.0
        %1444 = vmatprep.subr.mxu0 0.0
        %1445 = vmatpush1.msra.mxu0 0.0
        %1446 = vmatprep.subr.mxu0 0.0
        %1447 = vmatpush1.msra.mxu0 0.0
        %1448 = vmatprep.subr.mxu0 0.0
        %1449 = vmatpush1.msra.mxu0 0.0
        %1450 = vmatprep.mubr.f32.mxu0 0.0
        %1451 = vmatmul.mubr.f32.gmra.mrb[0].mxu0 %v1368
        %v1452 = vpop.f32.mrb[0].mxu0
        %v1453 = vadd.f32 0.0, %v1452
        %v1454 = vpop.f32.mrb[0].mxu0
        %1455 = vdwg.mxu0
        %v1456 = vadd.f32 %v998, %v1453
        %s1457 = scalar_lea.vmem [#allocation5], 768
        %v1458 = vld [vmem:[%s1457] sm:$0xff]
        %v1459 = vld [vmem:[%s1457 + $0x8] sm:$0xff]
        %v1460 = vld [vmem:[%s1457 + $0x10] sm:$0xff]
        %v1461 = vld [vmem:[%s1457 + $0x18] sm:$0xff]
        %v1462 = vld [vmem:[%s1457 + $0x20] sm:$0xff]
        %v1463 = vld [vmem:[%s1457 + $0x28] sm:$0xff]
        %v1464 = vld [vmem:[%s1457 + $0x30] sm:$0xff]
        %v1465 = vld [vmem:[%s1457 + $0x38] sm:$0xff]
        %v1466 = vld [vmem:[%s1457 + $0x40] sm:$0xff]
        %v1467 = vld [vmem:[%s1457 + $0x48] sm:$0xff]
        %v1468 = vld [vmem:[%s1457 + $0x50] sm:$0xff]
        %v1469 = vld [vmem:[%s1457 + $0x58] sm:$0xff]
        %v1470 = vld [vmem:[%s1457 + $0x60] sm:$0xff]
        %v1471 = vld [vmem:[%s1457 + $0x68] sm:$0xff]
        %v1472 = vld [vmem:[%s1457 + $0x70] sm:$0xff]
        %v1473 = vld [vmem:[%s1457 + $0x78] sm:$0xff]
        %v1474 = vld [vmem:[%s1457 + $0x80] sm:$0xff]
        %v1475 = vld [vmem:[%s1457 + $0x88] sm:$0xff]
        %v1476 = vld [vmem:[%s1457 + $0x90] sm:$0xff]
        %v1477 = vld [vmem:[%s1457 + $0x98] sm:$0xff]
        %v1478 = vld [vmem:[%s1457 + $0xa0] sm:$0xff]
        %v1479 = vld [vmem:[%s1457 + $0xa8] sm:$0xff]
        %v1480 = vld [vmem:[%s1457 + $0xb0] sm:$0xff]
        %v1481 = vld [vmem:[%s1457 + $0xb8] sm:$0xff]
        %v1482 = vld [vmem:[%s1457 + $0xc0] sm:$0xff]
        %v1483 = vld [vmem:[%s1457 + $0xc8] sm:$0xff]
        %v1484 = vld [vmem:[%s1457 + $0xd0] sm:$0xff]
        %v1485 = vld [vmem:[%s1457 + $0xd8] sm:$0xff]
        %v1486 = vld [vmem:[%s1457 + $0xe0] sm:$0xff]
        %v1487 = vld [vmem:[%s1457 + $0xe8] sm:$0xff]
        %v1488 = vld [vmem:[%s1457 + $0xf0] sm:$0xff]
        %v1489 = vld [vmem:[%s1457 + $0xf8] sm:$0xff]
        %v1490 = vld [vmem:[%s1457 + $0x100] sm:$0xff]
        %v1491 = vld [vmem:[%s1457 + $0x108] sm:$0xff]
        %v1492 = vld [vmem:[%s1457 + $0x110] sm:$0xff]
        %v1493 = vld [vmem:[%s1457 + $0x118] sm:$0xff]
        %v1494 = vld [vmem:[%s1457 + $0x120] sm:$0xff]
        %v1495 = vld [vmem:[%s1457 + $0x128] sm:$0xff]
        %v1496 = vld [vmem:[%s1457 + $0x130] sm:$0xff]
        %v1497 = vld [vmem:[%s1457 + $0x138] sm:$0xff]
        %v1498 = vld [vmem:[%s1457 + $0x140] sm:$0xff]
        %v1499 = vld [vmem:[%s1457 + $0x148] sm:$0xff]
        %v1500 = vld [vmem:[%s1457 + $0x150] sm:$0xff]
        %v1501 = vld [vmem:[%s1457 + $0x158] sm:$0xff]
        %v1502 = vld [vmem:[%s1457 + $0x160] sm:$0xff]
        %v1503 = vld [vmem:[%s1457 + $0x168] sm:$0xff]
        %v1504 = vld [vmem:[%s1457 + $0x170] sm:$0xff]
        %v1505 = vld [vmem:[%s1457 + $0x178] sm:$0xff]
        %s1506 = scalar_lea.vmem [#allocation7], 6
        %v1507 = vld [vmem:[%s1506] sm:$0x7]
        %v1509 = vlaneseq
        %v1510 = vshrl.u32 %v1509, 7
        %v1511 = vsub.s32 0, %v1510
        %v1512 = vrot.slane %v1507, %v1511
        %v1513 = vlaneseq
        %v1514 = vshrl.u32 %v1513, 7
        %v1515 = vsub.s32 1, %v1514
        %v1516 = vrot.slane %v1507, %v1515
        %v1517 = vlaneseq
        %v1518 = vshrl.u32 %v1517, 7
        %v1519 = vsub.s32 2, %v1518
        %v1520 = vrot.slane %v1507, %v1519
        %1524 = vmatprep.subr.mxu0 %v1459
        %1525 = vmatpush1.msra.mxu0 %v1458
        %1526 = vmatprep.subr.mxu0 %v1462
        %1527 = vmatpush1.msra.mxu0 %v1461
        %1528 = vmatprep.subr.mxu0 %v1465
        %1529 = vmatpush1.msra.mxu0 %v1464
        %1530 = vmatprep.subr.mxu0 %v1468
        %1531 = vmatpush1.msra.mxu0 %v1467
        %1532 = vmatprep.subr.mxu0 %v1471
        %1533 = vmatpush1.msra.mxu0 %v1470
        %1534 = vmatprep.subr.mxu0 %v1474
        %1535 = vmatpush1.msra.mxu0 %v1473
        %1536 = vmatprep.subr.mxu0 %v1477
        %1537 = vmatpush1.msra.mxu0 %v1476
        %1538 = vmatprep.subr.mxu0 %v1480
        %1539 = vmatpush1.msra.mxu0 %v1479
        %1540 = vmatprep.subr.mxu0 %v1483
        %1541 = vmatpush1.msra.mxu0 %v1482
        %1542 = vmatprep.subr.mxu0 %v1486
        %1543 = vmatpush1.msra.mxu0 %v1485
        %1544 = vmatprep.subr.mxu0 %v1489
        %1545 = vmatpush1.msra.mxu0 %v1488
        %1546 = vmatprep.subr.mxu0 %v1492
        %1547 = vmatpush1.msra.mxu0 %v1491
        %1548 = vmatprep.subr.mxu0 %v1495
        %1549 = vmatpush1.msra.mxu0 %v1494
        %1550 = vmatprep.subr.mxu0 %v1498
        %1551 = vmatpush1.msra.mxu0 %v1497
        %1552 = vmatprep.subr.mxu0 %v1501
        %1553 = vmatpush1.msra.mxu0 %v1500
        %1554 = vmatprep.subr.mxu0 %v1504
        %1555 = vmatpush1.msra.mxu0 %v1503
        %1556 = vmatprep.subr.mxu0 0.0
        %1557 = vmatpush1.msra.mxu0 0.0
        %1558 = vmatprep.subr.mxu0 0.0
        %1559 = vmatpush1.msra.mxu0 0.0
        %1560 = vmatprep.subr.mxu0 0.0
        %1561 = vmatpush1.msra.mxu0 0.0
        %1562 = vmatprep.subr.mxu0 0.0
        %1563 = vmatpush1.msra.mxu0 0.0
        %1564 = vmatprep.subr.mxu0 0.0
        %1565 = vmatpush1.msra.mxu0 0.0
        %1566 = vmatprep.subr.mxu0 0.0
        %1567 = vmatpush1.msra.mxu0 0.0
        %1568 = vmatprep.subr.mxu0 0.0
        %1569 = vmatpush1.msra.mxu0 0.0
        %1570 = vmatprep.subr.mxu0 0.0
        %1571 = vmatpush1.msra.mxu0 0.0
        %1572 = vmatprep.subr.mxu0 0.0
        %1573 = vmatpush1.msra.mxu0 0.0
        %1574 = vmatprep.subr.mxu0 0.0
        %1575 = vmatpush1.msra.mxu0 0.0
        %1576 = vmatprep.subr.mxu0 0.0
        %1577 = vmatpush1.msra.mxu0 0.0
        %1578 = vmatprep.subr.mxu0 0.0
        %1579 = vmatpush1.msra.mxu0 0.0
        %1580 = vmatprep.subr.mxu0 0.0
        %1581 = vmatpush1.msra.mxu0 0.0
        %1582 = vmatprep.subr.mxu0 0.0
        %1583 = vmatpush1.msra.mxu0 0.0
        %1584 = vmatprep.subr.mxu0 0.0
        %1585 = vmatpush1.msra.mxu0 0.0
        %1586 = vmatprep.subr.mxu0 0.0
        %1587 = vmatpush1.msra.mxu0 0.0
        %1588 = vmatprep.mubr.f32.mxu0 0.0
        %1589 = vmatmul.mubr.f32.gmra.mrb[0].mxu0 %v534
        %v1590 = vpop.f32.mrb[0].mxu0
        %v1591 = vadd.f32 %v1512, %v1590
        %v1592 = vpop.f32.mrb[0].mxu0
        %v1593 = vadd.f32 %v1516, %v1592
        %1594 = vdwg.mxu0
        %1595 = vmatprep.subr.mxu0 0.0
        %1596 = vmatpush1.msra.mxu0 %v1460
        %1597 = vmatprep.subr.mxu0 0.0
        %1598 = vmatpush1.msra.mxu0 %v1463
        %1599 = vmatprep.subr.mxu0 0.0
        %1600 = vmatpush1.msra.mxu0 %v1466
        %1601 = vmatprep.subr.mxu0 0.0
        %1602 = vmatpush1.msra.mxu0 %v1469
        %1603 = vmatprep.subr.mxu0 0.0
        %1604 = vmatpush1.msra.mxu0 %v1472
        %1605 = vmatprep.subr.mxu0 0.0
        %1606 = vmatpush1.msra.mxu0 %v1475
        %1607 = vmatprep.subr.mxu0 0.0
        %1608 = vmatpush1.msra.mxu0 %v1478
        %1609 = vmatprep.subr.mxu0 0.0
        %1610 = vmatpush1.msra.mxu0 %v1481
        %1611 = vmatprep.subr.mxu0 0.0
        %1612 = vmatpush1.msra.mxu0 %v1484
        %1613 = vmatprep.subr.mxu0 0.0
        %1614 = vmatpush1.msra.mxu0 %v1487
        %1615 = vmatprep.subr.mxu0 0.0
        %1616 = vmatpush1.msra.mxu0 %v1490
        %1617 = vmatprep.subr.mxu0 0.0
        %1618 = vmatpush1.msra.mxu0 %v1493
        %1619 = vmatprep.subr.mxu0 0.0
        %1620 = vmatpush1.msra.mxu0 %v1496
        %1621 = vmatprep.subr.mxu0 0.0
        %1622 = vmatpush1.msra.mxu0 %v1499
        %1623 = vmatprep.subr.mxu0 0.0
        %1624 = vmatpush1.msra.mxu0 %v1502
        %1625 = vmatprep.subr.mxu0 0.0
        %1626 = vmatpush1.msra.mxu0 %v1505
        %1627 = vmatprep.subr.mxu0 0.0
        %1628 = vmatpush1.msra.mxu0 0.0
        %1629 = vmatprep.subr.mxu0 0.0
        %1630 = vmatpush1.msra.mxu0 0.0
        %1631 = vmatprep.subr.mxu0 0.0
        %1632 = vmatpush1.msra.mxu0 0.0
        %1633 = vmatprep.subr.mxu0 0.0
        %1634 = vmatpush1.msra.mxu0 0.0
        %1635 = vmatprep.subr.mxu0 0.0
        %1636 = vmatpush1.msra.mxu0 0.0
        %1637 = vmatprep.subr.mxu0 0.0
        %1638 = vmatpush1.msra.mxu0 0.0
        %1639 = vmatprep.subr.mxu0 0.0
        %1640 = vmatpush1.msra.mxu0 0.0
        %1641 = vmatprep.subr.mxu0 0.0
        %1642 = vmatpush1.msra.mxu0 0.0
        %1643 = vmatprep.subr.mxu0 0.0
        %1644 = vmatpush1.msra.mxu0 0.0
        %1645 = vmatprep.subr.mxu0 0.0
        %1646 = vmatpush1.msra.mxu0 0.0
        %1647 = vmatprep.subr.mxu0 0.0
        %1648 = vmatpush1.msra.mxu0 0.0
        %1649 = vmatprep.subr.mxu0 0.0
        %1650 = vmatpush1.msra.mxu0 0.0
        %1651 = vmatprep.subr.mxu0 0.0
        %1652 = vmatpush1.msra.mxu0 0.0
        %1653 = vmatprep.subr.mxu0 0.0
        %1654 = vmatpush1.msra.mxu0 0.0
        %1655 = vmatprep.subr.mxu0 0.0
        %1656 = vmatpush1.msra.mxu0 0.0
        %1657 = vmatprep.subr.mxu0 0.0
        %1658 = vmatpush1.msra.mxu0 0.0
        %1659 = vmatprep.mubr.f32.mxu0 0.0
        %1660 = vmatmul.mubr.f32.gmra.mrb[0].mxu0 %v534
        %v1661 = vpop.f32.mrb[0].mxu0
        %v1662 = vadd.f32 %v1520, %v1661
        %v1663 = vpop.f32.mrb[0].mxu0
        %1664 = vdwg.mxu0
        %v1665 = vmul.f32 %v1591, 0.35355338
        %1666 = vmatprep.subr.mxu0 0.0
        %1667 = vmatpush1.xpose.msra.mxu0 %v1593
        %1668 = vmatprep.subr.mxu0 0.0
        %1669 = vmatpush1.xpose.msra.mxu0 0.0
        %1670 = vmatprep.subr.mxu0 0.0
        %1671 = vmatpush1.xpose.msra.mxu0 0.0
        %1672 = vmatprep.subr.mxu0 0.0
        %1673 = vmatpush1.xpose.msra.mxu0 0.0
        %1674 = vmatprep.subr.mxu0 0.0
        %1675 = vmatpush1.xpose.msra.mxu0 0.0
        %1676 = vmatprep.subr.mxu0 0.0
        %1677 = vmatpush1.xpose.msra.mxu0 0.0
        %1678 = vmatprep.subr.mxu0 0.0
        %1679 = vmatpush1.xpose.msra.mxu0 0.0
        %1680 = vmatprep.subr.mxu0 0.0
        %1681 = vmatpush1.xpose.msra.mxu0 0.0
        %1682 = vmatprep.subr.mxu0 0.0
        %1683 = vmatpush1.xpose.msra.mxu0 0.0
        %1684 = vmatprep.subr.mxu0 0.0
        %1685 = vmatpush1.xpose.msra.mxu0 0.0
        %1686 = vmatprep.subr.mxu0 0.0
        %1687 = vmatpush1.xpose.msra.mxu0 0.0
        %1688 = vmatprep.subr.mxu0 0.0
        %1689 = vmatpush1.xpose.msra.mxu0 0.0
        %1690 = vmatprep.subr.mxu0 0.0
        %1691 = vmatpush1.xpose.msra.mxu0 0.0
        %1692 = vmatprep.subr.mxu0 0.0
        %1693 = vmatpush1.xpose.msra.mxu0 0.0
        %1694 = vmatprep.subr.mxu0 0.0
        %1695 = vmatpush1.xpose.msra.mxu0 0.0
        %1696 = vmatprep.subr.mxu0 0.0
        %1697 = vmatpush1.xpose.msra.mxu0 0.0
        %1698 = vmatprep.subr.mxu0 0.0
        %1699 = vmatpush1.xpose.msra.mxu0 0.0
        %1700 = vmatprep.subr.mxu0 0.0
        %1701 = vmatpush1.xpose.msra.mxu0 0.0
        %1702 = vmatprep.subr.mxu0 0.0
        %1703 = vmatpush1.xpose.msra.mxu0 0.0
        %1704 = vmatprep.subr.mxu0 0.0
        %1705 = vmatpush1.xpose.msra.mxu0 0.0
        %1706 = vmatprep.subr.mxu0 0.0
        %1707 = vmatpush1.xpose.msra.mxu0 0.0
        %1708 = vmatprep.subr.mxu0 0.0
        %1709 = vmatpush1.xpose.msra.mxu0 0.0
        %1710 = vmatprep.subr.mxu0 0.0
        %1711 = vmatpush1.xpose.msra.mxu0 0.0
        %1712 = vmatprep.subr.mxu0 0.0
        %1713 = vmatpush1.xpose.msra.mxu0 0.0
        %1714 = vmatprep.subr.mxu0 0.0
        %1715 = vmatpush1.xpose.msra.mxu0 0.0
        %1716 = vmatprep.subr.mxu0 0.0
        %1717 = vmatpush1.xpose.msra.mxu0 0.0
        %1718 = vmatprep.subr.mxu0 0.0
        %1719 = vmatpush1.xpose.msra.mxu0 0.0
        %1720 = vmatprep.subr.mxu0 0.0
        %1721 = vmatpush1.xpose.msra.mxu0 0.0
        %1722 = vmatprep.subr.mxu0 0.0
        %1723 = vmatpush1.xpose.msra.mxu0 0.0
        %1724 = vmatprep.subr.mxu0 0.0
        %1725 = vmatpush1.xpose.msra.mxu0 0.0
        %1726 = vmatprep.subr.mxu0 0.0
        %1727 = vmatpush1.xpose.msra.mxu0 0.0
        %1728 = vmatprep.subr.mxu0 0.0
        %1729 = vmatpush1.xpose.msra.mxu0 0.0
        %1730 = vmatprep.mubr.f32.mxu0 0.0
        %1731 = vmatmul.mubr.f32.gmra.mrb[0].mxu0 %v1665
        %v1732 = vpop.f32.mrb[0].mxu0
        %v1733 = vadd.f32 0.0, %v1732
        %v1734 = vpop.f32.mrb[0].mxu0
        %1735 = vdwg.mxu0
        %v1736 = vsel %vm820, %v1733, -inf
        %1737 = vmax.xlane.f32.xlu0 %v1736
        %v1738 = vpop.xlane.xlu0 %1737
        %v1739 = vmax.f32 %v1738, -1e+30
        %v1740 = vsub.f32 -1e+30, %v1739
        %v1741 = vmul.f32 %v1740, 1.442695
        %v1742 = vpow.pop %v1741
        %v1743 = vsub.f32 %v1733, %v1739
        %v1744 = vmul.f32 %v1743, 1.442695
        %v1745 = vpow.pop %v1744
        %v1746 = vmul.f32 %v1742, 0.0
        %v1747 = vsel %vm820, %v1745, 0.0
        %1748 = vadd.xlane.f32.xlu0 %v1747
        %v1749 = vpop.xlane.xlu0 %1748
        %v1750 = vadd.f32 %v1746, %v1749
        %v1752 = vsel %vm820, %v1745, 0
        %1754 = vmatprep.subr.mxu0 0.0
        %1755 = vmatpush1.msra.mxu0 %v1662
        %1756 = vmatprep.subr.mxu0 0.0
        %1757 = vmatpush1.msra.mxu0 0.0
        %1758 = vmatprep.subr.mxu0 0.0
        %1759 = vmatpush1.msra.mxu0 0.0
        %1760 = vmatprep.subr.mxu0 0.0
        %1761 = vmatpush1.msra.mxu0 0.0
        %1762 = vmatprep.subr.mxu0 0.0
        %1763 = vmatpush1.msra.mxu0 0.0
        %1764 = vmatprep.subr.mxu0 0.0
        %1765 = vmatpush1.msra.mxu0 0.0
        %1766 = vmatprep.subr.mxu0 0.0
        %1767 = vmatpush1.msra.mxu0 0.0
        %1768 = vmatprep.subr.mxu0 0.0
        %1769 = vmatpush1.msra.mxu0 0.0
        %1770 = vmatprep.subr.mxu0 0.0
        %1771 = vmatpush1.msra.mxu0 0.0
        %1772 = vmatprep.subr.mxu0 0.0
        %1773 = vmatpush1.msra.mxu0 0.0
        %1774 = vmatprep.subr.mxu0 0.0
        %1775 = vmatpush1.msra.mxu0 0.0
        %1776 = vmatprep.subr.mxu0 0.0
        %1777 = vmatpush1.msra.mxu0 0.0
        %1778 = vmatprep.subr.mxu0 0.0
        %1779 = vmatpush1.msra.mxu0 0.0
        %1780 = vmatprep.subr.mxu0 0.0
        %1781 = vmatpush1.msra.mxu0 0.0
        %1782 = vmatprep.subr.mxu0 0.0
        %1783 = vmatpush1.msra.mxu0 0.0
        %1784 = vmatprep.subr.mxu0 0.0
        %1785 = vmatpush1.msra.mxu0 0.0
        %1786 = vmatprep.subr.mxu0 0.0
        %1787 = vmatpush1.msra.mxu0 0.0
        %1788 = vmatprep.subr.mxu0 0.0
        %1789 = vmatpush1.msra.mxu0 0.0
        %1790 = vmatprep.subr.mxu0 0.0
        %1791 = vmatpush1.msra.mxu0 0.0
        %1792 = vmatprep.subr.mxu0 0.0
        %1793 = vmatpush1.msra.mxu0 0.0
        %1794 = vmatprep.subr.mxu0 0.0
        %1795 = vmatpush1.msra.mxu0 0.0
        %1796 = vmatprep.subr.mxu0 0.0
        %1797 = vmatpush1.msra.mxu0 0.0
        %1798 = vmatprep.subr.mxu0 0.0
        %1799 = vmatpush1.msra.mxu0 0.0
        %1800 = vmatprep.subr.mxu0 0.0
        %1801 = vmatpush1.msra.mxu0 0.0
        %1802 = vmatprep.subr.mxu0 0.0
        %1803 = vmatpush1.msra.mxu0 0.0
        %1804 = vmatprep.subr.mxu0 0.0
        %1805 = vmatpush1.msra.mxu0 0.0
        %1806 = vmatprep.subr.mxu0 0.0
        %1807 = vmatpush1.msra.mxu0 0.0
        %1808 = vmatprep.subr.mxu0 0.0
        %1809 = vmatpush1.msra.mxu0 0.0
        %1810 = vmatprep.subr.mxu0 0.0
        %1811 = vmatpush1.msra.mxu0 0.0
        %1812 = vmatprep.subr.mxu0 0.0
        %1813 = vmatpush1.msra.mxu0 0.0
        %1814 = vmatprep.subr.mxu0 0.0
        %1815 = vmatpush1.msra.mxu0 0.0
        %1816 = vmatprep.subr.mxu0 0.0
        %1817 = vmatpush1.msra.mxu0 0.0
        %1818 = vmatprep.mubr.f32.mxu0 0.0
        %1819 = vmatmul.mubr.f32.gmra.mrb[0].mxu0 %v1752
        %v1820 = vpop.f32.mrb[0].mxu0
        %v1821 = vadd.f32 0.0, %v1820
        %v1822 = vpop.f32.mrb[0].mxu0
        %1823 = vdwg.mxu0
        %v1824 = vadd.f32 %v1746, %v1821
        %v1825 = vrcp.pop %v1750
        %v1826 = vmul.f32 %v1824, %v1825
        %s1827 = scalar_lea.vmem [#allocation8], 256
        %v1828 = vld [vmem:[%s1827] sm:$0xff]
        %v1829 = vld [vmem:[%s1827 + $0x8] sm:$0xff]
        %v1830 = vld [vmem:[%s1827 + $0x10] sm:$0xff]
        %v1831 = vld [vmem:[%s1827 + $0x18] sm:$0xff]
        %v1832 = vld [vmem:[%s1827 + $0x20] sm:$0xff]
        %v1833 = vld [vmem:[%s1827 + $0x28] sm:$0xff]
        %v1834 = vld [vmem:[%s1827 + $0x30] sm:$0xff]
        %v1835 = vld [vmem:[%s1827 + $0x38] sm:$0xff]
        %v1836 = vld [vmem:[%s1827 + $0x40] sm:$0xff]
        %v1837 = vld [vmem:[%s1827 + $0x48] sm:$0xff]
        %v1838 = vld [vmem:[%s1827 + $0x50] sm:$0xff]
        %v1839 = vld [vmem:[%s1827 + $0x58] sm:$0xff]
        %v1840 = vld [vmem:[%s1827 + $0x60] sm:$0xff]
        %v1841 = vld [vmem:[%s1827 + $0x68] sm:$0xff]
        %v1842 = vld [vmem:[%s1827 + $0x70] sm:$0xff]
        %v1843 = vld [vmem:[%s1827 + $0x78] sm:$0xff]
        %1844 = vmatprep.subr.mxu0 0.0
        %1845 = vmatpush1.msra.mxu0 %v1828
        %1846 = vmatprep.subr.mxu0 0.0
        %1847 = vmatpush1.msra.mxu0 %v1829
        %1848 = vmatprep.subr.mxu0 0.0
        %1849 = vmatpush1.msra.mxu0 %v1830
        %1850 = vmatprep.subr.mxu0 0.0
        %1851 = vmatpush1.msra.mxu0 %v1831
        %1852 = vmatprep.subr.mxu0 0.0
        %1853 = vmatpush1.msra.mxu0 %v1832
        %1854 = vmatprep.subr.mxu0 0.0
        %1855 = vmatpush1.msra.mxu0 %v1833
        %1856 = vmatprep.subr.mxu0 0.0
        %1857 = vmatpush1.msra.mxu0 %v1834
        %1858 = vmatprep.subr.mxu0 0.0
        %1859 = vmatpush1.msra.mxu0 %v1835
        %1860 = vmatprep.subr.mxu0 0.0
        %1861 = vmatpush1.msra.mxu0 %v1836
        %1862 = vmatprep.subr.mxu0 0.0
        %1863 = vmatpush1.msra.mxu0 %v1837
        %1864 = vmatprep.subr.mxu0 0.0
        %1865 = vmatpush1.msra.mxu0 %v1838
        %1866 = vmatprep.subr.mxu0 0.0
        %1867 = vmatpush1.msra.mxu0 %v1839
        %1868 = vmatprep.subr.mxu0 0.0
        %1869 = vmatpush1.msra.mxu0 %v1840
        %1870 = vmatprep.subr.mxu0 0.0
        %1871 = vmatpush1.msra.mxu0 %v1841
        %1872 = vmatprep.subr.mxu0 0.0
        %1873 = vmatpush1.msra.mxu0 %v1842
        %1874 = vmatprep.subr.mxu0 0.0
        %1875 = vmatpush1.msra.mxu0 %v1843
        %1876 = vmatprep.subr.mxu0 0.0
        %1877 = vmatpush1.msra.mxu0 0.0
        %1878 = vmatprep.subr.mxu0 0.0
        %1879 = vmatpush1.msra.mxu0 0.0
        %1880 = vmatprep.subr.mxu0 0.0
        %1881 = vmatpush1.msra.mxu0 0.0
        %1882 = vmatprep.subr.mxu0 0.0
        %1883 = vmatpush1.msra.mxu0 0.0
        %1884 = vmatprep.subr.mxu0 0.0
        %1885 = vmatpush1.msra.mxu0 0.0
        %1886 = vmatprep.subr.mxu0 0.0
        %1887 = vmatpush1.msra.mxu0 0.0
        %1888 = vmatprep.subr.mxu0 0.0
        %1889 = vmatpush1.msra.mxu0 0.0
        %1890 = vmatprep.subr.mxu0 0.0
        %1891 = vmatpush1.msra.mxu0 0.0
        %1892 = vmatprep.subr.mxu0 0.0
        %1893 = vmatpush1.msra.mxu0 0.0
        %1894 = vmatprep.subr.mxu0 0.0
        %1895 = vmatpush1.msra.mxu0 0.0
        %1896 = vmatprep.subr.mxu0 0.0
        %1897 = vmatpush1.msra.mxu0 0.0
        %1898 = vmatprep.subr.mxu0 0.0
        %1899 = vmatpush1.msra.mxu0 0.0
        %1900 = vmatprep.subr.mxu0 0.0
        %1901 = vmatpush1.msra.mxu0 0.0
        %1902 = vmatprep.subr.mxu0 0.0
        %1903 = vmatpush1.msra.mxu0 0.0
        %1904 = vmatprep.subr.mxu0 0.0
        %1905 = vmatpush1.msra.mxu0 0.0
        %1906 = vmatprep.subr.mxu0 0.0
        %1907 = vmatpush1.msra.mxu0 0.0
        %1908 = vmatprep.mubr.f32.mxu0 0.0
        %1909 = vmatmul.mubr.f32.gmra.mrb[0].mxu0 %v1826
        %v1910 = vpop.f32.mrb[0].mxu0
        %v1911 = vadd.f32 0.0, %v1910
        %v1912 = vpop.f32.mrb[0].mxu0
        %1913 = vdwg.mxu0
        %v1914 = vadd.f32 %v1456, %v1911
        %s1915 = scalar_lea.vmem [#allocation5], 1152
        %v1916 = vld [vmem:[%s1915] sm:$0xff]
        %v1917 = vld [vmem:[%s1915 + $0x8] sm:$0xff]
        %v1918 = vld [vmem:[%s1915 + $0x10] sm:$0xff]
        %v1919 = vld [vmem:[%s1915 + $0x18] sm:$0xff]
        %v1920 = vld [vmem:[%s1915 + $0x20] sm:$0xff]
        %v1921 = vld [vmem:[%s1915 + $0x28] sm:$0xff]
        %v1922 = vld [vmem:[%s1915 + $0x30] sm:$0xff]
        %v1923 = vld [vmem:[%s1915 + $0x38] sm:$0xff]
        %v1924 = vld [vmem:[%s1915 + $0x40] sm:$0xff]
        %v1925 = vld [vmem:[%s1915 + $0x48] sm:$0xff]
        %v1926 = vld [vmem:[%s1915 + $0x50] sm:$0xff]
        %v1927 = vld [vmem:[%s1915 + $0x58] sm:$0xff]
        %v1928 = vld [vmem:[%s1915 + $0x60] sm:$0xff]
        %v1929 = vld [vmem:[%s1915 + $0x68] sm:$0xff]
        %v1930 = vld [vmem:[%s1915 + $0x70] sm:$0xff]
        %v1931 = vld [vmem:[%s1915 + $0x78] sm:$0xff]
        %v1932 = vld [vmem:[%s1915 + $0x80] sm:$0xff]
        %v1933 = vld [vmem:[%s1915 + $0x88] sm:$0xff]
        %v1934 = vld [vmem:[%s1915 + $0x90] sm:$0xff]
        %v1935 = vld [vmem:[%s1915 + $0x98] sm:$0xff]
        %v1936 = vld [vmem:[%s1915 + $0xa0] sm:$0xff]
        %v1937 = vld [vmem:[%s1915 + $0xa8] sm:$0xff]
        %v1938 = vld [vmem:[%s1915 + $0xb0] sm:$0xff]
        %v1939 = vld [vmem:[%s1915 + $0xb8] sm:$0xff]
        %v1940 = vld [vmem:[%s1915 + $0xc0] sm:$0xff]
        %v1941 = vld [vmem:[%s1915 + $0xc8] sm:$0xff]
        %v1942 = vld [vmem:[%s1915 + $0xd0] sm:$0xff]
        %v1943 = vld [vmem:[%s1915 + $0xd8] sm:$0xff]
        %v1944 = vld [vmem:[%s1915 + $0xe0] sm:$0xff]
        %v1945 = vld [vmem:[%s1915 + $0xe8] sm:$0xff]
        %v1946 = vld [vmem:[%s1915 + $0xf0] sm:$0xff]
        %v1947 = vld [vmem:[%s1915 + $0xf8] sm:$0xff]
        %v1948 = vld [vmem:[%s1915 + $0x100] sm:$0xff]
        %v1949 = vld [vmem:[%s1915 + $0x108] sm:$0xff]
        %v1950 = vld [vmem:[%s1915 + $0x110] sm:$0xff]
        %v1951 = vld [vmem:[%s1915 + $0x118] sm:$0xff]
        %v1952 = vld [vmem:[%s1915 + $0x120] sm:$0xff]
        %v1953 = vld [vmem:[%s1915 + $0x128] sm:$0xff]
        %v1954 = vld [vmem:[%s1915 + $0x130] sm:$0xff]
        %v1955 = vld [vmem:[%s1915 + $0x138] sm:$0xff]
        %v1956 = vld [vmem:[%s1915 + $0x140] sm:$0xff]
        %v1957 = vld [vmem:[%s1915 + $0x148] sm:$0xff]
        %v1958 = vld [vmem:[%s1915 + $0x150] sm:$0xff]
        %v1959 = vld [vmem:[%s1915 + $0x158] sm:$0xff]
        %v1960 = vld [vmem:[%s1915 + $0x160] sm:$0xff]
        %v1961 = vld [vmem:[%s1915 + $0x168] sm:$0xff]
        %v1962 = vld [vmem:[%s1915 + $0x170] sm:$0xff]
        %v1963 = vld [vmem:[%s1915 + $0x178] sm:$0xff]
        %s1964 = scalar_lea.vmem [#allocation7], 9
        %v1965 = vld [vmem:[%s1964] sm:$0x7]
        %v1967 = vlaneseq
        %v1968 = vshrl.u32 %v1967, 7
        %v1969 = vsub.s32 0, %v1968
        %v1970 = vrot.slane %v1965, %v1969
        %v1971 = vlaneseq
        %v1972 = vshrl.u32 %v1971, 7
        %v1973 = vsub.s32 1, %v1972
        %v1974 = vrot.slane %v1965, %v1973
        %v1975 = vlaneseq
        %v1976 = vshrl.u32 %v1975, 7
        %v1977 = vsub.s32 2, %v1976
        %v1978 = vrot.slane %v1965, %v1977
        %1982 = vmatprep.subr.mxu0 %v1917
        %1983 = vmatpush1.msra.mxu0 %v1916
        %1984 = vmatprep.subr.mxu0 %v1920
        %1985 = vmatpush1.msra.mxu0 %v1919
        %1986 = vmatprep.subr.mxu0 %v1923
        %1987 = vmatpush1.msra.mxu0 %v1922
        %1988 = vmatprep.subr.mxu0 %v1926
        %1989 = vmatpush1.msra.mxu0 %v1925
        %1990 = vmatprep.subr.mxu0 %v1929
        %1991 = vmatpush1.msra.mxu0 %v1928
        %1992 = vmatprep.subr.mxu0 %v1932
        %1993 = vmatpush1.msra.mxu0 %v1931
        %1994 = vmatprep.subr.mxu0 %v1935
        %1995 = vmatpush1.msra.mxu0 %v1934
        %1996 = vmatprep.subr.mxu0 %v1938
        %1997 = vmatpush1.msra.mxu0 %v1937
        %1998 = vmatprep.subr.mxu0 %v1941
        %1999 = vmatpush1.msra.mxu0 %v1940
        %2000 = vmatprep.subr.mxu0 %v1944
        %2001 = vmatpush1.msra.mxu0 %v1943
        %2002 = vmatprep.subr.mxu0 %v1947
        %2003 = vmatpush1.msra.mxu0 %v1946
        %2004 = vmatprep.subr.mxu0 %v1950
        %2005 = vmatpush1.msra.mxu0 %v1949
        %2006 = vmatprep.subr.mxu0 %v1953
        %2007 = vmatpush1.msra.mxu0 %v1952
        %2008 = vmatprep.subr.mxu0 %v1956
        %2009 = vmatpush1.msra.mxu0 %v1955
        %2010 = vmatprep.subr.mxu0 %v1959
        %2011 = vmatpush1.msra.mxu0 %v1958
        %2012 = vmatprep.subr.mxu0 %v1962
        %2013 = vmatpush1.msra.mxu0 %v1961
        %2014 = vmatprep.subr.mxu0 0.0
        %2015 = vmatpush1.msra.mxu0 0.0
        %2016 = vmatprep.subr.mxu0 0.0
        %2017 = vmatpush1.msra.mxu0 0.0
        %2018 = vmatprep.subr.mxu0 0.0
        %2019 = vmatpush1.msra.mxu0 0.0
        %2020 = vmatprep.subr.mxu0 0.0
        %2021 = vmatpush1.msra.mxu0 0.0
        %2022 = vmatprep.subr.mxu0 0.0
        %2023 = vmatpush1.msra.mxu0 0.0
        %2024 = vmatprep.subr.mxu0 0.0
        %2025 = vmatpush1.msra.mxu0 0.0
        %2026 = vmatprep.subr.mxu0 0.0
        %2027 = vmatpush1.msra.mxu0 0.0
        %2028 = vmatprep.subr.mxu0 0.0
        %2029 = vmatpush1.msra.mxu0 0.0
        %2030 = vmatprep.subr.mxu0 0.0
        %2031 = vmatpush1.msra.mxu0 0.0
        %2032 = vmatprep.subr.mxu0 0.0
        %2033 = vmatpush1.msra.mxu0 0.0
        %2034 = vmatprep.subr.mxu0 0.0
        %2035 = vmatpush1.msra.mxu0 0.0
        %2036 = vmatprep.subr.mxu0 0.0
        %2037 = vmatpush1.msra.mxu0 0.0
        %2038 = vmatprep.subr.mxu0 0.0
        %2039 = vmatpush1.msra.mxu0 0.0
        %2040 = vmatprep.subr.mxu0 0.0
        %2041 = vmatpush1.msra.mxu0 0.0
        %2042 = vmatprep.subr.mxu0 0.0
        %2043 = vmatpush1.msra.mxu0 0.0
        %2044 = vmatprep.subr.mxu0 0.0
        %2045 = vmatpush1.msra.mxu0 0.0
        %2046 = vmatprep.mubr.f32.mxu0 0.0
        %2047 = vmatmul.mubr.f32.gmra.mrb[0].mxu0 %v534
        %v2048 = vpop.f32.mrb[0].mxu0
        %v2049 = vadd.f32 %v1970, %v2048
        %v2050 = vpop.f32.mrb[0].mxu0
        %v2051 = vadd.f32 %v1974, %v2050
        %2052 = vdwg.mxu0
        %2053 = vmatprep.subr.mxu0 0.0
        %2054 = vmatpush1.msra.mxu0 %v1918
        %2055 = vmatprep.subr.mxu0 0.0
        %2056 = vmatpush1.msra.mxu0 %v1921
        %2057 = vmatprep.subr.mxu0 0.0
        %2058 = vmatpush1.msra.mxu0 %v1924
        %2059 = vmatprep.subr.mxu0 0.0
        %2060 = vmatpush1.msra.mxu0 %v1927
        %2061 = vmatprep.subr.mxu0 0.0
        %2062 = vmatpush1.msra.mxu0 %v1930
        %2063 = vmatprep.subr.mxu0 0.0
        %2064 = vmatpush1.msra.mxu0 %v1933
        %2065 = vmatprep.subr.mxu0 0.0
        %2066 = vmatpush1.msra.mxu0 %v1936
        %2067 = vmatprep.subr.mxu0 0.0
        %2068 = vmatpush1.msra.mxu0 %v1939
        %2069 = vmatprep.subr.mxu0 0.0
        %2070 = vmatpush1.msra.mxu0 %v1942
        %2071 = vmatprep.subr.mxu0 0.0
        %2072 = vmatpush1.msra.mxu0 %v1945
        %2073 = vmatprep.subr.mxu0 0.0
        %2074 = vmatpush1.msra.mxu0 %v1948
        %2075 = vmatprep.subr.mxu0 0.0
        %2076 = vmatpush1.msra.mxu0 %v1951
        %2077 = vmatprep.subr.mxu0 0.0
        %2078 = vmatpush1.msra.mxu0 %v1954
        %2079 = vmatprep.subr.mxu0 0.0
        %2080 = vmatpush1.msra.mxu0 %v1957
        %2081 = vmatprep.subr.mxu0 0.0
        %2082 = vmatpush1.msra.mxu0 %v1960
        %2083 = vmatprep.subr.mxu0 0.0
        %2084 = vmatpush1.msra.mxu0 %v1963
        %2085 = vmatprep.subr.mxu0 0.0
        %2086 = vmatpush1.msra.mxu0 0.0
        %2087 = vmatprep.subr.mxu0 0.0
        %2088 = vmatpush1.msra.mxu0 0.0
        %2089 = vmatprep.subr.mxu0 0.0
        %2090 = vmatpush1.msra.mxu0 0.0
        %2091 = vmatprep.subr.mxu0 0.0
        %2092 = vmatpush1.msra.mxu0 0.0
        %2093 = vmatprep.subr.mxu0 0.0
        %2094 = vmatpush1.msra.mxu0 0.0
        %2095 = vmatprep.subr.mxu0 0.0
        %2096 = vmatpush1.msra.mxu0 0.0
        %2097 = vmatprep.subr.mxu0 0.0
        %2098 = vmatpush1.msra.mxu0 0.0
        %2099 = vmatprep.subr.mxu0 0.0
        %2100 = vmatpush1.msra.mxu0 0.0
        %2101 = vmatprep.subr.mxu0 0.0
        %2102 = vmatpush1.msra.mxu0 0.0
        %2103 = vmatprep.subr.mxu0 0.0
        %2104 = vmatpush1.msra.mxu0 0.0
        %2105 = vmatprep.subr.mxu0 0.0
        %2106 = vmatpush1.msra.mxu0 0.0
        %2107 = vmatprep.subr.mxu0 0.0
        %2108 = vmatpush1.msra.mxu0 0.0
        %2109 = vmatprep.subr.mxu0 0.0
        %2110 = vmatpush1.msra.mxu0 0.0
        %2111 = vmatprep.subr.mxu0 0.0
        %2112 = vmatpush1.msra.mxu0 0.0
        %2113 = vmatprep.subr.mxu0 0.0
        %2114 = vmatpush1.msra.mxu0 0.0
        %2115 = vmatprep.subr.mxu0 0.0
        %2116 = vmatpush1.msra.mxu0 0.0
        %2117 = vmatprep.mubr.f32.mxu0 0.0
        %2118 = vmatmul.mubr.f32.gmra.mrb[0].mxu0 %v534
        %v2119 = vpop.f32.mrb[0].mxu0
        %v2120 = vadd.f32 %v1978, %v2119
        %v2121 = vpop.f32.mrb[0].mxu0
        %2122 = vdwg.mxu0
        %v2123 = vmul.f32 %v2049, 0.35355338
        %2124 = vmatprep.subr.mxu0 0.0
        %2125 = vmatpush1.xpose.msra.mxu0 %v2051
        %2126 = vmatprep.subr.mxu0 0.0
        %2127 = vmatpush1.xpose.msra.mxu0 0.0
        %2128 = vmatprep.subr.mxu0 0.0
        %2129 = vmatpush1.xpose.msra.mxu0 0.0
        %2130 = vmatprep.subr.mxu0 0.0
        %2131 = vmatpush1.xpose.msra.mxu0 0.0
        %2132 = vmatprep.subr.mxu0 0.0
        %2133 = vmatpush1.xpose.msra.mxu0 0.0
        %2134 = vmatprep.subr.mxu0 0.0
        %2135 = vmatpush1.xpose.msra.mxu0 0.0
        %2136 = vmatprep.subr.mxu0 0.0
        %2137 = vmatpush1.xpose.msra.mxu0 0.0
        %2138 = vmatprep.subr.mxu0 0.0
        %2139 = vmatpush1.xpose.msra.mxu0 0.0
        %2140 = vmatprep.subr.mxu0 0.0
        %2141 = vmatpush1.xpose.msra.mxu0 0.0
        %2142 = vmatprep.subr.mxu0 0.0
        %2143 = vmatpush1.xpose.msra.mxu0 0.0
        %2144 = vmatprep.subr.mxu0 0.0
        %2145 = vmatpush1.xpose.msra.mxu0 0.0
        %2146 = vmatprep.subr.mxu0 0.0
        %2147 = vmatpush1.xpose.msra.mxu0 0.0
        %2148 = vmatprep.subr.mxu0 0.0
        %2149 = vmatpush1.xpose.msra.mxu0 0.0
        %2150 = vmatprep.subr.mxu0 0.0
        %2151 = vmatpush1.xpose.msra.mxu0 0.0
        %2152 = vmatprep.subr.mxu0 0.0
        %2153 = vmatpush1.xpose.msra.mxu0 0.0
        %2154 = vmatprep.subr.mxu0 0.0
        %2155 = vmatpush1.xpose.msra.mxu0 0.0
        %2156 = vmatprep.subr.mxu0 0.0
        %2157 = vmatpush1.xpose.msra.mxu0 0.0
        %2158 = vmatprep.subr.mxu0 0.0
        %2159 = vmatpush1.xpose.msra.mxu0 0.0
        %2160 = vmatprep.subr.mxu0 0.0
        %2161 = vmatpush1.xpose.msra.mxu0 0.0
        %2162 = vmatprep.subr.mxu0 0.0
        %2163 = vmatpush1.xpose.msra.mxu0 0.0
        %2164 = vmatprep.subr.mxu0 0.0
        %2165 = vmatpush1.xpose.msra.mxu0 0.0
        %2166 = vmatprep.subr.mxu0 0.0
        %2167 = vmatpush1.xpose.msra.mxu0 0.0
        %2168 = vmatprep.subr.mxu0 0.0
        %2169 = vmatpush1.xpose.msra.mxu0 0.0
        %2170 = vmatprep.subr.mxu0 0.0
        %2171 = vmatpush1.xpose.msra.mxu0 0.0
        %2172 = vmatprep.subr.mxu0 0.0
        %2173 = vmatpush1.xpose.msra.mxu0 0.0
        %2174 = vmatprep.subr.mxu0 0.0
        %2175 = vmatpush1.xpose.msra.mxu0 0.0
        %2176 = vmatprep.subr.mxu0 0.0
        %2177 = vmatpush1.xpose.msra.mxu0 0.0
        %2178 = vmatprep.subr.mxu0 0.0
        %2179 = vmatpush1.xpose.msra.mxu0 0.0
        %2180 = vmatprep.subr.mxu0 0.0
        %2181 = vmatpush1.xpose.msra.mxu0 0.0
        %2182 = vmatprep.subr.mxu0 0.0
        %2183 = vmatpush1.xpose.msra.mxu0 0.0
        %2184 = vmatprep.subr.mxu0 0.0
        %2185 = vmatpush1.xpose.msra.mxu0 0.0
        %2186 = vmatprep.subr.mxu0 0.0
        %2187 = vmatpush1.xpose.msra.mxu0 0.0
        %2188 = vmatprep.mubr.f32.mxu0 0.0
        %2189 = vmatmul.mubr.f32.gmra.mrb[0].mxu0 %v2123
        %v2190 = vpop.f32.mrb[0].mxu0
        %v2191 = vadd.f32 0.0, %v2190
        %v2192 = vpop.f32.mrb[0].mxu0
        %2193 = vdwg.mxu0
        %v2194 = vsel %vm820, %v2191, -inf
        %2195 = vmax.xlane.f32.xlu0 %v2194
        %v2196 = vpop.xlane.xlu0 %2195
        %v2197 = vmax.f32 %v2196, -1e+30
        %v2198 = vsub.f32 -1e+30, %v2197
        %v2199 = vmul.f32 %v2198, 1.442695
        %v2200 = vpow.pop %v2199
        %v2201 = vsub.f32 %v2191, %v2197
        %v2202 = vmul.f32 %v2201, 1.442695
        %v2203 = vpow.pop %v2202
        %v2204 = vmul.f32 %v2200, 0.0
        %v2205 = vsel %vm820, %v2203, 0.0
        %2206 = vadd.xlane.f32.xlu0 %v2205
        %v2207 = vpop.xlane.xlu0 %2206
        %v2208 = vadd.f32 %v2204, %v2207
        %v2210 = vsel %vm820, %v2203, 0
        %2212 = vmatprep.subr.mxu0 0.0
        %2213 = vmatpush1.msra.mxu0 %v2120
        %2214 = vmatprep.subr.mxu0 0.0
        %2215 = vmatpush1.msra.mxu0 0.0
        %2216 = vmatprep.subr.mxu0 0.0
        %2217 = vmatpush1.msra.mxu0 0.0
        %2218 = vmatprep.subr.mxu0 0.0
        %2219 = vmatpush1.msra.mxu0 0.0
        %2220 = vmatprep.subr.mxu0 0.0
        %2221 = vmatpush1.msra.mxu0 0.0
        %2222 = vmatprep.subr.mxu0 0.0
        %2223 = vmatpush1.msra.mxu0 0.0
        %2224 = vmatprep.subr.mxu0 0.0
        %2225 = vmatpush1.msra.mxu0 0.0
        %2226 = vmatprep.subr.mxu0 0.0
        %2227 = vmatpush1.msra.mxu0 0.0
        %2228 = vmatprep.subr.mxu0 0.0
        %2229 = vmatpush1.msra.mxu0 0.0
        %2230 = vmatprep.subr.mxu0 0.0
        %2231 = vmatpush1.msra.mxu0 0.0
        %2232 = vmatprep.subr.mxu0 0.0
        %2233 = vmatpush1.msra.mxu0 0.0
        %2234 = vmatprep.subr.mxu0 0.0
        %2235 = vmatpush1.msra.mxu0 0.0
        %2236 = vmatprep.subr.mxu0 0.0
        %2237 = vmatpush1.msra.mxu0 0.0
        %2238 = vmatprep.subr.mxu0 0.0
        %2239 = vmatpush1.msra.mxu0 0.0
        %2240 = vmatprep.subr.mxu0 0.0
        %2241 = vmatpush1.msra.mxu0 0.0
        %2242 = vmatprep.subr.mxu0 0.0
        %2243 = vmatpush1.msra.mxu0 0.0
        %2244 = vmatprep.subr.mxu0 0.0
        %2245 = vmatpush1.msra.mxu0 0.0
        %2246 = vmatprep.subr.mxu0 0.0
        %2247 = vmatpush1.msra.mxu0 0.0
        %2248 = vmatprep.subr.mxu0 0.0
        %2249 = vmatpush1.msra.mxu0 0.0
        %2250 = vmatprep.subr.mxu0 0.0
        %2251 = vmatpush1.msra.mxu0 0.0
        %2252 = vmatprep.subr.mxu0 0.0
        %2253 = vmatpush1.msra.mxu0 0.0
        %2254 = vmatprep.subr.mxu0 0.0
        %2255 = vmatpush1.msra.mxu0 0.0
        %2256 = vmatprep.subr.mxu0 0.0
        %2257 = vmatpush1.msra.mxu0 0.0
        %2258 = vmatprep.subr.mxu0 0.0
        %2259 = vmatpush1.msra.mxu0 0.0
        %2260 = vmatprep.subr.mxu0 0.0
        %2261 = vmatpush1.msra.mxu0 0.0
        %2262 = vmatprep.subr.mxu0 0.0
        %2263 = vmatpush1.msra.mxu0 0.0
        %2264 = vmatprep.subr.mxu0 0.0
        %2265 = vmatpush1.msra.mxu0 0.0
        %2266 = vmatprep.subr.mxu0 0.0
        %2267 = vmatpush1.msra.mxu0 0.0
        %2268 = vmatprep.subr.mxu0 0.0
        %2269 = vmatpush1.msra.mxu0 0.0
        %2270 = vmatprep.subr.mxu0 0.0
        %2271 = vmatpush1.msra.mxu0 0.0
        %2272 = vmatprep.subr.mxu0 0.0
        %2273 = vmatpush1.msra.mxu0 0.0
        %2274 = vmatprep.subr.mxu0 0.0
        %2275 = vmatpush1.msra.mxu0 0.0
        %2276 = vmatprep.mubr.f32.mxu0 0.0
        %2277 = vmatmul.mubr.f32.gmra.mrb[0].mxu0 %v2210
        %v2278 = vpop.f32.mrb[0].mxu0
        %v2279 = vadd.f32 0.0, %v2278
        %v2280 = vpop.f32.mrb[0].mxu0
        %2281 = vdwg.mxu0
        %v2282 = vadd.f32 %v2204, %v2279
        %v2283 = vrcp.pop %v2208
        %v2284 = vmul.f32 %v2282, %v2283
        %s2285 = scalar_lea.vmem [#allocation8], 384
        %v2286 = vld [vmem:[%s2285] sm:$0xff]
        %v2287 = vld [vmem:[%s2285 + $0x8] sm:$0xff]
        %v2288 = vld [vmem:[%s2285 + $0x10] sm:$0xff]
        %v2289 = vld [vmem:[%s2285 + $0x18] sm:$0xff]
        %v2290 = vld [vmem:[%s2285 + $0x20] sm:$0xff]
        %v2291 = vld [vmem:[%s2285 + $0x28] sm:$0xff]
        %v2292 = vld [vmem:[%s2285 + $0x30] sm:$0xff]
        %v2293 = vld [vmem:[%s2285 + $0x38] sm:$0xff]
        %v2294 = vld [vmem:[%s2285 + $0x40] sm:$0xff]
        %v2295 = vld [vmem:[%s2285 + $0x48] sm:$0xff]
        %v2296 = vld [vmem:[%s2285 + $0x50] sm:$0xff]
        %v2297 = vld [vmem:[%s2285 + $0x58] sm:$0xff]
        %v2298 = vld [vmem:[%s2285 + $0x60] sm:$0xff]
        %v2299 = vld [vmem:[%s2285 + $0x68] sm:$0xff]
        %v2300 = vld [vmem:[%s2285 + $0x70] sm:$0xff]
        %v2301 = vld [vmem:[%s2285 + $0x78] sm:$0xff]
        %2302 = vmatprep.subr.mxu0 0.0
        %2303 = vmatpush1.msra.mxu0 %v2286
        %2304 = vmatprep.subr.mxu0 0.0
        %2305 = vmatpush1.msra.mxu0 %v2287
        %2306 = vmatprep.subr.mxu0 0.0
        %2307 = vmatpush1.msra.mxu0 %v2288
        %2308 = vmatprep.subr.mxu0 0.0
        %2309 = vmatpush1.msra.mxu0 %v2289
        %2310 = vmatprep.subr.mxu0 0.0
        %2311 = vmatpush1.msra.mxu0 %v2290
        %2312 = vmatprep.subr.mxu0 0.0
        %2313 = vmatpush1.msra.mxu0 %v2291
        %2314 = vmatprep.subr.mxu0 0.0
        %2315 = vmatpush1.msra.mxu0 %v2292
        %2316 = vmatprep.subr.mxu0 0.0
        %2317 = vmatpush1.msra.mxu0 %v2293
        %2318 = vmatprep.subr.mxu0 0.0
        %2319 = vmatpush1.msra.mxu0 %v2294
        %2320 = vmatprep.subr.mxu0 0.0
        %2321 = vmatpush1.msra.mxu0 %v2295
        %2322 = vmatprep.subr.mxu0 0.0
        %2323 = vmatpush1.msra.mxu0 %v2296
        %2324 = vmatprep.subr.mxu0 0.0
        %2325 = vmatpush1.msra.mxu0 %v2297
        %2326 = vmatprep.subr.mxu0 0.0
        %2327 = vmatpush1.msra.mxu0 %v2298
        %2328 = vmatprep.subr.mxu0 0.0
        %2329 = vmatpush1.msra.mxu0 %v2299
        %2330 = vmatprep.subr.mxu0 0.0
        %2331 = vmatpush1.msra.mxu0 %v2300
        %2332 = vmatprep.subr.mxu0 0.0
        %2333 = vmatpush1.msra.mxu0 %v2301
        %2334 = vmatprep.subr.mxu0 0.0
        %2335 = vmatpush1.msra.mxu0 0.0
        %2336 = vmatprep.subr.mxu0 0.0
        %2337 = vmatpush1.msra.mxu0 0.0
        %2338 = vmatprep.subr.mxu0 0.0
        %2339 = vmatpush1.msra.mxu0 0.0
        %2340 = vmatprep.subr.mxu0 0.0
        %2341 = vmatpush1.msra.mxu0 0.0
        %2342 = vmatprep.subr.mxu0 0.0
        %2343 = vmatpush1.msra.mxu0 0.0
        %2344 = vmatprep.subr.mxu0 0.0
        %2345 = vmatpush1.msra.mxu0 0.0
        %2346 = vmatprep.subr.mxu0 0.0
        %2347 = vmatpush1.msra.mxu0 0.0
        %2348 = vmatprep.subr.mxu0 0.0
        %2349 = vmatpush1.msra.mxu0 0.0
        %2350 = vmatprep.subr.mxu0 0.0
        %2351 = vmatpush1.msra.mxu0 0.0
        %2352 = vmatprep.subr.mxu0 0.0
        %2353 = vmatpush1.msra.mxu0 0.0
        %2354 = vmatprep.subr.mxu0 0.0
        %2355 = vmatpush1.msra.mxu0 0.0
        %2356 = vmatprep.subr.mxu0 0.0
        %2357 = vmatpush1.msra.mxu0 0.0
        %2358 = vmatprep.subr.mxu0 0.0
        %2359 = vmatpush1.msra.mxu0 0.0
        %2360 = vmatprep.subr.mxu0 0.0
        %2361 = vmatpush1.msra.mxu0 0.0
        %2362 = vmatprep.subr.mxu0 0.0
        %2363 = vmatpush1.msra.mxu0 0.0
        %2364 = vmatprep.subr.mxu0 0.0
        %2365 = vmatpush1.msra.mxu0 0.0
        %2366 = vmatprep.mubr.f32.mxu0 0.0
        %2367 = vmatmul.mubr.f32.gmra.mrb[0].mxu0 %v2284
        %v2368 = vpop.f32.mrb[0].mxu0
        %v2369 = vadd.f32 0.0, %v2368
        %v2370 = vpop.f32.mrb[0].mxu0
        %2371 = vdwg.mxu0
        %v2372 = vadd.f32 %v1914, %v2369
        %v2373 = vadd.f32 %v534, %v2372
        %v2374 = vld [vmem:[%s5] sm:$0x1]
        %v2375 = vld [vmem:[%s6] sm:$0x1]
        %2376 = vadd.xlane.f32.xlu0 %v2373
        %v2377 = vpop.xlane.xlu0 %2376
        %v2378 = vmul.f32 %v2377, 0.03125
        %v2379 = vsub.f32 %v2373, %v2378
        %v2380 = vmul.f32 %v2379, %v533
        %v2381 = vmul.f32 %v2380, %v2380
        %2382 = vadd.xlane.f32.xlu0 %v2381
        %v2383 = vpop.xlane.xlu0 %2382
        %v2384 = vmul.f32 %v2383, 0.03125
        %v2385 = vadd.f32 %v2384, 1e-05
        %v2386 = vrsqrt.pop %v2385
        %v2387 = vmul.f32 %v2380, %v2386
        %v2389 = vlaneseq
        %v2390 = vshrl.u32 %v2389, 7
        %v2391 = vsub.s32 0, %v2390
        %v2392 = vrot.slane %v2374, %v2391
        %v2394 = vmul.f32 %v2387, %v2392
        %v2396 = vlaneseq
        %v2397 = vshrl.u32 %v2396, 7
        %v2398 = vsub.s32 0, %v2397
        %v2399 = vrot.slane %v2375, %v2398
        %v2401 = vadd.f32 %v2394, %v2399
        %v2402 = vld [vmem:[#allocation10] sm:$0xff]
        %v2403 = vld [vmem:[#allocation10 + $0x8] sm:$0xff]
        %v2404 = vld [vmem:[#allocation10 + $0x10] sm:$0xff]
        %v2405 = vld [vmem:[#allocation10 + $0x18] sm:$0xff]
        %v2406 = vld [vmem:[#allocation10 + $0x20] sm:$0xff]
        %v2407 = vld [vmem:[#allocation10 + $0x28] sm:$0xff]
        %v2408 = vld [vmem:[#allocation10 + $0x30] sm:$0xff]
        %v2409 = vld [vmem:[#allocation10 + $0x38] sm:$0xff]
        %v2410 = vld [vmem:[#allocation10 + $0x40] sm:$0xff]
        %v2411 = vld [vmem:[#allocation10 + $0x48] sm:$0xff]
        %v2412 = vld [vmem:[#allocation10 + $0x50] sm:$0xff]
        %v2413 = vld [vmem:[#allocation10 + $0x58] sm:$0xff]
        %v2414 = vld [vmem:[#allocation10 + $0x60] sm:$0xff]
        %v2415 = vld [vmem:[#allocation10 + $0x68] sm:$0xff]
        %v2416 = vld [vmem:[#allocation10 + $0x70] sm:$0xff]
        %v2417 = vld [vmem:[#allocation10 + $0x78] sm:$0xff]
        %v2418 = vld [vmem:[%s8] sm:$0x1]
        %v2420 = vlaneseq
        %v2421 = vshrl.u32 %v2420, 7
        %v2422 = vsub.s32 0, %v2421
        %v2423 = vrot.slane %v2418, %v2422
        %2425 = vmatprep.subr.mxu0 0.0
        %2426 = vmatpush1.msra.mxu0 %v2402
        %2427 = vmatprep.subr.mxu0 0.0
        %2428 = vmatpush1.msra.mxu0 %v2403
        %2429 = vmatprep.subr.mxu0 0.0
        %2430 = vmatpush1.msra.mxu0 %v2404
        %2431 = vmatprep.subr.mxu0 0.0
        %2432 = vmatpush1.msra.mxu0 %v2405
        %2433 = vmatprep.subr.mxu0 0.0
        %2434 = vmatpush1.msra.mxu0 %v2406
        %2435 = vmatprep.subr.mxu0 0.0
        %2436 = vmatpush1.msra.mxu0 %v2407
        %2437 = vmatprep.subr.mxu0 0.0
        %2438 = vmatpush1.msra.mxu0 %v2408
        %2439 = vmatprep.subr.mxu0 0.0
        %2440 = vmatpush1.msra.mxu0 %v2409
        %2441 = vmatprep.subr.mxu0 0.0
        %2442 = vmatpush1.msra.mxu0 %v2410
        %2443 = vmatprep.subr.mxu0 0.0
        %2444 = vmatpush1.msra.mxu0 %v2411
        %2445 = vmatprep.subr.mxu0 0.0
        %2446 = vmatpush1.msra.mxu0 %v2412
        %2447 = vmatprep.subr.mxu0 0.0
        %2448 = vmatpush1.msra.mxu0 %v2413
        %2449 = vmatprep.subr.mxu0 0.0
        %2450 = vmatpush1.msra.mxu0 %v2414
        %2451 = vmatprep.subr.mxu0 0.0
        %2452 = vmatpush1.msra.mxu0 %v2415
        %2453 = vmatprep.subr.mxu0 0.0
        %2454 = vmatpush1.msra.mxu0 %v2416
        %2455 = vmatprep.subr.mxu0 0.0
        %2456 = vmatpush1.msra.mxu0 %v2417
        %2457 = vmatprep.subr.mxu0 0.0
        %2458 = vmatpush1.msra.mxu0 0.0
        %2459 = vmatprep.subr.mxu0 0.0
        %2460 = vmatpush1.msra.mxu0 0.0
        %2461 = vmatprep.subr.mxu0 0.0
        %2462 = vmatpush1.msra.mxu0 0.0
        %2463 = vmatprep.subr.mxu0 0.0
        %2464 = vmatpush1.msra.mxu0 0.0
        %2465 = vmatprep.subr.mxu0 0.0
        %2466 = vmatpush1.msra.mxu0 0.0
        %2467 = vmatprep.subr.mxu0 0.0
        %2468 = vmatpush1.msra.mxu0 0.0
        %2469 = vmatprep.subr.mxu0 0.0
        %2470 = vmatpush1.msra.mxu0 0.0
        %2471 = vmatprep.subr.mxu0 0.0
        %2472 = vmatpush1.msra.mxu0 0.0
        %2473 = vmatprep.subr.mxu0 0.0
        %2474 = vmatpush1.msra.mxu0 0.0
        %2475 = vmatprep.subr.mxu0 0.0
        %2476 = vmatpush1.msra.mxu0 0.0
        %2477 = vmatprep.subr.mxu0 0.0
        %2478 = vmatpush1.msra.mxu0 0.0
        %2479 = vmatprep.subr.mxu0 0.0
        %2480 = vmatpush1.msra.mxu0 0.0
        %2481 = vmatprep.subr.mxu0 0.0
        %2482 = vmatpush1.msra.mxu0 0.0
        %2483 = vmatprep.subr.mxu0 0.0
        %2484 = vmatpush1.msra.mxu0 0.0
        %2485 = vmatprep.subr.mxu0 0.0
        %2486 = vmatpush1.msra.mxu0 0.0
        %2487 = vmatprep.subr.mxu0 0.0
        %2488 = vmatpush1.msra.mxu0 0.0
        %2489 = vmatprep.mubr.f32.mxu0 0.0
        %2490 = vmatmul.mubr.f32.gmra.mrb[0].mxu0 %v2401
        %v2491 = vpop.f32.mrb[0].mxu0
        %v2492 = vadd.f32 %v2423, %v2491
        %v2493 = vpop.f32.mrb[0].mxu0
        %2494 = vdwg.mxu0
        %v2495 = vmax.f32 %v2492, 0.0
        %v2496 = vld [vmem:[#allocation11] sm:$0xff]
        %v2497 = vld [vmem:[#allocation11 + $0x8] sm:$0xff]
        %v2498 = vld [vmem:[#allocation11 + $0x10] sm:$0xff]
        %v2499 = vld [vmem:[#allocation11 + $0x18] sm:$0xff]
        %v2500 = vld [vmem:[#allocation11 + $0x20] sm:$0xff]
        %v2501 = vld [vmem:[#allocation11 + $0x28] sm:$0xff]
        %v2502 = vld [vmem:[#allocation11 + $0x30] sm:$0xff]
        %v2503 = vld [vmem:[#allocation11 + $0x38] sm:$0xff]
        %v2504 = vld [vmem:[#allocation11 + $0x40] sm:$0xff]
        %v2505 = vld [vmem:[#allocation11 + $0x48] sm:$0xff]
        %v2506 = vld [vmem:[#allocation11 + $0x50] sm:$0xff]
        %v2507 = vld [vmem:[#allocation11 + $0x58] sm:$0xff]
        %v2508 = vld [vmem:[#allocation11 + $0x60] sm:$0xff]
        %v2509 = vld [vmem:[#allocation11 + $0x68] sm:$0xff]
        %v2510 = vld [vmem:[#allocation11 + $0x70] sm:$0xff]
        %v2511 = vld [vmem:[#allocation11 + $0x78] sm:$0xff]
        %v2512 = vld [vmem:[%s10] sm:$0x1]
        %v2514 = vlaneseq
        %v2515 = vshrl.u32 %v2514, 7
        %v2516 = vsub.s32 0, %v2515
        %v2517 = vrot.slane %v2512, %v2516
        %2519 = vmatprep.subr.mxu0 0.0
        %2520 = vmatpush1.msra.mxu0 %v2496
        %2521 = vmatprep.subr.mxu0 0.0
        %2522 = vmatpush1.msra.mxu0 %v2497
        %2523 = vmatprep.subr.mxu0 0.0
        %2524 = vmatpush1.msra.mxu0 %v2498
        %2525 = vmatprep.subr.mxu0 0.0
        %2526 = vmatpush1.msra.mxu0 %v2499
        %2527 = vmatprep.subr.mxu0 0.0
        %2528 = vmatpush1.msra.mxu0 %v2500
        %2529 = vmatprep.subr.mxu0 0.0
        %2530 = vmatpush1.msra.mxu0 %v2501
        %2531 = vmatprep.subr.mxu0 0.0
        %2532 = vmatpush1.msra.mxu0 %v2502
        %2533 = vmatprep.subr.mxu0 0.0
        %2534 = vmatpush1.msra.mxu0 %v2503
        %2535 = vmatprep.subr.mxu0 0.0
        %2536 = vmatpush1.msra.mxu0 %v2504
        %2537 = vmatprep.subr.mxu0 0.0
        %2538 = vmatpush1.msra.mxu0 %v2505
        %2539 = vmatprep.subr.mxu0 0.0
        %2540 = vmatpush1.msra.mxu0 %v2506
        %2541 = vmatprep.subr.mxu0 0.0
        %2542 = vmatpush1.msra.mxu0 %v2507
        %2543 = vmatprep.subr.mxu0 0.0
        %2544 = vmatpush1.msra.mxu0 %v2508
        %2545 = vmatprep.subr.mxu0 0.0
        %2546 = vmatpush1.msra.mxu0 %v2509
        %2547 = vmatprep.subr.mxu0 0.0
        %2548 = vmatpush1.msra.mxu0 %v2510
        %2549 = vmatprep.subr.mxu0 0.0
        %2550 = vmatpush1.msra.mxu0 %v2511
        %2551 = vmatprep.subr.mxu0 0.0
        %2552 = vmatpush1.msra.mxu0 0.0
        %2553 = vmatprep.subr.mxu0 0.0
        %2554 = vmatpush1.msra.mxu0 0.0
        %2555 = vmatprep.subr.mxu0 0.0
        %2556 = vmatpush1.msra.mxu0 0.0
        %2557 = vmatprep.subr.mxu0 0.0
        %2558 = vmatpush1.msra.mxu0 0.0
        %2559 = vmatprep.subr.mxu0 0.0
        %2560 = vmatpush1.msra.mxu0 0.0
        %2561 = vmatprep.subr.mxu0 0.0
        %2562 = vmatpush1.msra.mxu0 0.0
        %2563 = vmatprep.subr.mxu0 0.0
        %2564 = vmatpush1.msra.mxu0 0.0
        %2565 = vmatprep.subr.mxu0 0.0
        %2566 = vmatpush1.msra.mxu0 0.0
        %2567 = vmatprep.subr.mxu0 0.0
        %2568 = vmatpush1.msra.mxu0 0.0
        %2569 = vmatprep.subr.mxu0 0.0
        %2570 = vmatpush1.msra.mxu0 0.0
        %2571 = vmatprep.subr.mxu0 0.0
        %2572 = vmatpush1.msra.mxu0 0.0
        %2573 = vmatprep.subr.mxu0 0.0
        %2574 = vmatpush1.msra.mxu0 0.0
        %2575 = vmatprep.subr.mxu0 0.0
        %2576 = vmatpush1.msra.mxu0 0.0
        %2577 = vmatprep.subr.mxu0 0.0
        %2578 = vmatpush1.msra.mxu0 0.0
        %2579 = vmatprep.subr.mxu0 0.0
        %2580 = vmatpush1.msra.mxu0 0.0
        %2581 = vmatprep.subr.mxu0 0.0
        %2582 = vmatpush1.msra.mxu0 0.0
        %2583 = vmatprep.mubr.f32.mxu0 0.0
        %2584 = vmatmul.mubr.f32.gmra.mrb[0].mxu0 %v2495
        %v2585 = vpop.f32.mrb[0].mxu0
        %v2586 = vadd.f32 %v2517, %v2585
        %v2587 = vpop.f32.mrb[0].mxu0
        %2588 = vdwg.mxu0
        %v2589 = vadd.f32 %v2401, %v2586
        %v2590 = vld [vmem:[%s11] sm:$0x1]
        %v2591 = vld [vmem:[%s12] sm:$0x1]
        %2592 = vadd.xlane.f32.xlu0 %v2589
        %v2593 = vpop.xlane.xlu0 %2592
        %v2594 = vmul.f32 %v2593, 0.03125
        %v2595 = vsub.f32 %v2589, %v2594
        %v2596 = vmul.f32 %v2595, %v533
        %v2597 = vmul.f32 %v2596, %v2596
        %2598 = vadd.xlane.f32.xlu0 %v2597
        %v2599 = vpop.xlane.xlu0 %2598
        %v2600 = vmul.f32 %v2599, 0.03125
        %v2601 = vadd.f32 %v2600, 1e-05
        %v2602 = vrsqrt.pop %v2601
        %v2603 = vmul.f32 %v2596, %v2602
        %v2605 = vlaneseq
        %v2606 = vshrl.u32 %v2605, 7
        %v2607 = vsub.s32 0, %v2606
        %v2608 = vrot.slane %v2590, %v2607
        %v2610 = vmul.f32 %v2603, %v2608
        %v2612 = vlaneseq
        %v2613 = vshrl.u32 %v2612, 7
        %v2614 = vsub.s32 0, %v2613
        %v2615 = vrot.slane %v2591, %v2614
        %v2617 = vadd.f32 %v2610, %v2615
        %2618 = vst [vmem:[%s528] sm:$0xff] %v2617
        %s2619 = sand.u32 %s319, 1
        %s2620 = scalar_lea.sflag [#allocation4], %s2619
        %s2621 = sand.u32 %s319, 1
        %s2622 = smul.addr %s2621, 8
        %s2623 = scalar_lea.vmem [#allocation13], %s2622
        // Predicated region
        $region97: #{tpu_custom_call.1} parent=71 // pred_check
          %p2624 = pneg %p329
        $region98: #{tpu_custom_call.1} parent=71 // pred_check_branch
          %2626 = sbr.rel (%p2624) target = $region100
        $region99: #{tpu_custom_call.1} parent=71 // pred_region
          %s2628 = ssub.s32 128, 128
          %2629 = vsyncadd %s2620, %s2628
          %s2630 = smul.addr %s33, 128
          %s2631 = scalar_lea.hbm %s13, %s2630
          %s2633 = sshll.u32 %s2623, 4
          %s2634 = int_to_ptr.vmem [resolvable:$true] %s2633
          %2636 = dma.vmem_to_hbm [thread:$0]  %s2634, 128, %s2631, %s2620
        $region100: #{tpu_custom_call.1} parent=71 // pred_fallthru
          _
      $region72: #{tpu_custom_call.1} parent=5 // pred_fallthru
        _
      %p2637 = scmp.le.s32.totalorder 2, %s28
      // Predicated region
      $region101: #{tpu_custom_call.1} parent=5 // pred_check
        %p2638 = pneg %p2637
      $region102: #{tpu_custom_call.1} parent=5 // pred_check_branch
        %2640 = sbr.rel (%p2638) target = $region104
      $region103: #{tpu_custom_call.1} parent=5 // pred_region
        %s2641 = ssub.s32 %s28, 2
        // Predicated region
        $region105: #{tpu_custom_call.1} parent=103 // pred_check
          %p2642 = pneg %p335
        $region106: #{tpu_custom_call.1} parent=103 // pred_check_branch
          %2644 = sbr.rel (%p2642) target = $region108
        $region107: #{tpu_custom_call.1} parent=103 // pred_region
          %s2645 = sand.u32 %s320, 1
          %s2646 = scalar_lea.sflag [#allocation4], %s2645
          %s2647 = sand.u32 %s320, 1
          %s2648 = smul.addr %s2647, 8
          %s2649 = scalar_lea.vmem [#allocation13], %s2648
          %2650 = dma.done %s2646, 128
        $region108: #{tpu_custom_call.1} parent=103 // pred_fallthru
          _
      $region104: #{tpu_custom_call.1} parent=5 // pred_fallthru
        _
    $region6: #{tpu_custom_call.1} parent=1 // loop_footer
      %s32 = sadd.s32 1, %s28
    $region7: #{tpu_custom_call.1} parent=1 // loop_footer_branch
      %27 = sbr.rel target = $region3
    $region8: #{tpu_custom_call.1} parent=1 // loop_exit
      _
    %2651 = vsyncpa [#allocation3], 1
    %s2652 = scalar_lea.sflag [#allocation3], 1
    %2653 = vsyncpa %s2652, 1
    %2654 = vsyncpa [#allocation6], 1
    %2655 = vsyncpa [#allocation9], 1
    %2656 = vsyncpa [#allocation12], 1
    %2657 = vsyncpa [#allocation4], 1
    %s2658 = scalar_lea.sflag [#allocation4], 1
    %2659 = vsyncpa %s2658, 1

</llo_original>
